<compile_context>
chip_gen: v7x
topology: tpu7x:2x2x1
jax: 0.10.0
libtpu: 0.0.40
codegen_flags: <defaults>
</compile_context>

<pallas_src>
import math

import numpy as np
import jax
import jax.numpy as jnp
from jax import lax
from jax.experimental import pallas as pl
from jax.experimental.pallas import tpu as pltpu


# ----------------------------- Pallas kernel --------------------------------


def bilstm_embed_kernel(xb_ref, w_in_ref, w_rec_ref, b_ref, pe_ref, out_ref,
                        gates_scr):
    """Fused bidirectional LSTM over the token axis + positional-embedding add.

    xb_ref:    (T, B, 2C)  time-major tokens; lanes [0:C] = x(t), [C:2C] = x(T-1-t)
    w_in_ref:  (2C, 8H)    block-diag input->gate weights, interleaved gate columns
    w_rec_ref: (2H, 8H)    block-diag hidden->gate weights, interleaved gate columns
    b_ref:     (1, 8H)     fused bias (b_ih + b_hh), interleaved gate columns
    pe_ref:    (T, B, 2H)  positional embedding * position_weight (pre-broadcast)
    out_ref:   (T, B, 2H)  [h_fwd | h_bwd] + pe
    gates_scr: (T, B, 8H)  per-step input-gate projections for both directions
    """
    T, B, _ = xb_ref.shape
    H2 = out_ref.shape[-1]            # 2H (fused fwd|bwd width)
    H = H2 // 2

    # One fused input projection for every step and both directions (single MXU
    # dispatch pattern, off the sequential critical path).  Because the lane
    # half [C:2C] of xb holds the time-reversed tokens, gates_scr[t] contains
    # [fwd gates for token t | bwd gates for backward-step t] in one 8H tile.
    gates_scr[...] = (
        jnp.einsum('tbc,cg->tbg', xb_ref[...], w_in_ref[...],
                   preferred_element_type=jnp.float32) + b_ref[...])

    w_rec = w_rec_ref[...]

    h_cat = jnp.zeros((B, H2), jnp.float32)   # [h_fwd | h_bwd]
    c_cat = jnp.zeros((B, H2), jnp.float32)   # [c_fwd | c_bwd]

    # Fully unrolled recurrence (T is small and static): static leading-axis
    # scratch indexing, one MXU push + 2 sigmoid/tanh slices + 1 tanh per step.
    for t in range(T):
        g = gates_scr[t] + jnp.dot(h_cat, w_rec,
                                   preferred_element_type=jnp.float32)   # (B, 8H)
        ifo = jax.nn.sigmoid(g[:, 0:3 * H2])     # [i_f i_b | f_f f_b | o_f o_b]
        i_cat = ifo[:, 0:H2]
        f_cat = ifo[:, H2:2 * H2]
        o_cat = ifo[:, 2 * H2:3 * H2]
        g_cat = jnp.tanh(g[:, 3 * H2:4 * H2])    # [g_f | g_b]
        c_cat = f_cat * c_cat + i_cat * g_cat
        h_cat = o_cat * jnp.tanh(c_cat)
        # forward half -> output position t, backward half -> position T-1-t
        out_ref[t, :, 0:H] = h_cat[:, 0:H]
        out_ref[T - 1 - t, :, H:H2] = h_cat[:, H:H2]

    # Positional embedding add (out_ref fully written above).
    out_ref[...] = (out_ref[...] + pe_ref[...]).astype(out_ref.dtype)


# ------------------------- host-side parameter fusion -----------------------


def build_fused_params(params, H):
    """Fuse both directions into block-diagonal, gate-interleaved weights.

    Gate column order of the fused (…, 8H) arrays:
      [i_f, i_b, f_f, f_b, o_f, o_b, g_f, g_b]   (each block H wide)
    Per-direction inputs are in PyTorch (i, f, g, o) column order.
    """
    def interleave(wf, wb):
        def split(w):
            return (w[..., 0:H], w[..., H:2 * H],
                    w[..., 2 * H:3 * H], w[..., 3 * H:4 * H])
        i_f, f_f, g_f, o_f = split(wf)
        i_b, f_b, g_b, o_b = split(wb)
        return jnp.concatenate([i_f, i_b, f_f, f_b, o_f, o_b, g_f, g_b], axis=-1)

    wih_f, wih_b = params['wih_f'], params['wih_b']
    whh_f, whh_b = params['whh_f'], params['whh_b']
    zc = jnp.zeros_like(wih_f)                         # (C, 4H)
    zh = jnp.zeros_like(whh_f)                         # (H, 4H)
    w_in = interleave(jnp.concatenate([wih_f, zc], axis=0),
                      jnp.concatenate([zc, wih_b], axis=0))    # (2C, 8H)
    w_rec = interleave(jnp.concatenate([whh_f, zh], axis=0),
                       jnp.concatenate([zh, whh_b], axis=0))   # (2H, 8H)
    b = interleave(params['b_f'], params['b_b'])               # (1, 8H)
    return w_in, w_rec, b


def data_embedding_inverted_bilstm(xt, params, pe):
    """xt: (B, T, C) inverted tokens; pe: (T, 2H). Returns (B, T, 2H) float32."""
    B, T, C = xt.shape
    H = params['whh_f'].shape[0]
    D = 2 * H

    w_in, w_rec, b = build_fused_params(params, H)

    # Layout plumbing only (no compute hoisted): time-major input with the
    # time-reversed copy along the lane axis, and a pre-broadcast PE table.
    x_tm = jnp.transpose(xt, (1, 0, 2))                        # (T, B, C)
    x_both = jnp.concatenate([x_tm, x_tm[::-1]], axis=-1)      # (T, B, 2C)
    pe_tb = jnp.broadcast_to(pe[:, None, :], (T, B, D))        # (T, B, D)

    vmem = lambda: pl.BlockSpec(memory_space=pltpu.MemorySpace.VMEM)

    out_tm = pl.pallas_call(
        bilstm_embed_kernel,
        out_shape=jax.ShapeDtypeStruct((T, B, D), jnp.float32),
        in_specs=[vmem() for _ in range(5)],
        out_specs=vmem(),
        scratch_shapes=[
            pltpu.VMEM((T, B, 8 * H), jnp.float32),   # fused per-step gate projections
        ],
    )(x_both, w_in, w_rec, b, pe_tb)

    return jnp.transpose(out_tm, (1, 0, 2))                    # (B, T, D)


# ------------------------- parameter construction ---------------------------


def init_position_embedding(d_model):
    """Exact replica of _init_position_embedding (sin/cos table, 9 positions)."""
    index_order = [[2, 1, 2], [1, 0, 1], [2, 1, 2]]
    pe = np.zeros((9, d_model), dtype=np.float32)
    for i in range(3):
        for j in range(3):
            pos_val = index_order[i][j] * d_model // 2 + 1
            pos = i * 3 + j
            for k in range(d_model // 2):
                pe[pos, 2 * k] = math.sin(pos_val / 10000 ** (2 * k / d_model))
                pe[pos, 2 * k + 1] = math.cos(pos_val / 10000 ** (2 * k / d_model))
    return jnp.asarray(pe)


def init_lstm_params(key, c_in, hidden):
    """Deterministic init matching PyTorch LSTM shapes (uniform(-1/sqrt(H), 1/sqrt(H)))."""
    bound = 1.0 / math.sqrt(hidden)
    ks = jax.random.split(key, 8)
    u = lambda k, shape: jax.random.uniform(k, shape, jnp.float32, -bound, bound)
    params = {
        # stored transposed for right-multiplication: (C, 4H), (H, 4H); gate order (i,f,g,o)
        'wih_f': u(ks[0], (c_in, 4 * hidden)),
        'whh_f': u(ks[1], (hidden, 4 * hidden)),
        'b_f':   (u(ks[2], (1, 4 * hidden)) + u(ks[3], (1, 4 * hidden))),
        'wih_b': u(ks[4], (c_in, 4 * hidden)),
        'whh_b': u(ks[5], (hidden, 4 * hidden)),
        'b_b':   (u(ks[6], (1, 4 * hidden)) + u(ks[7], (1, 4 * hidden))),
    }
    return params


# ---------------------------- pure-JAX reference ----------------------------


def _lstm_direction_ref(xt, wih, whh, b):
    B, T, C = xt.shape
    H = whh.shape[0]
    gates = jnp.einsum('btc,cg->btg', xt, wih) + b

    def step(carry, g):
        h, c = carry
        g = g + h @ whh
        i = jax.nn.sigmoid(g[:, 0:H])
        f = jax.nn.sigmoid(g[:, H:2 * H])
        gg = jnp.tanh(g[:, 2 * H:3 * H])
        o = jax.nn.sigmoid(g[:, 3 * H:4 * H])
        c = f * c + i * gg
        h = o * jnp.tanh(c)
        return (h, c), h

    init = (jnp.zeros((B, H), jnp.float32), jnp.zeros((B, H), jnp.float32))
    _, hs = lax.scan(step, init, jnp.swapaxes(gates, 0, 1))
    return jnp.swapaxes(hs, 0, 1)  # (B, T, H)


def reference(xt, params, pe):
    hf = _lstm_direction_ref(xt, params['wih_f'], params['whh_f'], params['b_f'])
    hb = _lstm_direction_ref(xt[:, ::-1, :], params['wih_b'], params['whh_b'],
                             params['b_b'])[:, ::-1, :]
    return jnp.concatenate([hf, hb], axis=-1) + pe


# ----------------------------------- main ------------------------------------


if __name__ == "__main__":
    # Module config (small, but consistent with the forward's hard requirement
    # of 37 tokens for the positional-embedding branch).
    B = 2            # batch
    L = 8            # seq_len == c_in (LSTM feature size after the permute)
    N_VARS = 30      # number of variates
    N_MARK = 7       # time-mark features; N_VARS + N_MARK == 37 tokens
    D_MODEL = 32
    H = D_MODEL // 2

    key = jax.random.PRNGKey(0)
    k_x, k_m, k_p = jax.random.split(key, 3)

    x = jax.random.normal(k_x, (B, L, N_VARS), jnp.float32)
    x_mark = jax.random.normal(k_m, (B, L, N_MARK), jnp.float32)

    # glue: x.permute(0,2,1) ++ x_mark.permute(0,2,1) along token axis
    xt = jnp.concatenate(
        [jnp.transpose(x, (0, 2, 1)), jnp.transpose(x_mark, (0, 2, 1))], axis=1)
    assert xt.shape == (B, 37, L)

    params = init_lstm_params(k_p, L, H)

    # positional embedding: repeat 4x + row 4, scale by position_weight (ones at init)
    pe9 = init_position_embedding(D_MODEL)                          # (9, D)
    position_weight = jnp.ones((1, 37, D_MODEL), jnp.float32)
    pe37 = jnp.concatenate([pe9, pe9, pe9, pe9, pe9[4:5]], axis=0)  # (37, D)
    pe = pe37 * position_weight[0]                                  # (37, D)

    out = data_embedding_inverted_bilstm(xt, params, pe)
    out = jax.block_until_ready(out)

    ref = jax.block_until_ready(reference(xt, params, pe))
    assert out.shape == (B, 37, D_MODEL)
    assert jnp.allclose(out, ref, atol=1e-4, rtol=1e-4), \
        f"max abs err {jnp.max(jnp.abs(out - ref))}"

    print("KERNEL_OK")
</pallas_src>

<mosaic_0001>
module attributes {stable_mosaic.version = 11 : i64} {
  func.func @bilstm_embed_kernel(%arg0: memref<37x2x16xf32, #tpu.memory_space<vmem>>, %arg1: memref<16x128xf32, #tpu.memory_space<vmem>>, %arg2: memref<32x128xf32, #tpu.memory_space<vmem>>, %arg3: memref<1x128xf32, #tpu.memory_space<vmem>>, %arg4: memref<37x2x32xf32, #tpu.memory_space<vmem>>, %arg5: memref<37x2x32xf32, #tpu.memory_space<vmem>>, %arg6: memref<37x2x128xf32, #tpu.memory_space<vmem>>) attributes {dimension_semantics = [], scalar_prefetch = 0 : i64, scratch_operands = 1 : i64, tpu.core_type = #tpu.core_type<tc>} {
    %c0 = arith.constant 0 : index
    %c0_0 = arith.constant 0 : index
    %c0_1 = arith.constant 0 : index
    %0 = vector.load %arg0[%c0, %c0_0, %c0_1] : memref<37x2x16xf32, #tpu.memory_space<vmem>>, vector<37x2x16xf32>
    %c0_2 = arith.constant 0 : index
    %c0_3 = arith.constant 0 : index
    %1 = vector.load %arg1[%c0_2, %c0_3] : memref<16x128xf32, #tpu.memory_space<vmem>>, vector<16x128xf32>
    "tpu.trace_start"() <{level = 10 : i32, message = "tbc,cg->tbg"}> : () -> ()
    %cst = arith.constant dense<0.000000e+00> : vector<37x2x128xf32>
    %2 = tpu.matmul %0, %1, %cst {dimension_numbers = #tpu.dot_dimension_numbers<[2], [0], [0, 1], [1], [0, 0, 0, 1, 1, 1], [], []>} : vector<37x2x16xf32>, vector<16x128xf32>, vector<37x2x128xf32> -> vector<37x2x128xf32>
    "tpu.trace_stop"() : () -> ()
    %c0_4 = arith.constant 0 : index
    %c0_5 = arith.constant 0 : index
    %3 = vector.load %arg3[%c0_4, %c0_5] : memref<1x128xf32, #tpu.memory_space<vmem>>, vector<1x128xf32>
    %4 = vector.shape_cast %3 : vector<1x128xf32> to vector<1x1x128xf32>
    %5 = vector.broadcast %4 : vector<1x1x128xf32> to vector<37x2x128xf32>
    %6 = arith.addf %2, %5 : vector<37x2x128xf32>
    %c0_6 = arith.constant 0 : index
    %c0_7 = arith.constant 0 : index
    %c0_8 = arith.constant 0 : index
    %7 = vector.load %arg6[%c0_6, %c0_7, %c0_8] : memref<37x2x128xf32, #tpu.memory_space<vmem>>, vector<37x2x128xf32>
    tpu.vector_store %arg6[%c0_6, %c0_7, %c0_8], %6 {strides = array<i32>} : memref<37x2x128xf32, #tpu.memory_space<vmem>>, vector<37x2x128xf32>,
    %c0_9 = arith.constant 0 : index
    %c0_10 = arith.constant 0 : index
    %8 = vector.load %arg2[%c0_9, %c0_10] : memref<32x128xf32, #tpu.memory_space<vmem>>, vector<32x128xf32>
    %cst_11 = arith.constant 0.000000e+00 : f32
    %9 = vector.broadcast %cst_11 : f32 to vector<2x32xf32>
    %cst_12 = arith.constant 0.000000e+00 : f32
    %10 = vector.broadcast %cst_12 : f32 to vector<2x32xf32>
    %c0_13 = arith.constant 0 : index
    %c0_14 = arith.constant 0 : index
    %c0_15 = arith.constant 0 : index
    %11 = vector.load %arg6[%c0_13, %c0_14, %c0_15] : memref<37x2x128xf32, #tpu.memory_space<vmem>>, vector<1x2x128xf32>
    %12 = vector.shape_cast %11 : vector<1x2x128xf32> to vector<2x128xf32>
    %cst_16 = arith.constant dense<0.000000e+00> : vector<2x128xf32>
    %13 = tpu.matmul %9, %8, %cst_16 {dimension_numbers = #tpu.dot_dimension_numbers<[1], [0], [0], [1], [0, 0, 1, 1], [], []>} : vector<2x32xf32>, vector<32x128xf32>, vector<2x128xf32> -> vector<2x128xf32>
    %14 = arith.addf %12, %13 : vector<2x128xf32>
    %15 = vector.extract_strided_slice %14 {offsets = [0, 0], sizes = [2, 96], strides = [1, 1]} : vector<2x128xf32> to vector<2x96xf32>
    %16 = arith.negf %15 : vector<2x96xf32>
    %17 = math.exp %16 : vector<2x96xf32>
    %cst_17 = arith.constant 1.000000e+00 : f32
    %18 = vector.broadcast %cst_17 : f32 to vector<2x96xf32>
    %19 = arith.addf %18, %17 : vector<2x96xf32>
    %20 = arith.divf %18, %19 : vector<2x96xf32>
    %21 = vector.extract_strided_slice %20 {offsets = [0, 0], sizes = [2, 32], strides = [1, 1]} : vector<2x96xf32> to vector<2x32xf32>
    %22 = vector.extract_strided_slice %20 {offsets = [0, 32], sizes = [2, 32], strides = [1, 1]} : vector<2x96xf32> to vector<2x32xf32>
    %23 = vector.extract_strided_slice %20 {offsets = [0, 64], sizes = [2, 32], strides = [1, 1]} : vector<2x96xf32> to vector<2x32xf32>
    %24 = vector.extract_strided_slice %14 {offsets = [0, 96], sizes = [2, 32], strides = [1, 1]} : vector<2x128xf32> to vector<2x32xf32>
    %25 = math.tanh %24 : vector<2x32xf32>
    %26 = arith.mulf %22, %10 : vector<2x32xf32>
    %27 = arith.mulf %21, %25 : vector<2x32xf32>
    %28 = arith.addf %26, %27 : vector<2x32xf32>
    %29 = math.tanh %28 : vector<2x32xf32>
    %30 = arith.mulf %23, %29 : vector<2x32xf32>
    %31 = vector.extract_strided_slice %30 {offsets = [0, 0], sizes = [2, 16], strides = [1, 1]} : vector<2x32xf32> to vector<2x16xf32>
    %c0_18 = arith.constant 0 : index
    %c0_19 = arith.constant 0 : index
    %c0_20 = arith.constant 0 : index
    %32 = vector.load %arg5[%c0_18, %c0_19, %c0_20] : memref<37x2x32xf32, #tpu.memory_space<vmem>>, vector<1x2x16xf32>
    %33 = vector.shape_cast %32 : vector<1x2x16xf32> to vector<2x16xf32>
    %34 = vector.shape_cast %31 : vector<2x16xf32> to vector<1x2x16xf32>
    tpu.vector_store %arg5[%c0_18, %c0_19, %c0_20], %34 {strides = array<i32>} : memref<37x2x32xf32, #tpu.memory_space<vmem>>, vector<1x2x16xf32>,
    %35 = vector.extract_strided_slice %30 {offsets = [0, 16], sizes = [2, 16], strides = [1, 1]} : vector<2x32xf32> to vector<2x16xf32>
    %c36 = arith.constant 36 : index
    %c0_21 = arith.constant 0 : index
    %c16 = arith.constant 16 : index
    %36 = vector.load %arg5[%c36, %c0_21, %c16] : memref<37x2x32xf32, #tpu.memory_space<vmem>>, vector<1x2x16xf32>
    %37 = vector.shape_cast %36 : vector<1x2x16xf32> to vector<2x16xf32>
    %38 = vector.shape_cast %35 : vector<2x16xf32> to vector<1x2x16xf32>
    tpu.vector_store %arg5[%c36, %c0_21, %c16], %38 {strides = array<i32>} : memref<37x2x32xf32, #tpu.memory_space<vmem>>, vector<1x2x16xf32>,
    %c1 = arith.constant 1 : index
    %c0_22 = arith.constant 0 : index
    %c0_23 = arith.constant 0 : index
    %39 = vector.load %arg6[%c1, %c0_22, %c0_23] : memref<37x2x128xf32, #tpu.memory_space<vmem>>, vector<1x2x128xf32>
    %40 = vector.shape_cast %39 : vector<1x2x128xf32> to vector<2x128xf32>
    %cst_24 = arith.constant dense<0.000000e+00> : vector<2x128xf32>
    %41 = tpu.matmul %30, %8, %cst_24 {dimension_numbers = #tpu.dot_dimension_numbers<[1], [0], [0], [1], [0, 0, 1, 1], [], []>} : vector<2x32xf32>, vector<32x128xf32>, vector<2x128xf32> -> vector<2x128xf32>
    %42 = arith.addf %40, %41 : vector<2x128xf32>
    %43 = vector.extract_strided_slice %42 {offsets = [0, 0], sizes = [2, 96], strides = [1, 1]} : vector<2x128xf32> to vector<2x96xf32>
    %44 = arith.negf %43 : vector<2x96xf32>
    %45 = math.exp %44 : vector<2x96xf32>
    %cst_25 = arith.constant 1.000000e+00 : f32
    %46 = vector.broadcast %cst_25 : f32 to vector<2x96xf32>
    %47 = arith.addf %46, %45 : vector<2x96xf32>
    %48 = arith.divf %46, %47 : vector<2x96xf32>
    %49 = vector.extract_strided_slice %48 {offsets = [0, 0], sizes = [2, 32], strides = [1, 1]} : vector<2x96xf32> to vector<2x32xf32>
    %50 = vector.extract_strided_slice %48 {offsets = [0, 32], sizes = [2, 32], strides = [1, 1]} : vector<2x96xf32> to vector<2x32xf32>
    %51 = vector.extract_strided_slice %48 {offsets = [0, 64], sizes = [2, 32], strides = [1, 1]} : vector<2x96xf32> to vector<2x32xf32>
    %52 = vector.extract_strided_slice %42 {offsets = [0, 96], sizes = [2, 32], strides = [1, 1]} : vector<2x128xf32> to vector<2x32xf32>
    %53 = math.tanh %52 : vector<2x32xf32>
    %54 = arith.mulf %50, %28 : vector<2x32xf32>
    %55 = arith.mulf %49, %53 : vector<2x32xf32>
    %56 = arith.addf %54, %55 : vector<2x32xf32>
    %57 = math.tanh %56 : vector<2x32xf32>
    %58 = arith.mulf %51, %57 : vector<2x32xf32>
    %59 = vector.extract_strided_slice %58 {offsets = [0, 0], sizes = [2, 16], strides = [1, 1]} : vector<2x32xf32> to vector<2x16xf32>
    %c1_26 = arith.constant 1 : index
    %c0_27 = arith.constant 0 : index
    %c0_28 = arith.constant 0 : index
    %60 = vector.load %arg5[%c1_26, %c0_27, %c0_28] : memref<37x2x32xf32, #tpu.memory_space<vmem>>, vector<1x2x16xf32>
    %61 = vector.shape_cast %60 : vector<1x2x16xf32> to vector<2x16xf32>
    %62 = vector.shape_cast %59 : vector<2x16xf32> to vector<1x2x16xf32>
    tpu.vector_store %arg5[%c1_26, %c0_27, %c0_28], %62 {strides = array<i32>} : memref<37x2x32xf32, #tpu.memory_space<vmem>>, vector<1x2x16xf32>,
    %63 = vector.extract_strided_slice %58 {offsets = [0, 16], sizes = [2, 16], strides = [1, 1]} : vector<2x32xf32> to vector<2x16xf32>
    %c35 = arith.constant 35 : index
    %c0_29 = arith.constant 0 : index
    %c16_30 = arith.constant 16 : index
    %64 = vector.load %arg5[%c35, %c0_29, %c16_30] : memref<37x2x32xf32, #tpu.memory_space<vmem>>, vector<1x2x16xf32>
    %65 = vector.shape_cast %64 : vector<1x2x16xf32> to vector<2x16xf32>
    %66 = vector.shape_cast %63 : vector<2x16xf32> to vector<1x2x16xf32>
    tpu.vector_store %arg5[%c35, %c0_29, %c16_30], %66 {strides = array<i32>} : memref<37x2x32xf32, #tpu.memory_space<vmem>>, vector<1x2x16xf32>,
    %c2 = arith.constant 2 : index
    %c0_31 = arith.constant 0 : index
    %c0_32 = arith.constant 0 : index
    %67 = vector.load %arg6[%c2, %c0_31, %c0_32] : memref<37x2x128xf32, #tpu.memory_space<vmem>>, vector<1x2x128xf32>
    %68 = vector.shape_cast %67 : vector<1x2x128xf32> to vector<2x128xf32>
    %cst_33 = arith.constant dense<0.000000e+00> : vector<2x128xf32>
    %69 = tpu.matmul %58, %8, %cst_33 {dimension_numbers = #tpu.dot_dimension_numbers<[1], [0], [0], [1], [0, 0, 1, 1], [], []>} : vector<2x32xf32>, vector<32x128xf32>, vector<2x128xf32> -> vector<2x128xf32>
    %70 = arith.addf %68, %69 : vector<2x128xf32>
    %71 = vector.extract_strided_slice %70 {offsets = [0, 0], sizes = [2, 96], strides = [1, 1]} : vector<2x128xf32> to vector<2x96xf32>
    %72 = arith.negf %71 : vector<2x96xf32>
    %73 = math.exp %72 : vector<2x96xf32>
    %cst_34 = arith.constant 1.000000e+00 : f32
    %74 = vector.broadcast %cst_34 : f32 to vector<2x96xf32>
    %75 = arith.addf %74, %73 : vector<2x96xf32>
    %76 = arith.divf %74, %75 : vector<2x96xf32>
    %77 = vector.extract_strided_slice %76 {offsets = [0, 0], sizes = [2, 32], strides = [1, 1]} : vector<2x96xf32> to vector<2x32xf32>
    %78 = vector.extract_strided_slice %76 {offsets = [0, 32], sizes = [2, 32], strides = [1, 1]} : vector<2x96xf32> to vector<2x32xf32>
    %79 = vector.extract_strided_slice %76 {offsets = [0, 64], sizes = [2, 32], strides = [1, 1]} : vector<2x96xf32> to vector<2x32xf32>
    %80 = vector.extract_strided_slice %70 {offsets = [0, 96], sizes = [2, 32], strides = [1, 1]} : vector<2x128xf32> to vector<2x32xf32>
    %81 = math.tanh %80 : vector<2x32xf32>
    %82 = arith.mulf %78, %56 : vector<2x32xf32>
    %83 = arith.mulf %77, %81 : vector<2x32xf32>
    %84 = arith.addf %82, %83 : vector<2x32xf32>
    %85 = math.tanh %84 : vector<2x32xf32>
    %86 = arith.mulf %79, %85 : vector<2x32xf32>
    %87 = vector.extract_strided_slice %86 {offsets = [0, 0], sizes = [2, 16], strides = [1, 1]} : vector<2x32xf32> to vector<2x16xf32>
    %c2_35 = arith.constant 2 : index
    %c0_36 = arith.constant 0 : index
    %c0_37 = arith.constant 0 : index
    %88 = vector.load %arg5[%c2_35, %c0_36, %c0_37] : memref<37x2x32xf32, #tpu.memory_space<vmem>>, vector<1x2x16xf32>
    %89 = vector.shape_cast %88 : vector<1x2x16xf32> to vector<2x16xf32>
    %90 = vector.shape_cast %87 : vector<2x16xf32> to vector<1x2x16xf32>
    tpu.vector_store %arg5[%c2_35, %c0_36, %c0_37], %90 {strides = array<i32>} : memref<37x2x32xf32, #tpu.memory_space<vmem>>, vector<1x2x16xf32>,
    %91 = vector.extract_strided_slice %86 {offsets = [0, 16], sizes = [2, 16], strides = [1, 1]} : vector<2x32xf32> to vector<2x16xf32>
    %c34 = arith.constant 34 : index
    %c0_38 = arith.constant 0 : index
    %c16_39 = arith.constant 16 : index
    %92 = vector.load %arg5[%c34, %c0_38, %c16_39] : memref<37x2x32xf32, #tpu.memory_space<vmem>>, vector<1x2x16xf32>
    %93 = vector.shape_cast %92 : vector<1x2x16xf32> to vector<2x16xf32>
    %94 = vector.shape_cast %91 : vector<2x16xf32> to vector<1x2x16xf32>
    tpu.vector_store %arg5[%c34, %c0_38, %c16_39], %94 {strides = array<i32>} : memref<37x2x32xf32, #tpu.memory_space<vmem>>, vector<1x2x16xf32>,
    %c3 = arith.constant 3 : index
    %c0_40 = arith.constant 0 : index
    %c0_41 = arith.constant 0 : index
    %95 = vector.load %arg6[%c3, %c0_40, %c0_41] : memref<37x2x128xf32, #tpu.memory_space<vmem>>, vector<1x2x128xf32>
    %96 = vector.shape_cast %95 : vector<1x2x128xf32> to vector<2x128xf32>
    %cst_42 = arith.constant dense<0.000000e+00> : vector<2x128xf32>
    %97 = tpu.matmul %86, %8, %cst_42 {dimension_numbers = #tpu.dot_dimension_numbers<[1], [0], [0], [1], [0, 0, 1, 1], [], []>} : vector<2x32xf32>, vector<32x128xf32>, vector<2x128xf32> -> vector<2x128xf32>
    %98 = arith.addf %96, %97 : vector<2x128xf32>
    %99 = vector.extract_strided_slice %98 {offsets = [0, 0], sizes = [2, 96], strides = [1, 1]} : vector<2x128xf32> to vector<2x96xf32>
    %100 = arith.negf %99 : vector<2x96xf32>
    %101 = math.exp %100 : vector<2x96xf32>
    %cst_43 = arith.constant 1.000000e+00 : f32
    %102 = vector.broadcast %cst_43 : f32 to vector<2x96xf32>
    %103 = arith.addf %102, %101 : vector<2x96xf32>
    %104 = arith.divf %102, %103 : vector<2x96xf32>
    %105 = vector.extract_strided_slice %104 {offsets = [0, 0], sizes = [2, 32], strides = [1, 1]} : vector<2x96xf32> to vector<2x32xf32>
    %106 = vector.extract_strided_slice %104 {offsets = [0, 32], sizes = [2, 32], strides = [1, 1]} : vector<2x96xf32> to vector<2x32xf32>
    %107 = vector.extract_strided_slice %104 {offsets = [0, 64], sizes = [2, 32], strides = [1, 1]} : vector<2x96xf32> to vector<2x32xf32>
    %108 = vector.extract_strided_slice %98 {offsets = [0, 96], sizes = [2, 32], strides = [1, 1]} : vector<2x128xf32> to vector<2x32xf32>
    %109 = math.tanh %108 : vector<2x32xf32>
    %110 = arith.mulf %106, %84 : vector<2x32xf32>
    %111 = arith.mulf %105, %109 : vector<2x32xf32>
    %112 = arith.addf %110, %111 : vector<2x32xf32>
    %113 = math.tanh %112 : vector<2x32xf32>
    %114 = arith.mulf %107, %113 : vector<2x32xf32>
    %115 = vector.extract_strided_slice %114 {offsets = [0, 0], sizes = [2, 16], strides = [1, 1]} : vector<2x32xf32> to vector<2x16xf32>
    %c3_44 = arith.constant 3 : index
    %c0_45 = arith.constant 0 : index
    %c0_46 = arith.constant 0 : index
    %116 = vector.load %arg5[%c3_44, %c0_45, %c0_46] : memref<37x2x32xf32, #tpu.memory_space<vmem>>, vector<1x2x16xf32>
    %117 = vector.shape_cast %116 : vector<1x2x16xf32> to vector<2x16xf32>
    %118 = vector.shape_cast %115 : vector<2x16xf32> to vector<1x2x16xf32>
    tpu.vector_store %arg5[%c3_44, %c0_45, %c0_46], %118 {strides = array<i32>} : memref<37x2x32xf32, #tpu.memory_space<vmem>>, vector<1x2x16xf32>,
    %119 = vector.extract_strided_slice %114 {offsets = [0, 16], sizes = [2, 16], strides = [1, 1]} : vector<2x32xf32> to vector<2x16xf32>
    %c33 = arith.constant 33 : index
    %c0_47 = arith.constant 0 : index
    %c16_48 = arith.constant 16 : index
    %120 = vector.load %arg5[%c33, %c0_47, %c16_48] : memref<37x2x32xf32, #tpu.memory_space<vmem>>, vector<1x2x16xf32>
    %121 = vector.shape_cast %120 : vector<1x2x16xf32> to vector<2x16xf32>
    %122 = vector.shape_cast %119 : vector<2x16xf32> to vector<1x2x16xf32>
    tpu.vector_store %arg5[%c33, %c0_47, %c16_48], %122 {strides = array<i32>} : memref<37x2x32xf32, #tpu.memory_space<vmem>>, vector<1x2x16xf32>,
    %c4 = arith.constant 4 : index
    %c0_49 = arith.constant 0 : index
    %c0_50 = arith.constant 0 : index
    %123 = vector.load %arg6[%c4, %c0_49, %c0_50] : memref<37x2x128xf32, #tpu.memory_space<vmem>>, vector<1x2x128xf32>
    %124 = vector.shape_cast %123 : vector<1x2x128xf32> to vector<2x128xf32>
    %cst_51 = arith.constant dense<0.000000e+00> : vector<2x128xf32>
    %125 = tpu.matmul %114, %8, %cst_51 {dimension_numbers = #tpu.dot_dimension_numbers<[1], [0], [0], [1], [0, 0, 1, 1], [], []>} : vector<2x32xf32>, vector<32x128xf32>, vector<2x128xf32> -> vector<2x128xf32>
    %126 = arith.addf %124, %125 : vector<2x128xf32>
    %127 = vector.extract_strided_slice %126 {offsets = [0, 0], sizes = [2, 96], strides = [1, 1]} : vector<2x128xf32> to vector<2x96xf32>
    %128 = arith.negf %127 : vector<2x96xf32>
    %129 = math.exp %128 : vector<2x96xf32>
    %cst_52 = arith.constant 1.000000e+00 : f32
    %130 = vector.broadcast %cst_52 : f32 to vector<2x96xf32>
    %131 = arith.addf %130, %129 : vector<2x96xf32>
    %132 = arith.divf %130, %131 : vector<2x96xf32>
    %133 = vector.extract_strided_slice %132 {offsets = [0, 0], sizes = [2, 32], strides = [1, 1]} : vector<2x96xf32> to vector<2x32xf32>
    %134 = vector.extract_strided_slice %132 {offsets = [0, 32], sizes = [2, 32], strides = [1, 1]} : vector<2x96xf32> to vector<2x32xf32>
    %135 = vector.extract_strided_slice %132 {offsets = [0, 64], sizes = [2, 32], strides = [1, 1]} : vector<2x96xf32> to vector<2x32xf32>
    %136 = vector.extract_strided_slice %126 {offsets = [0, 96], sizes = [2, 32], strides = [1, 1]} : vector<2x128xf32> to vector<2x32xf32>
    %137 = math.tanh %136 : vector<2x32xf32>
    %138 = arith.mulf %134, %112 : vector<2x32xf32>
    %139 = arith.mulf %133, %137 : vector<2x32xf32>
    %140 = arith.addf %138, %139 : vector<2x32xf32>
    %141 = math.tanh %140 : vector<2x32xf32>
    %142 = arith.mulf %135, %141 : vector<2x32xf32>
    %143 = vector.extract_strided_slice %142 {offsets = [0, 0], sizes = [2, 16], strides = [1, 1]} : vector<2x32xf32> to vector<2x16xf32>
    %c4_53 = arith.constant 4 : index
    %c0_54 = arith.constant 0 : index
    %c0_55 = arith.constant 0 : index
    %144 = vector.load %arg5[%c4_53, %c0_54, %c0_55] : memref<37x2x32xf32, #tpu.memory_space<vmem>>, vector<1x2x16xf32>
    %145 = vector.shape_cast %144 : vector<1x2x16xf32> to vector<2x16xf32>
    %146 = vector.shape_cast %143 : vector<2x16xf32> to vector<1x2x16xf32>
    tpu.vector_store %arg5[%c4_53, %c0_54, %c0_55], %146 {strides = array<i32>} : memref<37x2x32xf32, #tpu.memory_space<vmem>>, vector<1x2x16xf32>,
    %147 = vector.extract_strided_slice %142 {offsets = [0, 16], sizes = [2, 16], strides = [1, 1]} : vector<2x32xf32> to vector<2x16xf32>
    %c32 = arith.constant 32 : index
    %c0_56 = arith.constant 0 : index
    %c16_57 = arith.constant 16 : index
    %148 = vector.load %arg5[%c32, %c0_56, %c16_57] : memref<37x2x32xf32, #tpu.memory_space<vmem>>, vector<1x2x16xf32>
    %149 = vector.shape_cast %148 : vector<1x2x16xf32> to vector<2x16xf32>
    %150 = vector.shape_cast %147 : vector<2x16xf32> to vector<1x2x16xf32>
    tpu.vector_store %arg5[%c32, %c0_56, %c16_57], %150 {strides = array<i32>} : memref<37x2x32xf32, #tpu.memory_space<vmem>>, vector<1x2x16xf32>,
    %c5 = arith.constant 5 : index
    %c0_58 = arith.constant 0 : index
    %c0_59 = arith.constant 0 : index
    %151 = vector.load %arg6[%c5, %c0_58, %c0_59] : memref<37x2x128xf32, #tpu.memory_space<vmem>>, vector<1x2x128xf32>
    %152 = vector.shape_cast %151 : vector<1x2x128xf32> to vector<2x128xf32>
    %cst_60 = arith.constant dense<0.000000e+00> : vector<2x128xf32>
    %153 = tpu.matmul %142, %8, %cst_60 {dimension_numbers = #tpu.dot_dimension_numbers<[1], [0], [0], [1], [0, 0, 1, 1], [], []>} : vector<2x32xf32>, vector<32x128xf32>, vector<2x128xf32> -> vector<2x128xf32>
    %154 = arith.addf %152, %153 : vector<2x128xf32>
    %155 = vector.extract_strided_slice %154 {offsets = [0, 0], sizes = [2, 96], strides = [1, 1]} : vector<2x128xf32> to vector<2x96xf32>
    %156 = arith.negf %155 : vector<2x96xf32>
    %157 = math.exp %156 : vector<2x96xf32>
    %cst_61 = arith.constant 1.000000e+00 : f32
    %158 = vector.broadcast %cst_61 : f32 to vector<2x96xf32>
    %159 = arith.addf %158, %157 : vector<2x96xf32>
    %160 = arith.divf %158, %159 : vector<2x96xf32>
    %161 = vector.extract_strided_slice %160 {offsets = [0, 0], sizes = [2, 32], strides = [1, 1]} : vector<2x96xf32> to vector<2x32xf32>
    %162 = vector.extract_strided_slice %160 {offsets = [0, 32], sizes = [2, 32], strides = [1, 1]} : vector<2x96xf32> to vector<2x32xf32>
    %163 = vector.extract_strided_slice %160 {offsets = [0, 64], sizes = [2, 32], strides = [1, 1]} : vector<2x96xf32> to vector<2x32xf32>
    %164 = vector.extract_strided_slice %154 {offsets = [0, 96], sizes = [2, 32], strides = [1, 1]} : vector<2x128xf32> to vector<2x32xf32>
    %165 = math.tanh %164 : vector<2x32xf32>
    %166 = arith.mulf %162, %140 : vector<2x32xf32>
    %167 = arith.mulf %161, %165 : vector<2x32xf32>
    %168 = arith.addf %166, %167 : vector<2x32xf32>
    %169 = math.tanh %168 : vector<2x32xf32>
    %170 = arith.mulf %163, %169 : vector<2x32xf32>
    %171 = vector.extract_strided_slice %170 {offsets = [0, 0], sizes = [2, 16], strides = [1, 1]} : vector<2x32xf32> to vector<2x16xf32>
    %c5_62 = arith.constant 5 : index
    %c0_63 = arith.constant 0 : index
    %c0_64 = arith.constant 0 : index
    %172 = vector.load %arg5[%c5_62, %c0_63, %c0_64] : memref<37x2x32xf32, #tpu.memory_space<vmem>>, vector<1x2x16xf32>
    %173 = vector.shape_cast %172 : vector<1x2x16xf32> to vector<2x16xf32>
    %174 = vector.shape_cast %171 : vector<2x16xf32> to vector<1x2x16xf32>
    tpu.vector_store %arg5[%c5_62, %c0_63, %c0_64], %174 {strides = array<i32>} : memref<37x2x32xf32, #tpu.memory_space<vmem>>, vector<1x2x16xf32>,
    %175 = vector.extract_strided_slice %170 {offsets = [0, 16], sizes = [2, 16], strides = [1, 1]} : vector<2x32xf32> to vector<2x16xf32>
    %c31 = arith.constant 31 : index
    %c0_65 = arith.constant 0 : index
    %c16_66 = arith.constant 16 : index
    %176 = vector.load %arg5[%c31, %c0_65, %c16_66] : memref<37x2x32xf32, #tpu.memory_space<vmem>>, vector<1x2x16xf32>
    %177 = vector.shape_cast %176 : vector<1x2x16xf32> to vector<2x16xf32>
    %178 = vector.shape_cast %175 : vector<2x16xf32> to vector<1x2x16xf32>
    tpu.vector_store %arg5[%c31, %c0_65, %c16_66], %178 {strides = array<i32>} : memref<37x2x32xf32, #tpu.memory_space<vmem>>, vector<1x2x16xf32>,
    %c6 = arith.constant 6 : index
    %c0_67 = arith.constant 0 : index
    %c0_68 = arith.constant 0 : index
    %179 = vector.load %arg6[%c6, %c0_67, %c0_68] : memref<37x2x128xf32, #tpu.memory_space<vmem>>, vector<1x2x128xf32>
    %180 = vector.shape_cast %179 : vector<1x2x128xf32> to vector<2x128xf32>
    %cst_69 = arith.constant dense<0.000000e+00> : vector<2x128xf32>
    %181 = tpu.matmul %170, %8, %cst_69 {dimension_numbers = #tpu.dot_dimension_numbers<[1], [0], [0], [1], [0, 0, 1, 1], [], []>} : vector<2x32xf32>, vector<32x128xf32>, vector<2x128xf32> -> vector<2x128xf32>
    %182 = arith.addf %180, %181 : vector<2x128xf32>
    %183 = vector.extract_strided_slice %182 {offsets = [0, 0], sizes = [2, 96], strides = [1, 1]} : vector<2x128xf32> to vector<2x96xf32>
    %184 = arith.negf %183 : vector<2x96xf32>
    %185 = math.exp %184 : vector<2x96xf32>
    %cst_70 = arith.constant 1.000000e+00 : f32
    %186 = vector.broadcast %cst_70 : f32 to vector<2x96xf32>
    %187 = arith.addf %186, %185 : vector<2x96xf32>
    %188 = arith.divf %186, %187 : vector<2x96xf32>
    %189 = vector.extract_strided_slice %188 {offsets = [0, 0], sizes = [2, 32], strides = [1, 1]} : vector<2x96xf32> to vector<2x32xf32>
    %190 = vector.extract_strided_slice %188 {offsets = [0, 32], sizes = [2, 32], strides = [1, 1]} : vector<2x96xf32> to vector<2x32xf32>
    %191 = vector.extract_strided_slice %188 {offsets = [0, 64], sizes = [2, 32], strides = [1, 1]} : vector<2x96xf32> to vector<2x32xf32>
    %192 = vector.extract_strided_slice %182 {offsets = [0, 96], sizes = [2, 32], strides = [1, 1]} : vector<2x128xf32> to vector<2x32xf32>
    %193 = math.tanh %192 : vector<2x32xf32>
    %194 = arith.mulf %190, %168 : vector<2x32xf32>
    %195 = arith.mulf %189, %193 : vector<2x32xf32>
    %196 = arith.addf %194, %195 : vector<2x32xf32>
    %197 = math.tanh %196 : vector<2x32xf32>
    %198 = arith.mulf %191, %197 : vector<2x32xf32>
    %199 = vector.extract_strided_slice %198 {offsets = [0, 0], sizes = [2, 16], strides = [1, 1]} : vector<2x32xf32> to vector<2x16xf32>
    %c6_71 = arith.constant 6 : index
    %c0_72 = arith.constant 0 : index
    %c0_73 = arith.constant 0 : index
    %200 = vector.load %arg5[%c6_71, %c0_72, %c0_73] : memref<37x2x32xf32, #tpu.memory_space<vmem>>, vector<1x2x16xf32>
    %201 = vector.shape_cast %200 : vector<1x2x16xf32> to vector<2x16xf32>
    %202 = vector.shape_cast %199 : vector<2x16xf32> to vector<1x2x16xf32>
    tpu.vector_store %arg5[%c6_71, %c0_72, %c0_73], %202 {strides = array<i32>} : memref<37x2x32xf32, #tpu.memory_space<vmem>>, vector<1x2x16xf32>,
    %203 = vector.extract_strided_slice %198 {offsets = [0, 16], sizes = [2, 16], strides = [1, 1]} : vector<2x32xf32> to vector<2x16xf32>
    %c30 = arith.constant 30 : index
    %c0_74 = arith.constant 0 : index
    %c16_75 = arith.constant 16 : index
    %204 = vector.load %arg5[%c30, %c0_74, %c16_75] : memref<37x2x32xf32, #tpu.memory_space<vmem>>, vector<1x2x16xf32>
    %205 = vector.shape_cast %204 : vector<1x2x16xf32> to vector<2x16xf32>
    %206 = vector.shape_cast %203 : vector<2x16xf32> to vector<1x2x16xf32>
    tpu.vector_store %arg5[%c30, %c0_74, %c16_75], %206 {strides = array<i32>} : memref<37x2x32xf32, #tpu.memory_space<vmem>>, vector<1x2x16xf32>,
    %c7 = arith.constant 7 : index
    %c0_76 = arith.constant 0 : index
    %c0_77 = arith.constant 0 : index
    %207 = vector.load %arg6[%c7, %c0_76, %c0_77] : memref<37x2x128xf32, #tpu.memory_space<vmem>>, vector<1x2x128xf32>
    %208 = vector.shape_cast %207 : vector<1x2x128xf32> to vector<2x128xf32>
    %cst_78 = arith.constant dense<0.000000e+00> : vector<2x128xf32>
    %209 = tpu.matmul %198, %8, %cst_78 {dimension_numbers = #tpu.dot_dimension_numbers<[1], [0], [0], [1], [0, 0, 1, 1], [], []>} : vector<2x32xf32>, vector<32x128xf32>, vector<2x128xf32> -> vector<2x128xf32>
    %210 = arith.addf %208, %209 : vector<2x128xf32>
    %211 = vector.extract_strided_slice %210 {offsets = [0, 0], sizes = [2, 96], strides = [1, 1]} : vector<2x128xf32> to vector<2x96xf32>
    %212 = arith.negf %211 : vector<2x96xf32>
    %213 = math.exp %212 : vector<2x96xf32>
    %cst_79 = arith.constant 1.000000e+00 : f32
    %214 = vector.broadcast %cst_79 : f32 to vector<2x96xf32>
    %215 = arith.addf %214, %213 : vector<2x96xf32>
    %216 = arith.divf %214, %215 : vector<2x96xf32>
    %217 = vector.extract_strided_slice %216 {offsets = [0, 0], sizes = [2, 32], strides = [1, 1]} : vector<2x96xf32> to vector<2x32xf32>
    %218 = vector.extract_strided_slice %216 {offsets = [0, 32], sizes = [2, 32], strides = [1, 1]} : vector<2x96xf32> to vector<2x32xf32>
    %219 = vector.extract_strided_slice %216 {offsets = [0, 64], sizes = [2, 32], strides = [1, 1]} : vector<2x96xf32> to vector<2x32xf32>
    %220 = vector.extract_strided_slice %210 {offsets = [0, 96], sizes = [2, 32], strides = [1, 1]} : vector<2x128xf32> to vector<2x32xf32>
    %221 = math.tanh %220 : vector<2x32xf32>
    %222 = arith.mulf %218, %196 : vector<2x32xf32>
    %223 = arith.mulf %217, %221 : vector<2x32xf32>
    %224 = arith.addf %222, %223 : vector<2x32xf32>
    %225 = math.tanh %224 : vector<2x32xf32>
    %226 = arith.mulf %219, %225 : vector<2x32xf32>
    %227 = vector.extract_strided_slice %226 {offsets = [0, 0], sizes = [2, 16], strides = [1, 1]} : vector<2x32xf32> to vector<2x16xf32>
    %c7_80 = arith.constant 7 : index
    %c0_81 = arith.constant 0 : index
    %c0_82 = arith.constant 0 : index
    %228 = vector.load %arg5[%c7_80, %c0_81, %c0_82] : memref<37x2x32xf32, #tpu.memory_space<vmem>>, vector<1x2x16xf32>
    %229 = vector.shape_cast %228 : vector<1x2x16xf32> to vector<2x16xf32>
    %230 = vector.shape_cast %227 : vector<2x16xf32> to vector<1x2x16xf32>
    tpu.vector_store %arg5[%c7_80, %c0_81, %c0_82], %230 {strides = array<i32>} : memref<37x2x32xf32, #tpu.memory_space<vmem>>, vector<1x2x16xf32>,
    %231 = vector.extract_strided_slice %226 {offsets = [0, 16], sizes = [2, 16], strides = [1, 1]} : vector<2x32xf32> to vector<2x16xf32>
    %c29 = arith.constant 29 : index
    %c0_83 = arith.constant 0 : index
    %c16_84 = arith.constant 16 : index
    %232 = vector.load %arg5[%c29, %c0_83, %c16_84] : memref<37x2x32xf32, #tpu.memory_space<vmem>>, vector<1x2x16xf32>
    %233 = vector.shape_cast %232 : vector<1x2x16xf32> to vector<2x16xf32>
    %234 = vector.shape_cast %231 : vector<2x16xf32> to vector<1x2x16xf32>
    tpu.vector_store %arg5[%c29, %c0_83, %c16_84], %234 {strides = array<i32>} : memref<37x2x32xf32, #tpu.memory_space<vmem>>, vector<1x2x16xf32>,
    %c8 = arith.constant 8 : index
    %c0_85 = arith.constant 0 : index
    %c0_86 = arith.constant 0 : index
    %235 = vector.load %arg6[%c8, %c0_85, %c0_86] : memref<37x2x128xf32, #tpu.memory_space<vmem>>, vector<1x2x128xf32>
    %236 = vector.shape_cast %235 : vector<1x2x128xf32> to vector<2x128xf32>
    %cst_87 = arith.constant dense<0.000000e+00> : vector<2x128xf32>
    %237 = tpu.matmul %226, %8, %cst_87 {dimension_numbers = #tpu.dot_dimension_numbers<[1], [0], [0], [1], [0, 0, 1, 1], [], []>} : vector<2x32xf32>, vector<32x128xf32>, vector<2x128xf32> -> vector<2x128xf32>
    %238 = arith.addf %236, %237 : vector<2x128xf32>
    %239 = vector.extract_strided_slice %238 {offsets = [0, 0], sizes = [2, 96], strides = [1, 1]} : vector<2x128xf32> to vector<2x96xf32>
    %240 = arith.negf %239 : vector<2x96xf32>
    %241 = math.exp %240 : vector<2x96xf32>
    %cst_88 = arith.constant 1.000000e+00 : f32
    %242 = vector.broadcast %cst_88 : f32 to vector<2x96xf32>
    %243 = arith.addf %242, %241 : vector<2x96xf32>
    %244 = arith.divf %242, %243 : vector<2x96xf32>
    %245 = vector.extract_strided_slice %244 {offsets = [0, 0], sizes = [2, 32], strides = [1, 1]} : vector<2x96xf32> to vector<2x32xf32>
    %246 = vector.extract_strided_slice %244 {offsets = [0, 32], sizes = [2, 32], strides = [1, 1]} : vector<2x96xf32> to vector<2x32xf32>
    %247 = vector.extract_strided_slice %244 {offsets = [0, 64], sizes = [2, 32], strides = [1, 1]} : vector<2x96xf32> to vector<2x32xf32>
    %248 = vector.extract_strided_slice %238 {offsets = [0, 96], sizes = [2, 32], strides = [1, 1]} : vector<2x128xf32> to vector<2x32xf32>
    %249 = math.tanh %248 : vector<2x32xf32>
    %250 = arith.mulf %246, %224 : vector<2x32xf32>
    %251 = arith.mulf %245, %249 : vector<2x32xf32>
    %252 = arith.addf %250, %251 : vector<2x32xf32>
    %253 = math.tanh %252 : vector<2x32xf32>
    %254 = arith.mulf %247, %253 : vector<2x32xf32>
    %255 = vector.extract_strided_slice %254 {offsets = [0, 0], sizes = [2, 16], strides = [1, 1]} : vector<2x32xf32> to vector<2x16xf32>
    %c8_89 = arith.constant 8 : index
    %c0_90 = arith.constant 0 : index
    %c0_91 = arith.constant 0 : index
    %256 = vector.load %arg5[%c8_89, %c0_90, %c0_91] : memref<37x2x32xf32, #tpu.memory_space<vmem>>, vector<1x2x16xf32>
    %257 = vector.shape_cast %256 : vector<1x2x16xf32> to vector<2x16xf32>
    %258 = vector.shape_cast %255 : vector<2x16xf32> to vector<1x2x16xf32>
    tpu.vector_store %arg5[%c8_89, %c0_90, %c0_91], %258 {strides = array<i32>} : memref<37x2x32xf32, #tpu.memory_space<vmem>>, vector<1x2x16xf32>,
    %259 = vector.extract_strided_slice %254 {offsets = [0, 16], sizes = [2, 16], strides = [1, 1]} : vector<2x32xf32> to vector<2x16xf32>
    %c28 = arith.constant 28 : index
    %c0_92 = arith.constant 0 : index
    %c16_93 = arith.constant 16 : index
    %260 = vector.load %arg5[%c28, %c0_92, %c16_93] : memref<37x2x32xf32, #tpu.memory_space<vmem>>, vector<1x2x16xf32>
    %261 = vector.shape_cast %260 : vector<1x2x16xf32> to vector<2x16xf32>
    %262 = vector.shape_cast %259 : vector<2x16xf32> to vector<1x2x16xf32>
    tpu.vector_store %arg5[%c28, %c0_92, %c16_93], %262 {strides = array<i32>} : memref<37x2x32xf32, #tpu.memory_space<vmem>>, vector<1x2x16xf32>,
    %c9 = arith.constant 9 : index
    %c0_94 = arith.constant 0 : index
    %c0_95 = arith.constant 0 : index
    %263 = vector.load %arg6[%c9, %c0_94, %c0_95] : memref<37x2x128xf32, #tpu.memory_space<vmem>>, vector<1x2x128xf32>
    %264 = vector.shape_cast %263 : vector<1x2x128xf32> to vector<2x128xf32>
    %cst_96 = arith.constant dense<0.000000e+00> : vector<2x128xf32>
    %265 = tpu.matmul %254, %8, %cst_96 {dimension_numbers = #tpu.dot_dimension_numbers<[1], [0], [0], [1], [0, 0, 1, 1], [], []>} : vector<2x32xf32>, vector<32x128xf32>, vector<2x128xf32> -> vector<2x128xf32>
    %266 = arith.addf %264, %265 : vector<2x128xf32>
    %267 = vector.extract_strided_slice %266 {offsets = [0, 0], sizes = [2, 96], strides = [1, 1]} : vector<2x128xf32> to vector<2x96xf32>
    %268 = arith.negf %267 : vector<2x96xf32>
    %269 = math.exp %268 : vector<2x96xf32>
    %cst_97 = arith.constant 1.000000e+00 : f32
    %270 = vector.broadcast %cst_97 : f32 to vector<2x96xf32>
    %271 = arith.addf %270, %269 : vector<2x96xf32>
    %272 = arith.divf %270, %271 : vector<2x96xf32>
    %273 = vector.extract_strided_slice %272 {offsets = [0, 0], sizes = [2, 32], strides = [1, 1]} : vector<2x96xf32> to vector<2x32xf32>
    %274 = vector.extract_strided_slice %272 {offsets = [0, 32], sizes = [2, 32], strides = [1, 1]} : vector<2x96xf32> to vector<2x32xf32>
    %275 = vector.extract_strided_slice %272 {offsets = [0, 64], sizes = [2, 32], strides = [1, 1]} : vector<2x96xf32> to vector<2x32xf32>
    %276 = vector.extract_strided_slice %266 {offsets = [0, 96], sizes = [2, 32], strides = [1, 1]} : vector<2x128xf32> to vector<2x32xf32>
    %277 = math.tanh %276 : vector<2x32xf32>
    %278 = arith.mulf %274, %252 : vector<2x32xf32>
    %279 = arith.mulf %273, %277 : vector<2x32xf32>
    %280 = arith.addf %278, %279 : vector<2x32xf32>
    %281 = math.tanh %280 : vector<2x32xf32>
    %282 = arith.mulf %275, %281 : vector<2x32xf32>
    %283 = vector.extract_strided_slice %282 {offsets = [0, 0], sizes = [2, 16], strides = [1, 1]} : vector<2x32xf32> to vector<2x16xf32>
    %c9_98 = arith.constant 9 : index
    %c0_99 = arith.constant 0 : index
    %c0_100 = arith.constant 0 : index
    %284 = vector.load %arg5[%c9_98, %c0_99, %c0_100] : memref<37x2x32xf32, #tpu.memory_space<vmem>>, vector<1x2x16xf32>
    %285 = vector.shape_cast %284 : vector<1x2x16xf32> to vector<2x16xf32>
    %286 = vector.shape_cast %283 : vector<2x16xf32> to vector<1x2x16xf32>
    tpu.vector_store %arg5[%c9_98, %c0_99, %c0_100], %286 {strides = array<i32>} : memref<37x2x32xf32, #tpu.memory_space<vmem>>, vector<1x2x16xf32>,
    %287 = vector.extract_strided_slice %282 {offsets = [0, 16], sizes = [2, 16], strides = [1, 1]} : vector<2x32xf32> to vector<2x16xf32>
    %c27 = arith.constant 27 : index
    %c0_101 = arith.constant 0 : index
    %c16_102 = arith.constant 16 : index
    %288 = vector.load %arg5[%c27, %c0_101, %c16_102] : memref<37x2x32xf32, #tpu.memory_space<vmem>>, vector<1x2x16xf32>
    %289 = vector.shape_cast %288 : vector<1x2x16xf32> to vector<2x16xf32>
    %290 = vector.shape_cast %287 : vector<2x16xf32> to vector<1x2x16xf32>
    tpu.vector_store %arg5[%c27, %c0_101, %c16_102], %290 {strides = array<i32>} : memref<37x2x32xf32, #tpu.memory_space<vmem>>, vector<1x2x16xf32>,
    %c10 = arith.constant 10 : index
    %c0_103 = arith.constant 0 : index
    %c0_104 = arith.constant 0 : index
    %291 = vector.load %arg6[%c10, %c0_103, %c0_104] : memref<37x2x128xf32, #tpu.memory_space<vmem>>, vector<1x2x128xf32>
    %292 = vector.shape_cast %291 : vector<1x2x128xf32> to vector<2x128xf32>
    %cst_105 = arith.constant dense<0.000000e+00> : vector<2x128xf32>
    %293 = tpu.matmul %282, %8, %cst_105 {dimension_numbers = #tpu.dot_dimension_numbers<[1], [0], [0], [1], [0, 0, 1, 1], [], []>} : vector<2x32xf32>, vector<32x128xf32>, vector<2x128xf32> -> vector<2x128xf32>
    %294 = arith.addf %292, %293 : vector<2x128xf32>
    %295 = vector.extract_strided_slice %294 {offsets = [0, 0], sizes = [2, 96], strides = [1, 1]} : vector<2x128xf32> to vector<2x96xf32>
    %296 = arith.negf %295 : vector<2x96xf32>
    %297 = math.exp %296 : vector<2x96xf32>
    %cst_106 = arith.constant 1.000000e+00 : f32
    %298 = vector.broadcast %cst_106 : f32 to vector<2x96xf32>
    %299 = arith.addf %298, %297 : vector<2x96xf32>
    %300 = arith.divf %298, %299 : vector<2x96xf32>
    %301 = vector.extract_strided_slice %300 {offsets = [0, 0], sizes = [2, 32], strides = [1, 1]} : vector<2x96xf32> to vector<2x32xf32>
    %302 = vector.extract_strided_slice %300 {offsets = [0, 32], sizes = [2, 32], strides = [1, 1]} : vector<2x96xf32> to vector<2x32xf32>
    %303 = vector.extract_strided_slice %300 {offsets = [0, 64], sizes = [2, 32], strides = [1, 1]} : vector<2x96xf32> to vector<2x32xf32>
    %304 = vector.extract_strided_slice %294 {offsets = [0, 96], sizes = [2, 32], strides = [1, 1]} : vector<2x128xf32> to vector<2x32xf32>
    %305 = math.tanh %304 : vector<2x32xf32>
    %306 = arith.mulf %302, %280 : vector<2x32xf32>
    %307 = arith.mulf %301, %305 : vector<2x32xf32>
    %308 = arith.addf %306, %307 : vector<2x32xf32>
    %309 = math.tanh %308 : vector<2x32xf32>
    %310 = arith.mulf %303, %309 : vector<2x32xf32>
    %311 = vector.extract_strided_slice %310 {offsets = [0, 0], sizes = [2, 16], strides = [1, 1]} : vector<2x32xf32> to vector<2x16xf32>
    %c10_107 = arith.constant 10 : index
    %c0_108 = arith.constant 0 : index
    %c0_109 = arith.constant 0 : index
    %312 = vector.load %arg5[%c10_107, %c0_108, %c0_109] : memref<37x2x32xf32, #tpu.memory_space<vmem>>, vector<1x2x16xf32>
    %313 = vector.shape_cast %312 : vector<1x2x16xf32> to vector<2x16xf32>
    %314 = vector.shape_cast %311 : vector<2x16xf32> to vector<1x2x16xf32>
    tpu.vector_store %arg5[%c10_107, %c0_108, %c0_109], %314 {strides = array<i32>} : memref<37x2x32xf32, #tpu.memory_space<vmem>>, vector<1x2x16xf32>,
    %315 = vector.extract_strided_slice %310 {offsets = [0, 16], sizes = [2, 16], strides = [1, 1]} : vector<2x32xf32> to vector<2x16xf32>
    %c26 = arith.constant 26 : index
    %c0_110 = arith.constant 0 : index
    %c16_111 = arith.constant 16 : index
    %316 = vector.load %arg5[%c26, %c0_110, %c16_111] : memref<37x2x32xf32, #tpu.memory_space<vmem>>, vector<1x2x16xf32>
    %317 = vector.shape_cast %316 : vector<1x2x16xf32> to vector<2x16xf32>
    %318 = vector.shape_cast %315 : vector<2x16xf32> to vector<1x2x16xf32>
    tpu.vector_store %arg5[%c26, %c0_110, %c16_111], %318 {strides = array<i32>} : memref<37x2x32xf32, #tpu.memory_space<vmem>>, vector<1x2x16xf32>,
    %c11 = arith.constant 11 : index
    %c0_112 = arith.constant 0 : index
    %c0_113 = arith.constant 0 : index
    %319 = vector.load %arg6[%c11, %c0_112, %c0_113] : memref<37x2x128xf32, #tpu.memory_space<vmem>>, vector<1x2x128xf32>
    %320 = vector.shape_cast %319 : vector<1x2x128xf32> to vector<2x128xf32>
    %cst_114 = arith.constant dense<0.000000e+00> : vector<2x128xf32>
    %321 = tpu.matmul %310, %8, %cst_114 {dimension_numbers = #tpu.dot_dimension_numbers<[1], [0], [0], [1], [0, 0, 1, 1], [], []>} : vector<2x32xf32>, vector<32x128xf32>, vector<2x128xf32> -> vector<2x128xf32>
    %322 = arith.addf %320, %321 : vector<2x128xf32>
    %323 = vector.extract_strided_slice %322 {offsets = [0, 0], sizes = [2, 96], strides = [1, 1]} : vector<2x128xf32> to vector<2x96xf32>
    %324 = arith.negf %323 : vector<2x96xf32>
    %325 = math.exp %324 : vector<2x96xf32>
    %cst_115 = arith.constant 1.000000e+00 : f32
    %326 = vector.broadcast %cst_115 : f32 to vector<2x96xf32>
    %327 = arith.addf %326, %325 : vector<2x96xf32>
    %328 = arith.divf %326, %327 : vector<2x96xf32>
    %329 = vector.extract_strided_slice %328 {offsets = [0, 0], sizes = [2, 32], strides = [1, 1]} : vector<2x96xf32> to vector<2x32xf32>
    %330 = vector.extract_strided_slice %328 {offsets = [0, 32], sizes = [2, 32], strides = [1, 1]} : vector<2x96xf32> to vector<2x32xf32>
    %331 = vector.extract_strided_slice %328 {offsets = [0, 64], sizes = [2, 32], strides = [1, 1]} : vector<2x96xf32> to vector<2x32xf32>
    %332 = vector.extract_strided_slice %322 {offsets = [0, 96], sizes = [2, 32], strides = [1, 1]} : vector<2x128xf32> to vector<2x32xf32>
    %333 = math.tanh %332 : vector<2x32xf32>
    %334 = arith.mulf %330, %308 : vector<2x32xf32>
    %335 = arith.mulf %329, %333 : vector<2x32xf32>
    %336 = arith.addf %334, %335 : vector<2x32xf32>
    %337 = math.tanh %336 : vector<2x32xf32>
    %338 = arith.mulf %331, %337 : vector<2x32xf32>
    %339 = vector.extract_strided_slice %338 {offsets = [0, 0], sizes = [2, 16], strides = [1, 1]} : vector<2x32xf32> to vector<2x16xf32>
    %c11_116 = arith.constant 11 : index
    %c0_117 = arith.constant 0 : index
    %c0_118 = arith.constant 0 : index
    %340 = vector.load %arg5[%c11_116, %c0_117, %c0_118] : memref<37x2x32xf32, #tpu.memory_space<vmem>>, vector<1x2x16xf32>
    %341 = vector.shape_cast %340 : vector<1x2x16xf32> to vector<2x16xf32>
    %342 = vector.shape_cast %339 : vector<2x16xf32> to vector<1x2x16xf32>
    tpu.vector_store %arg5[%c11_116, %c0_117, %c0_118], %342 {strides = array<i32>} : memref<37x2x32xf32, #tpu.memory_space<vmem>>, vector<1x2x16xf32>,
    %343 = vector.extract_strided_slice %338 {offsets = [0, 16], sizes = [2, 16], strides = [1, 1]} : vector<2x32xf32> to vector<2x16xf32>
    %c25 = arith.constant 25 : index
    %c0_119 = arith.constant 0 : index
    %c16_120 = arith.constant 16 : index
    %344 = vector.load %arg5[%c25, %c0_119, %c16_120] : memref<37x2x32xf32, #tpu.memory_space<vmem>>, vector<1x2x16xf32>
    %345 = vector.shape_cast %344 : vector<1x2x16xf32> to vector<2x16xf32>
    %346 = vector.shape_cast %343 : vector<2x16xf32> to vector<1x2x16xf32>
    tpu.vector_store %arg5[%c25, %c0_119, %c16_120], %346 {strides = array<i32>} : memref<37x2x32xf32, #tpu.memory_space<vmem>>, vector<1x2x16xf32>,
    %c12 = arith.constant 12 : index
    %c0_121 = arith.constant 0 : index
    %c0_122 = arith.constant 0 : index
    %347 = vector.load %arg6[%c12, %c0_121, %c0_122] : memref<37x2x128xf32, #tpu.memory_space<vmem>>, vector<1x2x128xf32>
    %348 = vector.shape_cast %347 : vector<1x2x128xf32> to vector<2x128xf32>
    %cst_123 = arith.constant dense<0.000000e+00> : vector<2x128xf32>
    %349 = tpu.matmul %338, %8, %cst_123 {dimension_numbers = #tpu.dot_dimension_numbers<[1], [0], [0], [1], [0, 0, 1, 1], [], []>} : vector<2x32xf32>, vector<32x128xf32>, vector<2x128xf32> -> vector<2x128xf32>
    %350 = arith.addf %348, %349 : vector<2x128xf32>
    %351 = vector.extract_strided_slice %350 {offsets = [0, 0], sizes = [2, 96], strides = [1, 1]} : vector<2x128xf32> to vector<2x96xf32>
    %352 = arith.negf %351 : vector<2x96xf32>
    %353 = math.exp %352 : vector<2x96xf32>
    %cst_124 = arith.constant 1.000000e+00 : f32
    %354 = vector.broadcast %cst_124 : f32 to vector<2x96xf32>
    %355 = arith.addf %354, %353 : vector<2x96xf32>
    %356 = arith.divf %354, %355 : vector<2x96xf32>
    %357 = vector.extract_strided_slice %356 {offsets = [0, 0], sizes = [2, 32], strides = [1, 1]} : vector<2x96xf32> to vector<2x32xf32>
    %358 = vector.extract_strided_slice %356 {offsets = [0, 32], sizes = [2, 32], strides = [1, 1]} : vector<2x96xf32> to vector<2x32xf32>
    %359 = vector.extract_strided_slice %356 {offsets = [0, 64], sizes = [2, 32], strides = [1, 1]} : vector<2x96xf32> to vector<2x32xf32>
    %360 = vector.extract_strided_slice %350 {offsets = [0, 96], sizes = [2, 32], strides = [1, 1]} : vector<2x128xf32> to vector<2x32xf32>
    %361 = math.tanh %360 : vector<2x32xf32>
    %362 = arith.mulf %358, %336 : vector<2x32xf32>
    %363 = arith.mulf %357, %361 : vector<2x32xf32>
    %364 = arith.addf %362, %363 : vector<2x32xf32>
    %365 = math.tanh %364 : vector<2x32xf32>
    %366 = arith.mulf %359, %365 : vector<2x32xf32>
    %367 = vector.extract_strided_slice %366 {offsets = [0, 0], sizes = [2, 16], strides = [1, 1]} : vector<2x32xf32> to vector<2x16xf32>
    %c12_125 = arith.constant 12 : index
    %c0_126 = arith.constant 0 : index
    %c0_127 = arith.constant 0 : index
    %368 = vector.load %arg5[%c12_125, %c0_126, %c0_127] : memref<37x2x32xf32, #tpu.memory_space<vmem>>, vector<1x2x16xf32>
    %369 = vector.shape_cast %368 : vector<1x2x16xf32> to vector<2x16xf32>
    %370 = vector.shape_cast %367 : vector<2x16xf32> to vector<1x2x16xf32>
    tpu.vector_store %arg5[%c12_125, %c0_126, %c0_127], %370 {strides = array<i32>} : memref<37x2x32xf32, #tpu.memory_space<vmem>>, vector<1x2x16xf32>,
    %371 = vector.extract_strided_slice %366 {offsets = [0, 16], sizes = [2, 16], strides = [1, 1]} : vector<2x32xf32> to vector<2x16xf32>
    %c24 = arith.constant 24 : index
    %c0_128 = arith.constant 0 : index
    %c16_129 = arith.constant 16 : index
    %372 = vector.load %arg5[%c24, %c0_128, %c16_129] : memref<37x2x32xf32, #tpu.memory_space<vmem>>, vector<1x2x16xf32>
    %373 = vector.shape_cast %372 : vector<1x2x16xf32> to vector<2x16xf32>
    %374 = vector.shape_cast %371 : vector<2x16xf32> to vector<1x2x16xf32>
    tpu.vector_store %arg5[%c24, %c0_128, %c16_129], %374 {strides = array<i32>} : memref<37x2x32xf32, #tpu.memory_space<vmem>>, vector<1x2x16xf32>,
    %c13 = arith.constant 13 : index
    %c0_130 = arith.constant 0 : index
    %c0_131 = arith.constant 0 : index
    %375 = vector.load %arg6[%c13, %c0_130, %c0_131] : memref<37x2x128xf32, #tpu.memory_space<vmem>>, vector<1x2x128xf32>
    %376 = vector.shape_cast %375 : vector<1x2x128xf32> to vector<2x128xf32>
    %cst_132 = arith.constant dense<0.000000e+00> : vector<2x128xf32>
    %377 = tpu.matmul %366, %8, %cst_132 {dimension_numbers = #tpu.dot_dimension_numbers<[1], [0], [0], [1], [0, 0, 1, 1], [], []>} : vector<2x32xf32>, vector<32x128xf32>, vector<2x128xf32> -> vector<2x128xf32>
    %378 = arith.addf %376, %377 : vector<2x128xf32>
    %379 = vector.extract_strided_slice %378 {offsets = [0, 0], sizes = [2, 96], strides = [1, 1]} : vector<2x128xf32> to vector<2x96xf32>
    %380 = arith.negf %379 : vector<2x96xf32>
    %381 = math.exp %380 : vector<2x96xf32>
    %cst_133 = arith.constant 1.000000e+00 : f32
    %382 = vector.broadcast %cst_133 : f32 to vector<2x96xf32>
    %383 = arith.addf %382, %381 : vector<2x96xf32>
    %384 = arith.divf %382, %383 : vector<2x96xf32>
    %385 = vector.extract_strided_slice %384 {offsets = [0, 0], sizes = [2, 32], strides = [1, 1]} : vector<2x96xf32> to vector<2x32xf32>
    %386 = vector.extract_strided_slice %384 {offsets = [0, 32], sizes = [2, 32], strides = [1, 1]} : vector<2x96xf32> to vector<2x32xf32>
    %387 = vector.extract_strided_slice %384 {offsets = [0, 64], sizes = [2, 32], strides = [1, 1]} : vector<2x96xf32> to vector<2x32xf32>
    %388 = vector.extract_strided_slice %378 {offsets = [0, 96], sizes = [2, 32], strides = [1, 1]} : vector<2x128xf32> to vector<2x32xf32>
    %389 = math.tanh %388 : vector<2x32xf32>
    %390 = arith.mulf %386, %364 : vector<2x32xf32>
    %391 = arith.mulf %385, %389 : vector<2x32xf32>
    %392 = arith.addf %390, %391 : vector<2x32xf32>
    %393 = math.tanh %392 : vector<2x32xf32>
    %394 = arith.mulf %387, %393 : vector<2x32xf32>
    %395 = vector.extract_strided_slice %394 {offsets = [0, 0], sizes = [2, 16], strides = [1, 1]} : vector<2x32xf32> to vector<2x16xf32>
    %c13_134 = arith.constant 13 : index
    %c0_135 = arith.constant 0 : index
    %c0_136 = arith.constant 0 : index
    %396 = vector.load %arg5[%c13_134, %c0_135, %c0_136] : memref<37x2x32xf32, #tpu.memory_space<vmem>>, vector<1x2x16xf32>
    %397 = vector.shape_cast %396 : vector<1x2x16xf32> to vector<2x16xf32>
    %398 = vector.shape_cast %395 : vector<2x16xf32> to vector<1x2x16xf32>
    tpu.vector_store %arg5[%c13_134, %c0_135, %c0_136], %398 {strides = array<i32>} : memref<37x2x32xf32, #tpu.memory_space<vmem>>, vector<1x2x16xf32>,
    %399 = vector.extract_strided_slice %394 {offsets = [0, 16], sizes = [2, 16], strides = [1, 1]} : vector<2x32xf32> to vector<2x16xf32>
    %c23 = arith.constant 23 : index
    %c0_137 = arith.constant 0 : index
    %c16_138 = arith.constant 16 : index
    %400 = vector.load %arg5[%c23, %c0_137, %c16_138] : memref<37x2x32xf32, #tpu.memory_space<vmem>>, vector<1x2x16xf32>
    %401 = vector.shape_cast %400 : vector<1x2x16xf32> to vector<2x16xf32>
    %402 = vector.shape_cast %399 : vector<2x16xf32> to vector<1x2x16xf32>
    tpu.vector_store %arg5[%c23, %c0_137, %c16_138], %402 {strides = array<i32>} : memref<37x2x32xf32, #tpu.memory_space<vmem>>, vector<1x2x16xf32>,
    %c14 = arith.constant 14 : index
    %c0_139 = arith.constant 0 : index
    %c0_140 = arith.constant 0 : index
    %403 = vector.load %arg6[%c14, %c0_139, %c0_140] : memref<37x2x128xf32, #tpu.memory_space<vmem>>, vector<1x2x128xf32>
    %404 = vector.shape_cast %403 : vector<1x2x128xf32> to vector<2x128xf32>
    %cst_141 = arith.constant dense<0.000000e+00> : vector<2x128xf32>
    %405 = tpu.matmul %394, %8, %cst_141 {dimension_numbers = #tpu.dot_dimension_numbers<[1], [0], [0], [1], [0, 0, 1, 1], [], []>} : vector<2x32xf32>, vector<32x128xf32>, vector<2x128xf32> -> vector<2x128xf32>
    %406 = arith.addf %404, %405 : vector<2x128xf32>
    %407 = vector.extract_strided_slice %406 {offsets = [0, 0], sizes = [2, 96], strides = [1, 1]} : vector<2x128xf32> to vector<2x96xf32>
    %408 = arith.negf %407 : vector<2x96xf32>
    %409 = math.exp %408 : vector<2x96xf32>
    %cst_142 = arith.constant 1.000000e+00 : f32
    %410 = vector.broadcast %cst_142 : f32 to vector<2x96xf32>
    %411 = arith.addf %410, %409 : vector<2x96xf32>
    %412 = arith.divf %410, %411 : vector<2x96xf32>
    %413 = vector.extract_strided_slice %412 {offsets = [0, 0], sizes = [2, 32], strides = [1, 1]} : vector<2x96xf32> to vector<2x32xf32>
    %414 = vector.extract_strided_slice %412 {offsets = [0, 32], sizes = [2, 32], strides = [1, 1]} : vector<2x96xf32> to vector<2x32xf32>
    %415 = vector.extract_strided_slice %412 {offsets = [0, 64], sizes = [2, 32], strides = [1, 1]} : vector<2x96xf32> to vector<2x32xf32>
    %416 = vector.extract_strided_slice %406 {offsets = [0, 96], sizes = [2, 32], strides = [1, 1]} : vector<2x128xf32> to vector<2x32xf32>
    %417 = math.tanh %416 : vector<2x32xf32>
    %418 = arith.mulf %414, %392 : vector<2x32xf32>
    %419 = arith.mulf %413, %417 : vector<2x32xf32>
    %420 = arith.addf %418, %419 : vector<2x32xf32>
    %421 = math.tanh %420 : vector<2x32xf32>
    %422 = arith.mulf %415, %421 : vector<2x32xf32>
    %423 = vector.extract_strided_slice %422 {offsets = [0, 0], sizes = [2, 16], strides = [1, 1]} : vector<2x32xf32> to vector<2x16xf32>
    %c14_143 = arith.constant 14 : index
    %c0_144 = arith.constant 0 : index
    %c0_145 = arith.constant 0 : index
    %424 = vector.load %arg5[%c14_143, %c0_144, %c0_145] : memref<37x2x32xf32, #tpu.memory_space<vmem>>, vector<1x2x16xf32>
    %425 = vector.shape_cast %424 : vector<1x2x16xf32> to vector<2x16xf32>
    %426 = vector.shape_cast %423 : vector<2x16xf32> to vector<1x2x16xf32>
    tpu.vector_store %arg5[%c14_143, %c0_144, %c0_145], %426 {strides = array<i32>} : memref<37x2x32xf32, #tpu.memory_space<vmem>>, vector<1x2x16xf32>,
    %427 = vector.extract_strided_slice %422 {offsets = [0, 16], sizes = [2, 16], strides = [1, 1]} : vector<2x32xf32> to vector<2x16xf32>
    %c22 = arith.constant 22 : index
    %c0_146 = arith.constant 0 : index
    %c16_147 = arith.constant 16 : index
    %428 = vector.load %arg5[%c22, %c0_146, %c16_147] : memref<37x2x32xf32, #tpu.memory_space<vmem>>, vector<1x2x16xf32>
    %429 = vector.shape_cast %428 : vector<1x2x16xf32> to vector<2x16xf32>
    %430 = vector.shape_cast %427 : vector<2x16xf32> to vector<1x2x16xf32>
    tpu.vector_store %arg5[%c22, %c0_146, %c16_147], %430 {strides = array<i32>} : memref<37x2x32xf32, #tpu.memory_space<vmem>>, vector<1x2x16xf32>,
    %c15 = arith.constant 15 : index
    %c0_148 = arith.constant 0 : index
    %c0_149 = arith.constant 0 : index
    %431 = vector.load %arg6[%c15, %c0_148, %c0_149] : memref<37x2x128xf32, #tpu.memory_space<vmem>>, vector<1x2x128xf32>
    %432 = vector.shape_cast %431 : vector<1x2x128xf32> to vector<2x128xf32>
    %cst_150 = arith.constant dense<0.000000e+00> : vector<2x128xf32>
    %433 = tpu.matmul %422, %8, %cst_150 {dimension_numbers = #tpu.dot_dimension_numbers<[1], [0], [0], [1], [0, 0, 1, 1], [], []>} : vector<2x32xf32>, vector<32x128xf32>, vector<2x128xf32> -> vector<2x128xf32>
    %434 = arith.addf %432, %433 : vector<2x128xf32>
    %435 = vector.extract_strided_slice %434 {offsets = [0, 0], sizes = [2, 96], strides = [1, 1]} : vector<2x128xf32> to vector<2x96xf32>
    %436 = arith.negf %435 : vector<2x96xf32>
    %437 = math.exp %436 : vector<2x96xf32>
    %cst_151 = arith.constant 1.000000e+00 : f32
    %438 = vector.broadcast %cst_151 : f32 to vector<2x96xf32>
    %439 = arith.addf %438, %437 : vector<2x96xf32>
    %440 = arith.divf %438, %439 : vector<2x96xf32>
    %441 = vector.extract_strided_slice %440 {offsets = [0, 0], sizes = [2, 32], strides = [1, 1]} : vector<2x96xf32> to vector<2x32xf32>
    %442 = vector.extract_strided_slice %440 {offsets = [0, 32], sizes = [2, 32], strides = [1, 1]} : vector<2x96xf32> to vector<2x32xf32>
    %443 = vector.extract_strided_slice %440 {offsets = [0, 64], sizes = [2, 32], strides = [1, 1]} : vector<2x96xf32> to vector<2x32xf32>
    %444 = vector.extract_strided_slice %434 {offsets = [0, 96], sizes = [2, 32], strides = [1, 1]} : vector<2x128xf32> to vector<2x32xf32>
    %445 = math.tanh %444 : vector<2x32xf32>
    %446 = arith.mulf %442, %420 : vector<2x32xf32>
    %447 = arith.mulf %441, %445 : vector<2x32xf32>
    %448 = arith.addf %446, %447 : vector<2x32xf32>
    %449 = math.tanh %448 : vector<2x32xf32>
    %450 = arith.mulf %443, %449 : vector<2x32xf32>
    %451 = vector.extract_strided_slice %450 {offsets = [0, 0], sizes = [2, 16], strides = [1, 1]} : vector<2x32xf32> to vector<2x16xf32>
    %c15_152 = arith.constant 15 : index
    %c0_153 = arith.constant 0 : index
    %c0_154 = arith.constant 0 : index
    %452 = vector.load %arg5[%c15_152, %c0_153, %c0_154] : memref<37x2x32xf32, #tpu.memory_space<vmem>>, vector<1x2x16xf32>
    %453 = vector.shape_cast %452 : vector<1x2x16xf32> to vector<2x16xf32>
    %454 = vector.shape_cast %451 : vector<2x16xf32> to vector<1x2x16xf32>
    tpu.vector_store %arg5[%c15_152, %c0_153, %c0_154], %454 {strides = array<i32>} : memref<37x2x32xf32, #tpu.memory_space<vmem>>, vector<1x2x16xf32>,
    %455 = vector.extract_strided_slice %450 {offsets = [0, 16], sizes = [2, 16], strides = [1, 1]} : vector<2x32xf32> to vector<2x16xf32>
    %c21 = arith.constant 21 : index
    %c0_155 = arith.constant 0 : index
    %c16_156 = arith.constant 16 : index
    %456 = vector.load %arg5[%c21, %c0_155, %c16_156] : memref<37x2x32xf32, #tpu.memory_space<vmem>>, vector<1x2x16xf32>
    %457 = vector.shape_cast %456 : vector<1x2x16xf32> to vector<2x16xf32>
    %458 = vector.shape_cast %455 : vector<2x16xf32> to vector<1x2x16xf32>
    tpu.vector_store %arg5[%c21, %c0_155, %c16_156], %458 {strides = array<i32>} : memref<37x2x32xf32, #tpu.memory_space<vmem>>, vector<1x2x16xf32>,
    %c16_157 = arith.constant 16 : index
    %c0_158 = arith.constant 0 : index
    %c0_159 = arith.constant 0 : index
    %459 = vector.load %arg6[%c16_157, %c0_158, %c0_159] : memref<37x2x128xf32, #tpu.memory_space<vmem>>, vector<1x2x128xf32>
    %460 = vector.shape_cast %459 : vector<1x2x128xf32> to vector<2x128xf32>
    %cst_160 = arith.constant dense<0.000000e+00> : vector<2x128xf32>
    %461 = tpu.matmul %450, %8, %cst_160 {dimension_numbers = #tpu.dot_dimension_numbers<[1], [0], [0], [1], [0, 0, 1, 1], [], []>} : vector<2x32xf32>, vector<32x128xf32>, vector<2x128xf32> -> vector<2x128xf32>
    %462 = arith.addf %460, %461 : vector<2x128xf32>
    %463 = vector.extract_strided_slice %462 {offsets = [0, 0], sizes = [2, 96], strides = [1, 1]} : vector<2x128xf32> to vector<2x96xf32>
    %464 = arith.negf %463 : vector<2x96xf32>
    %465 = math.exp %464 : vector<2x96xf32>
    %cst_161 = arith.constant 1.000000e+00 : f32
    %466 = vector.broadcast %cst_161 : f32 to vector<2x96xf32>
    %467 = arith.addf %466, %465 : vector<2x96xf32>
    %468 = arith.divf %466, %467 : vector<2x96xf32>
    %469 = vector.extract_strided_slice %468 {offsets = [0, 0], sizes = [2, 32], strides = [1, 1]} : vector<2x96xf32> to vector<2x32xf32>
    %470 = vector.extract_strided_slice %468 {offsets = [0, 32], sizes = [2, 32], strides = [1, 1]} : vector<2x96xf32> to vector<2x32xf32>
    %471 = vector.extract_strided_slice %468 {offsets = [0, 64], sizes = [2, 32], strides = [1, 1]} : vector<2x96xf32> to vector<2x32xf32>
    %472 = vector.extract_strided_slice %462 {offsets = [0, 96], sizes = [2, 32], strides = [1, 1]} : vector<2x128xf32> to vector<2x32xf32>
    %473 = math.tanh %472 : vector<2x32xf32>
    %474 = arith.mulf %470, %448 : vector<2x32xf32>
    %475 = arith.mulf %469, %473 : vector<2x32xf32>
    %476 = arith.addf %474, %475 : vector<2x32xf32>
    %477 = math.tanh %476 : vector<2x32xf32>
    %478 = arith.mulf %471, %477 : vector<2x32xf32>
    %479 = vector.extract_strided_slice %478 {offsets = [0, 0], sizes = [2, 16], strides = [1, 1]} : vector<2x32xf32> to vector<2x16xf32>
    %c16_162 = arith.constant 16 : index
    %c0_163 = arith.constant 0 : index
    %c0_164 = arith.constant 0 : index
    %480 = vector.load %arg5[%c16_162, %c0_163, %c0_164] : memref<37x2x32xf32, #tpu.memory_space<vmem>>, vector<1x2x16xf32>
    %481 = vector.shape_cast %480 : vector<1x2x16xf32> to vector<2x16xf32>
    %482 = vector.shape_cast %479 : vector<2x16xf32> to vector<1x2x16xf32>
    tpu.vector_store %arg5[%c16_162, %c0_163, %c0_164], %482 {strides = array<i32>} : memref<37x2x32xf32, #tpu.memory_space<vmem>>, vector<1x2x16xf32>,
    %483 = vector.extract_strided_slice %478 {offsets = [0, 16], sizes = [2, 16], strides = [1, 1]} : vector<2x32xf32> to vector<2x16xf32>
    %c20 = arith.constant 20 : index
    %c0_165 = arith.constant 0 : index
    %c16_166 = arith.constant 16 : index
    %484 = vector.load %arg5[%c20, %c0_165, %c16_166] : memref<37x2x32xf32, #tpu.memory_space<vmem>>, vector<1x2x16xf32>
    %485 = vector.shape_cast %484 : vector<1x2x16xf32> to vector<2x16xf32>
    %486 = vector.shape_cast %483 : vector<2x16xf32> to vector<1x2x16xf32>
    tpu.vector_store %arg5[%c20, %c0_165, %c16_166], %486 {strides = array<i32>} : memref<37x2x32xf32, #tpu.memory_space<vmem>>, vector<1x2x16xf32>,
    %c17 = arith.constant 17 : index
    %c0_167 = arith.constant 0 : index
    %c0_168 = arith.constant 0 : index
    %487 = vector.load %arg6[%c17, %c0_167, %c0_168] : memref<37x2x128xf32, #tpu.memory_space<vmem>>, vector<1x2x128xf32>
    %488 = vector.shape_cast %487 : vector<1x2x128xf32> to vector<2x128xf32>
    %cst_169 = arith.constant dense<0.000000e+00> : vector<2x128xf32>
    %489 = tpu.matmul %478, %8, %cst_169 {dimension_numbers = #tpu.dot_dimension_numbers<[1], [0], [0], [1], [0, 0, 1, 1], [], []>} : vector<2x32xf32>, vector<32x128xf32>, vector<2x128xf32> -> vector<2x128xf32>
    %490 = arith.addf %488, %489 : vector<2x128xf32>
    %491 = vector.extract_strided_slice %490 {offsets = [0, 0], sizes = [2, 96], strides = [1, 1]} : vector<2x128xf32> to vector<2x96xf32>
    %492 = arith.negf %491 : vector<2x96xf32>
    %493 = math.exp %492 : vector<2x96xf32>
    %cst_170 = arith.constant 1.000000e+00 : f32
    %494 = vector.broadcast %cst_170 : f32 to vector<2x96xf32>
    %495 = arith.addf %494, %493 : vector<2x96xf32>
    %496 = arith.divf %494, %495 : vector<2x96xf32>
    %497 = vector.extract_strided_slice %496 {offsets = [0, 0], sizes = [2, 32], strides = [1, 1]} : vector<2x96xf32> to vector<2x32xf32>
    %498 = vector.extract_strided_slice %496 {offsets = [0, 32], sizes = [2, 32], strides = [1, 1]} : vector<2x96xf32> to vector<2x32xf32>
    %499 = vector.extract_strided_slice %496 {offsets = [0, 64], sizes = [2, 32], strides = [1, 1]} : vector<2x96xf32> to vector<2x32xf32>
    %500 = vector.extract_strided_slice %490 {offsets = [0, 96], sizes = [2, 32], strides = [1, 1]} : vector<2x128xf32> to vector<2x32xf32>
    %501 = math.tanh %500 : vector<2x32xf32>
    %502 = arith.mulf %498, %476 : vector<2x32xf32>
    %503 = arith.mulf %497, %501 : vector<2x32xf32>
    %504 = arith.addf %502, %503 : vector<2x32xf32>
    %505 = math.tanh %504 : vector<2x32xf32>
    %506 = arith.mulf %499, %505 : vector<2x32xf32>
    %507 = vector.extract_strided_slice %506 {offsets = [0, 0], sizes = [2, 16], strides = [1, 1]} : vector<2x32xf32> to vector<2x16xf32>
    %c17_171 = arith.constant 17 : index
    %c0_172 = arith.constant 0 : index
    %c0_173 = arith.constant 0 : index
    %508 = vector.load %arg5[%c17_171, %c0_172, %c0_173] : memref<37x2x32xf32, #tpu.memory_space<vmem>>, vector<1x2x16xf32>
    %509 = vector.shape_cast %508 : vector<1x2x16xf32> to vector<2x16xf32>
    %510 = vector.shape_cast %507 : vector<2x16xf32> to vector<1x2x16xf32>
    tpu.vector_store %arg5[%c17_171, %c0_172, %c0_173], %510 {strides = array<i32>} : memref<37x2x32xf32, #tpu.memory_space<vmem>>, vector<1x2x16xf32>,
    %511 = vector.extract_strided_slice %506 {offsets = [0, 16], sizes = [2, 16], strides = [1, 1]} : vector<2x32xf32> to vector<2x16xf32>
    %c19 = arith.constant 19 : index
    %c0_174 = arith.constant 0 : index
    %c16_175 = arith.constant 16 : index
    %512 = vector.load %arg5[%c19, %c0_174, %c16_175] : memref<37x2x32xf32, #tpu.memory_space<vmem>>, vector<1x2x16xf32>
    %513 = vector.shape_cast %512 : vector<1x2x16xf32> to vector<2x16xf32>
    %514 = vector.shape_cast %511 : vector<2x16xf32> to vector<1x2x16xf32>
    tpu.vector_store %arg5[%c19, %c0_174, %c16_175], %514 {strides = array<i32>} : memref<37x2x32xf32, #tpu.memory_space<vmem>>, vector<1x2x16xf32>,
    %c18 = arith.constant 18 : index
    %c0_176 = arith.constant 0 : index
    %c0_177 = arith.constant 0 : index
    %515 = vector.load %arg6[%c18, %c0_176, %c0_177] : memref<37x2x128xf32, #tpu.memory_space<vmem>>, vector<1x2x128xf32>
    %516 = vector.shape_cast %515 : vector<1x2x128xf32> to vector<2x128xf32>
    %cst_178 = arith.constant dense<0.000000e+00> : vector<2x128xf32>
    %517 = tpu.matmul %506, %8, %cst_178 {dimension_numbers = #tpu.dot_dimension_numbers<[1], [0], [0], [1], [0, 0, 1, 1], [], []>} : vector<2x32xf32>, vector<32x128xf32>, vector<2x128xf32> -> vector<2x128xf32>
    %518 = arith.addf %516, %517 : vector<2x128xf32>
    %519 = vector.extract_strided_slice %518 {offsets = [0, 0], sizes = [2, 96], strides = [1, 1]} : vector<2x128xf32> to vector<2x96xf32>
    %520 = arith.negf %519 : vector<2x96xf32>
    %521 = math.exp %520 : vector<2x96xf32>
    %cst_179 = arith.constant 1.000000e+00 : f32
    %522 = vector.broadcast %cst_179 : f32 to vector<2x96xf32>
    %523 = arith.addf %522, %521 : vector<2x96xf32>
    %524 = arith.divf %522, %523 : vector<2x96xf32>
    %525 = vector.extract_strided_slice %524 {offsets = [0, 0], sizes = [2, 32], strides = [1, 1]} : vector<2x96xf32> to vector<2x32xf32>
    %526 = vector.extract_strided_slice %524 {offsets = [0, 32], sizes = [2, 32], strides = [1, 1]} : vector<2x96xf32> to vector<2x32xf32>
    %527 = vector.extract_strided_slice %524 {offsets = [0, 64], sizes = [2, 32], strides = [1, 1]} : vector<2x96xf32> to vector<2x32xf32>
    %528 = vector.extract_strided_slice %518 {offsets = [0, 96], sizes = [2, 32], strides = [1, 1]} : vector<2x128xf32> to vector<2x32xf32>
    %529 = math.tanh %528 : vector<2x32xf32>
    %530 = arith.mulf %526, %504 : vector<2x32xf32>
    %531 = arith.mulf %525, %529 : vector<2x32xf32>
    %532 = arith.addf %530, %531 : vector<2x32xf32>
    %533 = math.tanh %532 : vector<2x32xf32>
    %534 = arith.mulf %527, %533 : vector<2x32xf32>
    %535 = vector.extract_strided_slice %534 {offsets = [0, 0], sizes = [2, 16], strides = [1, 1]} : vector<2x32xf32> to vector<2x16xf32>
    %c18_180 = arith.constant 18 : index
    %c0_181 = arith.constant 0 : index
    %c0_182 = arith.constant 0 : index
    %536 = vector.load %arg5[%c18_180, %c0_181, %c0_182] : memref<37x2x32xf32, #tpu.memory_space<vmem>>, vector<1x2x16xf32>
    %537 = vector.shape_cast %536 : vector<1x2x16xf32> to vector<2x16xf32>
    %538 = vector.shape_cast %535 : vector<2x16xf32> to vector<1x2x16xf32>
    tpu.vector_store %arg5[%c18_180, %c0_181, %c0_182], %538 {strides = array<i32>} : memref<37x2x32xf32, #tpu.memory_space<vmem>>, vector<1x2x16xf32>,
    %539 = vector.extract_strided_slice %534 {offsets = [0, 16], sizes = [2, 16], strides = [1, 1]} : vector<2x32xf32> to vector<2x16xf32>
    %c18_183 = arith.constant 18 : index
    %c0_184 = arith.constant 0 : index
    %c16_185 = arith.constant 16 : index
    %540 = vector.load %arg5[%c18_183, %c0_184, %c16_185] : memref<37x2x32xf32, #tpu.memory_space<vmem>>, vector<1x2x16xf32>
    %541 = vector.shape_cast %540 : vector<1x2x16xf32> to vector<2x16xf32>
    %542 = vector.shape_cast %539 : vector<2x16xf32> to vector<1x2x16xf32>
    tpu.vector_store %arg5[%c18_183, %c0_184, %c16_185], %542 {strides = array<i32>} : memref<37x2x32xf32, #tpu.memory_space<vmem>>, vector<1x2x16xf32>,
    %c19_186 = arith.constant 19 : index
    %c0_187 = arith.constant 0 : index
    %c0_188 = arith.constant 0 : index
    %543 = vector.load %arg6[%c19_186, %c0_187, %c0_188] : memref<37x2x128xf32, #tpu.memory_space<vmem>>, vector<1x2x128xf32>
    %544 = vector.shape_cast %543 : vector<1x2x128xf32> to vector<2x128xf32>
    %cst_189 = arith.constant dense<0.000000e+00> : vector<2x128xf32>
    %545 = tpu.matmul %534, %8, %cst_189 {dimension_numbers = #tpu.dot_dimension_numbers<[1], [0], [0], [1], [0, 0, 1, 1], [], []>} : vector<2x32xf32>, vector<32x128xf32>, vector<2x128xf32> -> vector<2x128xf32>
    %546 = arith.addf %544, %545 : vector<2x128xf32>
    %547 = vector.extract_strided_slice %546 {offsets = [0, 0], sizes = [2, 96], strides = [1, 1]} : vector<2x128xf32> to vector<2x96xf32>
    %548 = arith.negf %547 : vector<2x96xf32>
    %549 = math.exp %548 : vector<2x96xf32>
    %cst_190 = arith.constant 1.000000e+00 : f32
    %550 = vector.broadcast %cst_190 : f32 to vector<2x96xf32>
    %551 = arith.addf %550, %549 : vector<2x96xf32>
    %552 = arith.divf %550, %551 : vector<2x96xf32>
    %553 = vector.extract_strided_slice %552 {offsets = [0, 0], sizes = [2, 32], strides = [1, 1]} : vector<2x96xf32> to vector<2x32xf32>
    %554 = vector.extract_strided_slice %552 {offsets = [0, 32], sizes = [2, 32], strides = [1, 1]} : vector<2x96xf32> to vector<2x32xf32>
    %555 = vector.extract_strided_slice %552 {offsets = [0, 64], sizes = [2, 32], strides = [1, 1]} : vector<2x96xf32> to vector<2x32xf32>
    %556 = vector.extract_strided_slice %546 {offsets = [0, 96], sizes = [2, 32], strides = [1, 1]} : vector<2x128xf32> to vector<2x32xf32>
    %557 = math.tanh %556 : vector<2x32xf32>
    %558 = arith.mulf %554, %532 : vector<2x32xf32>
    %559 = arith.mulf %553, %557 : vector<2x32xf32>
    %560 = arith.addf %558, %559 : vector<2x32xf32>
    %561 = math.tanh %560 : vector<2x32xf32>
    %562 = arith.mulf %555, %561 : vector<2x32xf32>
    %563 = vector.extract_strided_slice %562 {offsets = [0, 0], sizes = [2, 16], strides = [1, 1]} : vector<2x32xf32> to vector<2x16xf32>
    %c19_191 = arith.constant 19 : index
    %c0_192 = arith.constant 0 : index
    %c0_193 = arith.constant 0 : index
    %564 = vector.load %arg5[%c19_191, %c0_192, %c0_193] : memref<37x2x32xf32, #tpu.memory_space<vmem>>, vector<1x2x16xf32>
    %565 = vector.shape_cast %564 : vector<1x2x16xf32> to vector<2x16xf32>
    %566 = vector.shape_cast %563 : vector<2x16xf32> to vector<1x2x16xf32>
    tpu.vector_store %arg5[%c19_191, %c0_192, %c0_193], %566 {strides = array<i32>} : memref<37x2x32xf32, #tpu.memory_space<vmem>>, vector<1x2x16xf32>,
    %567 = vector.extract_strided_slice %562 {offsets = [0, 16], sizes = [2, 16], strides = [1, 1]} : vector<2x32xf32> to vector<2x16xf32>
    %c17_194 = arith.constant 17 : index
    %c0_195 = arith.constant 0 : index
    %c16_196 = arith.constant 16 : index
    %568 = vector.load %arg5[%c17_194, %c0_195, %c16_196] : memref<37x2x32xf32, #tpu.memory_space<vmem>>, vector<1x2x16xf32>
    %569 = vector.shape_cast %568 : vector<1x2x16xf32> to vector<2x16xf32>
    %570 = vector.shape_cast %567 : vector<2x16xf32> to vector<1x2x16xf32>
    tpu.vector_store %arg5[%c17_194, %c0_195, %c16_196], %570 {strides = array<i32>} : memref<37x2x32xf32, #tpu.memory_space<vmem>>, vector<1x2x16xf32>,
    %c20_197 = arith.constant 20 : index
    %c0_198 = arith.constant 0 : index
    %c0_199 = arith.constant 0 : index
    %571 = vector.load %arg6[%c20_197, %c0_198, %c0_199] : memref<37x2x128xf32, #tpu.memory_space<vmem>>, vector<1x2x128xf32>
    %572 = vector.shape_cast %571 : vector<1x2x128xf32> to vector<2x128xf32>
    %cst_200 = arith.constant dense<0.000000e+00> : vector<2x128xf32>
    %573 = tpu.matmul %562, %8, %cst_200 {dimension_numbers = #tpu.dot_dimension_numbers<[1], [0], [0], [1], [0, 0, 1, 1], [], []>} : vector<2x32xf32>, vector<32x128xf32>, vector<2x128xf32> -> vector<2x128xf32>
    %574 = arith.addf %572, %573 : vector<2x128xf32>
    %575 = vector.extract_strided_slice %574 {offsets = [0, 0], sizes = [2, 96], strides = [1, 1]} : vector<2x128xf32> to vector<2x96xf32>
    %576 = arith.negf %575 : vector<2x96xf32>
    %577 = math.exp %576 : vector<2x96xf32>
    %cst_201 = arith.constant 1.000000e+00 : f32
    %578 = vector.broadcast %cst_201 : f32 to vector<2x96xf32>
    %579 = arith.addf %578, %577 : vector<2x96xf32>
    %580 = arith.divf %578, %579 : vector<2x96xf32>
    %581 = vector.extract_strided_slice %580 {offsets = [0, 0], sizes = [2, 32], strides = [1, 1]} : vector<2x96xf32> to vector<2x32xf32>
    %582 = vector.extract_strided_slice %580 {offsets = [0, 32], sizes = [2, 32], strides = [1, 1]} : vector<2x96xf32> to vector<2x32xf32>
    %583 = vector.extract_strided_slice %580 {offsets = [0, 64], sizes = [2, 32], strides = [1, 1]} : vector<2x96xf32> to vector<2x32xf32>
    %584 = vector.extract_strided_slice %574 {offsets = [0, 96], sizes = [2, 32], strides = [1, 1]} : vector<2x128xf32> to vector<2x32xf32>
    %585 = math.tanh %584 : vector<2x32xf32>
    %586 = arith.mulf %582, %560 : vector<2x32xf32>
    %587 = arith.mulf %581, %585 : vector<2x32xf32>
    %588 = arith.addf %586, %587 : vector<2x32xf32>
    %589 = math.tanh %588 : vector<2x32xf32>
    %590 = arith.mulf %583, %589 : vector<2x32xf32>
    %591 = vector.extract_strided_slice %590 {offsets = [0, 0], sizes = [2, 16], strides = [1, 1]} : vector<2x32xf32> to vector<2x16xf32>
    %c20_202 = arith.constant 20 : index
    %c0_203 = arith.constant 0 : index
    %c0_204 = arith.constant 0 : index
    %592 = vector.load %arg5[%c20_202, %c0_203, %c0_204] : memref<37x2x32xf32, #tpu.memory_space<vmem>>, vector<1x2x16xf32>
    %593 = vector.shape_cast %592 : vector<1x2x16xf32> to vector<2x16xf32>
    %594 = vector.shape_cast %591 : vector<2x16xf32> to vector<1x2x16xf32>
    tpu.vector_store %arg5[%c20_202, %c0_203, %c0_204], %594 {strides = array<i32>} : memref<37x2x32xf32, #tpu.memory_space<vmem>>, vector<1x2x16xf32>,
    %595 = vector.extract_strided_slice %590 {offsets = [0, 16], sizes = [2, 16], strides = [1, 1]} : vector<2x32xf32> to vector<2x16xf32>
    %c16_205 = arith.constant 16 : index
    %c0_206 = arith.constant 0 : index
    %c16_207 = arith.constant 16 : index
    %596 = vector.load %arg5[%c16_205, %c0_206, %c16_207] : memref<37x2x32xf32, #tpu.memory_space<vmem>>, vector<1x2x16xf32>
    %597 = vector.shape_cast %596 : vector<1x2x16xf32> to vector<2x16xf32>
    %598 = vector.shape_cast %595 : vector<2x16xf32> to vector<1x2x16xf32>
    tpu.vector_store %arg5[%c16_205, %c0_206, %c16_207], %598 {strides = array<i32>} : memref<37x2x32xf32, #tpu.memory_space<vmem>>, vector<1x2x16xf32>,
    %c21_208 = arith.constant 21 : index
    %c0_209 = arith.constant 0 : index
    %c0_210 = arith.constant 0 : index
    %599 = vector.load %arg6[%c21_208, %c0_209, %c0_210] : memref<37x2x128xf32, #tpu.memory_space<vmem>>, vector<1x2x128xf32>
    %600 = vector.shape_cast %599 : vector<1x2x128xf32> to vector<2x128xf32>
    %cst_211 = arith.constant dense<0.000000e+00> : vector<2x128xf32>
    %601 = tpu.matmul %590, %8, %cst_211 {dimension_numbers = #tpu.dot_dimension_numbers<[1], [0], [0], [1], [0, 0, 1, 1], [], []>} : vector<2x32xf32>, vector<32x128xf32>, vector<2x128xf32> -> vector<2x128xf32>
    %602 = arith.addf %600, %601 : vector<2x128xf32>
    %603 = vector.extract_strided_slice %602 {offsets = [0, 0], sizes = [2, 96], strides = [1, 1]} : vector<2x128xf32> to vector<2x96xf32>
    %604 = arith.negf %603 : vector<2x96xf32>
    %605 = math.exp %604 : vector<2x96xf32>
    %cst_212 = arith.constant 1.000000e+00 : f32
    %606 = vector.broadcast %cst_212 : f32 to vector<2x96xf32>
    %607 = arith.addf %606, %605 : vector<2x96xf32>
    %608 = arith.divf %606, %607 : vector<2x96xf32>
    %609 = vector.extract_strided_slice %608 {offsets = [0, 0], sizes = [2, 32], strides = [1, 1]} : vector<2x96xf32> to vector<2x32xf32>
    %610 = vector.extract_strided_slice %608 {offsets = [0, 32], sizes = [2, 32], strides = [1, 1]} : vector<2x96xf32> to vector<2x32xf32>
    %611 = vector.extract_strided_slice %608 {offsets = [0, 64], sizes = [2, 32], strides = [1, 1]} : vector<2x96xf32> to vector<2x32xf32>
    %612 = vector.extract_strided_slice %602 {offsets = [0, 96], sizes = [2, 32], strides = [1, 1]} : vector<2x128xf32> to vector<2x32xf32>
    %613 = math.tanh %612 : vector<2x32xf32>
    %614 = arith.mulf %610, %588 : vector<2x32xf32>
    %615 = arith.mulf %609, %613 : vector<2x32xf32>
    %616 = arith.addf %614, %615 : vector<2x32xf32>
    %617 = math.tanh %616 : vector<2x32xf32>
    %618 = arith.mulf %611, %617 : vector<2x32xf32>
    %619 = vector.extract_strided_slice %618 {offsets = [0, 0], sizes = [2, 16], strides = [1, 1]} : vector<2x32xf32> to vector<2x16xf32>
    %c21_213 = arith.constant 21 : index
    %c0_214 = arith.constant 0 : index
    %c0_215 = arith.constant 0 : index
    %620 = vector.load %arg5[%c21_213, %c0_214, %c0_215] : memref<37x2x32xf32, #tpu.memory_space<vmem>>, vector<1x2x16xf32>
    %621 = vector.shape_cast %620 : vector<1x2x16xf32> to vector<2x16xf32>
    %622 = vector.shape_cast %619 : vector<2x16xf32> to vector<1x2x16xf32>
    tpu.vector_store %arg5[%c21_213, %c0_214, %c0_215], %622 {strides = array<i32>} : memref<37x2x32xf32, #tpu.memory_space<vmem>>, vector<1x2x16xf32>,
    %623 = vector.extract_strided_slice %618 {offsets = [0, 16], sizes = [2, 16], strides = [1, 1]} : vector<2x32xf32> to vector<2x16xf32>
    %c15_216 = arith.constant 15 : index
    %c0_217 = arith.constant 0 : index
    %c16_218 = arith.constant 16 : index
    %624 = vector.load %arg5[%c15_216, %c0_217, %c16_218] : memref<37x2x32xf32, #tpu.memory_space<vmem>>, vector<1x2x16xf32>
    %625 = vector.shape_cast %624 : vector<1x2x16xf32> to vector<2x16xf32>
    %626 = vector.shape_cast %623 : vector<2x16xf32> to vector<1x2x16xf32>
    tpu.vector_store %arg5[%c15_216, %c0_217, %c16_218], %626 {strides = array<i32>} : memref<37x2x32xf32, #tpu.memory_space<vmem>>, vector<1x2x16xf32>,
    %c22_219 = arith.constant 22 : index
    %c0_220 = arith.constant 0 : index
    %c0_221 = arith.constant 0 : index
    %627 = vector.load %arg6[%c22_219, %c0_220, %c0_221] : memref<37x2x128xf32, #tpu.memory_space<vmem>>, vector<1x2x128xf32>
    %628 = vector.shape_cast %627 : vector<1x2x128xf32> to vector<2x128xf32>
    %cst_222 = arith.constant dense<0.000000e+00> : vector<2x128xf32>
    %629 = tpu.matmul %618, %8, %cst_222 {dimension_numbers = #tpu.dot_dimension_numbers<[1], [0], [0], [1], [0, 0, 1, 1], [], []>} : vector<2x32xf32>, vector<32x128xf32>, vector<2x128xf32> -> vector<2x128xf32>
    %630 = arith.addf %628, %629 : vector<2x128xf32>
    %631 = vector.extract_strided_slice %630 {offsets = [0, 0], sizes = [2, 96], strides = [1, 1]} : vector<2x128xf32> to vector<2x96xf32>
    %632 = arith.negf %631 : vector<2x96xf32>
    %633 = math.exp %632 : vector<2x96xf32>
    %cst_223 = arith.constant 1.000000e+00 : f32
    %634 = vector.broadcast %cst_223 : f32 to vector<2x96xf32>
    %635 = arith.addf %634, %633 : vector<2x96xf32>
    %636 = arith.divf %634, %635 : vector<2x96xf32>
    %637 = vector.extract_strided_slice %636 {offsets = [0, 0], sizes = [2, 32], strides = [1, 1]} : vector<2x96xf32> to vector<2x32xf32>
    %638 = vector.extract_strided_slice %636 {offsets = [0, 32], sizes = [2, 32], strides = [1, 1]} : vector<2x96xf32> to vector<2x32xf32>
    %639 = vector.extract_strided_slice %636 {offsets = [0, 64], sizes = [2, 32], strides = [1, 1]} : vector<2x96xf32> to vector<2x32xf32>
    %640 = vector.extract_strided_slice %630 {offsets = [0, 96], sizes = [2, 32], strides = [1, 1]} : vector<2x128xf32> to vector<2x32xf32>
    %641 = math.tanh %640 : vector<2x32xf32>
    %642 = arith.mulf %638, %616 : vector<2x32xf32>
    %643 = arith.mulf %637, %641 : vector<2x32xf32>
    %644 = arith.addf %642, %643 : vector<2x32xf32>
    %645 = math.tanh %644 : vector<2x32xf32>
    %646 = arith.mulf %639, %645 : vector<2x32xf32>
    %647 = vector.extract_strided_slice %646 {offsets = [0, 0], sizes = [2, 16], strides = [1, 1]} : vector<2x32xf32> to vector<2x16xf32>
    %c22_224 = arith.constant 22 : index
    %c0_225 = arith.constant 0 : index
    %c0_226 = arith.constant 0 : index
    %648 = vector.load %arg5[%c22_224, %c0_225, %c0_226] : memref<37x2x32xf32, #tpu.memory_space<vmem>>, vector<1x2x16xf32>
    %649 = vector.shape_cast %648 : vector<1x2x16xf32> to vector<2x16xf32>
    %650 = vector.shape_cast %647 : vector<2x16xf32> to vector<1x2x16xf32>
    tpu.vector_store %arg5[%c22_224, %c0_225, %c0_226], %650 {strides = array<i32>} : memref<37x2x32xf32, #tpu.memory_space<vmem>>, vector<1x2x16xf32>,
    %651 = vector.extract_strided_slice %646 {offsets = [0, 16], sizes = [2, 16], strides = [1, 1]} : vector<2x32xf32> to vector<2x16xf32>
    %c14_227 = arith.constant 14 : index
    %c0_228 = arith.constant 0 : index
    %c16_229 = arith.constant 16 : index
    %652 = vector.load %arg5[%c14_227, %c0_228, %c16_229] : memref<37x2x32xf32, #tpu.memory_space<vmem>>, vector<1x2x16xf32>
    %653 = vector.shape_cast %652 : vector<1x2x16xf32> to vector<2x16xf32>
    %654 = vector.shape_cast %651 : vector<2x16xf32> to vector<1x2x16xf32>
    tpu.vector_store %arg5[%c14_227, %c0_228, %c16_229], %654 {strides = array<i32>} : memref<37x2x32xf32, #tpu.memory_space<vmem>>, vector<1x2x16xf32>,
    %c23_230 = arith.constant 23 : index
    %c0_231 = arith.constant 0 : index
    %c0_232 = arith.constant 0 : index
    %655 = vector.load %arg6[%c23_230, %c0_231, %c0_232] : memref<37x2x128xf32, #tpu.memory_space<vmem>>, vector<1x2x128xf32>
    %656 = vector.shape_cast %655 : vector<1x2x128xf32> to vector<2x128xf32>
    %cst_233 = arith.constant dense<0.000000e+00> : vector<2x128xf32>
    %657 = tpu.matmul %646, %8, %cst_233 {dimension_numbers = #tpu.dot_dimension_numbers<[1], [0], [0], [1], [0, 0, 1, 1], [], []>} : vector<2x32xf32>, vector<32x128xf32>, vector<2x128xf32> -> vector<2x128xf32>
    %658 = arith.addf %656, %657 : vector<2x128xf32>
    %659 = vector.extract_strided_slice %658 {offsets = [0, 0], sizes = [2, 96], strides = [1, 1]} : vector<2x128xf32> to vector<2x96xf32>
    %660 = arith.negf %659 : vector<2x96xf32>
    %661 = math.exp %660 : vector<2x96xf32>
    %cst_234 = arith.constant 1.000000e+00 : f32
    %662 = vector.broadcast %cst_234 : f32 to vector<2x96xf32>
    %663 = arith.addf %662, %661 : vector<2x96xf32>
    %664 = arith.divf %662, %663 : vector<2x96xf32>
    %665 = vector.extract_strided_slice %664 {offsets = [0, 0], sizes = [2, 32], strides = [1, 1]} : vector<2x96xf32> to vector<2x32xf32>
    %666 = vector.extract_strided_slice %664 {offsets = [0, 32], sizes = [2, 32], strides = [1, 1]} : vector<2x96xf32> to vector<2x32xf32>
    %667 = vector.extract_strided_slice %664 {offsets = [0, 64], sizes = [2, 32], strides = [1, 1]} : vector<2x96xf32> to vector<2x32xf32>
    %668 = vector.extract_strided_slice %658 {offsets = [0, 96], sizes = [2, 32], strides = [1, 1]} : vector<2x128xf32> to vector<2x32xf32>
    %669 = math.tanh %668 : vector<2x32xf32>
    %670 = arith.mulf %666, %644 : vector<2x32xf32>
    %671 = arith.mulf %665, %669 : vector<2x32xf32>
    %672 = arith.addf %670, %671 : vector<2x32xf32>
    %673 = math.tanh %672 : vector<2x32xf32>
    %674 = arith.mulf %667, %673 : vector<2x32xf32>
    %675 = vector.extract_strided_slice %674 {offsets = [0, 0], sizes = [2, 16], strides = [1, 1]} : vector<2x32xf32> to vector<2x16xf32>
    %c23_235 = arith.constant 23 : index
    %c0_236 = arith.constant 0 : index
    %c0_237 = arith.constant 0 : index
    %676 = vector.load %arg5[%c23_235, %c0_236, %c0_237] : memref<37x2x32xf32, #tpu.memory_space<vmem>>, vector<1x2x16xf32>
    %677 = vector.shape_cast %676 : vector<1x2x16xf32> to vector<2x16xf32>
    %678 = vector.shape_cast %675 : vector<2x16xf32> to vector<1x2x16xf32>
    tpu.vector_store %arg5[%c23_235, %c0_236, %c0_237], %678 {strides = array<i32>} : memref<37x2x32xf32, #tpu.memory_space<vmem>>, vector<1x2x16xf32>,
    %679 = vector.extract_strided_slice %674 {offsets = [0, 16], sizes = [2, 16], strides = [1, 1]} : vector<2x32xf32> to vector<2x16xf32>
    %c13_238 = arith.constant 13 : index
    %c0_239 = arith.constant 0 : index
    %c16_240 = arith.constant 16 : index
    %680 = vector.load %arg5[%c13_238, %c0_239, %c16_240] : memref<37x2x32xf32, #tpu.memory_space<vmem>>, vector<1x2x16xf32>
    %681 = vector.shape_cast %680 : vector<1x2x16xf32> to vector<2x16xf32>
    %682 = vector.shape_cast %679 : vector<2x16xf32> to vector<1x2x16xf32>
    tpu.vector_store %arg5[%c13_238, %c0_239, %c16_240], %682 {strides = array<i32>} : memref<37x2x32xf32, #tpu.memory_space<vmem>>, vector<1x2x16xf32>,
    %c24_241 = arith.constant 24 : index
    %c0_242 = arith.constant 0 : index
    %c0_243 = arith.constant 0 : index
    %683 = vector.load %arg6[%c24_241, %c0_242, %c0_243] : memref<37x2x128xf32, #tpu.memory_space<vmem>>, vector<1x2x128xf32>
    %684 = vector.shape_cast %683 : vector<1x2x128xf32> to vector<2x128xf32>
    %cst_244 = arith.constant dense<0.000000e+00> : vector<2x128xf32>
    %685 = tpu.matmul %674, %8, %cst_244 {dimension_numbers = #tpu.dot_dimension_numbers<[1], [0], [0], [1], [0, 0, 1, 1], [], []>} : vector<2x32xf32>, vector<32x128xf32>, vector<2x128xf32> -> vector<2x128xf32>
    %686 = arith.addf %684, %685 : vector<2x128xf32>
    %687 = vector.extract_strided_slice %686 {offsets = [0, 0], sizes = [2, 96], strides = [1, 1]} : vector<2x128xf32> to vector<2x96xf32>
    %688 = arith.negf %687 : vector<2x96xf32>
    %689 = math.exp %688 : vector<2x96xf32>
    %cst_245 = arith.constant 1.000000e+00 : f32
    %690 = vector.broadcast %cst_245 : f32 to vector<2x96xf32>
    %691 = arith.addf %690, %689 : vector<2x96xf32>
    %692 = arith.divf %690, %691 : vector<2x96xf32>
    %693 = vector.extract_strided_slice %692 {offsets = [0, 0], sizes = [2, 32], strides = [1, 1]} : vector<2x96xf32> to vector<2x32xf32>
    %694 = vector.extract_strided_slice %692 {offsets = [0, 32], sizes = [2, 32], strides = [1, 1]} : vector<2x96xf32> to vector<2x32xf32>
    %695 = vector.extract_strided_slice %692 {offsets = [0, 64], sizes = [2, 32], strides = [1, 1]} : vector<2x96xf32> to vector<2x32xf32>
    %696 = vector.extract_strided_slice %686 {offsets = [0, 96], sizes = [2, 32], strides = [1, 1]} : vector<2x128xf32> to vector<2x32xf32>
    %697 = math.tanh %696 : vector<2x32xf32>
    %698 = arith.mulf %694, %672 : vector<2x32xf32>
    %699 = arith.mulf %693, %697 : vector<2x32xf32>
    %700 = arith.addf %698, %699 : vector<2x32xf32>
    %701 = math.tanh %700 : vector<2x32xf32>
    %702 = arith.mulf %695, %701 : vector<2x32xf32>
    %703 = vector.extract_strided_slice %702 {offsets = [0, 0], sizes = [2, 16], strides = [1, 1]} : vector<2x32xf32> to vector<2x16xf32>
    %c24_246 = arith.constant 24 : index
    %c0_247 = arith.constant 0 : index
    %c0_248 = arith.constant 0 : index
    %704 = vector.load %arg5[%c24_246, %c0_247, %c0_248] : memref<37x2x32xf32, #tpu.memory_space<vmem>>, vector<1x2x16xf32>
    %705 = vector.shape_cast %704 : vector<1x2x16xf32> to vector<2x16xf32>
    %706 = vector.shape_cast %703 : vector<2x16xf32> to vector<1x2x16xf32>
    tpu.vector_store %arg5[%c24_246, %c0_247, %c0_248], %706 {strides = array<i32>} : memref<37x2x32xf32, #tpu.memory_space<vmem>>, vector<1x2x16xf32>,
    %707 = vector.extract_strided_slice %702 {offsets = [0, 16], sizes = [2, 16], strides = [1, 1]} : vector<2x32xf32> to vector<2x16xf32>
    %c12_249 = arith.constant 12 : index
    %c0_250 = arith.constant 0 : index
    %c16_251 = arith.constant 16 : index
    %708 = vector.load %arg5[%c12_249, %c0_250, %c16_251] : memref<37x2x32xf32, #tpu.memory_space<vmem>>, vector<1x2x16xf32>
    %709 = vector.shape_cast %708 : vector<1x2x16xf32> to vector<2x16xf32>
    %710 = vector.shape_cast %707 : vector<2x16xf32> to vector<1x2x16xf32>
    tpu.vector_store %arg5[%c12_249, %c0_250, %c16_251], %710 {strides = array<i32>} : memref<37x2x32xf32, #tpu.memory_space<vmem>>, vector<1x2x16xf32>,
    %c25_252 = arith.constant 25 : index
    %c0_253 = arith.constant 0 : index
    %c0_254 = arith.constant 0 : index
    %711 = vector.load %arg6[%c25_252, %c0_253, %c0_254] : memref<37x2x128xf32, #tpu.memory_space<vmem>>, vector<1x2x128xf32>
    %712 = vector.shape_cast %711 : vector<1x2x128xf32> to vector<2x128xf32>
    %cst_255 = arith.constant dense<0.000000e+00> : vector<2x128xf32>
    %713 = tpu.matmul %702, %8, %cst_255 {dimension_numbers = #tpu.dot_dimension_numbers<[1], [0], [0], [1], [0, 0, 1, 1], [], []>} : vector<2x32xf32>, vector<32x128xf32>, vector<2x128xf32> -> vector<2x128xf32>
    %714 = arith.addf %712, %713 : vector<2x128xf32>
    %715 = vector.extract_strided_slice %714 {offsets = [0, 0], sizes = [2, 96], strides = [1, 1]} : vector<2x128xf32> to vector<2x96xf32>
    %716 = arith.negf %715 : vector<2x96xf32>
    %717 = math.exp %716 : vector<2x96xf32>
    %cst_256 = arith.constant 1.000000e+00 : f32
    %718 = vector.broadcast %cst_256 : f32 to vector<2x96xf32>
    %719 = arith.addf %718, %717 : vector<2x96xf32>
    %720 = arith.divf %718, %719 : vector<2x96xf32>
    %721 = vector.extract_strided_slice %720 {offsets = [0, 0], sizes = [2, 32], strides = [1, 1]} : vector<2x96xf32> to vector<2x32xf32>
    %722 = vector.extract_strided_slice %720 {offsets = [0, 32], sizes = [2, 32], strides = [1, 1]} : vector<2x96xf32> to vector<2x32xf32>
    %723 = vector.extract_strided_slice %720 {offsets = [0, 64], sizes = [2, 32], strides = [1, 1]} : vector<2x96xf32> to vector<2x32xf32>
    %724 = vector.extract_strided_slice %714 {offsets = [0, 96], sizes = [2, 32], strides = [1, 1]} : vector<2x128xf32> to vector<2x32xf32>
    %725 = math.tanh %724 : vector<2x32xf32>
    %726 = arith.mulf %722, %700 : vector<2x32xf32>
    %727 = arith.mulf %721, %725 : vector<2x32xf32>
    %728 = arith.addf %726, %727 : vector<2x32xf32>
    %729 = math.tanh %728 : vector<2x32xf32>
    %730 = arith.mulf %723, %729 : vector<2x32xf32>
    %731 = vector.extract_strided_slice %730 {offsets = [0, 0], sizes = [2, 16], strides = [1, 1]} : vector<2x32xf32> to vector<2x16xf32>
    %c25_257 = arith.constant 25 : index
    %c0_258 = arith.constant 0 : index
    %c0_259 = arith.constant 0 : index
    %732 = vector.load %arg5[%c25_257, %c0_258, %c0_259] : memref<37x2x32xf32, #tpu.memory_space<vmem>>, vector<1x2x16xf32>
    %733 = vector.shape_cast %732 : vector<1x2x16xf32> to vector<2x16xf32>
    %734 = vector.shape_cast %731 : vector<2x16xf32> to vector<1x2x16xf32>
    tpu.vector_store %arg5[%c25_257, %c0_258, %c0_259], %734 {strides = array<i32>} : memref<37x2x32xf32, #tpu.memory_space<vmem>>, vector<1x2x16xf32>,
    %735 = vector.extract_strided_slice %730 {offsets = [0, 16], sizes = [2, 16], strides = [1, 1]} : vector<2x32xf32> to vector<2x16xf32>
    %c11_260 = arith.constant 11 : index
    %c0_261 = arith.constant 0 : index
    %c16_262 = arith.constant 16 : index
    %736 = vector.load %arg5[%c11_260, %c0_261, %c16_262] : memref<37x2x32xf32, #tpu.memory_space<vmem>>, vector<1x2x16xf32>
    %737 = vector.shape_cast %736 : vector<1x2x16xf32> to vector<2x16xf32>
    %738 = vector.shape_cast %735 : vector<2x16xf32> to vector<1x2x16xf32>
    tpu.vector_store %arg5[%c11_260, %c0_261, %c16_262], %738 {strides = array<i32>} : memref<37x2x32xf32, #tpu.memory_space<vmem>>, vector<1x2x16xf32>,
    %c26_263 = arith.constant 26 : index
    %c0_264 = arith.constant 0 : index
    %c0_265 = arith.constant 0 : index
    %739 = vector.load %arg6[%c26_263, %c0_264, %c0_265] : memref<37x2x128xf32, #tpu.memory_space<vmem>>, vector<1x2x128xf32>
    %740 = vector.shape_cast %739 : vector<1x2x128xf32> to vector<2x128xf32>
    %cst_266 = arith.constant dense<0.000000e+00> : vector<2x128xf32>
    %741 = tpu.matmul %730, %8, %cst_266 {dimension_numbers = #tpu.dot_dimension_numbers<[1], [0], [0], [1], [0, 0, 1, 1], [], []>} : vector<2x32xf32>, vector<32x128xf32>, vector<2x128xf32> -> vector<2x128xf32>
    %742 = arith.addf %740, %741 : vector<2x128xf32>
    %743 = vector.extract_strided_slice %742 {offsets = [0, 0], sizes = [2, 96], strides = [1, 1]} : vector<2x128xf32> to vector<2x96xf32>
    %744 = arith.negf %743 : vector<2x96xf32>
    %745 = math.exp %744 : vector<2x96xf32>
    %cst_267 = arith.constant 1.000000e+00 : f32
    %746 = vector.broadcast %cst_267 : f32 to vector<2x96xf32>
    %747 = arith.addf %746, %745 : vector<2x96xf32>
    %748 = arith.divf %746, %747 : vector<2x96xf32>
    %749 = vector.extract_strided_slice %748 {offsets = [0, 0], sizes = [2, 32], strides = [1, 1]} : vector<2x96xf32> to vector<2x32xf32>
    %750 = vector.extract_strided_slice %748 {offsets = [0, 32], sizes = [2, 32], strides = [1, 1]} : vector<2x96xf32> to vector<2x32xf32>
    %751 = vector.extract_strided_slice %748 {offsets = [0, 64], sizes = [2, 32], strides = [1, 1]} : vector<2x96xf32> to vector<2x32xf32>
    %752 = vector.extract_strided_slice %742 {offsets = [0, 96], sizes = [2, 32], strides = [1, 1]} : vector<2x128xf32> to vector<2x32xf32>
    %753 = math.tanh %752 : vector<2x32xf32>
    %754 = arith.mulf %750, %728 : vector<2x32xf32>
    %755 = arith.mulf %749, %753 : vector<2x32xf32>
    %756 = arith.addf %754, %755 : vector<2x32xf32>
    %757 = math.tanh %756 : vector<2x32xf32>
    %758 = arith.mulf %751, %757 : vector<2x32xf32>
    %759 = vector.extract_strided_slice %758 {offsets = [0, 0], sizes = [2, 16], strides = [1, 1]} : vector<2x32xf32> to vector<2x16xf32>
    %c26_268 = arith.constant 26 : index
    %c0_269 = arith.constant 0 : index
    %c0_270 = arith.constant 0 : index
    %760 = vector.load %arg5[%c26_268, %c0_269, %c0_270] : memref<37x2x32xf32, #tpu.memory_space<vmem>>, vector<1x2x16xf32>
    %761 = vector.shape_cast %760 : vector<1x2x16xf32> to vector<2x16xf32>
    %762 = vector.shape_cast %759 : vector<2x16xf32> to vector<1x2x16xf32>
    tpu.vector_store %arg5[%c26_268, %c0_269, %c0_270], %762 {strides = array<i32>} : memref<37x2x32xf32, #tpu.memory_space<vmem>>, vector<1x2x16xf32>,
    %763 = vector.extract_strided_slice %758 {offsets = [0, 16], sizes = [2, 16], strides = [1, 1]} : vector<2x32xf32> to vector<2x16xf32>
    %c10_271 = arith.constant 10 : index
    %c0_272 = arith.constant 0 : index
    %c16_273 = arith.constant 16 : index
    %764 = vector.load %arg5[%c10_271, %c0_272, %c16_273] : memref<37x2x32xf32, #tpu.memory_space<vmem>>, vector<1x2x16xf32>
    %765 = vector.shape_cast %764 : vector<1x2x16xf32> to vector<2x16xf32>
    %766 = vector.shape_cast %763 : vector<2x16xf32> to vector<1x2x16xf32>
    tpu.vector_store %arg5[%c10_271, %c0_272, %c16_273], %766 {strides = array<i32>} : memref<37x2x32xf32, #tpu.memory_space<vmem>>, vector<1x2x16xf32>,
    %c27_274 = arith.constant 27 : index
    %c0_275 = arith.constant 0 : index
    %c0_276 = arith.constant 0 : index
    %767 = vector.load %arg6[%c27_274, %c0_275, %c0_276] : memref<37x2x128xf32, #tpu.memory_space<vmem>>, vector<1x2x128xf32>
    %768 = vector.shape_cast %767 : vector<1x2x128xf32> to vector<2x128xf32>
    %cst_277 = arith.constant dense<0.000000e+00> : vector<2x128xf32>
    %769 = tpu.matmul %758, %8, %cst_277 {dimension_numbers = #tpu.dot_dimension_numbers<[1], [0], [0], [1], [0, 0, 1, 1], [], []>} : vector<2x32xf32>, vector<32x128xf32>, vector<2x128xf32> -> vector<2x128xf32>
    %770 = arith.addf %768, %769 : vector<2x128xf32>
    %771 = vector.extract_strided_slice %770 {offsets = [0, 0], sizes = [2, 96], strides = [1, 1]} : vector<2x128xf32> to vector<2x96xf32>
    %772 = arith.negf %771 : vector<2x96xf32>
    %773 = math.exp %772 : vector<2x96xf32>
    %cst_278 = arith.constant 1.000000e+00 : f32
    %774 = vector.broadcast %cst_278 : f32 to vector<2x96xf32>
    %775 = arith.addf %774, %773 : vector<2x96xf32>
    %776 = arith.divf %774, %775 : vector<2x96xf32>
    %777 = vector.extract_strided_slice %776 {offsets = [0, 0], sizes = [2, 32], strides = [1, 1]} : vector<2x96xf32> to vector<2x32xf32>
    %778 = vector.extract_strided_slice %776 {offsets = [0, 32], sizes = [2, 32], strides = [1, 1]} : vector<2x96xf32> to vector<2x32xf32>
    %779 = vector.extract_strided_slice %776 {offsets = [0, 64], sizes = [2, 32], strides = [1, 1]} : vector<2x96xf32> to vector<2x32xf32>
    %780 = vector.extract_strided_slice %770 {offsets = [0, 96], sizes = [2, 32], strides = [1, 1]} : vector<2x128xf32> to vector<2x32xf32>
    %781 = math.tanh %780 : vector<2x32xf32>
    %782 = arith.mulf %778, %756 : vector<2x32xf32>
    %783 = arith.mulf %777, %781 : vector<2x32xf32>
    %784 = arith.addf %782, %783 : vector<2x32xf32>
    %785 = math.tanh %784 : vector<2x32xf32>
    %786 = arith.mulf %779, %785 : vector<2x32xf32>
    %787 = vector.extract_strided_slice %786 {offsets = [0, 0], sizes = [2, 16], strides = [1, 1]} : vector<2x32xf32> to vector<2x16xf32>
    %c27_279 = arith.constant 27 : index
    %c0_280 = arith.constant 0 : index
    %c0_281 = arith.constant 0 : index
    %788 = vector.load %arg5[%c27_279, %c0_280, %c0_281] : memref<37x2x32xf32, #tpu.memory_space<vmem>>, vector<1x2x16xf32>
    %789 = vector.shape_cast %788 : vector<1x2x16xf32> to vector<2x16xf32>
    %790 = vector.shape_cast %787 : vector<2x16xf32> to vector<1x2x16xf32>
    tpu.vector_store %arg5[%c27_279, %c0_280, %c0_281], %790 {strides = array<i32>} : memref<37x2x32xf32, #tpu.memory_space<vmem>>, vector<1x2x16xf32>,
    %791 = vector.extract_strided_slice %786 {offsets = [0, 16], sizes = [2, 16], strides = [1, 1]} : vector<2x32xf32> to vector<2x16xf32>
    %c9_282 = arith.constant 9 : index
    %c0_283 = arith.constant 0 : index
    %c16_284 = arith.constant 16 : index
    %792 = vector.load %arg5[%c9_282, %c0_283, %c16_284] : memref<37x2x32xf32, #tpu.memory_space<vmem>>, vector<1x2x16xf32>
    %793 = vector.shape_cast %792 : vector<1x2x16xf32> to vector<2x16xf32>
    %794 = vector.shape_cast %791 : vector<2x16xf32> to vector<1x2x16xf32>
    tpu.vector_store %arg5[%c9_282, %c0_283, %c16_284], %794 {strides = array<i32>} : memref<37x2x32xf32, #tpu.memory_space<vmem>>, vector<1x2x16xf32>,
    %c28_285 = arith.constant 28 : index
    %c0_286 = arith.constant 0 : index
    %c0_287 = arith.constant 0 : index
    %795 = vector.load %arg6[%c28_285, %c0_286, %c0_287] : memref<37x2x128xf32, #tpu.memory_space<vmem>>, vector<1x2x128xf32>
    %796 = vector.shape_cast %795 : vector<1x2x128xf32> to vector<2x128xf32>
    %cst_288 = arith.constant dense<0.000000e+00> : vector<2x128xf32>
    %797 = tpu.matmul %786, %8, %cst_288 {dimension_numbers = #tpu.dot_dimension_numbers<[1], [0], [0], [1], [0, 0, 1, 1], [], []>} : vector<2x32xf32>, vector<32x128xf32>, vector<2x128xf32> -> vector<2x128xf32>
    %798 = arith.addf %796, %797 : vector<2x128xf32>
    %799 = vector.extract_strided_slice %798 {offsets = [0, 0], sizes = [2, 96], strides = [1, 1]} : vector<2x128xf32> to vector<2x96xf32>
    %800 = arith.negf %799 : vector<2x96xf32>
    %801 = math.exp %800 : vector<2x96xf32>
    %cst_289 = arith.constant 1.000000e+00 : f32
    %802 = vector.broadcast %cst_289 : f32 to vector<2x96xf32>
    %803 = arith.addf %802, %801 : vector<2x96xf32>
    %804 = arith.divf %802, %803 : vector<2x96xf32>
    %805 = vector.extract_strided_slice %804 {offsets = [0, 0], sizes = [2, 32], strides = [1, 1]} : vector<2x96xf32> to vector<2x32xf32>
    %806 = vector.extract_strided_slice %804 {offsets = [0, 32], sizes = [2, 32], strides = [1, 1]} : vector<2x96xf32> to vector<2x32xf32>
    %807 = vector.extract_strided_slice %804 {offsets = [0, 64], sizes = [2, 32], strides = [1, 1]} : vector<2x96xf32> to vector<2x32xf32>
    %808 = vector.extract_strided_slice %798 {offsets = [0, 96], sizes = [2, 32], strides = [1, 1]} : vector<2x128xf32> to vector<2x32xf32>
    %809 = math.tanh %808 : vector<2x32xf32>
    %810 = arith.mulf %806, %784 : vector<2x32xf32>
    %811 = arith.mulf %805, %809 : vector<2x32xf32>
    %812 = arith.addf %810, %811 : vector<2x32xf32>
    %813 = math.tanh %812 : vector<2x32xf32>
    %814 = arith.mulf %807, %813 : vector<2x32xf32>
    %815 = vector.extract_strided_slice %814 {offsets = [0, 0], sizes = [2, 16], strides = [1, 1]} : vector<2x32xf32> to vector<2x16xf32>
    %c28_290 = arith.constant 28 : index
    %c0_291 = arith.constant 0 : index
    %c0_292 = arith.constant 0 : index
    %816 = vector.load %arg5[%c28_290, %c0_291, %c0_292] : memref<37x2x32xf32, #tpu.memory_space<vmem>>, vector<1x2x16xf32>
    %817 = vector.shape_cast %816 : vector<1x2x16xf32> to vector<2x16xf32>
    %818 = vector.shape_cast %815 : vector<2x16xf32> to vector<1x2x16xf32>
    tpu.vector_store %arg5[%c28_290, %c0_291, %c0_292], %818 {strides = array<i32>} : memref<37x2x32xf32, #tpu.memory_space<vmem>>, vector<1x2x16xf32>,
    %819 = vector.extract_strided_slice %814 {offsets = [0, 16], sizes = [2, 16], strides = [1, 1]} : vector<2x32xf32> to vector<2x16xf32>
    %c8_293 = arith.constant 8 : index
    %c0_294 = arith.constant 0 : index
    %c16_295 = arith.constant 16 : index
    %820 = vector.load %arg5[%c8_293, %c0_294, %c16_295] : memref<37x2x32xf32, #tpu.memory_space<vmem>>, vector<1x2x16xf32>
    %821 = vector.shape_cast %820 : vector<1x2x16xf32> to vector<2x16xf32>
    %822 = vector.shape_cast %819 : vector<2x16xf32> to vector<1x2x16xf32>
    tpu.vector_store %arg5[%c8_293, %c0_294, %c16_295], %822 {strides = array<i32>} : memref<37x2x32xf32, #tpu.memory_space<vmem>>, vector<1x2x16xf32>,
    %c29_296 = arith.constant 29 : index
    %c0_297 = arith.constant 0 : index
    %c0_298 = arith.constant 0 : index
    %823 = vector.load %arg6[%c29_296, %c0_297, %c0_298] : memref<37x2x128xf32, #tpu.memory_space<vmem>>, vector<1x2x128xf32>
    %824 = vector.shape_cast %823 : vector<1x2x128xf32> to vector<2x128xf32>
    %cst_299 = arith.constant dense<0.000000e+00> : vector<2x128xf32>
    %825 = tpu.matmul %814, %8, %cst_299 {dimension_numbers = #tpu.dot_dimension_numbers<[1], [0], [0], [1], [0, 0, 1, 1], [], []>} : vector<2x32xf32>, vector<32x128xf32>, vector<2x128xf32> -> vector<2x128xf32>
    %826 = arith.addf %824, %825 : vector<2x128xf32>
    %827 = vector.extract_strided_slice %826 {offsets = [0, 0], sizes = [2, 96], strides = [1, 1]} : vector<2x128xf32> to vector<2x96xf32>
    %828 = arith.negf %827 : vector<2x96xf32>
    %829 = math.exp %828 : vector<2x96xf32>
    %cst_300 = arith.constant 1.000000e+00 : f32
    %830 = vector.broadcast %cst_300 : f32 to vector<2x96xf32>
    %831 = arith.addf %830, %829 : vector<2x96xf32>
    %832 = arith.divf %830, %831 : vector<2x96xf32>
    %833 = vector.extract_strided_slice %832 {offsets = [0, 0], sizes = [2, 32], strides = [1, 1]} : vector<2x96xf32> to vector<2x32xf32>
    %834 = vector.extract_strided_slice %832 {offsets = [0, 32], sizes = [2, 32], strides = [1, 1]} : vector<2x96xf32> to vector<2x32xf32>
    %835 = vector.extract_strided_slice %832 {offsets = [0, 64], sizes = [2, 32], strides = [1, 1]} : vector<2x96xf32> to vector<2x32xf32>
    %836 = vector.extract_strided_slice %826 {offsets = [0, 96], sizes = [2, 32], strides = [1, 1]} : vector<2x128xf32> to vector<2x32xf32>
    %837 = math.tanh %836 : vector<2x32xf32>
    %838 = arith.mulf %834, %812 : vector<2x32xf32>
    %839 = arith.mulf %833, %837 : vector<2x32xf32>
    %840 = arith.addf %838, %839 : vector<2x32xf32>
    %841 = math.tanh %840 : vector<2x32xf32>
    %842 = arith.mulf %835, %841 : vector<2x32xf32>
    %843 = vector.extract_strided_slice %842 {offsets = [0, 0], sizes = [2, 16], strides = [1, 1]} : vector<2x32xf32> to vector<2x16xf32>
    %c29_301 = arith.constant 29 : index
    %c0_302 = arith.constant 0 : index
    %c0_303 = arith.constant 0 : index
    %844 = vector.load %arg5[%c29_301, %c0_302, %c0_303] : memref<37x2x32xf32, #tpu.memory_space<vmem>>, vector<1x2x16xf32>
    %845 = vector.shape_cast %844 : vector<1x2x16xf32> to vector<2x16xf32>
    %846 = vector.shape_cast %843 : vector<2x16xf32> to vector<1x2x16xf32>
    tpu.vector_store %arg5[%c29_301, %c0_302, %c0_303], %846 {strides = array<i32>} : memref<37x2x32xf32, #tpu.memory_space<vmem>>, vector<1x2x16xf32>,
    %847 = vector.extract_strided_slice %842 {offsets = [0, 16], sizes = [2, 16], strides = [1, 1]} : vector<2x32xf32> to vector<2x16xf32>
    %c7_304 = arith.constant 7 : index
    %c0_305 = arith.constant 0 : index
    %c16_306 = arith.constant 16 : index
    %848 = vector.load %arg5[%c7_304, %c0_305, %c16_306] : memref<37x2x32xf32, #tpu.memory_space<vmem>>, vector<1x2x16xf32>
    %849 = vector.shape_cast %848 : vector<1x2x16xf32> to vector<2x16xf32>
    %850 = vector.shape_cast %847 : vector<2x16xf32> to vector<1x2x16xf32>
    tpu.vector_store %arg5[%c7_304, %c0_305, %c16_306], %850 {strides = array<i32>} : memref<37x2x32xf32, #tpu.memory_space<vmem>>, vector<1x2x16xf32>,
    %c30_307 = arith.constant 30 : index
    %c0_308 = arith.constant 0 : index
    %c0_309 = arith.constant 0 : index
    %851 = vector.load %arg6[%c30_307, %c0_308, %c0_309] : memref<37x2x128xf32, #tpu.memory_space<vmem>>, vector<1x2x128xf32>
    %852 = vector.shape_cast %851 : vector<1x2x128xf32> to vector<2x128xf32>
    %cst_310 = arith.constant dense<0.000000e+00> : vector<2x128xf32>
    %853 = tpu.matmul %842, %8, %cst_310 {dimension_numbers = #tpu.dot_dimension_numbers<[1], [0], [0], [1], [0, 0, 1, 1], [], []>} : vector<2x32xf32>, vector<32x128xf32>, vector<2x128xf32> -> vector<2x128xf32>
    %854 = arith.addf %852, %853 : vector<2x128xf32>
    %855 = vector.extract_strided_slice %854 {offsets = [0, 0], sizes = [2, 96], strides = [1, 1]} : vector<2x128xf32> to vector<2x96xf32>
    %856 = arith.negf %855 : vector<2x96xf32>
    %857 = math.exp %856 : vector<2x96xf32>
    %cst_311 = arith.constant 1.000000e+00 : f32
    %858 = vector.broadcast %cst_311 : f32 to vector<2x96xf32>
    %859 = arith.addf %858, %857 : vector<2x96xf32>
    %860 = arith.divf %858, %859 : vector<2x96xf32>
    %861 = vector.extract_strided_slice %860 {offsets = [0, 0], sizes = [2, 32], strides = [1, 1]} : vector<2x96xf32> to vector<2x32xf32>
    %862 = vector.extract_strided_slice %860 {offsets = [0, 32], sizes = [2, 32], strides = [1, 1]} : vector<2x96xf32> to vector<2x32xf32>
    %863 = vector.extract_strided_slice %860 {offsets = [0, 64], sizes = [2, 32], strides = [1, 1]} : vector<2x96xf32> to vector<2x32xf32>
    %864 = vector.extract_strided_slice %854 {offsets = [0, 96], sizes = [2, 32], strides = [1, 1]} : vector<2x128xf32> to vector<2x32xf32>
    %865 = math.tanh %864 : vector<2x32xf32>
    %866 = arith.mulf %862, %840 : vector<2x32xf32>
    %867 = arith.mulf %861, %865 : vector<2x32xf32>
    %868 = arith.addf %866, %867 : vector<2x32xf32>
    %869 = math.tanh %868 : vector<2x32xf32>
    %870 = arith.mulf %863, %869 : vector<2x32xf32>
    %871 = vector.extract_strided_slice %870 {offsets = [0, 0], sizes = [2, 16], strides = [1, 1]} : vector<2x32xf32> to vector<2x16xf32>
    %c30_312 = arith.constant 30 : index
    %c0_313 = arith.constant 0 : index
    %c0_314 = arith.constant 0 : index
    %872 = vector.load %arg5[%c30_312, %c0_313, %c0_314] : memref<37x2x32xf32, #tpu.memory_space<vmem>>, vector<1x2x16xf32>
    %873 = vector.shape_cast %872 : vector<1x2x16xf32> to vector<2x16xf32>
    %874 = vector.shape_cast %871 : vector<2x16xf32> to vector<1x2x16xf32>
    tpu.vector_store %arg5[%c30_312, %c0_313, %c0_314], %874 {strides = array<i32>} : memref<37x2x32xf32, #tpu.memory_space<vmem>>, vector<1x2x16xf32>,
    %875 = vector.extract_strided_slice %870 {offsets = [0, 16], sizes = [2, 16], strides = [1, 1]} : vector<2x32xf32> to vector<2x16xf32>
    %c6_315 = arith.constant 6 : index
    %c0_316 = arith.constant 0 : index
    %c16_317 = arith.constant 16 : index
    %876 = vector.load %arg5[%c6_315, %c0_316, %c16_317] : memref<37x2x32xf32, #tpu.memory_space<vmem>>, vector<1x2x16xf32>
    %877 = vector.shape_cast %876 : vector<1x2x16xf32> to vector<2x16xf32>
    %878 = vector.shape_cast %875 : vector<2x16xf32> to vector<1x2x16xf32>
    tpu.vector_store %arg5[%c6_315, %c0_316, %c16_317], %878 {strides = array<i32>} : memref<37x2x32xf32, #tpu.memory_space<vmem>>, vector<1x2x16xf32>,
    %c31_318 = arith.constant 31 : index
    %c0_319 = arith.constant 0 : index
    %c0_320 = arith.constant 0 : index
    %879 = vector.load %arg6[%c31_318, %c0_319, %c0_320] : memref<37x2x128xf32, #tpu.memory_space<vmem>>, vector<1x2x128xf32>
    %880 = vector.shape_cast %879 : vector<1x2x128xf32> to vector<2x128xf32>
    %cst_321 = arith.constant dense<0.000000e+00> : vector<2x128xf32>
    %881 = tpu.matmul %870, %8, %cst_321 {dimension_numbers = #tpu.dot_dimension_numbers<[1], [0], [0], [1], [0, 0, 1, 1], [], []>} : vector<2x32xf32>, vector<32x128xf32>, vector<2x128xf32> -> vector<2x128xf32>
    %882 = arith.addf %880, %881 : vector<2x128xf32>
    %883 = vector.extract_strided_slice %882 {offsets = [0, 0], sizes = [2, 96], strides = [1, 1]} : vector<2x128xf32> to vector<2x96xf32>
    %884 = arith.negf %883 : vector<2x96xf32>
    %885 = math.exp %884 : vector<2x96xf32>
    %cst_322 = arith.constant 1.000000e+00 : f32
    %886 = vector.broadcast %cst_322 : f32 to vector<2x96xf32>
    %887 = arith.addf %886, %885 : vector<2x96xf32>
    %888 = arith.divf %886, %887 : vector<2x96xf32>
    %889 = vector.extract_strided_slice %888 {offsets = [0, 0], sizes = [2, 32], strides = [1, 1]} : vector<2x96xf32> to vector<2x32xf32>
    %890 = vector.extract_strided_slice %888 {offsets = [0, 32], sizes = [2, 32], strides = [1, 1]} : vector<2x96xf32> to vector<2x32xf32>
    %891 = vector.extract_strided_slice %888 {offsets = [0, 64], sizes = [2, 32], strides = [1, 1]} : vector<2x96xf32> to vector<2x32xf32>
    %892 = vector.extract_strided_slice %882 {offsets = [0, 96], sizes = [2, 32], strides = [1, 1]} : vector<2x128xf32> to vector<2x32xf32>
    %893 = math.tanh %892 : vector<2x32xf32>
    %894 = arith.mulf %890, %868 : vector<2x32xf32>
    %895 = arith.mulf %889, %893 : vector<2x32xf32>
    %896 = arith.addf %894, %895 : vector<2x32xf32>
    %897 = math.tanh %896 : vector<2x32xf32>
    %898 = arith.mulf %891, %897 : vector<2x32xf32>
    %899 = vector.extract_strided_slice %898 {offsets = [0, 0], sizes = [2, 16], strides = [1, 1]} : vector<2x32xf32> to vector<2x16xf32>
    %c31_323 = arith.constant 31 : index
    %c0_324 = arith.constant 0 : index
    %c0_325 = arith.constant 0 : index
    %900 = vector.load %arg5[%c31_323, %c0_324, %c0_325] : memref<37x2x32xf32, #tpu.memory_space<vmem>>, vector<1x2x16xf32>
    %901 = vector.shape_cast %900 : vector<1x2x16xf32> to vector<2x16xf32>
    %902 = vector.shape_cast %899 : vector<2x16xf32> to vector<1x2x16xf32>
    tpu.vector_store %arg5[%c31_323, %c0_324, %c0_325], %902 {strides = array<i32>} : memref<37x2x32xf32, #tpu.memory_space<vmem>>, vector<1x2x16xf32>,
    %903 = vector.extract_strided_slice %898 {offsets = [0, 16], sizes = [2, 16], strides = [1, 1]} : vector<2x32xf32> to vector<2x16xf32>
    %c5_326 = arith.constant 5 : index
    %c0_327 = arith.constant 0 : index
    %c16_328 = arith.constant 16 : index
    %904 = vector.load %arg5[%c5_326, %c0_327, %c16_328] : memref<37x2x32xf32, #tpu.memory_space<vmem>>, vector<1x2x16xf32>
    %905 = vector.shape_cast %904 : vector<1x2x16xf32> to vector<2x16xf32>
    %906 = vector.shape_cast %903 : vector<2x16xf32> to vector<1x2x16xf32>
    tpu.vector_store %arg5[%c5_326, %c0_327, %c16_328], %906 {strides = array<i32>} : memref<37x2x32xf32, #tpu.memory_space<vmem>>, vector<1x2x16xf32>,
    %c32_329 = arith.constant 32 : index
    %c0_330 = arith.constant 0 : index
    %c0_331 = arith.constant 0 : index
    %907 = vector.load %arg6[%c32_329, %c0_330, %c0_331] : memref<37x2x128xf32, #tpu.memory_space<vmem>>, vector<1x2x128xf32>
    %908 = vector.shape_cast %907 : vector<1x2x128xf32> to vector<2x128xf32>
    %cst_332 = arith.constant dense<0.000000e+00> : vector<2x128xf32>
    %909 = tpu.matmul %898, %8, %cst_332 {dimension_numbers = #tpu.dot_dimension_numbers<[1], [0], [0], [1], [0, 0, 1, 1], [], []>} : vector<2x32xf32>, vector<32x128xf32>, vector<2x128xf32> -> vector<2x128xf32>
    %910 = arith.addf %908, %909 : vector<2x128xf32>
    %911 = vector.extract_strided_slice %910 {offsets = [0, 0], sizes = [2, 96], strides = [1, 1]} : vector<2x128xf32> to vector<2x96xf32>
    %912 = arith.negf %911 : vector<2x96xf32>
    %913 = math.exp %912 : vector<2x96xf32>
    %cst_333 = arith.constant 1.000000e+00 : f32
    %914 = vector.broadcast %cst_333 : f32 to vector<2x96xf32>
    %915 = arith.addf %914, %913 : vector<2x96xf32>
    %916 = arith.divf %914, %915 : vector<2x96xf32>
    %917 = vector.extract_strided_slice %916 {offsets = [0, 0], sizes = [2, 32], strides = [1, 1]} : vector<2x96xf32> to vector<2x32xf32>
    %918 = vector.extract_strided_slice %916 {offsets = [0, 32], sizes = [2, 32], strides = [1, 1]} : vector<2x96xf32> to vector<2x32xf32>
    %919 = vector.extract_strided_slice %916 {offsets = [0, 64], sizes = [2, 32], strides = [1, 1]} : vector<2x96xf32> to vector<2x32xf32>
    %920 = vector.extract_strided_slice %910 {offsets = [0, 96], sizes = [2, 32], strides = [1, 1]} : vector<2x128xf32> to vector<2x32xf32>
    %921 = math.tanh %920 : vector<2x32xf32>
    %922 = arith.mulf %918, %896 : vector<2x32xf32>
    %923 = arith.mulf %917, %921 : vector<2x32xf32>
    %924 = arith.addf %922, %923 : vector<2x32xf32>
    %925 = math.tanh %924 : vector<2x32xf32>
    %926 = arith.mulf %919, %925 : vector<2x32xf32>
    %927 = vector.extract_strided_slice %926 {offsets = [0, 0], sizes = [2, 16], strides = [1, 1]} : vector<2x32xf32> to vector<2x16xf32>
    %c32_334 = arith.constant 32 : index
    %c0_335 = arith.constant 0 : index
    %c0_336 = arith.constant 0 : index
    %928 = vector.load %arg5[%c32_334, %c0_335, %c0_336] : memref<37x2x32xf32, #tpu.memory_space<vmem>>, vector<1x2x16xf32>
    %929 = vector.shape_cast %928 : vector<1x2x16xf32> to vector<2x16xf32>
    %930 = vector.shape_cast %927 : vector<2x16xf32> to vector<1x2x16xf32>
    tpu.vector_store %arg5[%c32_334, %c0_335, %c0_336], %930 {strides = array<i32>} : memref<37x2x32xf32, #tpu.memory_space<vmem>>, vector<1x2x16xf32>,
    %931 = vector.extract_strided_slice %926 {offsets = [0, 16], sizes = [2, 16], strides = [1, 1]} : vector<2x32xf32> to vector<2x16xf32>
    %c4_337 = arith.constant 4 : index
    %c0_338 = arith.constant 0 : index
    %c16_339 = arith.constant 16 : index
    %932 = vector.load %arg5[%c4_337, %c0_338, %c16_339] : memref<37x2x32xf32, #tpu.memory_space<vmem>>, vector<1x2x16xf32>
    %933 = vector.shape_cast %932 : vector<1x2x16xf32> to vector<2x16xf32>
    %934 = vector.shape_cast %931 : vector<2x16xf32> to vector<1x2x16xf32>
    tpu.vector_store %arg5[%c4_337, %c0_338, %c16_339], %934 {strides = array<i32>} : memref<37x2x32xf32, #tpu.memory_space<vmem>>, vector<1x2x16xf32>,
    %c33_340 = arith.constant 33 : index
    %c0_341 = arith.constant 0 : index
    %c0_342 = arith.constant 0 : index
    %935 = vector.load %arg6[%c33_340, %c0_341, %c0_342] : memref<37x2x128xf32, #tpu.memory_space<vmem>>, vector<1x2x128xf32>
    %936 = vector.shape_cast %935 : vector<1x2x128xf32> to vector<2x128xf32>
    %cst_343 = arith.constant dense<0.000000e+00> : vector<2x128xf32>
    %937 = tpu.matmul %926, %8, %cst_343 {dimension_numbers = #tpu.dot_dimension_numbers<[1], [0], [0], [1], [0, 0, 1, 1], [], []>} : vector<2x32xf32>, vector<32x128xf32>, vector<2x128xf32> -> vector<2x128xf32>
    %938 = arith.addf %936, %937 : vector<2x128xf32>
    %939 = vector.extract_strided_slice %938 {offsets = [0, 0], sizes = [2, 96], strides = [1, 1]} : vector<2x128xf32> to vector<2x96xf32>
    %940 = arith.negf %939 : vector<2x96xf32>
    %941 = math.exp %940 : vector<2x96xf32>
    %cst_344 = arith.constant 1.000000e+00 : f32
    %942 = vector.broadcast %cst_344 : f32 to vector<2x96xf32>
    %943 = arith.addf %942, %941 : vector<2x96xf32>
    %944 = arith.divf %942, %943 : vector<2x96xf32>
    %945 = vector.extract_strided_slice %944 {offsets = [0, 0], sizes = [2, 32], strides = [1, 1]} : vector<2x96xf32> to vector<2x32xf32>
    %946 = vector.extract_strided_slice %944 {offsets = [0, 32], sizes = [2, 32], strides = [1, 1]} : vector<2x96xf32> to vector<2x32xf32>
    %947 = vector.extract_strided_slice %944 {offsets = [0, 64], sizes = [2, 32], strides = [1, 1]} : vector<2x96xf32> to vector<2x32xf32>
    %948 = vector.extract_strided_slice %938 {offsets = [0, 96], sizes = [2, 32], strides = [1, 1]} : vector<2x128xf32> to vector<2x32xf32>
    %949 = math.tanh %948 : vector<2x32xf32>
    %950 = arith.mulf %946, %924 : vector<2x32xf32>
    %951 = arith.mulf %945, %949 : vector<2x32xf32>
    %952 = arith.addf %950, %951 : vector<2x32xf32>
    %953 = math.tanh %952 : vector<2x32xf32>
    %954 = arith.mulf %947, %953 : vector<2x32xf32>
    %955 = vector.extract_strided_slice %954 {offsets = [0, 0], sizes = [2, 16], strides = [1, 1]} : vector<2x32xf32> to vector<2x16xf32>
    %c33_345 = arith.constant 33 : index
    %c0_346 = arith.constant 0 : index
    %c0_347 = arith.constant 0 : index
    %956 = vector.load %arg5[%c33_345, %c0_346, %c0_347] : memref<37x2x32xf32, #tpu.memory_space<vmem>>, vector<1x2x16xf32>
    %957 = vector.shape_cast %956 : vector<1x2x16xf32> to vector<2x16xf32>
    %958 = vector.shape_cast %955 : vector<2x16xf32> to vector<1x2x16xf32>
    tpu.vector_store %arg5[%c33_345, %c0_346, %c0_347], %958 {strides = array<i32>} : memref<37x2x32xf32, #tpu.memory_space<vmem>>, vector<1x2x16xf32>,
    %959 = vector.extract_strided_slice %954 {offsets = [0, 16], sizes = [2, 16], strides = [1, 1]} : vector<2x32xf32> to vector<2x16xf32>
    %c3_348 = arith.constant 3 : index
    %c0_349 = arith.constant 0 : index
    %c16_350 = arith.constant 16 : index
    %960 = vector.load %arg5[%c3_348, %c0_349, %c16_350] : memref<37x2x32xf32, #tpu.memory_space<vmem>>, vector<1x2x16xf32>
    %961 = vector.shape_cast %960 : vector<1x2x16xf32> to vector<2x16xf32>
    %962 = vector.shape_cast %959 : vector<2x16xf32> to vector<1x2x16xf32>
    tpu.vector_store %arg5[%c3_348, %c0_349, %c16_350], %962 {strides = array<i32>} : memref<37x2x32xf32, #tpu.memory_space<vmem>>, vector<1x2x16xf32>,
    %c34_351 = arith.constant 34 : index
    %c0_352 = arith.constant 0 : index
    %c0_353 = arith.constant 0 : index
    %963 = vector.load %arg6[%c34_351, %c0_352, %c0_353] : memref<37x2x128xf32, #tpu.memory_space<vmem>>, vector<1x2x128xf32>
    %964 = vector.shape_cast %963 : vector<1x2x128xf32> to vector<2x128xf32>
    %cst_354 = arith.constant dense<0.000000e+00> : vector<2x128xf32>
    %965 = tpu.matmul %954, %8, %cst_354 {dimension_numbers = #tpu.dot_dimension_numbers<[1], [0], [0], [1], [0, 0, 1, 1], [], []>} : vector<2x32xf32>, vector<32x128xf32>, vector<2x128xf32> -> vector<2x128xf32>
    %966 = arith.addf %964, %965 : vector<2x128xf32>
    %967 = vector.extract_strided_slice %966 {offsets = [0, 0], sizes = [2, 96], strides = [1, 1]} : vector<2x128xf32> to vector<2x96xf32>
    %968 = arith.negf %967 : vector<2x96xf32>
    %969 = math.exp %968 : vector<2x96xf32>
    %cst_355 = arith.constant 1.000000e+00 : f32
    %970 = vector.broadcast %cst_355 : f32 to vector<2x96xf32>
    %971 = arith.addf %970, %969 : vector<2x96xf32>
    %972 = arith.divf %970, %971 : vector<2x96xf32>
    %973 = vector.extract_strided_slice %972 {offsets = [0, 0], sizes = [2, 32], strides = [1, 1]} : vector<2x96xf32> to vector<2x32xf32>
    %974 = vector.extract_strided_slice %972 {offsets = [0, 32], sizes = [2, 32], strides = [1, 1]} : vector<2x96xf32> to vector<2x32xf32>
    %975 = vector.extract_strided_slice %972 {offsets = [0, 64], sizes = [2, 32], strides = [1, 1]} : vector<2x96xf32> to vector<2x32xf32>
    %976 = vector.extract_strided_slice %966 {offsets = [0, 96], sizes = [2, 32], strides = [1, 1]} : vector<2x128xf32> to vector<2x32xf32>
    %977 = math.tanh %976 : vector<2x32xf32>
    %978 = arith.mulf %974, %952 : vector<2x32xf32>
    %979 = arith.mulf %973, %977 : vector<2x32xf32>
    %980 = arith.addf %978, %979 : vector<2x32xf32>
    %981 = math.tanh %980 : vector<2x32xf32>
    %982 = arith.mulf %975, %981 : vector<2x32xf32>
    %983 = vector.extract_strided_slice %982 {offsets = [0, 0], sizes = [2, 16], strides = [1, 1]} : vector<2x32xf32> to vector<2x16xf32>
    %c34_356 = arith.constant 34 : index
    %c0_357 = arith.constant 0 : index
    %c0_358 = arith.constant 0 : index
    %984 = vector.load %arg5[%c34_356, %c0_357, %c0_358] : memref<37x2x32xf32, #tpu.memory_space<vmem>>, vector<1x2x16xf32>
    %985 = vector.shape_cast %984 : vector<1x2x16xf32> to vector<2x16xf32>
    %986 = vector.shape_cast %983 : vector<2x16xf32> to vector<1x2x16xf32>
    tpu.vector_store %arg5[%c34_356, %c0_357, %c0_358], %986 {strides = array<i32>} : memref<37x2x32xf32, #tpu.memory_space<vmem>>, vector<1x2x16xf32>,
    %987 = vector.extract_strided_slice %982 {offsets = [0, 16], sizes = [2, 16], strides = [1, 1]} : vector<2x32xf32> to vector<2x16xf32>
    %c2_359 = arith.constant 2 : index
    %c0_360 = arith.constant 0 : index
    %c16_361 = arith.constant 16 : index
    %988 = vector.load %arg5[%c2_359, %c0_360, %c16_361] : memref<37x2x32xf32, #tpu.memory_space<vmem>>, vector<1x2x16xf32>
    %989 = vector.shape_cast %988 : vector<1x2x16xf32> to vector<2x16xf32>
    %990 = vector.shape_cast %987 : vector<2x16xf32> to vector<1x2x16xf32>
    tpu.vector_store %arg5[%c2_359, %c0_360, %c16_361], %990 {strides = array<i32>} : memref<37x2x32xf32, #tpu.memory_space<vmem>>, vector<1x2x16xf32>,
    %c35_362 = arith.constant 35 : index
    %c0_363 = arith.constant 0 : index
    %c0_364 = arith.constant 0 : index
    %991 = vector.load %arg6[%c35_362, %c0_363, %c0_364] : memref<37x2x128xf32, #tpu.memory_space<vmem>>, vector<1x2x128xf32>
    %992 = vector.shape_cast %991 : vector<1x2x128xf32> to vector<2x128xf32>
    %cst_365 = arith.constant dense<0.000000e+00> : vector<2x128xf32>
    %993 = tpu.matmul %982, %8, %cst_365 {dimension_numbers = #tpu.dot_dimension_numbers<[1], [0], [0], [1], [0, 0, 1, 1], [], []>} : vector<2x32xf32>, vector<32x128xf32>, vector<2x128xf32> -> vector<2x128xf32>
    %994 = arith.addf %992, %993 : vector<2x128xf32>
    %995 = vector.extract_strided_slice %994 {offsets = [0, 0], sizes = [2, 96], strides = [1, 1]} : vector<2x128xf32> to vector<2x96xf32>
    %996 = arith.negf %995 : vector<2x96xf32>
    %997 = math.exp %996 : vector<2x96xf32>
    %cst_366 = arith.constant 1.000000e+00 : f32
    %998 = vector.broadcast %cst_366 : f32 to vector<2x96xf32>
    %999 = arith.addf %998, %997 : vector<2x96xf32>
    %1000 = arith.divf %998, %999 : vector<2x96xf32>
    %1001 = vector.extract_strided_slice %1000 {offsets = [0, 0], sizes = [2, 32], strides = [1, 1]} : vector<2x96xf32> to vector<2x32xf32>
    %1002 = vector.extract_strided_slice %1000 {offsets = [0, 32], sizes = [2, 32], strides = [1, 1]} : vector<2x96xf32> to vector<2x32xf32>
    %1003 = vector.extract_strided_slice %1000 {offsets = [0, 64], sizes = [2, 32], strides = [1, 1]} : vector<2x96xf32> to vector<2x32xf32>
    %1004 = vector.extract_strided_slice %994 {offsets = [0, 96], sizes = [2, 32], strides = [1, 1]} : vector<2x128xf32> to vector<2x32xf32>
    %1005 = math.tanh %1004 : vector<2x32xf32>
    %1006 = arith.mulf %1002, %980 : vector<2x32xf32>
    %1007 = arith.mulf %1001, %1005 : vector<2x32xf32>
    %1008 = arith.addf %1006, %1007 : vector<2x32xf32>
    %1009 = math.tanh %1008 : vector<2x32xf32>
    %1010 = arith.mulf %1003, %1009 : vector<2x32xf32>
    %1011 = vector.extract_strided_slice %1010 {offsets = [0, 0], sizes = [2, 16], strides = [1, 1]} : vector<2x32xf32> to vector<2x16xf32>
    %c35_367 = arith.constant 35 : index
    %c0_368 = arith.constant 0 : index
    %c0_369 = arith.constant 0 : index
    %1012 = vector.load %arg5[%c35_367, %c0_368, %c0_369] : memref<37x2x32xf32, #tpu.memory_space<vmem>>, vector<1x2x16xf32>
    %1013 = vector.shape_cast %1012 : vector<1x2x16xf32> to vector<2x16xf32>
    %1014 = vector.shape_cast %1011 : vector<2x16xf32> to vector<1x2x16xf32>
    tpu.vector_store %arg5[%c35_367, %c0_368, %c0_369], %1014 {strides = array<i32>} : memref<37x2x32xf32, #tpu.memory_space<vmem>>, vector<1x2x16xf32>,
    %1015 = vector.extract_strided_slice %1010 {offsets = [0, 16], sizes = [2, 16], strides = [1, 1]} : vector<2x32xf32> to vector<2x16xf32>
    %c1_370 = arith.constant 1 : index
    %c0_371 = arith.constant 0 : index
    %c16_372 = arith.constant 16 : index
    %1016 = vector.load %arg5[%c1_370, %c0_371, %c16_372] : memref<37x2x32xf32, #tpu.memory_space<vmem>>, vector<1x2x16xf32>
    %1017 = vector.shape_cast %1016 : vector<1x2x16xf32> to vector<2x16xf32>
    %1018 = vector.shape_cast %1015 : vector<2x16xf32> to vector<1x2x16xf32>
    tpu.vector_store %arg5[%c1_370, %c0_371, %c16_372], %1018 {strides = array<i32>} : memref<37x2x32xf32, #tpu.memory_space<vmem>>, vector<1x2x16xf32>,
    %c36_373 = arith.constant 36 : index
    %c0_374 = arith.constant 0 : index
    %c0_375 = arith.constant 0 : index
    %1019 = vector.load %arg6[%c36_373, %c0_374, %c0_375] : memref<37x2x128xf32, #tpu.memory_space<vmem>>, vector<1x2x128xf32>
    %1020 = vector.shape_cast %1019 : vector<1x2x128xf32> to vector<2x128xf32>
    %cst_376 = arith.constant dense<0.000000e+00> : vector<2x128xf32>
    %1021 = tpu.matmul %1010, %8, %cst_376 {dimension_numbers = #tpu.dot_dimension_numbers<[1], [0], [0], [1], [0, 0, 1, 1], [], []>} : vector<2x32xf32>, vector<32x128xf32>, vector<2x128xf32> -> vector<2x128xf32>
    %1022 = arith.addf %1020, %1021 : vector<2x128xf32>
    %1023 = vector.extract_strided_slice %1022 {offsets = [0, 0], sizes = [2, 96], strides = [1, 1]} : vector<2x128xf32> to vector<2x96xf32>
    %1024 = arith.negf %1023 : vector<2x96xf32>
    %1025 = math.exp %1024 : vector<2x96xf32>
    %cst_377 = arith.constant 1.000000e+00 : f32
    %1026 = vector.broadcast %cst_377 : f32 to vector<2x96xf32>
    %1027 = arith.addf %1026, %1025 : vector<2x96xf32>
    %1028 = arith.divf %1026, %1027 : vector<2x96xf32>
    %1029 = vector.extract_strided_slice %1028 {offsets = [0, 0], sizes = [2, 32], strides = [1, 1]} : vector<2x96xf32> to vector<2x32xf32>
    %1030 = vector.extract_strided_slice %1028 {offsets = [0, 32], sizes = [2, 32], strides = [1, 1]} : vector<2x96xf32> to vector<2x32xf32>
    %1031 = vector.extract_strided_slice %1028 {offsets = [0, 64], sizes = [2, 32], strides = [1, 1]} : vector<2x96xf32> to vector<2x32xf32>
    %1032 = vector.extract_strided_slice %1022 {offsets = [0, 96], sizes = [2, 32], strides = [1, 1]} : vector<2x128xf32> to vector<2x32xf32>
    %1033 = math.tanh %1032 : vector<2x32xf32>
    %1034 = arith.mulf %1030, %1008 : vector<2x32xf32>
    %1035 = arith.mulf %1029, %1033 : vector<2x32xf32>
    %1036 = arith.addf %1034, %1035 : vector<2x32xf32>
    %1037 = math.tanh %1036 : vector<2x32xf32>
    %1038 = arith.mulf %1031, %1037 : vector<2x32xf32>
    %1039 = vector.extract_strided_slice %1038 {offsets = [0, 0], sizes = [2, 16], strides = [1, 1]} : vector<2x32xf32> to vector<2x16xf32>
    %c36_378 = arith.constant 36 : index
    %c0_379 = arith.constant 0 : index
    %c0_380 = arith.constant 0 : index
    %1040 = vector.load %arg5[%c36_378, %c0_379, %c0_380] : memref<37x2x32xf32, #tpu.memory_space<vmem>>, vector<1x2x16xf32>
    %1041 = vector.shape_cast %1040 : vector<1x2x16xf32> to vector<2x16xf32>
    %1042 = vector.shape_cast %1039 : vector<2x16xf32> to vector<1x2x16xf32>
    tpu.vector_store %arg5[%c36_378, %c0_379, %c0_380], %1042 {strides = array<i32>} : memref<37x2x32xf32, #tpu.memory_space<vmem>>, vector<1x2x16xf32>,
    %1043 = vector.extract_strided_slice %1038 {offsets = [0, 16], sizes = [2, 16], strides = [1, 1]} : vector<2x32xf32> to vector<2x16xf32>
    %c0_381 = arith.constant 0 : index
    %c0_382 = arith.constant 0 : index
    %c16_383 = arith.constant 16 : index
    %1044 = vector.load %arg5[%c0_381, %c0_382, %c16_383] : memref<37x2x32xf32, #tpu.memory_space<vmem>>, vector<1x2x16xf32>
    %1045 = vector.shape_cast %1044 : vector<1x2x16xf32> to vector<2x16xf32>
    %1046 = vector.shape_cast %1043 : vector<2x16xf32> to vector<1x2x16xf32>
    tpu.vector_store %arg5[%c0_381, %c0_382, %c16_383], %1046 {strides = array<i32>} : memref<37x2x32xf32, #tpu.memory_space<vmem>>, vector<1x2x16xf32>,
    %c0_384 = arith.constant 0 : index
    %c0_385 = arith.constant 0 : index
    %c0_386 = arith.constant 0 : index
    %1047 = vector.load %arg5[%c0_384, %c0_385, %c0_386] : memref<37x2x32xf32, #tpu.memory_space<vmem>>, vector<37x2x32xf32>
    %c0_387 = arith.constant 0 : index
    %c0_388 = arith.constant 0 : index
    %c0_389 = arith.constant 0 : index
    %1048 = vector.load %arg4[%c0_387, %c0_388, %c0_389] : memref<37x2x32xf32, #tpu.memory_space<vmem>>, vector<37x2x32xf32>
    %1049 = arith.addf %1047, %1048 : vector<37x2x32xf32>
    %c0_390 = arith.constant 0 : index
    %c0_391 = arith.constant 0 : index
    %c0_392 = arith.constant 0 : index
    %1050 = vector.load %arg5[%c0_390, %c0_391, %c0_392] : memref<37x2x32xf32, #tpu.memory_space<vmem>>, vector<37x2x32xf32>
    tpu.vector_store %arg5[%c0_390, %c0_391, %c0_392], %1049 {strides = array<i32>} : memref<37x2x32xf32, #tpu.memory_space<vmem>>, vector<37x2x32xf32>,
    return
  }
}

</mosaic_0001>

<llo_original>
// kernel: tpu_custom_call.1
$region0: #{tpu_custom_call.1}
  #allocation0 [shape = 'u32[]', space=smem, size = 0x4, offset = 0x4, fixed_abs, tag = 'smem constant byte address 0x4 - core index']
  #allocation1 [shape = 'u32[144,128]{1,0:T(1,128)}', space=vmem, size = 0x12000, scoped, tag = 'internal scratch']
  #allocation2 [shape = 'f32[37,2,128]{2,1,0:T(2,128)}', space=vmem, size = 0x9400, scoped, tag = 'scratch operand']
  %s0 = inlined_call_operand.vmem [shape: f32[37,2,16], index: 0, kind: input, shape index: {}]
  %s1 = inlined_call_operand.vmem [shape: f32[16,128], index: 1, kind: input, shape index: {}]
  %s2 = inlined_call_operand.vmem [shape: f32[32,128], index: 2, kind: input, shape index: {}]
  %s3 = inlined_call_operand.vmem [shape: f32[1,128], index: 3, kind: input, shape index: {}]
  %s4 = inlined_call_operand.vmem [shape: f32[37,2,32], index: 4, kind: input, shape index: {}]
  %s5 = inlined_call_operand.vmem [shape: f32[37,2,32], index: 5, kind: output, shape index: {}]
  %s6 = sld [smem:[#allocation0]]
  $region30: #{tpu_custom_call.1} parent=0
    _
  %s8 = ssub.s32 1, %s6
  %s9 = scalar_select 0, %s8, %s6
  // Predicated region
  $region2: #{tpu_custom_call.1} parent=0 // pred_check
    _
  $region3: #{tpu_custom_call.1} parent=0 // pred_check_branch
    %11 = sbr.rel (0) target = $region5
  $region4: #{tpu_custom_call.1} parent=0 // pred_region
    _
  $region5: #{tpu_custom_call.1} parent=0 // pred_fallthru
    _
  // Predicated region
  $region6: #{tpu_custom_call.1} parent=0 // pred_check
    _
  $region7: #{tpu_custom_call.1} parent=0 // pred_check_branch
    %13 = sbr.rel (0) target = $region9
  $region8: #{tpu_custom_call.1} parent=0 // pred_region
    _
  $region9: #{tpu_custom_call.1} parent=0 // pred_fallthru
    _
  // Predicated region
  $region10: #{tpu_custom_call.1} parent=0 // pred_check
    _
  $region11: #{tpu_custom_call.1} parent=0 // pred_check_branch
    %15 = sbr.rel (0) target = $region13
  $region12: #{tpu_custom_call.1} parent=0 // pred_region
    _
  $region13: #{tpu_custom_call.1} parent=0 // pred_fallthru
    _
  // Predicated region
  $region14: #{tpu_custom_call.1} parent=0 // pred_check
    _
  $region15: #{tpu_custom_call.1} parent=0 // pred_check_branch
    %17 = sbr.rel (0) target = $region17
  $region16: #{tpu_custom_call.1} parent=0 // pred_region
    _
  $region17: #{tpu_custom_call.1} parent=0 // pred_fallthru
    _
  // Predicated region
  $region18: #{tpu_custom_call.1} parent=0 // pred_check
    _
  $region19: #{tpu_custom_call.1} parent=0 // pred_check_branch
    %19 = sbr.rel (0) target = $region21
  $region20: #{tpu_custom_call.1} parent=0 // pred_region
    _
  $region21: #{tpu_custom_call.1} parent=0 // pred_fallthru
    _
  %v20 = vld [vmem:[%s0] sm:$0x3]
  %v21 = vld [vmem:[%s0 + $0x2] sm:$0x3]
  %v22 = vld [vmem:[%s0 + $0x4] sm:$0x3]
  %v23 = vld [vmem:[%s0 + $0x6] sm:$0x3]
  %v24 = vld [vmem:[%s0 + $0x8] sm:$0x3]
  %v25 = vld [vmem:[%s0 + $0xa] sm:$0x3]
  %v26 = vld [vmem:[%s0 + $0xc] sm:$0x3]
  %v27 = vld [vmem:[%s0 + $0xe] sm:$0x3]
  %v28 = vld [vmem:[%s0 + $0x10] sm:$0x3]
  %v29 = vld [vmem:[%s0 + $0x12] sm:$0x3]
  %v30 = vld [vmem:[%s0 + $0x14] sm:$0x3]
  %v31 = vld [vmem:[%s0 + $0x16] sm:$0x3]
  %v32 = vld [vmem:[%s0 + $0x18] sm:$0x3]
  %v33 = vld [vmem:[%s0 + $0x1a] sm:$0x3]
  %v34 = vld [vmem:[%s0 + $0x1c] sm:$0x3]
  %v35 = vld [vmem:[%s0 + $0x1e] sm:$0x3]
  %v36 = vld [vmem:[%s0 + $0x20] sm:$0x3]
  %v37 = vld [vmem:[%s0 + $0x22] sm:$0x3]
  %v38 = vld [vmem:[%s0 + $0x24] sm:$0x3]
  %v39 = vld [vmem:[%s0 + $0x26] sm:$0x3]
  %v40 = vld [vmem:[%s0 + $0x28] sm:$0x3]
  %v41 = vld [vmem:[%s0 + $0x2a] sm:$0x3]
  %v42 = vld [vmem:[%s0 + $0x2c] sm:$0x3]
  %v43 = vld [vmem:[%s0 + $0x2e] sm:$0x3]
  %v44 = vld [vmem:[%s0 + $0x30] sm:$0x3]
  %v45 = vld [vmem:[%s0 + $0x32] sm:$0x3]
  %v46 = vld [vmem:[%s0 + $0x34] sm:$0x3]
  %v47 = vld [vmem:[%s0 + $0x36] sm:$0x3]
  %v48 = vld [vmem:[%s0 + $0x38] sm:$0x3]
  %v49 = vld [vmem:[%s0 + $0x3a] sm:$0x3]
  %v50 = vld [vmem:[%s0 + $0x3c] sm:$0x3]
  %v51 = vld [vmem:[%s0 + $0x3e] sm:$0x3]
  %v52 = vld [vmem:[%s0 + $0x40] sm:$0x3]
  %v53 = vld [vmem:[%s0 + $0x42] sm:$0x3]
  %v54 = vld [vmem:[%s0 + $0x44] sm:$0x3]
  %v55 = vld [vmem:[%s0 + $0x46] sm:$0x3]
  %v56 = vld [vmem:[%s0 + $0x48] sm:$0x3]
  %v57 = vld [vmem:[%s1] sm:$0xff]
  %v58 = vld [vmem:[%s1 + $0x8] sm:$0xff]
  %v59 = vld [vmem:[%s3] sm:$0x1]
  %v61 = vlaneseq
  %v62 = vshrl.u32 %v61, 7
  %v63 = vsub.s32 0, %v62
  %v64 = vrot.slane %v59, %v63
  %v102 = vcombine.low %v20, %v21
  %v103 = vcombine.low %v22, %v23
  %v105 = vunpack.c.l.s4 1983009808
  %v106 = vunpack.c.0.s8 %v105
  %v107 = vlaneseq
  %v108 = vshrl.u32 %v107, 7
  %v109 = vsub.s32 %v106, %v108
  %v110 = vrot.slane %v102, %v109
  %v112 = vunpack.c.l.s4 1983009808
  %v113 = vunpack.c.0.s8 %v112
  %v114 = vlaneseq
  %v115 = vshrl.u32 %v114, 7
  %v116 = vsub.s32 %v113, %v115
  %v117 = vrot.slane %v103, %v116
  %v118 = vcombine.low %v110, %v117
  %v119 = vcombine.low %v24, %v25
  %v120 = vcombine.low %v26, %v27
  %v122 = vunpack.c.l.s4 1983009808
  %v123 = vunpack.c.0.s8 %v122
  %v124 = vlaneseq
  %v125 = vshrl.u32 %v124, 7
  %v126 = vsub.s32 %v123, %v125
  %v127 = vrot.slane %v119, %v126
  %v129 = vunpack.c.l.s4 1983009808
  %v130 = vunpack.c.0.s8 %v129
  %v131 = vlaneseq
  %v132 = vshrl.u32 %v131, 7
  %v133 = vsub.s32 %v130, %v132
  %v134 = vrot.slane %v120, %v133
  %v135 = vcombine.low %v127, %v134
  %v136 = vcombine.low %v28, %v29
  %v137 = vcombine.low %v30, %v31
  %v139 = vunpack.c.l.s4 1983009808
  %v140 = vunpack.c.0.s8 %v139
  %v141 = vlaneseq
  %v142 = vshrl.u32 %v141, 7
  %v143 = vsub.s32 %v140, %v142
  %v144 = vrot.slane %v136, %v143
  %v146 = vunpack.c.l.s4 1983009808
  %v147 = vunpack.c.0.s8 %v146
  %v148 = vlaneseq
  %v149 = vshrl.u32 %v148, 7
  %v150 = vsub.s32 %v147, %v149
  %v151 = vrot.slane %v137, %v150
  %v152 = vcombine.low %v144, %v151
  %v153 = vcombine.low %v32, %v33
  %v154 = vcombine.low %v34, %v35
  %v156 = vunpack.c.l.s4 1983009808
  %v157 = vunpack.c.0.s8 %v156
  %v158 = vlaneseq
  %v159 = vshrl.u32 %v158, 7
  %v160 = vsub.s32 %v157, %v159
  %v161 = vrot.slane %v153, %v160
  %v163 = vunpack.c.l.s4 1983009808
  %v164 = vunpack.c.0.s8 %v163
  %v165 = vlaneseq
  %v166 = vshrl.u32 %v165, 7
  %v167 = vsub.s32 %v164, %v166
  %v168 = vrot.slane %v154, %v167
  %v169 = vcombine.low %v161, %v168
  %v170 = vcombine.low %v36, %v37
  %v171 = vcombine.low %v38, %v39
  %v173 = vunpack.c.l.s4 1983009808
  %v174 = vunpack.c.0.s8 %v173
  %v175 = vlaneseq
  %v176 = vshrl.u32 %v175, 7
  %v177 = vsub.s32 %v174, %v176
  %v178 = vrot.slane %v170, %v177
  %v180 = vunpack.c.l.s4 1983009808
  %v181 = vunpack.c.0.s8 %v180
  %v182 = vlaneseq
  %v183 = vshrl.u32 %v182, 7
  %v184 = vsub.s32 %v181, %v183
  %v185 = vrot.slane %v171, %v184
  %v186 = vcombine.low %v178, %v185
  %v187 = vcombine.low %v40, %v41
  %v188 = vcombine.low %v42, %v43
  %v190 = vunpack.c.l.s4 1983009808
  %v191 = vunpack.c.0.s8 %v190
  %v192 = vlaneseq
  %v193 = vshrl.u32 %v192, 7
  %v194 = vsub.s32 %v191, %v193
  %v195 = vrot.slane %v187, %v194
  %v197 = vunpack.c.l.s4 1983009808
  %v198 = vunpack.c.0.s8 %v197
  %v199 = vlaneseq
  %v200 = vshrl.u32 %v199, 7
  %v201 = vsub.s32 %v198, %v200
  %v202 = vrot.slane %v188, %v201
  %v203 = vcombine.low %v195, %v202
  %v204 = vcombine.low %v44, %v45
  %v205 = vcombine.low %v46, %v47
  %v207 = vunpack.c.l.s4 1983009808
  %v208 = vunpack.c.0.s8 %v207
  %v209 = vlaneseq
  %v210 = vshrl.u32 %v209, 7
  %v211 = vsub.s32 %v208, %v210
  %v212 = vrot.slane %v204, %v211
  %v214 = vunpack.c.l.s4 1983009808
  %v215 = vunpack.c.0.s8 %v214
  %v216 = vlaneseq
  %v217 = vshrl.u32 %v216, 7
  %v218 = vsub.s32 %v215, %v217
  %v219 = vrot.slane %v205, %v218
  %v220 = vcombine.low %v212, %v219
  %v221 = vcombine.low %v48, %v49
  %v222 = vcombine.low %v50, %v51
  %v224 = vunpack.c.l.s4 1983009808
  %v225 = vunpack.c.0.s8 %v224
  %v226 = vlaneseq
  %v227 = vshrl.u32 %v226, 7
  %v228 = vsub.s32 %v225, %v227
  %v229 = vrot.slane %v221, %v228
  %v231 = vunpack.c.l.s4 1983009808
  %v232 = vunpack.c.0.s8 %v231
  %v233 = vlaneseq
  %v234 = vshrl.u32 %v233, 7
  %v235 = vsub.s32 %v232, %v234
  %v236 = vrot.slane %v222, %v235
  %v237 = vcombine.low %v229, %v236
  %v238 = vcombine.low %v52, %v53
  %v239 = vcombine.low %v54, %v55
  %v241 = vunpack.c.l.s4 1983009808
  %v242 = vunpack.c.0.s8 %v241
  %v243 = vlaneseq
  %v244 = vshrl.u32 %v243, 7
  %v245 = vsub.s32 %v242, %v244
  %v246 = vrot.slane %v238, %v245
  %v248 = vunpack.c.l.s4 1983009808
  %v249 = vunpack.c.0.s8 %v248
  %v250 = vlaneseq
  %v251 = vshrl.u32 %v250, 7
  %v252 = vsub.s32 %v249, %v251
  %v253 = vrot.slane %v239, %v252
  %v254 = vcombine.low %v246, %v253
  %v256 = vunpack.c.l.s4 1983009808
  %v257 = vunpack.c.0.s8 %v256
  %v258 = vlaneseq
  %v259 = vshrl.u32 %v258, 7
  %v260 = vsub.s32 %v257, %v259
  %v261 = vrot.slane %v56, %v260
  %v262 = vcombine.low %v64, %v64
  %v264 = vunpack.c.l.s4 1983009808
  %v265 = vunpack.c.0.s8 %v264
  %v266 = vlaneseq
  %v267 = vshrl.u32 %v266, 7
  %v268 = vsub.s32 %v265, %v267
  %v269 = vrot.slane %v262, %v268
  %v270 = vcombine.low %v269, %v269
  %v272 = vunpack.c.l.s4 1983009808
  %v273 = vunpack.c.0.s8 %v272
  %v274 = vlaneseq
  %v275 = vshrl.u32 %v274, 7
  %v276 = vsub.s32 %v273, %v275
  %v277 = vrot.slane %v64, %v276
  %vm280 = vcmask 130048
  %v281 = vsel %vm280, %v118, 0
  %v283 = vsel %vm280, %v135, 0
  %v285 = vsel %vm280, %v152, 0
  %v287 = vsel %vm280, %v169, 0
  %v289 = vsel %vm280, %v186, 0
  %v291 = vsel %vm280, %v203, 0
  %v293 = vsel %vm280, %v220, 0
  %v295 = vsel %vm280, %v237, 0
  %v297 = vsel %vm280, %v254, 0
  %v299 = vsel %vm280, %v261, 0
  %301 = vmatprep.subr.mxu0 0.0
  %302 = vmatpush1.msra.mxu0 %v57
  %303 = vmatprep.subr.mxu0 0.0
  %304 = vmatpush1.msra.mxu0 %v58
  %305 = vmatprep.subr.mxu0 0.0
  %306 = vmatpush1.msra.mxu0 0.0
  %307 = vmatprep.subr.mxu0 0.0
  %308 = vmatpush1.msra.mxu0 0.0
  %309 = vmatprep.subr.mxu0 0.0
  %310 = vmatpush1.msra.mxu0 0.0
  %311 = vmatprep.subr.mxu0 0.0
  %312 = vmatpush1.msra.mxu0 0.0
  %313 = vmatprep.subr.mxu0 0.0
  %314 = vmatpush1.msra.mxu0 0.0
  %315 = vmatprep.subr.mxu0 0.0
  %316 = vmatpush1.msra.mxu0 0.0
  %317 = vmatprep.subr.mxu0 0.0
  %318 = vmatpush1.msra.mxu0 0.0
  %319 = vmatprep.subr.mxu0 0.0
  %320 = vmatpush1.msra.mxu0 0.0
  %321 = vmatprep.subr.mxu0 0.0
  %322 = vmatpush1.msra.mxu0 0.0
  %323 = vmatprep.subr.mxu0 0.0
  %324 = vmatpush1.msra.mxu0 0.0
  %325 = vmatprep.subr.mxu0 0.0
  %326 = vmatpush1.msra.mxu0 0.0
  %327 = vmatprep.subr.mxu0 0.0
  %328 = vmatpush1.msra.mxu0 0.0
  %329 = vmatprep.subr.mxu0 0.0
  %330 = vmatpush1.msra.mxu0 0.0
  %331 = vmatprep.subr.mxu0 0.0
  %332 = vmatpush1.msra.mxu0 0.0
  %333 = vmatprep.subr.mxu0 0.0
  %334 = vmatpush1.msra.mxu0 0.0
  %335 = vmatprep.subr.mxu0 0.0
  %336 = vmatpush1.msra.mxu0 0.0
  %337 = vmatprep.subr.mxu0 0.0
  %338 = vmatpush1.msra.mxu0 0.0
  %339 = vmatprep.subr.mxu0 0.0
  %340 = vmatpush1.msra.mxu0 0.0
  %341 = vmatprep.subr.mxu0 0.0
  %342 = vmatpush1.msra.mxu0 0.0
  %343 = vmatprep.subr.mxu0 0.0
  %344 = vmatpush1.msra.mxu0 0.0
  %345 = vmatprep.subr.mxu0 0.0
  %346 = vmatpush1.msra.mxu0 0.0
  %347 = vmatprep.subr.mxu0 0.0
  %348 = vmatpush1.msra.mxu0 0.0
  %349 = vmatprep.subr.mxu0 0.0
  %350 = vmatpush1.msra.mxu0 0.0
  %351 = vmatprep.subr.mxu0 0.0
  %352 = vmatpush1.msra.mxu0 0.0
  %353 = vmatprep.subr.mxu0 0.0
  %354 = vmatpush1.msra.mxu0 0.0
  %355 = vmatprep.subr.mxu0 0.0
  %356 = vmatpush1.msra.mxu0 0.0
  %357 = vmatprep.subr.mxu0 0.0
  %358 = vmatpush1.msra.mxu0 0.0
  %359 = vmatprep.subr.mxu0 0.0
  %360 = vmatpush1.msra.mxu0 0.0
  %361 = vmatprep.subr.mxu0 0.0
  %362 = vmatpush1.msra.mxu0 0.0
  %363 = vmatprep.subr.mxu0 0.0
  %364 = vmatpush1.msra.mxu0 0.0
  %365 = vmatprep.mubr.f32.mxu0 0.0
  %366 = vmatmul.mubr.f32.gmra.mrb[0].mxu0 %v281
  %v367 = vpop.f32.mrb[0].mxu0
  %v368 = vadd.f32 %v270, %v367
  %v369 = vpop.f32.mrb[0].mxu0
  %370 = vmatprep.mubr.f32.mxu0 0.0
  %371 = vmatmul.mubr.f32.gmra.mrb[0].mxu0 %v283
  %v372 = vpop.f32.mrb[0].mxu0
  %v373 = vadd.f32 %v270, %v372
  %v374 = vpop.f32.mrb[0].mxu0
  %375 = vmatprep.mubr.f32.mxu0 0.0
  %376 = vmatmul.mubr.f32.gmra.mrb[0].mxu0 %v285
  %v377 = vpop.f32.mrb[0].mxu0
  %v378 = vadd.f32 %v270, %v377
  %v379 = vpop.f32.mrb[0].mxu0
  %380 = vmatprep.mubr.f32.mxu0 0.0
  %381 = vmatmul.mubr.f32.gmra.mrb[0].mxu0 %v287
  %v382 = vpop.f32.mrb[0].mxu0
  %v383 = vadd.f32 %v270, %v382
  %v384 = vpop.f32.mrb[0].mxu0
  %385 = vmatprep.mubr.f32.mxu0 0.0
  %386 = vmatmul.mubr.f32.gmra.mrb[0].mxu0 %v289
  %v387 = vpop.f32.mrb[0].mxu0
  %v388 = vadd.f32 %v270, %v387
  %v389 = vpop.f32.mrb[0].mxu0
  %390 = vmatprep.mubr.f32.mxu0 0.0
  %391 = vmatmul.mubr.f32.gmra.mrb[0].mxu0 %v291
  %v392 = vpop.f32.mrb[0].mxu0
  %v393 = vadd.f32 %v270, %v392
  %v394 = vpop.f32.mrb[0].mxu0
  %395 = vmatprep.mubr.f32.mxu0 0.0
  %396 = vmatmul.mubr.f32.gmra.mrb[0].mxu0 %v293
  %v397 = vpop.f32.mrb[0].mxu0
  %v398 = vadd.f32 %v270, %v397
  %v399 = vpop.f32.mrb[0].mxu0
  %400 = vmatprep.mubr.f32.mxu0 0.0
  %401 = vmatmul.mubr.f32.gmra.mrb[0].mxu0 %v295
  %v402 = vpop.f32.mrb[0].mxu0
  %v403 = vadd.f32 %v270, %v402
  %v404 = vpop.f32.mrb[0].mxu0
  %405 = vmatprep.mubr.f32.mxu0 0.0
  %406 = vmatmul.mubr.f32.gmra.mrb[0].mxu0 %v297
  %v407 = vpop.f32.mrb[0].mxu0
  %v408 = vadd.f32 %v270, %v407
  %v409 = vpop.f32.mrb[0].mxu0
  %410 = vmatprep.mubr.f32.mxu0 0.0
  %411 = vmatmul.mubr.f32.gmra.mrb[0].mxu0 %v299
  %v412 = vpop.f32.mrb[0].mxu0
  %v413 = vadd.f32 %v277, %v412
  %v414 = vpop.f32.mrb[0].mxu0
  %415 = vdwg.mxu0
  %v426 = vcombine.high %v368, %v368
  %v428 = vunpack.c.l.s4 1983009808
  %v429 = vunpack.c.0.s8 %v428
  %v430 = vlaneseq
  %v431 = vshrl.u32 %v430, 7
  %v432 = vsub.s32 %v429, %v431
  %v433 = vrot.slane %v368, %v432
  %v435 = vunpack.c.l.s4 1983009808
  %v436 = vunpack.c.0.s8 %v435
  %v437 = vlaneseq
  %v438 = vshrl.u32 %v437, 7
  %v439 = vsub.s32 %v436, %v438
  %v440 = vrot.slane %v426, %v439
  %v441 = vcombine.high %v433, %v433
  %v442 = vcombine.high %v440, %v440
  %v443 = vcombine.high %v373, %v373
  %v445 = vunpack.c.l.s4 1983009808
  %v446 = vunpack.c.0.s8 %v445
  %v447 = vlaneseq
  %v448 = vshrl.u32 %v447, 7
  %v449 = vsub.s32 %v446, %v448
  %v450 = vrot.slane %v373, %v449
  %v452 = vunpack.c.l.s4 1983009808
  %v453 = vunpack.c.0.s8 %v452
  %v454 = vlaneseq
  %v455 = vshrl.u32 %v454, 7
  %v456 = vsub.s32 %v453, %v455
  %v457 = vrot.slane %v443, %v456
  %v458 = vcombine.high %v450, %v450
  %v459 = vcombine.high %v457, %v457
  %v460 = vcombine.high %v378, %v378
  %v462 = vunpack.c.l.s4 1983009808
  %v463 = vunpack.c.0.s8 %v462
  %v464 = vlaneseq
  %v465 = vshrl.u32 %v464, 7
  %v466 = vsub.s32 %v463, %v465
  %v467 = vrot.slane %v378, %v466
  %v469 = vunpack.c.l.s4 1983009808
  %v470 = vunpack.c.0.s8 %v469
  %v471 = vlaneseq
  %v472 = vshrl.u32 %v471, 7
  %v473 = vsub.s32 %v470, %v472
  %v474 = vrot.slane %v460, %v473
  %v475 = vcombine.high %v467, %v467
  %v476 = vcombine.high %v474, %v474
  %v477 = vcombine.high %v383, %v383
  %v479 = vunpack.c.l.s4 1983009808
  %v480 = vunpack.c.0.s8 %v479
  %v481 = vlaneseq
  %v482 = vshrl.u32 %v481, 7
  %v483 = vsub.s32 %v480, %v482
  %v484 = vrot.slane %v383, %v483
  %v486 = vunpack.c.l.s4 1983009808
  %v487 = vunpack.c.0.s8 %v486
  %v488 = vlaneseq
  %v489 = vshrl.u32 %v488, 7
  %v490 = vsub.s32 %v487, %v489
  %v491 = vrot.slane %v477, %v490
  %v492 = vcombine.high %v484, %v484
  %v493 = vcombine.high %v491, %v491
  %v494 = vcombine.high %v388, %v388
  %v496 = vunpack.c.l.s4 1983009808
  %v497 = vunpack.c.0.s8 %v496
  %v498 = vlaneseq
  %v499 = vshrl.u32 %v498, 7
  %v500 = vsub.s32 %v497, %v499
  %v501 = vrot.slane %v388, %v500
  %v503 = vunpack.c.l.s4 1983009808
  %v504 = vunpack.c.0.s8 %v503
  %v505 = vlaneseq
  %v506 = vshrl.u32 %v505, 7
  %v507 = vsub.s32 %v504, %v506
  %v508 = vrot.slane %v494, %v507
  %v509 = vcombine.high %v501, %v501
  %v510 = vcombine.high %v508, %v508
  %v511 = vcombine.high %v393, %v393
  %v513 = vunpack.c.l.s4 1983009808
  %v514 = vunpack.c.0.s8 %v513
  %v515 = vlaneseq
  %v516 = vshrl.u32 %v515, 7
  %v517 = vsub.s32 %v514, %v516
  %v518 = vrot.slane %v393, %v517
  %v520 = vunpack.c.l.s4 1983009808
  %v521 = vunpack.c.0.s8 %v520
  %v522 = vlaneseq
  %v523 = vshrl.u32 %v522, 7
  %v524 = vsub.s32 %v521, %v523
  %v525 = vrot.slane %v511, %v524
  %v526 = vcombine.high %v518, %v518
  %v527 = vcombine.high %v525, %v525
  %v528 = vcombine.high %v398, %v398
  %v530 = vunpack.c.l.s4 1983009808
  %v531 = vunpack.c.0.s8 %v530
  %v532 = vlaneseq
  %v533 = vshrl.u32 %v532, 7
  %v534 = vsub.s32 %v531, %v533
  %v535 = vrot.slane %v398, %v534
  %v537 = vunpack.c.l.s4 1983009808
  %v538 = vunpack.c.0.s8 %v537
  %v539 = vlaneseq
  %v540 = vshrl.u32 %v539, 7
  %v541 = vsub.s32 %v538, %v540
  %v542 = vrot.slane %v528, %v541
  %v543 = vcombine.high %v535, %v535
  %v544 = vcombine.high %v542, %v542
  %v545 = vcombine.high %v403, %v403
  %v547 = vunpack.c.l.s4 1983009808
  %v548 = vunpack.c.0.s8 %v547
  %v549 = vlaneseq
  %v550 = vshrl.u32 %v549, 7
  %v551 = vsub.s32 %v548, %v550
  %v552 = vrot.slane %v403, %v551
  %v554 = vunpack.c.l.s4 1983009808
  %v555 = vunpack.c.0.s8 %v554
  %v556 = vlaneseq
  %v557 = vshrl.u32 %v556, 7
  %v558 = vsub.s32 %v555, %v557
  %v559 = vrot.slane %v545, %v558
  %v560 = vcombine.high %v552, %v552
  %v561 = vcombine.high %v559, %v559
  %v562 = vcombine.high %v408, %v408
  %v564 = vunpack.c.l.s4 1983009808
  %v565 = vunpack.c.0.s8 %v564
  %v566 = vlaneseq
  %v567 = vshrl.u32 %v566, 7
  %v568 = vsub.s32 %v565, %v567
  %v569 = vrot.slane %v408, %v568
  %v571 = vunpack.c.l.s4 1983009808
  %v572 = vunpack.c.0.s8 %v571
  %v573 = vlaneseq
  %v574 = vshrl.u32 %v573, 7
  %v575 = vsub.s32 %v572, %v574
  %v576 = vrot.slane %v562, %v575
  %v577 = vcombine.high %v569, %v569
  %v578 = vcombine.high %v576, %v576
  %v580 = vunpack.c.l.s4 1983009808
  %v581 = vunpack.c.0.s8 %v580
  %v582 = vlaneseq
  %v583 = vshrl.u32 %v582, 7
  %v584 = vsub.s32 %v581, %v583
  %v585 = vrot.slane %v413, %v584
  %623 = vst [vmem:[#allocation2] sm:$0x3] %v433
  %624 = vst [vmem:[#allocation2 + $0x2] sm:$0x3] %v441
  %625 = vst [vmem:[#allocation2 + $0x4] sm:$0x3] %v440
  %626 = vst [vmem:[#allocation2 + $0x6] sm:$0x3] %v442
  %627 = vst [vmem:[#allocation2 + $0x8] sm:$0x3] %v450
  %628 = vst [vmem:[#allocation2 + $0xa] sm:$0x3] %v458
  %629 = vst [vmem:[#allocation2 + $0xc] sm:$0x3] %v457
  %630 = vst [vmem:[#allocation2 + $0xe] sm:$0x3] %v459
  %631 = vst [vmem:[#allocation2 + $0x10] sm:$0x3] %v467
  %632 = vst [vmem:[#allocation2 + $0x12] sm:$0x3] %v475
  %633 = vst [vmem:[#allocation2 + $0x14] sm:$0x3] %v474
  %634 = vst [vmem:[#allocation2 + $0x16] sm:$0x3] %v476
  %635 = vst [vmem:[#allocation2 + $0x18] sm:$0x3] %v484
  %636 = vst [vmem:[#allocation2 + $0x1a] sm:$0x3] %v492
  %637 = vst [vmem:[#allocation2 + $0x1c] sm:$0x3] %v491
  %638 = vst [vmem:[#allocation2 + $0x1e] sm:$0x3] %v493
  %639 = vst [vmem:[#allocation2 + $0x20] sm:$0x3] %v501
  %640 = vst [vmem:[#allocation2 + $0x22] sm:$0x3] %v509
  %641 = vst [vmem:[#allocation2 + $0x24] sm:$0x3] %v508
  %642 = vst [vmem:[#allocation2 + $0x26] sm:$0x3] %v510
  %643 = vst [vmem:[#allocation2 + $0x28] sm:$0x3] %v518
  %644 = vst [vmem:[#allocation2 + $0x2a] sm:$0x3] %v526
  %645 = vst [vmem:[#allocation2 + $0x2c] sm:$0x3] %v525
  %646 = vst [vmem:[#allocation2 + $0x2e] sm:$0x3] %v527
  %647 = vst [vmem:[#allocation2 + $0x30] sm:$0x3] %v535
  %648 = vst [vmem:[#allocation2 + $0x32] sm:$0x3] %v543
  %649 = vst [vmem:[#allocation2 + $0x34] sm:$0x3] %v542
  %650 = vst [vmem:[#allocation2 + $0x36] sm:$0x3] %v544
  %651 = vst [vmem:[#allocation2 + $0x38] sm:$0x3] %v552
  %652 = vst [vmem:[#allocation2 + $0x3a] sm:$0x3] %v560
  %653 = vst [vmem:[#allocation2 + $0x3c] sm:$0x3] %v559
  %654 = vst [vmem:[#allocation2 + $0x3e] sm:$0x3] %v561
  %655 = vst [vmem:[#allocation2 + $0x40] sm:$0x3] %v569
  %656 = vst [vmem:[#allocation2 + $0x42] sm:$0x3] %v577
  %657 = vst [vmem:[#allocation2 + $0x44] sm:$0x3] %v576
  %658 = vst [vmem:[#allocation2 + $0x46] sm:$0x3] %v578
  %659 = vst [vmem:[#allocation2 + $0x48] sm:$0x3] %v585
  %v660 = vld [vmem:[%s2] sm:$0xff]
  %v661 = vld [vmem:[%s2 + $0x8] sm:$0xff]
  %v662 = vld [vmem:[%s2 + $0x10] sm:$0xff]
  %v663 = vld [vmem:[%s2 + $0x18] sm:$0xff]
  %v664 = vld [vmem:[#allocation2] sm:$0x3]
  %vm665 = vcmask 261120
  %v667 = vsel %vm665, 0.0, 0
  %669 = vmatprep.subr.mxu0 0.0
  %670 = vmatpush1.msra.mxu0 %v660
  %671 = vmatprep.subr.mxu0 0.0
  %672 = vmatpush1.msra.mxu0 %v661
  %673 = vmatprep.subr.mxu0 0.0
  %674 = vmatpush1.msra.mxu0 %v662
  %675 = vmatprep.subr.mxu0 0.0
  %676 = vmatpush1.msra.mxu0 %v663
  %677 = vmatprep.subr.mxu0 0.0
  %678 = vmatpush1.msra.mxu0 0.0
  %679 = vmatprep.subr.mxu0 0.0
  %680 = vmatpush1.msra.mxu0 0.0
  %681 = vmatprep.subr.mxu0 0.0
  %682 = vmatpush1.msra.mxu0 0.0
  %683 = vmatprep.subr.mxu0 0.0
  %684 = vmatpush1.msra.mxu0 0.0
  %685 = vmatprep.subr.mxu0 0.0
  %686 = vmatpush1.msra.mxu0 0.0
  %687 = vmatprep.subr.mxu0 0.0
  %688 = vmatpush1.msra.mxu0 0.0
  %689 = vmatprep.subr.mxu0 0.0
  %690 = vmatpush1.msra.mxu0 0.0
  %691 = vmatprep.subr.mxu0 0.0
  %692 = vmatpush1.msra.mxu0 0.0
  %693 = vmatprep.subr.mxu0 0.0
  %694 = vmatpush1.msra.mxu0 0.0
  %695 = vmatprep.subr.mxu0 0.0
  %696 = vmatpush1.msra.mxu0 0.0
  %697 = vmatprep.subr.mxu0 0.0
  %698 = vmatpush1.msra.mxu0 0.0
  %699 = vmatprep.subr.mxu0 0.0
  %700 = vmatpush1.msra.mxu0 0.0
  %701 = vmatprep.subr.mxu0 0.0
  %702 = vmatpush1.msra.mxu0 0.0
  %703 = vmatprep.subr.mxu0 0.0
  %704 = vmatpush1.msra.mxu0 0.0
  %705 = vmatprep.subr.mxu0 0.0
  %706 = vmatpush1.msra.mxu0 0.0
  %707 = vmatprep.subr.mxu0 0.0
  %708 = vmatpush1.msra.mxu0 0.0
  %709 = vmatprep.subr.mxu0 0.0
  %710 = vmatpush1.msra.mxu0 0.0
  %711 = vmatprep.subr.mxu0 0.0
  %712 = vmatpush1.msra.mxu0 0.0
  %713 = vmatprep.subr.mxu0 0.0
  %714 = vmatpush1.msra.mxu0 0.0
  %715 = vmatprep.subr.mxu0 0.0
  %716 = vmatpush1.msra.mxu0 0.0
  %717 = vmatprep.subr.mxu0 0.0
  %718 = vmatpush1.msra.mxu0 0.0
  %719 = vmatprep.subr.mxu0 0.0
  %720 = vmatpush1.msra.mxu0 0.0
  %721 = vmatprep.subr.mxu0 0.0
  %722 = vmatpush1.msra.mxu0 0.0
  %723 = vmatprep.subr.mxu0 0.0
  %724 = vmatpush1.msra.mxu0 0.0
  %725 = vmatprep.subr.mxu0 0.0
  %726 = vmatpush1.msra.mxu0 0.0
  %727 = vmatprep.subr.mxu0 0.0
  %728 = vmatpush1.msra.mxu0 0.0
  %729 = vmatprep.subr.mxu0 0.0
  %730 = vmatpush1.msra.mxu0 0.0
  %731 = vmatprep.subr.mxu0 0.0
  %732 = vmatpush1.msra.mxu0 0.0
  %733 = vmatprep.mubr.f32.mxu0 0.0
  %734 = vmatmul.mubr.f32.gmra.mrb[0].mxu0 %v667
  %v735 = vpop.f32.mrb[0].mxu0
  %v736 = vadd.f32 0.0, %v735
  %v737 = vpop.f32.mrb[0].mxu0
  %738 = vdwg.mxu0
  %v739 = vadd.f32 %v664, %v736
  %v740 = vxor.u32 %v739, 2147483648
  %v741 = vmul.f32 %v740, 1.442695
  %v742 = vpow.pop %v741
  %v743 = vadd.f32 %v742, 1.0
  %v744 = vrcp.pop %v743
  %v745 = vmul.f32 1.0, %v744
  %v746 = vtanh.pop %v739
  %v747 = vmul.f32 %v745, 0.0
  %749 = vrot.lane.b32.xlu0 %v746, 32
  %v750 = vpop.permute.xlu0 %749
  %v752 = vmul.f32 %v745, %v750
  %754 = vrot.lane.b32.xlu0 %v752, 32
  %v755 = vpop.permute.xlu0 %754
  %v757 = vadd.f32 %v747, %v755
  %v758 = vtanh.pop %v757
  %760 = vrot.lane.b32.xlu0 %v758, 32
  %v761 = vpop.permute.xlu0 %760
  %v763 = vmul.f32 %v745, %v761
  %765 = vrot.lane.b32.xlu0 %v763, 64
  %v766 = vpop.permute.xlu0 %765
  %vm768 = vcmask 123904
  %769 = vst.msk [vmem:[%s5] sm:$0x3] %vm768, %v766
  %s770 = scalar_lea.vmem %s5, 72
  %vm771 = vcmask 255104
  %772 = vst.msk [vmem:[%s770] sm:$0x3] %vm771, %v766
  %s773 = scalar_lea.vmem [#allocation2], 2
  %v774 = vld [vmem:[%s773] sm:$0x3]
  %v775 = vsel %vm665, %v766, 0
  %777 = vmatprep.subr.mxu0 0.0
  %778 = vmatpush1.msra.mxu0 %v660
  %779 = vmatprep.subr.mxu0 0.0
  %780 = vmatpush1.msra.mxu0 %v661
  %781 = vmatprep.subr.mxu0 0.0
  %782 = vmatpush1.msra.mxu0 %v662
  %783 = vmatprep.subr.mxu0 0.0
  %784 = vmatpush1.msra.mxu0 %v663
  %785 = vmatprep.subr.mxu0 0.0
  %786 = vmatpush1.msra.mxu0 0.0
  %787 = vmatprep.subr.mxu0 0.0
  %788 = vmatpush1.msra.mxu0 0.0
  %789 = vmatprep.subr.mxu0 0.0
  %790 = vmatpush1.msra.mxu0 0.0
  %791 = vmatprep.subr.mxu0 0.0
  %792 = vmatpush1.msra.mxu0 0.0
  %793 = vmatprep.subr.mxu0 0.0
  %794 = vmatpush1.msra.mxu0 0.0
  %795 = vmatprep.subr.mxu0 0.0
  %796 = vmatpush1.msra.mxu0 0.0
  %797 = vmatprep.subr.mxu0 0.0
  %798 = vmatpush1.msra.mxu0 0.0
  %799 = vmatprep.subr.mxu0 0.0
  %800 = vmatpush1.msra.mxu0 0.0
  %801 = vmatprep.subr.mxu0 0.0
  %802 = vmatpush1.msra.mxu0 0.0
  %803 = vmatprep.subr.mxu0 0.0
  %804 = vmatpush1.msra.mxu0 0.0
  %805 = vmatprep.subr.mxu0 0.0
  %806 = vmatpush1.msra.mxu0 0.0
  %807 = vmatprep.subr.mxu0 0.0
  %808 = vmatpush1.msra.mxu0 0.0
  %809 = vmatprep.subr.mxu0 0.0
  %810 = vmatpush1.msra.mxu0 0.0
  %811 = vmatprep.subr.mxu0 0.0
  %812 = vmatpush1.msra.mxu0 0.0
  %813 = vmatprep.subr.mxu0 0.0
  %814 = vmatpush1.msra.mxu0 0.0
  %815 = vmatprep.subr.mxu0 0.0
  %816 = vmatpush1.msra.mxu0 0.0
  %817 = vmatprep.subr.mxu0 0.0
  %818 = vmatpush1.msra.mxu0 0.0
  %819 = vmatprep.subr.mxu0 0.0
  %820 = vmatpush1.msra.mxu0 0.0
  %821 = vmatprep.subr.mxu0 0.0
  %822 = vmatpush1.msra.mxu0 0.0
  %823 = vmatprep.subr.mxu0 0.0
  %824 = vmatpush1.msra.mxu0 0.0
  %825 = vmatprep.subr.mxu0 0.0
  %826 = vmatpush1.msra.mxu0 0.0
  %827 = vmatprep.subr.mxu0 0.0
  %828 = vmatpush1.msra.mxu0 0.0
  %829 = vmatprep.subr.mxu0 0.0
  %830 = vmatpush1.msra.mxu0 0.0
  %831 = vmatprep.subr.mxu0 0.0
  %832 = vmatpush1.msra.mxu0 0.0
  %833 = vmatprep.subr.mxu0 0.0
  %834 = vmatpush1.msra.mxu0 0.0
  %835 = vmatprep.subr.mxu0 0.0
  %836 = vmatpush1.msra.mxu0 0.0
  %837 = vmatprep.subr.mxu0 0.0
  %838 = vmatpush1.msra.mxu0 0.0
  %839 = vmatprep.subr.mxu0 0.0
  %840 = vmatpush1.msra.mxu0 0.0
  %841 = vmatprep.mubr.f32.mxu0 0.0
  %842 = vmatmul.mubr.f32.gmra.mrb[0].mxu0 %v775
  %v843 = vpop.f32.mrb[0].mxu0
  %v844 = vadd.f32 0.0, %v843
  %v845 = vpop.f32.mrb[0].mxu0
  %846 = vdwg.mxu0
  %v847 = vadd.f32 %v774, %v844
  %v848 = vxor.u32 %v847, 2147483648
  %v849 = vmul.f32 %v848, 1.442695
  %v850 = vpow.pop %v849
  %v851 = vadd.f32 %v850, 1.0
  %v852 = vrcp.pop %v851
  %v853 = vmul.f32 1.0, %v852
  %v854 = vtanh.pop %v847
  %v855 = vmul.f32 %v853, %v757
  %857 = vrot.lane.b32.xlu0 %v854, 32
  %v858 = vpop.permute.xlu0 %857
  %v860 = vmul.f32 %v853, %v858
  %862 = vrot.lane.b32.xlu0 %v860, 32
  %v863 = vpop.permute.xlu0 %862
  %v865 = vadd.f32 %v855, %v863
  %v866 = vtanh.pop %v865
  %868 = vrot.lane.b32.xlu0 %v866, 32
  %v869 = vpop.permute.xlu0 %868
  %v871 = vmul.f32 %v853, %v869
  %873 = vrot.lane.b32.xlu0 %v871, 64
  %v874 = vpop.permute.xlu0 %873
  %s876 = scalar_lea.vmem %s5, 2
  %877 = vst.msk [vmem:[%s876] sm:$0x3] %vm768, %v874
  %s878 = scalar_lea.vmem %s5, 70
  %879 = vst.msk [vmem:[%s878] sm:$0x3] %vm771, %v874
  %s880 = scalar_lea.vmem [#allocation2], 4
  %v881 = vld [vmem:[%s880] sm:$0x3]
  %v882 = vsel %vm665, %v874, 0
  %884 = vmatprep.subr.mxu0 0.0
  %885 = vmatpush1.msra.mxu0 %v660
  %886 = vmatprep.subr.mxu0 0.0
  %887 = vmatpush1.msra.mxu0 %v661
  %888 = vmatprep.subr.mxu0 0.0
  %889 = vmatpush1.msra.mxu0 %v662
  %890 = vmatprep.subr.mxu0 0.0
  %891 = vmatpush1.msra.mxu0 %v663
  %892 = vmatprep.subr.mxu0 0.0
  %893 = vmatpush1.msra.mxu0 0.0
  %894 = vmatprep.subr.mxu0 0.0
  %895 = vmatpush1.msra.mxu0 0.0
  %896 = vmatprep.subr.mxu0 0.0
  %897 = vmatpush1.msra.mxu0 0.0
  %898 = vmatprep.subr.mxu0 0.0
  %899 = vmatpush1.msra.mxu0 0.0
  %900 = vmatprep.subr.mxu0 0.0
  %901 = vmatpush1.msra.mxu0 0.0
  %902 = vmatprep.subr.mxu0 0.0
  %903 = vmatpush1.msra.mxu0 0.0
  %904 = vmatprep.subr.mxu0 0.0
  %905 = vmatpush1.msra.mxu0 0.0
  %906 = vmatprep.subr.mxu0 0.0
  %907 = vmatpush1.msra.mxu0 0.0
  %908 = vmatprep.subr.mxu0 0.0
  %909 = vmatpush1.msra.mxu0 0.0
  %910 = vmatprep.subr.mxu0 0.0
  %911 = vmatpush1.msra.mxu0 0.0
  %912 = vmatprep.subr.mxu0 0.0
  %913 = vmatpush1.msra.mxu0 0.0
  %914 = vmatprep.subr.mxu0 0.0
  %915 = vmatpush1.msra.mxu0 0.0
  %916 = vmatprep.subr.mxu0 0.0
  %917 = vmatpush1.msra.mxu0 0.0
  %918 = vmatprep.subr.mxu0 0.0
  %919 = vmatpush1.msra.mxu0 0.0
  %920 = vmatprep.subr.mxu0 0.0
  %921 = vmatpush1.msra.mxu0 0.0
  %922 = vmatprep.subr.mxu0 0.0
  %923 = vmatpush1.msra.mxu0 0.0
  %924 = vmatprep.subr.mxu0 0.0
  %925 = vmatpush1.msra.mxu0 0.0
  %926 = vmatprep.subr.mxu0 0.0
  %927 = vmatpush1.msra.mxu0 0.0
  %928 = vmatprep.subr.mxu0 0.0
  %929 = vmatpush1.msra.mxu0 0.0
  %930 = vmatprep.subr.mxu0 0.0
  %931 = vmatpush1.msra.mxu0 0.0
  %932 = vmatprep.subr.mxu0 0.0
  %933 = vmatpush1.msra.mxu0 0.0
  %934 = vmatprep.subr.mxu0 0.0
  %935 = vmatpush1.msra.mxu0 0.0
  %936 = vmatprep.subr.mxu0 0.0
  %937 = vmatpush1.msra.mxu0 0.0
  %938 = vmatprep.subr.mxu0 0.0
  %939 = vmatpush1.msra.mxu0 0.0
  %940 = vmatprep.subr.mxu0 0.0
  %941 = vmatpush1.msra.mxu0 0.0
  %942 = vmatprep.subr.mxu0 0.0
  %943 = vmatpush1.msra.mxu0 0.0
  %944 = vmatprep.subr.mxu0 0.0
  %945 = vmatpush1.msra.mxu0 0.0
  %946 = vmatprep.subr.mxu0 0.0
  %947 = vmatpush1.msra.mxu0 0.0
  %948 = vmatprep.mubr.f32.mxu0 0.0
  %949 = vmatmul.mubr.f32.gmra.mrb[0].mxu0 %v882
  %v950 = vpop.f32.mrb[0].mxu0
  %v951 = vadd.f32 0.0, %v950
  %v952 = vpop.f32.mrb[0].mxu0
  %953 = vdwg.mxu0
  %v954 = vadd.f32 %v881, %v951
  %v955 = vxor.u32 %v954, 2147483648
  %v956 = vmul.f32 %v955, 1.442695
  %v957 = vpow.pop %v956
  %v958 = vadd.f32 %v957, 1.0
  %v959 = vrcp.pop %v958
  %v960 = vmul.f32 1.0, %v959
  %v961 = vtanh.pop %v954
  %v962 = vmul.f32 %v960, %v865
  %964 = vrot.lane.b32.xlu0 %v961, 32
  %v965 = vpop.permute.xlu0 %964
  %v967 = vmul.f32 %v960, %v965
  %969 = vrot.lane.b32.xlu0 %v967, 32
  %v970 = vpop.permute.xlu0 %969
  %v972 = vadd.f32 %v962, %v970
  %v973 = vtanh.pop %v972
  %975 = vrot.lane.b32.xlu0 %v973, 32
  %v976 = vpop.permute.xlu0 %975
  %v978 = vmul.f32 %v960, %v976
  %980 = vrot.lane.b32.xlu0 %v978, 64
  %v981 = vpop.permute.xlu0 %980
  %s983 = scalar_lea.vmem %s5, 4
  %984 = vst.msk [vmem:[%s983] sm:$0x3] %vm768, %v981
  %s985 = scalar_lea.vmem %s5, 68
  %986 = vst.msk [vmem:[%s985] sm:$0x3] %vm771, %v981
  %s987 = scalar_lea.vmem [#allocation2], 6
  %v988 = vld [vmem:[%s987] sm:$0x3]
  %v989 = vsel %vm665, %v981, 0
  %991 = vmatprep.subr.mxu0 0.0
  %992 = vmatpush1.msra.mxu0 %v660
  %993 = vmatprep.subr.mxu0 0.0
  %994 = vmatpush1.msra.mxu0 %v661
  %995 = vmatprep.subr.mxu0 0.0
  %996 = vmatpush1.msra.mxu0 %v662
  %997 = vmatprep.subr.mxu0 0.0
  %998 = vmatpush1.msra.mxu0 %v663
  %999 = vmatprep.subr.mxu0 0.0
  %1000 = vmatpush1.msra.mxu0 0.0
  %1001 = vmatprep.subr.mxu0 0.0
  %1002 = vmatpush1.msra.mxu0 0.0
  %1003 = vmatprep.subr.mxu0 0.0
  %1004 = vmatpush1.msra.mxu0 0.0
  %1005 = vmatprep.subr.mxu0 0.0
  %1006 = vmatpush1.msra.mxu0 0.0
  %1007 = vmatprep.subr.mxu0 0.0
  %1008 = vmatpush1.msra.mxu0 0.0
  %1009 = vmatprep.subr.mxu0 0.0
  %1010 = vmatpush1.msra.mxu0 0.0
  %1011 = vmatprep.subr.mxu0 0.0
  %1012 = vmatpush1.msra.mxu0 0.0
  %1013 = vmatprep.subr.mxu0 0.0
  %1014 = vmatpush1.msra.mxu0 0.0
  %1015 = vmatprep.subr.mxu0 0.0
  %1016 = vmatpush1.msra.mxu0 0.0
  %1017 = vmatprep.subr.mxu0 0.0
  %1018 = vmatpush1.msra.mxu0 0.0
  %1019 = vmatprep.subr.mxu0 0.0
  %1020 = vmatpush1.msra.mxu0 0.0
  %1021 = vmatprep.subr.mxu0 0.0
  %1022 = vmatpush1.msra.mxu0 0.0
  %1023 = vmatprep.subr.mxu0 0.0
  %1024 = vmatpush1.msra.mxu0 0.0
  %1025 = vmatprep.subr.mxu0 0.0
  %1026 = vmatpush1.msra.mxu0 0.0
  %1027 = vmatprep.subr.mxu0 0.0
  %1028 = vmatpush1.msra.mxu0 0.0
  %1029 = vmatprep.subr.mxu0 0.0
  %1030 = vmatpush1.msra.mxu0 0.0
  %1031 = vmatprep.subr.mxu0 0.0
  %1032 = vmatpush1.msra.mxu0 0.0
  %1033 = vmatprep.subr.mxu0 0.0
  %1034 = vmatpush1.msra.mxu0 0.0
  %1035 = vmatprep.subr.mxu0 0.0
  %1036 = vmatpush1.msra.mxu0 0.0
  %1037 = vmatprep.subr.mxu0 0.0
  %1038 = vmatpush1.msra.mxu0 0.0
  %1039 = vmatprep.subr.mxu0 0.0
  %1040 = vmatpush1.msra.mxu0 0.0
  %1041 = vmatprep.subr.mxu0 0.0
  %1042 = vmatpush1.msra.mxu0 0.0
  %1043 = vmatprep.subr.mxu0 0.0
  %1044 = vmatpush1.msra.mxu0 0.0
  %1045 = vmatprep.subr.mxu0 0.0
  %1046 = vmatpush1.msra.mxu0 0.0
  %1047 = vmatprep.subr.mxu0 0.0
  %1048 = vmatpush1.msra.mxu0 0.0
  %1049 = vmatprep.subr.mxu0 0.0
  %1050 = vmatpush1.msra.mxu0 0.0
  %1051 = vmatprep.subr.mxu0 0.0
  %1052 = vmatpush1.msra.mxu0 0.0
  %1053 = vmatprep.subr.mxu0 0.0
  %1054 = vmatpush1.msra.mxu0 0.0
  %1055 = vmatprep.mubr.f32.mxu0 0.0
  %1056 = vmatmul.mubr.f32.gmra.mrb[0].mxu0 %v989
  %v1057 = vpop.f32.mrb[0].mxu0
  %v1058 = vadd.f32 0.0, %v1057
  %v1059 = vpop.f32.mrb[0].mxu0
  %1060 = vdwg.mxu0
  %v1061 = vadd.f32 %v988, %v1058
  %v1062 = vxor.u32 %v1061, 2147483648
  %v1063 = vmul.f32 %v1062, 1.442695
  %v1064 = vpow.pop %v1063
  %v1065 = vadd.f32 %v1064, 1.0
  %v1066 = vrcp.pop %v1065
  %v1067 = vmul.f32 1.0, %v1066
  %v1068 = vtanh.pop %v1061
  %v1069 = vmul.f32 %v1067, %v972
  %1071 = vrot.lane.b32.xlu0 %v1068, 32
  %v1072 = vpop.permute.xlu0 %1071
  %v1074 = vmul.f32 %v1067, %v1072
  %1076 = vrot.lane.b32.xlu0 %v1074, 32
  %v1077 = vpop.permute.xlu0 %1076
  %v1079 = vadd.f32 %v1069, %v1077
  %v1080 = vtanh.pop %v1079
  %1082 = vrot.lane.b32.xlu0 %v1080, 32
  %v1083 = vpop.permute.xlu0 %1082
  %v1085 = vmul.f32 %v1067, %v1083
  %1087 = vrot.lane.b32.xlu0 %v1085, 64
  %v1088 = vpop.permute.xlu0 %1087
  %s1090 = scalar_lea.vmem %s5, 6
  %1091 = vst.msk [vmem:[%s1090] sm:$0x3] %vm768, %v1088
  %s1092 = scalar_lea.vmem %s5, 66
  %1093 = vst.msk [vmem:[%s1092] sm:$0x3] %vm771, %v1088
  %s1094 = scalar_lea.vmem [#allocation2], 8
  %v1095 = vld [vmem:[%s1094] sm:$0x3]
  %v1096 = vsel %vm665, %v1088, 0
  %1098 = vmatprep.subr.mxu0 0.0
  %1099 = vmatpush1.msra.mxu0 %v660
  %1100 = vmatprep.subr.mxu0 0.0
  %1101 = vmatpush1.msra.mxu0 %v661
  %1102 = vmatprep.subr.mxu0 0.0
  %1103 = vmatpush1.msra.mxu0 %v662
  %1104 = vmatprep.subr.mxu0 0.0
  %1105 = vmatpush1.msra.mxu0 %v663
  %1106 = vmatprep.subr.mxu0 0.0
  %1107 = vmatpush1.msra.mxu0 0.0
  %1108 = vmatprep.subr.mxu0 0.0
  %1109 = vmatpush1.msra.mxu0 0.0
  %1110 = vmatprep.subr.mxu0 0.0
  %1111 = vmatpush1.msra.mxu0 0.0
  %1112 = vmatprep.subr.mxu0 0.0
  %1113 = vmatpush1.msra.mxu0 0.0
  %1114 = vmatprep.subr.mxu0 0.0
  %1115 = vmatpush1.msra.mxu0 0.0
  %1116 = vmatprep.subr.mxu0 0.0
  %1117 = vmatpush1.msra.mxu0 0.0
  %1118 = vmatprep.subr.mxu0 0.0
  %1119 = vmatpush1.msra.mxu0 0.0
  %1120 = vmatprep.subr.mxu0 0.0
  %1121 = vmatpush1.msra.mxu0 0.0
  %1122 = vmatprep.subr.mxu0 0.0
  %1123 = vmatpush1.msra.mxu0 0.0
  %1124 = vmatprep.subr.mxu0 0.0
  %1125 = vmatpush1.msra.mxu0 0.0
  %1126 = vmatprep.subr.mxu0 0.0
  %1127 = vmatpush1.msra.mxu0 0.0
  %1128 = vmatprep.subr.mxu0 0.0
  %1129 = vmatpush1.msra.mxu0 0.0
  %1130 = vmatprep.subr.mxu0 0.0
  %1131 = vmatpush1.msra.mxu0 0.0
  %1132 = vmatprep.subr.mxu0 0.0
  %1133 = vmatpush1.msra.mxu0 0.0
  %1134 = vmatprep.subr.mxu0 0.0
  %1135 = vmatpush1.msra.mxu0 0.0
  %1136 = vmatprep.subr.mxu0 0.0
  %1137 = vmatpush1.msra.mxu0 0.0
  %1138 = vmatprep.subr.mxu0 0.0
  %1139 = vmatpush1.msra.mxu0 0.0
  %1140 = vmatprep.subr.mxu0 0.0
  %1141 = vmatpush1.msra.mxu0 0.0
  %1142 = vmatprep.subr.mxu0 0.0
  %1143 = vmatpush1.msra.mxu0 0.0
  %1144 = vmatprep.subr.mxu0 0.0
  %1145 = vmatpush1.msra.mxu0 0.0
  %1146 = vmatprep.subr.mxu0 0.0
  %1147 = vmatpush1.msra.mxu0 0.0
  %1148 = vmatprep.subr.mxu0 0.0
  %1149 = vmatpush1.msra.mxu0 0.0
  %1150 = vmatprep.subr.mxu0 0.0
  %1151 = vmatpush1.msra.mxu0 0.0
  %1152 = vmatprep.subr.mxu0 0.0
  %1153 = vmatpush1.msra.mxu0 0.0
  %1154 = vmatprep.subr.mxu0 0.0
  %1155 = vmatpush1.msra.mxu0 0.0
  %1156 = vmatprep.subr.mxu0 0.0
  %1157 = vmatpush1.msra.mxu0 0.0
  %1158 = vmatprep.subr.mxu0 0.0
  %1159 = vmatpush1.msra.mxu0 0.0
  %1160 = vmatprep.subr.mxu0 0.0
  %1161 = vmatpush1.msra.mxu0 0.0
  %1162 = vmatprep.mubr.f32.mxu0 0.0
  %1163 = vmatmul.mubr.f32.gmra.mrb[0].mxu0 %v1096
  %v1164 = vpop.f32.mrb[0].mxu0
  %v1165 = vadd.f32 0.0, %v1164
  %v1166 = vpop.f32.mrb[0].mxu0
  %1167 = vdwg.mxu0
  %v1168 = vadd.f32 %v1095, %v1165
  %v1169 = vxor.u32 %v1168, 2147483648
  %v1170 = vmul.f32 %v1169, 1.442695
  %v1171 = vpow.pop %v1170
  %v1172 = vadd.f32 %v1171, 1.0
  %v1173 = vrcp.pop %v1172
  %v1174 = vmul.f32 1.0, %v1173
  %v1175 = vtanh.pop %v1168
  %v1176 = vmul.f32 %v1174, %v1079
  %1178 = vrot.lane.b32.xlu0 %v1175, 32
  %v1179 = vpop.permute.xlu0 %1178
  %v1181 = vmul.f32 %v1174, %v1179
  %1183 = vrot.lane.b32.xlu0 %v1181, 32
  %v1184 = vpop.permute.xlu0 %1183
  %v1186 = vadd.f32 %v1176, %v1184
  %v1187 = vtanh.pop %v1186
  %1189 = vrot.lane.b32.xlu0 %v1187, 32
  %v1190 = vpop.permute.xlu0 %1189
  %v1192 = vmul.f32 %v1174, %v1190
  %1194 = vrot.lane.b32.xlu0 %v1192, 64
  %v1195 = vpop.permute.xlu0 %1194
  %s1197 = scalar_lea.vmem %s5, 8
  %1198 = vst.msk [vmem:[%s1197] sm:$0x3] %vm768, %v1195
  %s1199 = scalar_lea.vmem %s5, 64
  %1200 = vst.msk [vmem:[%s1199] sm:$0x3] %vm771, %v1195
  %s1201 = scalar_lea.vmem [#allocation2], 10
  %v1202 = vld [vmem:[%s1201] sm:$0x3]
  %v1203 = vsel %vm665, %v1195, 0
  %1205 = vmatprep.subr.mxu0 0.0
  %1206 = vmatpush1.msra.mxu0 %v660
  %1207 = vmatprep.subr.mxu0 0.0
  %1208 = vmatpush1.msra.mxu0 %v661
  %1209 = vmatprep.subr.mxu0 0.0
  %1210 = vmatpush1.msra.mxu0 %v662
  %1211 = vmatprep.subr.mxu0 0.0
  %1212 = vmatpush1.msra.mxu0 %v663
  %1213 = vmatprep.subr.mxu0 0.0
  %1214 = vmatpush1.msra.mxu0 0.0
  %1215 = vmatprep.subr.mxu0 0.0
  %1216 = vmatpush1.msra.mxu0 0.0
  %1217 = vmatprep.subr.mxu0 0.0
  %1218 = vmatpush1.msra.mxu0 0.0
  %1219 = vmatprep.subr.mxu0 0.0
  %1220 = vmatpush1.msra.mxu0 0.0
  %1221 = vmatprep.subr.mxu0 0.0
  %1222 = vmatpush1.msra.mxu0 0.0
  %1223 = vmatprep.subr.mxu0 0.0
  %1224 = vmatpush1.msra.mxu0 0.0
  %1225 = vmatprep.subr.mxu0 0.0
  %1226 = vmatpush1.msra.mxu0 0.0
  %1227 = vmatprep.subr.mxu0 0.0
  %1228 = vmatpush1.msra.mxu0 0.0
  %1229 = vmatprep.subr.mxu0 0.0
  %1230 = vmatpush1.msra.mxu0 0.0
  %1231 = vmatprep.subr.mxu0 0.0
  %1232 = vmatpush1.msra.mxu0 0.0
  %1233 = vmatprep.subr.mxu0 0.0
  %1234 = vmatpush1.msra.mxu0 0.0
  %1235 = vmatprep.subr.mxu0 0.0
  %1236 = vmatpush1.msra.mxu0 0.0
  %1237 = vmatprep.subr.mxu0 0.0
  %1238 = vmatpush1.msra.mxu0 0.0
  %1239 = vmatprep.subr.mxu0 0.0
  %1240 = vmatpush1.msra.mxu0 0.0
  %1241 = vmatprep.subr.mxu0 0.0
  %1242 = vmatpush1.msra.mxu0 0.0
  %1243 = vmatprep.subr.mxu0 0.0
  %1244 = vmatpush1.msra.mxu0 0.0
  %1245 = vmatprep.subr.mxu0 0.0
  %1246 = vmatpush1.msra.mxu0 0.0
  %1247 = vmatprep.subr.mxu0 0.0
  %1248 = vmatpush1.msra.mxu0 0.0
  %1249 = vmatprep.subr.mxu0 0.0
  %1250 = vmatpush1.msra.mxu0 0.0
  %1251 = vmatprep.subr.mxu0 0.0
  %1252 = vmatpush1.msra.mxu0 0.0
  %1253 = vmatprep.subr.mxu0 0.0
  %1254 = vmatpush1.msra.mxu0 0.0
  %1255 = vmatprep.subr.mxu0 0.0
  %1256 = vmatpush1.msra.mxu0 0.0
  %1257 = vmatprep.subr.mxu0 0.0
  %1258 = vmatpush1.msra.mxu0 0.0
  %1259 = vmatprep.subr.mxu0 0.0
  %1260 = vmatpush1.msra.mxu0 0.0
  %1261 = vmatprep.subr.mxu0 0.0
  %1262 = vmatpush1.msra.mxu0 0.0
  %1263 = vmatprep.subr.mxu0 0.0
  %1264 = vmatpush1.msra.mxu0 0.0
  %1265 = vmatprep.subr.mxu0 0.0
  %1266 = vmatpush1.msra.mxu0 0.0
  %1267 = vmatprep.subr.mxu0 0.0
  %1268 = vmatpush1.msra.mxu0 0.0
  %1269 = vmatprep.mubr.f32.mxu0 0.0
  %1270 = vmatmul.mubr.f32.gmra.mrb[0].mxu0 %v1203
  %v1271 = vpop.f32.mrb[0].mxu0
  %v1272 = vadd.f32 0.0, %v1271
  %v1273 = vpop.f32.mrb[0].mxu0
  %1274 = vdwg.mxu0
  %v1275 = vadd.f32 %v1202, %v1272
  %v1276 = vxor.u32 %v1275, 2147483648
  %v1277 = vmul.f32 %v1276, 1.442695
  %v1278 = vpow.pop %v1277
  %v1279 = vadd.f32 %v1278, 1.0
  %v1280 = vrcp.pop %v1279
  %v1281 = vmul.f32 1.0, %v1280
  %v1282 = vtanh.pop %v1275
  %v1283 = vmul.f32 %v1281, %v1186
  %1285 = vrot.lane.b32.xlu0 %v1282, 32
  %v1286 = vpop.permute.xlu0 %1285
  %v1288 = vmul.f32 %v1281, %v1286
  %1290 = vrot.lane.b32.xlu0 %v1288, 32
  %v1291 = vpop.permute.xlu0 %1290
  %v1293 = vadd.f32 %v1283, %v1291
  %v1294 = vtanh.pop %v1293
  %1296 = vrot.lane.b32.xlu0 %v1294, 32
  %v1297 = vpop.permute.xlu0 %1296
  %v1299 = vmul.f32 %v1281, %v1297
  %1301 = vrot.lane.b32.xlu0 %v1299, 64
  %v1302 = vpop.permute.xlu0 %1301
  %s1304 = scalar_lea.vmem %s5, 10
  %1305 = vst.msk [vmem:[%s1304] sm:$0x3] %vm768, %v1302
  %s1306 = scalar_lea.vmem %s5, 62
  %1307 = vst.msk [vmem:[%s1306] sm:$0x3] %vm771, %v1302
  %s1308 = scalar_lea.vmem [#allocation2], 12
  %v1309 = vld [vmem:[%s1308] sm:$0x3]
  %v1310 = vsel %vm665, %v1302, 0
  %1312 = vmatprep.subr.mxu0 0.0
  %1313 = vmatpush1.msra.mxu0 %v660
  %1314 = vmatprep.subr.mxu0 0.0
  %1315 = vmatpush1.msra.mxu0 %v661
  %1316 = vmatprep.subr.mxu0 0.0
  %1317 = vmatpush1.msra.mxu0 %v662
  %1318 = vmatprep.subr.mxu0 0.0
  %1319 = vmatpush1.msra.mxu0 %v663
  %1320 = vmatprep.subr.mxu0 0.0
  %1321 = vmatpush1.msra.mxu0 0.0
  %1322 = vmatprep.subr.mxu0 0.0
  %1323 = vmatpush1.msra.mxu0 0.0
  %1324 = vmatprep.subr.mxu0 0.0
  %1325 = vmatpush1.msra.mxu0 0.0
  %1326 = vmatprep.subr.mxu0 0.0
  %1327 = vmatpush1.msra.mxu0 0.0
  %1328 = vmatprep.subr.mxu0 0.0
  %1329 = vmatpush1.msra.mxu0 0.0
  %1330 = vmatprep.subr.mxu0 0.0
  %1331 = vmatpush1.msra.mxu0 0.0
  %1332 = vmatprep.subr.mxu0 0.0
  %1333 = vmatpush1.msra.mxu0 0.0
  %1334 = vmatprep.subr.mxu0 0.0
  %1335 = vmatpush1.msra.mxu0 0.0
  %1336 = vmatprep.subr.mxu0 0.0
  %1337 = vmatpush1.msra.mxu0 0.0
  %1338 = vmatprep.subr.mxu0 0.0
  %1339 = vmatpush1.msra.mxu0 0.0
  %1340 = vmatprep.subr.mxu0 0.0
  %1341 = vmatpush1.msra.mxu0 0.0
  %1342 = vmatprep.subr.mxu0 0.0
  %1343 = vmatpush1.msra.mxu0 0.0
  %1344 = vmatprep.subr.mxu0 0.0
  %1345 = vmatpush1.msra.mxu0 0.0
  %1346 = vmatprep.subr.mxu0 0.0
  %1347 = vmatpush1.msra.mxu0 0.0
  %1348 = vmatprep.subr.mxu0 0.0
  %1349 = vmatpush1.msra.mxu0 0.0
  %1350 = vmatprep.subr.mxu0 0.0
  %1351 = vmatpush1.msra.mxu0 0.0
  %1352 = vmatprep.subr.mxu0 0.0
  %1353 = vmatpush1.msra.mxu0 0.0
  %1354 = vmatprep.subr.mxu0 0.0
  %1355 = vmatpush1.msra.mxu0 0.0
  %1356 = vmatprep.subr.mxu0 0.0
  %1357 = vmatpush1.msra.mxu0 0.0
  %1358 = vmatprep.subr.mxu0 0.0
  %1359 = vmatpush1.msra.mxu0 0.0
  %1360 = vmatprep.subr.mxu0 0.0
  %1361 = vmatpush1.msra.mxu0 0.0
  %1362 = vmatprep.subr.mxu0 0.0
  %1363 = vmatpush1.msra.mxu0 0.0
  %1364 = vmatprep.subr.mxu0 0.0
  %1365 = vmatpush1.msra.mxu0 0.0
  %1366 = vmatprep.subr.mxu0 0.0
  %1367 = vmatpush1.msra.mxu0 0.0
  %1368 = vmatprep.subr.mxu0 0.0
  %1369 = vmatpush1.msra.mxu0 0.0
  %1370 = vmatprep.subr.mxu0 0.0
  %1371 = vmatpush1.msra.mxu0 0.0
  %1372 = vmatprep.subr.mxu0 0.0
  %1373 = vmatpush1.msra.mxu0 0.0
  %1374 = vmatprep.subr.mxu0 0.0
  %1375 = vmatpush1.msra.mxu0 0.0
  %1376 = vmatprep.mubr.f32.mxu0 0.0
  %1377 = vmatmul.mubr.f32.gmra.mrb[0].mxu0 %v1310
  %v1378 = vpop.f32.mrb[0].mxu0
  %v1379 = vadd.f32 0.0, %v1378
  %v1380 = vpop.f32.mrb[0].mxu0
  %1381 = vdwg.mxu0
  %v1382 = vadd.f32 %v1309, %v1379
  %v1383 = vxor.u32 %v1382, 2147483648
  %v1384 = vmul.f32 %v1383, 1.442695
  %v1385 = vpow.pop %v1384
  %v1386 = vadd.f32 %v1385, 1.0
  %v1387 = vrcp.pop %v1386
  %v1388 = vmul.f32 1.0, %v1387
  %v1389 = vtanh.pop %v1382
  %v1390 = vmul.f32 %v1388, %v1293
  %1392 = vrot.lane.b32.xlu0 %v1389, 32
  %v1393 = vpop.permute.xlu0 %1392
  %v1395 = vmul.f32 %v1388, %v1393
  %1397 = vrot.lane.b32.xlu0 %v1395, 32
  %v1398 = vpop.permute.xlu0 %1397
  %v1400 = vadd.f32 %v1390, %v1398
  %v1401 = vtanh.pop %v1400
  %1403 = vrot.lane.b32.xlu0 %v1401, 32
  %v1404 = vpop.permute.xlu0 %1403
  %v1406 = vmul.f32 %v1388, %v1404
  %1408 = vrot.lane.b32.xlu0 %v1406, 64
  %v1409 = vpop.permute.xlu0 %1408
  %s1411 = scalar_lea.vmem %s5, 12
  %1412 = vst.msk [vmem:[%s1411] sm:$0x3] %vm768, %v1409
  %s1413 = scalar_lea.vmem %s5, 60
  %1414 = vst.msk [vmem:[%s1413] sm:$0x3] %vm771, %v1409
  %s1415 = scalar_lea.vmem [#allocation2], 14
  %v1416 = vld [vmem:[%s1415] sm:$0x3]
  %v1417 = vsel %vm665, %v1409, 0
  %1419 = vmatprep.subr.mxu0 0.0
  %1420 = vmatpush1.msra.mxu0 %v660
  %1421 = vmatprep.subr.mxu0 0.0
  %1422 = vmatpush1.msra.mxu0 %v661
  %1423 = vmatprep.subr.mxu0 0.0
  %1424 = vmatpush1.msra.mxu0 %v662
  %1425 = vmatprep.subr.mxu0 0.0
  %1426 = vmatpush1.msra.mxu0 %v663
  %1427 = vmatprep.subr.mxu0 0.0
  %1428 = vmatpush1.msra.mxu0 0.0
  %1429 = vmatprep.subr.mxu0 0.0
  %1430 = vmatpush1.msra.mxu0 0.0
  %1431 = vmatprep.subr.mxu0 0.0
  %1432 = vmatpush1.msra.mxu0 0.0
  %1433 = vmatprep.subr.mxu0 0.0
  %1434 = vmatpush1.msra.mxu0 0.0
  %1435 = vmatprep.subr.mxu0 0.0
  %1436 = vmatpush1.msra.mxu0 0.0
  %1437 = vmatprep.subr.mxu0 0.0
  %1438 = vmatpush1.msra.mxu0 0.0
  %1439 = vmatprep.subr.mxu0 0.0
  %1440 = vmatpush1.msra.mxu0 0.0
  %1441 = vmatprep.subr.mxu0 0.0
  %1442 = vmatpush1.msra.mxu0 0.0
  %1443 = vmatprep.subr.mxu0 0.0
  %1444 = vmatpush1.msra.mxu0 0.0
  %1445 = vmatprep.subr.mxu0 0.0
  %1446 = vmatpush1.msra.mxu0 0.0
  %1447 = vmatprep.subr.mxu0 0.0
  %1448 = vmatpush1.msra.mxu0 0.0
  %1449 = vmatprep.subr.mxu0 0.0
  %1450 = vmatpush1.msra.mxu0 0.0
  %1451 = vmatprep.subr.mxu0 0.0
  %1452 = vmatpush1.msra.mxu0 0.0
  %1453 = vmatprep.subr.mxu0 0.0
  %1454 = vmatpush1.msra.mxu0 0.0
  %1455 = vmatprep.subr.mxu0 0.0
  %1456 = vmatpush1.msra.mxu0 0.0
  %1457 = vmatprep.subr.mxu0 0.0
  %1458 = vmatpush1.msra.mxu0 0.0
  %1459 = vmatprep.subr.mxu0 0.0
  %1460 = vmatpush1.msra.mxu0 0.0
  %1461 = vmatprep.subr.mxu0 0.0
  %1462 = vmatpush1.msra.mxu0 0.0
  %1463 = vmatprep.subr.mxu0 0.0
  %1464 = vmatpush1.msra.mxu0 0.0
  %1465 = vmatprep.subr.mxu0 0.0
  %1466 = vmatpush1.msra.mxu0 0.0
  %1467 = vmatprep.subr.mxu0 0.0
  %1468 = vmatpush1.msra.mxu0 0.0
  %1469 = vmatprep.subr.mxu0 0.0
  %1470 = vmatpush1.msra.mxu0 0.0
  %1471 = vmatprep.subr.mxu0 0.0
  %1472 = vmatpush1.msra.mxu0 0.0
  %1473 = vmatprep.subr.mxu0 0.0
  %1474 = vmatpush1.msra.mxu0 0.0
  %1475 = vmatprep.subr.mxu0 0.0
  %1476 = vmatpush1.msra.mxu0 0.0
  %1477 = vmatprep.subr.mxu0 0.0
  %1478 = vmatpush1.msra.mxu0 0.0
  %1479 = vmatprep.subr.mxu0 0.0
  %1480 = vmatpush1.msra.mxu0 0.0
  %1481 = vmatprep.subr.mxu0 0.0
  %1482 = vmatpush1.msra.mxu0 0.0
  %1483 = vmatprep.mubr.f32.mxu0 0.0
  %1484 = vmatmul.mubr.f32.gmra.mrb[0].mxu0 %v1417
  %v1485 = vpop.f32.mrb[0].mxu0
  %v1486 = vadd.f32 0.0, %v1485
  %v1487 = vpop.f32.mrb[0].mxu0
  %1488 = vdwg.mxu0
  %v1489 = vadd.f32 %v1416, %v1486
  %v1490 = vxor.u32 %v1489, 2147483648
  %v1491 = vmul.f32 %v1490, 1.442695
  %v1492 = vpow.pop %v1491
  %v1493 = vadd.f32 %v1492, 1.0
  %v1494 = vrcp.pop %v1493
  %v1495 = vmul.f32 1.0, %v1494
  %v1496 = vtanh.pop %v1489
  %v1497 = vmul.f32 %v1495, %v1400
  %1499 = vrot.lane.b32.xlu0 %v1496, 32
  %v1500 = vpop.permute.xlu0 %1499
  %v1502 = vmul.f32 %v1495, %v1500
  %1504 = vrot.lane.b32.xlu0 %v1502, 32
  %v1505 = vpop.permute.xlu0 %1504
  %v1507 = vadd.f32 %v1497, %v1505
  %v1508 = vtanh.pop %v1507
  %1510 = vrot.lane.b32.xlu0 %v1508, 32
  %v1511 = vpop.permute.xlu0 %1510
  %v1513 = vmul.f32 %v1495, %v1511
  %1515 = vrot.lane.b32.xlu0 %v1513, 64
  %v1516 = vpop.permute.xlu0 %1515
  %s1518 = scalar_lea.vmem %s5, 14
  %1519 = vst.msk [vmem:[%s1518] sm:$0x3] %vm768, %v1516
  %s1520 = scalar_lea.vmem %s5, 58
  %1521 = vst.msk [vmem:[%s1520] sm:$0x3] %vm771, %v1516
  %s1522 = scalar_lea.vmem [#allocation2], 16
  %v1523 = vld [vmem:[%s1522] sm:$0x3]
  %v1524 = vsel %vm665, %v1516, 0
  %1526 = vmatprep.subr.mxu0 0.0
  %1527 = vmatpush1.msra.mxu0 %v660
  %1528 = vmatprep.subr.mxu0 0.0
  %1529 = vmatpush1.msra.mxu0 %v661
  %1530 = vmatprep.subr.mxu0 0.0
  %1531 = vmatpush1.msra.mxu0 %v662
  %1532 = vmatprep.subr.mxu0 0.0
  %1533 = vmatpush1.msra.mxu0 %v663
  %1534 = vmatprep.subr.mxu0 0.0
  %1535 = vmatpush1.msra.mxu0 0.0
  %1536 = vmatprep.subr.mxu0 0.0
  %1537 = vmatpush1.msra.mxu0 0.0
  %1538 = vmatprep.subr.mxu0 0.0
  %1539 = vmatpush1.msra.mxu0 0.0
  %1540 = vmatprep.subr.mxu0 0.0
  %1541 = vmatpush1.msra.mxu0 0.0
  %1542 = vmatprep.subr.mxu0 0.0
  %1543 = vmatpush1.msra.mxu0 0.0
  %1544 = vmatprep.subr.mxu0 0.0
  %1545 = vmatpush1.msra.mxu0 0.0
  %1546 = vmatprep.subr.mxu0 0.0
  %1547 = vmatpush1.msra.mxu0 0.0
  %1548 = vmatprep.subr.mxu0 0.0
  %1549 = vmatpush1.msra.mxu0 0.0
  %1550 = vmatprep.subr.mxu0 0.0
  %1551 = vmatpush1.msra.mxu0 0.0
  %1552 = vmatprep.subr.mxu0 0.0
  %1553 = vmatpush1.msra.mxu0 0.0
  %1554 = vmatprep.subr.mxu0 0.0
  %1555 = vmatpush1.msra.mxu0 0.0
  %1556 = vmatprep.subr.mxu0 0.0
  %1557 = vmatpush1.msra.mxu0 0.0
  %1558 = vmatprep.subr.mxu0 0.0
  %1559 = vmatpush1.msra.mxu0 0.0
  %1560 = vmatprep.subr.mxu0 0.0
  %1561 = vmatpush1.msra.mxu0 0.0
  %1562 = vmatprep.subr.mxu0 0.0
  %1563 = vmatpush1.msra.mxu0 0.0
  %1564 = vmatprep.subr.mxu0 0.0
  %1565 = vmatpush1.msra.mxu0 0.0
  %1566 = vmatprep.subr.mxu0 0.0
  %1567 = vmatpush1.msra.mxu0 0.0
  %1568 = vmatprep.subr.mxu0 0.0
  %1569 = vmatpush1.msra.mxu0 0.0
  %1570 = vmatprep.subr.mxu0 0.0
  %1571 = vmatpush1.msra.mxu0 0.0
  %1572 = vmatprep.subr.mxu0 0.0
  %1573 = vmatpush1.msra.mxu0 0.0
  %1574 = vmatprep.subr.mxu0 0.0
  %1575 = vmatpush1.msra.mxu0 0.0
  %1576 = vmatprep.subr.mxu0 0.0
  %1577 = vmatpush1.msra.mxu0 0.0
  %1578 = vmatprep.subr.mxu0 0.0
  %1579 = vmatpush1.msra.mxu0 0.0
  %1580 = vmatprep.subr.mxu0 0.0
  %1581 = vmatpush1.msra.mxu0 0.0
  %1582 = vmatprep.subr.mxu0 0.0
  %1583 = vmatpush1.msra.mxu0 0.0
  %1584 = vmatprep.subr.mxu0 0.0
  %1585 = vmatpush1.msra.mxu0 0.0
  %1586 = vmatprep.subr.mxu0 0.0
  %1587 = vmatpush1.msra.mxu0 0.0
  %1588 = vmatprep.subr.mxu0 0.0
  %1589 = vmatpush1.msra.mxu0 0.0
  %1590 = vmatprep.mubr.f32.mxu0 0.0
  %1591 = vmatmul.mubr.f32.gmra.mrb[0].mxu0 %v1524
  %v1592 = vpop.f32.mrb[0].mxu0
  %v1593 = vadd.f32 0.0, %v1592
  %v1594 = vpop.f32.mrb[0].mxu0
  %1595 = vdwg.mxu0
  %v1596 = vadd.f32 %v1523, %v1593
  %v1597 = vxor.u32 %v1596, 2147483648
  %v1598 = vmul.f32 %v1597, 1.442695
  %v1599 = vpow.pop %v1598
  %v1600 = vadd.f32 %v1599, 1.0
  %v1601 = vrcp.pop %v1600
  %v1602 = vmul.f32 1.0, %v1601
  %v1603 = vtanh.pop %v1596
  %v1604 = vmul.f32 %v1602, %v1507
  %1606 = vrot.lane.b32.xlu0 %v1603, 32
  %v1607 = vpop.permute.xlu0 %1606
  %v1609 = vmul.f32 %v1602, %v1607
  %1611 = vrot.lane.b32.xlu0 %v1609, 32
  %v1612 = vpop.permute.xlu0 %1611
  %v1614 = vadd.f32 %v1604, %v1612
  %v1615 = vtanh.pop %v1614
  %1617 = vrot.lane.b32.xlu0 %v1615, 32
  %v1618 = vpop.permute.xlu0 %1617
  %v1620 = vmul.f32 %v1602, %v1618
  %1622 = vrot.lane.b32.xlu0 %v1620, 64
  %v1623 = vpop.permute.xlu0 %1622
  %s1625 = scalar_lea.vmem %s5, 16
  %1626 = vst.msk [vmem:[%s1625] sm:$0x3] %vm768, %v1623
  %s1627 = scalar_lea.vmem %s5, 56
  %1628 = vst.msk [vmem:[%s1627] sm:$0x3] %vm771, %v1623
  %s1629 = scalar_lea.vmem [#allocation2], 18
  %v1630 = vld [vmem:[%s1629] sm:$0x3]
  %v1631 = vsel %vm665, %v1623, 0
  %1633 = vmatprep.subr.mxu0 0.0
  %1634 = vmatpush1.msra.mxu0 %v660
  %1635 = vmatprep.subr.mxu0 0.0
  %1636 = vmatpush1.msra.mxu0 %v661
  %1637 = vmatprep.subr.mxu0 0.0
  %1638 = vmatpush1.msra.mxu0 %v662
  %1639 = vmatprep.subr.mxu0 0.0
  %1640 = vmatpush1.msra.mxu0 %v663
  %1641 = vmatprep.subr.mxu0 0.0
  %1642 = vmatpush1.msra.mxu0 0.0
  %1643 = vmatprep.subr.mxu0 0.0
  %1644 = vmatpush1.msra.mxu0 0.0
  %1645 = vmatprep.subr.mxu0 0.0
  %1646 = vmatpush1.msra.mxu0 0.0
  %1647 = vmatprep.subr.mxu0 0.0
  %1648 = vmatpush1.msra.mxu0 0.0
  %1649 = vmatprep.subr.mxu0 0.0
  %1650 = vmatpush1.msra.mxu0 0.0
  %1651 = vmatprep.subr.mxu0 0.0
  %1652 = vmatpush1.msra.mxu0 0.0
  %1653 = vmatprep.subr.mxu0 0.0
  %1654 = vmatpush1.msra.mxu0 0.0
  %1655 = vmatprep.subr.mxu0 0.0
  %1656 = vmatpush1.msra.mxu0 0.0
  %1657 = vmatprep.subr.mxu0 0.0
  %1658 = vmatpush1.msra.mxu0 0.0
  %1659 = vmatprep.subr.mxu0 0.0
  %1660 = vmatpush1.msra.mxu0 0.0
  %1661 = vmatprep.subr.mxu0 0.0
  %1662 = vmatpush1.msra.mxu0 0.0
  %1663 = vmatprep.subr.mxu0 0.0
  %1664 = vmatpush1.msra.mxu0 0.0
  %1665 = vmatprep.subr.mxu0 0.0
  %1666 = vmatpush1.msra.mxu0 0.0
  %1667 = vmatprep.subr.mxu0 0.0
  %1668 = vmatpush1.msra.mxu0 0.0
  %1669 = vmatprep.subr.mxu0 0.0
  %1670 = vmatpush1.msra.mxu0 0.0
  %1671 = vmatprep.subr.mxu0 0.0
  %1672 = vmatpush1.msra.mxu0 0.0
  %1673 = vmatprep.subr.mxu0 0.0
  %1674 = vmatpush1.msra.mxu0 0.0
  %1675 = vmatprep.subr.mxu0 0.0
  %1676 = vmatpush1.msra.mxu0 0.0
  %1677 = vmatprep.subr.mxu0 0.0
  %1678 = vmatpush1.msra.mxu0 0.0
  %1679 = vmatprep.subr.mxu0 0.0
  %1680 = vmatpush1.msra.mxu0 0.0
  %1681 = vmatprep.subr.mxu0 0.0
  %1682 = vmatpush1.msra.mxu0 0.0
  %1683 = vmatprep.subr.mxu0 0.0
  %1684 = vmatpush1.msra.mxu0 0.0
  %1685 = vmatprep.subr.mxu0 0.0
  %1686 = vmatpush1.msra.mxu0 0.0
  %1687 = vmatprep.subr.mxu0 0.0
  %1688 = vmatpush1.msra.mxu0 0.0
  %1689 = vmatprep.subr.mxu0 0.0
  %1690 = vmatpush1.msra.mxu0 0.0
  %1691 = vmatprep.subr.mxu0 0.0
  %1692 = vmatpush1.msra.mxu0 0.0
  %1693 = vmatprep.subr.mxu0 0.0
  %1694 = vmatpush1.msra.mxu0 0.0
  %1695 = vmatprep.subr.mxu0 0.0
  %1696 = vmatpush1.msra.mxu0 0.0
  %1697 = vmatprep.mubr.f32.mxu0 0.0
  %1698 = vmatmul.mubr.f32.gmra.mrb[0].mxu0 %v1631
  %v1699 = vpop.f32.mrb[0].mxu0
  %v1700 = vadd.f32 0.0, %v1699
  %v1701 = vpop.f32.mrb[0].mxu0
  %1702 = vdwg.mxu0
  %v1703 = vadd.f32 %v1630, %v1700
  %v1704 = vxor.u32 %v1703, 2147483648
  %v1705 = vmul.f32 %v1704, 1.442695
  %v1706 = vpow.pop %v1705
  %v1707 = vadd.f32 %v1706, 1.0
  %v1708 = vrcp.pop %v1707
  %v1709 = vmul.f32 1.0, %v1708
  %v1710 = vtanh.pop %v1703
  %v1711 = vmul.f32 %v1709, %v1614
  %1713 = vrot.lane.b32.xlu0 %v1710, 32
  %v1714 = vpop.permute.xlu0 %1713
  %v1716 = vmul.f32 %v1709, %v1714
  %1718 = vrot.lane.b32.xlu0 %v1716, 32
  %v1719 = vpop.permute.xlu0 %1718
  %v1721 = vadd.f32 %v1711, %v1719
  %v1722 = vtanh.pop %v1721
  %1724 = vrot.lane.b32.xlu0 %v1722, 32
  %v1725 = vpop.permute.xlu0 %1724
  %v1727 = vmul.f32 %v1709, %v1725
  %1729 = vrot.lane.b32.xlu0 %v1727, 64
  %v1730 = vpop.permute.xlu0 %1729
  %s1732 = scalar_lea.vmem %s5, 18
  %1733 = vst.msk [vmem:[%s1732] sm:$0x3] %vm768, %v1730
  %s1734 = scalar_lea.vmem %s5, 54
  %1735 = vst.msk [vmem:[%s1734] sm:$0x3] %vm771, %v1730
  %s1736 = scalar_lea.vmem [#allocation2], 20
  %v1737 = vld [vmem:[%s1736] sm:$0x3]
  %v1738 = vsel %vm665, %v1730, 0
  %1740 = vmatprep.subr.mxu0 0.0
  %1741 = vmatpush1.msra.mxu0 %v660
  %1742 = vmatprep.subr.mxu0 0.0
  %1743 = vmatpush1.msra.mxu0 %v661
  %1744 = vmatprep.subr.mxu0 0.0
  %1745 = vmatpush1.msra.mxu0 %v662
  %1746 = vmatprep.subr.mxu0 0.0
  %1747 = vmatpush1.msra.mxu0 %v663
  %1748 = vmatprep.subr.mxu0 0.0
  %1749 = vmatpush1.msra.mxu0 0.0
  %1750 = vmatprep.subr.mxu0 0.0
  %1751 = vmatpush1.msra.mxu0 0.0
  %1752 = vmatprep.subr.mxu0 0.0
  %1753 = vmatpush1.msra.mxu0 0.0
  %1754 = vmatprep.subr.mxu0 0.0
  %1755 = vmatpush1.msra.mxu0 0.0
  %1756 = vmatprep.subr.mxu0 0.0
  %1757 = vmatpush1.msra.mxu0 0.0
  %1758 = vmatprep.subr.mxu0 0.0
  %1759 = vmatpush1.msra.mxu0 0.0
  %1760 = vmatprep.subr.mxu0 0.0
  %1761 = vmatpush1.msra.mxu0 0.0
  %1762 = vmatprep.subr.mxu0 0.0
  %1763 = vmatpush1.msra.mxu0 0.0
  %1764 = vmatprep.subr.mxu0 0.0
  %1765 = vmatpush1.msra.mxu0 0.0
  %1766 = vmatprep.subr.mxu0 0.0
  %1767 = vmatpush1.msra.mxu0 0.0
  %1768 = vmatprep.subr.mxu0 0.0
  %1769 = vmatpush1.msra.mxu0 0.0
  %1770 = vmatprep.subr.mxu0 0.0
  %1771 = vmatpush1.msra.mxu0 0.0
  %1772 = vmatprep.subr.mxu0 0.0
  %1773 = vmatpush1.msra.mxu0 0.0
  %1774 = vmatprep.subr.mxu0 0.0
  %1775 = vmatpush1.msra.mxu0 0.0
  %1776 = vmatprep.subr.mxu0 0.0
  %1777 = vmatpush1.msra.mxu0 0.0
  %1778 = vmatprep.subr.mxu0 0.0
  %1779 = vmatpush1.msra.mxu0 0.0
  %1780 = vmatprep.subr.mxu0 0.0
  %1781 = vmatpush1.msra.mxu0 0.0
  %1782 = vmatprep.subr.mxu0 0.0
  %1783 = vmatpush1.msra.mxu0 0.0
  %1784 = vmatprep.subr.mxu0 0.0
  %1785 = vmatpush1.msra.mxu0 0.0
  %1786 = vmatprep.subr.mxu0 0.0
  %1787 = vmatpush1.msra.mxu0 0.0
  %1788 = vmatprep.subr.mxu0 0.0
  %1789 = vmatpush1.msra.mxu0 0.0
  %1790 = vmatprep.subr.mxu0 0.0
  %1791 = vmatpush1.msra.mxu0 0.0
  %1792 = vmatprep.subr.mxu0 0.0
  %1793 = vmatpush1.msra.mxu0 0.0
  %1794 = vmatprep.subr.mxu0 0.0
  %1795 = vmatpush1.msra.mxu0 0.0
  %1796 = vmatprep.subr.mxu0 0.0
  %1797 = vmatpush1.msra.mxu0 0.0
  %1798 = vmatprep.subr.mxu0 0.0
  %1799 = vmatpush1.msra.mxu0 0.0
  %1800 = vmatprep.subr.mxu0 0.0
  %1801 = vmatpush1.msra.mxu0 0.0
  %1802 = vmatprep.subr.mxu0 0.0
  %1803 = vmatpush1.msra.mxu0 0.0
  %1804 = vmatprep.mubr.f32.mxu0 0.0
  %1805 = vmatmul.mubr.f32.gmra.mrb[0].mxu0 %v1738
  %v1806 = vpop.f32.mrb[0].mxu0
  %v1807 = vadd.f32 0.0, %v1806
  %v1808 = vpop.f32.mrb[0].mxu0
  %1809 = vdwg.mxu0
  %v1810 = vadd.f32 %v1737, %v1807
  %v1811 = vxor.u32 %v1810, 2147483648
  %v1812 = vmul.f32 %v1811, 1.442695
  %v1813 = vpow.pop %v1812
  %v1814 = vadd.f32 %v1813, 1.0
  %v1815 = vrcp.pop %v1814
  %v1816 = vmul.f32 1.0, %v1815
  %v1817 = vtanh.pop %v1810
  %v1818 = vmul.f32 %v1816, %v1721
  %1820 = vrot.lane.b32.xlu0 %v1817, 32
  %v1821 = vpop.permute.xlu0 %1820
  %v1823 = vmul.f32 %v1816, %v1821
  %1825 = vrot.lane.b32.xlu0 %v1823, 32
  %v1826 = vpop.permute.xlu0 %1825
  %v1828 = vadd.f32 %v1818, %v1826
  %v1829 = vtanh.pop %v1828
  %1831 = vrot.lane.b32.xlu0 %v1829, 32
  %v1832 = vpop.permute.xlu0 %1831
  %v1834 = vmul.f32 %v1816, %v1832
  %1836 = vrot.lane.b32.xlu0 %v1834, 64
  %v1837 = vpop.permute.xlu0 %1836
  %s1839 = scalar_lea.vmem %s5, 20
  %1840 = vst.msk [vmem:[%s1839] sm:$0x3] %vm768, %v1837
  %s1841 = scalar_lea.vmem %s5, 52
  %1842 = vst.msk [vmem:[%s1841] sm:$0x3] %vm771, %v1837
  %s1843 = scalar_lea.vmem [#allocation2], 22
  %v1844 = vld [vmem:[%s1843] sm:$0x3]
  %v1845 = vsel %vm665, %v1837, 0
  %1847 = vmatprep.subr.mxu0 0.0
  %1848 = vmatpush1.msra.mxu0 %v660
  %1849 = vmatprep.subr.mxu0 0.0
  %1850 = vmatpush1.msra.mxu0 %v661
  %1851 = vmatprep.subr.mxu0 0.0
  %1852 = vmatpush1.msra.mxu0 %v662
  %1853 = vmatprep.subr.mxu0 0.0
  %1854 = vmatpush1.msra.mxu0 %v663
  %1855 = vmatprep.subr.mxu0 0.0
  %1856 = vmatpush1.msra.mxu0 0.0
  %1857 = vmatprep.subr.mxu0 0.0
  %1858 = vmatpush1.msra.mxu0 0.0
  %1859 = vmatprep.subr.mxu0 0.0
  %1860 = vmatpush1.msra.mxu0 0.0
  %1861 = vmatprep.subr.mxu0 0.0
  %1862 = vmatpush1.msra.mxu0 0.0
  %1863 = vmatprep.subr.mxu0 0.0
  %1864 = vmatpush1.msra.mxu0 0.0
  %1865 = vmatprep.subr.mxu0 0.0
  %1866 = vmatpush1.msra.mxu0 0.0
  %1867 = vmatprep.subr.mxu0 0.0
  %1868 = vmatpush1.msra.mxu0 0.0
  %1869 = vmatprep.subr.mxu0 0.0
  %1870 = vmatpush1.msra.mxu0 0.0
  %1871 = vmatprep.subr.mxu0 0.0
  %1872 = vmatpush1.msra.mxu0 0.0
  %1873 = vmatprep.subr.mxu0 0.0
  %1874 = vmatpush1.msra.mxu0 0.0
  %1875 = vmatprep.subr.mxu0 0.0
  %1876 = vmatpush1.msra.mxu0 0.0
  %1877 = vmatprep.subr.mxu0 0.0
  %1878 = vmatpush1.msra.mxu0 0.0
  %1879 = vmatprep.subr.mxu0 0.0
  %1880 = vmatpush1.msra.mxu0 0.0
  %1881 = vmatprep.subr.mxu0 0.0
  %1882 = vmatpush1.msra.mxu0 0.0
  %1883 = vmatprep.subr.mxu0 0.0
  %1884 = vmatpush1.msra.mxu0 0.0
  %1885 = vmatprep.subr.mxu0 0.0
  %1886 = vmatpush1.msra.mxu0 0.0
  %1887 = vmatprep.subr.mxu0 0.0
  %1888 = vmatpush1.msra.mxu0 0.0
  %1889 = vmatprep.subr.mxu0 0.0
  %1890 = vmatpush1.msra.mxu0 0.0
  %1891 = vmatprep.subr.mxu0 0.0
  %1892 = vmatpush1.msra.mxu0 0.0
  %1893 = vmatprep.subr.mxu0 0.0
  %1894 = vmatpush1.msra.mxu0 0.0
  %1895 = vmatprep.subr.mxu0 0.0
  %1896 = vmatpush1.msra.mxu0 0.0
  %1897 = vmatprep.subr.mxu0 0.0
  %1898 = vmatpush1.msra.mxu0 0.0
  %1899 = vmatprep.subr.mxu0 0.0
  %1900 = vmatpush1.msra.mxu0 0.0
  %1901 = vmatprep.subr.mxu0 0.0
  %1902 = vmatpush1.msra.mxu0 0.0
  %1903 = vmatprep.subr.mxu0 0.0
  %1904 = vmatpush1.msra.mxu0 0.0
  %1905 = vmatprep.subr.mxu0 0.0
  %1906 = vmatpush1.msra.mxu0 0.0
  %1907 = vmatprep.subr.mxu0 0.0
  %1908 = vmatpush1.msra.mxu0 0.0
  %1909 = vmatprep.subr.mxu0 0.0
  %1910 = vmatpush1.msra.mxu0 0.0
  %1911 = vmatprep.mubr.f32.mxu0 0.0
  %1912 = vmatmul.mubr.f32.gmra.mrb[0].mxu0 %v1845
  %v1913 = vpop.f32.mrb[0].mxu0
  %v1914 = vadd.f32 0.0, %v1913
  %v1915 = vpop.f32.mrb[0].mxu0
  %1916 = vdwg.mxu0
  %v1917 = vadd.f32 %v1844, %v1914
  %v1918 = vxor.u32 %v1917, 2147483648
  %v1919 = vmul.f32 %v1918, 1.442695
  %v1920 = vpow.pop %v1919
  %v1921 = vadd.f32 %v1920, 1.0
  %v1922 = vrcp.pop %v1921
  %v1923 = vmul.f32 1.0, %v1922
  %v1924 = vtanh.pop %v1917
  %v1925 = vmul.f32 %v1923, %v1828
  %1927 = vrot.lane.b32.xlu0 %v1924, 32
  %v1928 = vpop.permute.xlu0 %1927
  %v1930 = vmul.f32 %v1923, %v1928
  %1932 = vrot.lane.b32.xlu0 %v1930, 32
  %v1933 = vpop.permute.xlu0 %1932
  %v1935 = vadd.f32 %v1925, %v1933
  %v1936 = vtanh.pop %v1935
  %1938 = vrot.lane.b32.xlu0 %v1936, 32
  %v1939 = vpop.permute.xlu0 %1938
  %v1941 = vmul.f32 %v1923, %v1939
  %1943 = vrot.lane.b32.xlu0 %v1941, 64
  %v1944 = vpop.permute.xlu0 %1943
  %s1946 = scalar_lea.vmem %s5, 22
  %1947 = vst.msk [vmem:[%s1946] sm:$0x3] %vm768, %v1944
  %s1948 = scalar_lea.vmem %s5, 50
  %1949 = vst.msk [vmem:[%s1948] sm:$0x3] %vm771, %v1944
  %s1950 = scalar_lea.vmem [#allocation2], 24
  %v1951 = vld [vmem:[%s1950] sm:$0x3]
  %v1952 = vsel %vm665, %v1944, 0
  %1954 = vmatprep.subr.mxu0 0.0
  %1955 = vmatpush1.msra.mxu0 %v660
  %1956 = vmatprep.subr.mxu0 0.0
  %1957 = vmatpush1.msra.mxu0 %v661
  %1958 = vmatprep.subr.mxu0 0.0
  %1959 = vmatpush1.msra.mxu0 %v662
  %1960 = vmatprep.subr.mxu0 0.0
  %1961 = vmatpush1.msra.mxu0 %v663
  %1962 = vmatprep.subr.mxu0 0.0
  %1963 = vmatpush1.msra.mxu0 0.0
  %1964 = vmatprep.subr.mxu0 0.0
  %1965 = vmatpush1.msra.mxu0 0.0
  %1966 = vmatprep.subr.mxu0 0.0
  %1967 = vmatpush1.msra.mxu0 0.0
  %1968 = vmatprep.subr.mxu0 0.0
  %1969 = vmatpush1.msra.mxu0 0.0
  %1970 = vmatprep.subr.mxu0 0.0
  %1971 = vmatpush1.msra.mxu0 0.0
  %1972 = vmatprep.subr.mxu0 0.0
  %1973 = vmatpush1.msra.mxu0 0.0
  %1974 = vmatprep.subr.mxu0 0.0
  %1975 = vmatpush1.msra.mxu0 0.0
  %1976 = vmatprep.subr.mxu0 0.0
  %1977 = vmatpush1.msra.mxu0 0.0
  %1978 = vmatprep.subr.mxu0 0.0
  %1979 = vmatpush1.msra.mxu0 0.0
  %1980 = vmatprep.subr.mxu0 0.0
  %1981 = vmatpush1.msra.mxu0 0.0
  %1982 = vmatprep.subr.mxu0 0.0
  %1983 = vmatpush1.msra.mxu0 0.0
  %1984 = vmatprep.subr.mxu0 0.0
  %1985 = vmatpush1.msra.mxu0 0.0
  %1986 = vmatprep.subr.mxu0 0.0
  %1987 = vmatpush1.msra.mxu0 0.0
  %1988 = vmatprep.subr.mxu0 0.0
  %1989 = vmatpush1.msra.mxu0 0.0
  %1990 = vmatprep.subr.mxu0 0.0
  %1991 = vmatpush1.msra.mxu0 0.0
  %1992 = vmatprep.subr.mxu0 0.0
  %1993 = vmatpush1.msra.mxu0 0.0
  %1994 = vmatprep.subr.mxu0 0.0
  %1995 = vmatpush1.msra.mxu0 0.0
  %1996 = vmatprep.subr.mxu0 0.0
  %1997 = vmatpush1.msra.mxu0 0.0
  %1998 = vmatprep.subr.mxu0 0.0
  %1999 = vmatpush1.msra.mxu0 0.0
  %2000 = vmatprep.subr.mxu0 0.0
  %2001 = vmatpush1.msra.mxu0 0.0
  %2002 = vmatprep.subr.mxu0 0.0
  %2003 = vmatpush1.msra.mxu0 0.0
  %2004 = vmatprep.subr.mxu0 0.0
  %2005 = vmatpush1.msra.mxu0 0.0
  %2006 = vmatprep.subr.mxu0 0.0
  %2007 = vmatpush1.msra.mxu0 0.0
  %2008 = vmatprep.subr.mxu0 0.0
  %2009 = vmatpush1.msra.mxu0 0.0
  %2010 = vmatprep.subr.mxu0 0.0
  %2011 = vmatpush1.msra.mxu0 0.0
  %2012 = vmatprep.subr.mxu0 0.0
  %2013 = vmatpush1.msra.mxu0 0.0
  %2014 = vmatprep.subr.mxu0 0.0
  %2015 = vmatpush1.msra.mxu0 0.0
  %2016 = vmatprep.subr.mxu0 0.0
  %2017 = vmatpush1.msra.mxu0 0.0
  %2018 = vmatprep.mubr.f32.mxu0 0.0
  %2019 = vmatmul.mubr.f32.gmra.mrb[0].mxu0 %v1952
  %v2020 = vpop.f32.mrb[0].mxu0
  %v2021 = vadd.f32 0.0, %v2020
  %v2022 = vpop.f32.mrb[0].mxu0
  %2023 = vdwg.mxu0
  %v2024 = vadd.f32 %v1951, %v2021
  %v2025 = vxor.u32 %v2024, 2147483648
  %v2026 = vmul.f32 %v2025, 1.442695
  %v2027 = vpow.pop %v2026
  %v2028 = vadd.f32 %v2027, 1.0
  %v2029 = vrcp.pop %v2028
  %v2030 = vmul.f32 1.0, %v2029
  %v2031 = vtanh.pop %v2024
  %v2032 = vmul.f32 %v2030, %v1935
  %2034 = vrot.lane.b32.xlu0 %v2031, 32
  %v2035 = vpop.permute.xlu0 %2034
  %v2037 = vmul.f32 %v2030, %v2035
  %2039 = vrot.lane.b32.xlu0 %v2037, 32
  %v2040 = vpop.permute.xlu0 %2039
  %v2042 = vadd.f32 %v2032, %v2040
  %v2043 = vtanh.pop %v2042
  %2045 = vrot.lane.b32.xlu0 %v2043, 32
  %v2046 = vpop.permute.xlu0 %2045
  %v2048 = vmul.f32 %v2030, %v2046
  %2050 = vrot.lane.b32.xlu0 %v2048, 64
  %v2051 = vpop.permute.xlu0 %2050
  %s2053 = scalar_lea.vmem %s5, 24
  %2054 = vst.msk [vmem:[%s2053] sm:$0x3] %vm768, %v2051
  %s2055 = scalar_lea.vmem %s5, 48
  %2056 = vst.msk [vmem:[%s2055] sm:$0x3] %vm771, %v2051
  %s2057 = scalar_lea.vmem [#allocation2], 26
  %v2058 = vld [vmem:[%s2057] sm:$0x3]
  %v2059 = vsel %vm665, %v2051, 0
  %2061 = vmatprep.subr.mxu0 0.0
  %2062 = vmatpush1.msra.mxu0 %v660
  %2063 = vmatprep.subr.mxu0 0.0
  %2064 = vmatpush1.msra.mxu0 %v661
  %2065 = vmatprep.subr.mxu0 0.0
  %2066 = vmatpush1.msra.mxu0 %v662
  %2067 = vmatprep.subr.mxu0 0.0
  %2068 = vmatpush1.msra.mxu0 %v663
  %2069 = vmatprep.subr.mxu0 0.0
  %2070 = vmatpush1.msra.mxu0 0.0
  %2071 = vmatprep.subr.mxu0 0.0
  %2072 = vmatpush1.msra.mxu0 0.0
  %2073 = vmatprep.subr.mxu0 0.0
  %2074 = vmatpush1.msra.mxu0 0.0
  %2075 = vmatprep.subr.mxu0 0.0
  %2076 = vmatpush1.msra.mxu0 0.0
  %2077 = vmatprep.subr.mxu0 0.0
  %2078 = vmatpush1.msra.mxu0 0.0
  %2079 = vmatprep.subr.mxu0 0.0
  %2080 = vmatpush1.msra.mxu0 0.0
  %2081 = vmatprep.subr.mxu0 0.0
  %2082 = vmatpush1.msra.mxu0 0.0
  %2083 = vmatprep.subr.mxu0 0.0
  %2084 = vmatpush1.msra.mxu0 0.0
  %2085 = vmatprep.subr.mxu0 0.0
  %2086 = vmatpush1.msra.mxu0 0.0
  %2087 = vmatprep.subr.mxu0 0.0
  %2088 = vmatpush1.msra.mxu0 0.0
  %2089 = vmatprep.subr.mxu0 0.0
  %2090 = vmatpush1.msra.mxu0 0.0
  %2091 = vmatprep.subr.mxu0 0.0
  %2092 = vmatpush1.msra.mxu0 0.0
  %2093 = vmatprep.subr.mxu0 0.0
  %2094 = vmatpush1.msra.mxu0 0.0
  %2095 = vmatprep.subr.mxu0 0.0
  %2096 = vmatpush1.msra.mxu0 0.0
  %2097 = vmatprep.subr.mxu0 0.0
  %2098 = vmatpush1.msra.mxu0 0.0
  %2099 = vmatprep.subr.mxu0 0.0
  %2100 = vmatpush1.msra.mxu0 0.0
  %2101 = vmatprep.subr.mxu0 0.0
  %2102 = vmatpush1.msra.mxu0 0.0
  %2103 = vmatprep.subr.mxu0 0.0
  %2104 = vmatpush1.msra.mxu0 0.0
  %2105 = vmatprep.subr.mxu0 0.0
  %2106 = vmatpush1.msra.mxu0 0.0
  %2107 = vmatprep.subr.mxu0 0.0
  %2108 = vmatpush1.msra.mxu0 0.0
  %2109 = vmatprep.subr.mxu0 0.0
  %2110 = vmatpush1.msra.mxu0 0.0
  %2111 = vmatprep.subr.mxu0 0.0
  %2112 = vmatpush1.msra.mxu0 0.0
  %2113 = vmatprep.subr.mxu0 0.0
  %2114 = vmatpush1.msra.mxu0 0.0
  %2115 = vmatprep.subr.mxu0 0.0
  %2116 = vmatpush1.msra.mxu0 0.0
  %2117 = vmatprep.subr.mxu0 0.0
  %2118 = vmatpush1.msra.mxu0 0.0
  %2119 = vmatprep.subr.mxu0 0.0
  %2120 = vmatpush1.msra.mxu0 0.0
  %2121 = vmatprep.subr.mxu0 0.0
  %2122 = vmatpush1.msra.mxu0 0.0
  %2123 = vmatprep.subr.mxu0 0.0
  %2124 = vmatpush1.msra.mxu0 0.0
  %2125 = vmatprep.mubr.f32.mxu0 0.0
  %2126 = vmatmul.mubr.f32.gmra.mrb[0].mxu0 %v2059
  %v2127 = vpop.f32.mrb[0].mxu0
  %v2128 = vadd.f32 0.0, %v2127
  %v2129 = vpop.f32.mrb[0].mxu0
  %2130 = vdwg.mxu0
  %v2131 = vadd.f32 %v2058, %v2128
  %v2132 = vxor.u32 %v2131, 2147483648
  %v2133 = vmul.f32 %v2132, 1.442695
  %v2134 = vpow.pop %v2133
  %v2135 = vadd.f32 %v2134, 1.0
  %v2136 = vrcp.pop %v2135
  %v2137 = vmul.f32 1.0, %v2136
  %v2138 = vtanh.pop %v2131
  %v2139 = vmul.f32 %v2137, %v2042
  %2141 = vrot.lane.b32.xlu0 %v2138, 32
  %v2142 = vpop.permute.xlu0 %2141
  %v2144 = vmul.f32 %v2137, %v2142
  %2146 = vrot.lane.b32.xlu0 %v2144, 32
  %v2147 = vpop.permute.xlu0 %2146
  %v2149 = vadd.f32 %v2139, %v2147
  %v2150 = vtanh.pop %v2149
  %2152 = vrot.lane.b32.xlu0 %v2150, 32
  %v2153 = vpop.permute.xlu0 %2152
  %v2155 = vmul.f32 %v2137, %v2153
  %2157 = vrot.lane.b32.xlu0 %v2155, 64
  %v2158 = vpop.permute.xlu0 %2157
  %s2160 = scalar_lea.vmem %s5, 26
  %2161 = vst.msk [vmem:[%s2160] sm:$0x3] %vm768, %v2158
  %s2162 = scalar_lea.vmem %s5, 46
  %2163 = vst.msk [vmem:[%s2162] sm:$0x3] %vm771, %v2158
  %s2164 = scalar_lea.vmem [#allocation2], 28
  %v2165 = vld [vmem:[%s2164] sm:$0x3]
  %v2166 = vsel %vm665, %v2158, 0
  %2168 = vmatprep.subr.mxu0 0.0
  %2169 = vmatpush1.msra.mxu0 %v660
  %2170 = vmatprep.subr.mxu0 0.0
  %2171 = vmatpush1.msra.mxu0 %v661
  %2172 = vmatprep.subr.mxu0 0.0
  %2173 = vmatpush1.msra.mxu0 %v662
  %2174 = vmatprep.subr.mxu0 0.0
  %2175 = vmatpush1.msra.mxu0 %v663
  %2176 = vmatprep.subr.mxu0 0.0
  %2177 = vmatpush1.msra.mxu0 0.0
  %2178 = vmatprep.subr.mxu0 0.0
  %2179 = vmatpush1.msra.mxu0 0.0
  %2180 = vmatprep.subr.mxu0 0.0
  %2181 = vmatpush1.msra.mxu0 0.0
  %2182 = vmatprep.subr.mxu0 0.0
  %2183 = vmatpush1.msra.mxu0 0.0
  %2184 = vmatprep.subr.mxu0 0.0
  %2185 = vmatpush1.msra.mxu0 0.0
  %2186 = vmatprep.subr.mxu0 0.0
  %2187 = vmatpush1.msra.mxu0 0.0
  %2188 = vmatprep.subr.mxu0 0.0
  %2189 = vmatpush1.msra.mxu0 0.0
  %2190 = vmatprep.subr.mxu0 0.0
  %2191 = vmatpush1.msra.mxu0 0.0
  %2192 = vmatprep.subr.mxu0 0.0
  %2193 = vmatpush1.msra.mxu0 0.0
  %2194 = vmatprep.subr.mxu0 0.0
  %2195 = vmatpush1.msra.mxu0 0.0
  %2196 = vmatprep.subr.mxu0 0.0
  %2197 = vmatpush1.msra.mxu0 0.0
  %2198 = vmatprep.subr.mxu0 0.0
  %2199 = vmatpush1.msra.mxu0 0.0
  %2200 = vmatprep.subr.mxu0 0.0
  %2201 = vmatpush1.msra.mxu0 0.0
  %2202 = vmatprep.subr.mxu0 0.0
  %2203 = vmatpush1.msra.mxu0 0.0
  %2204 = vmatprep.subr.mxu0 0.0
  %2205 = vmatpush1.msra.mxu0 0.0
  %2206 = vmatprep.subr.mxu0 0.0
  %2207 = vmatpush1.msra.mxu0 0.0
  %2208 = vmatprep.subr.mxu0 0.0
  %2209 = vmatpush1.msra.mxu0 0.0
  %2210 = vmatprep.subr.mxu0 0.0
  %2211 = vmatpush1.msra.mxu0 0.0
  %2212 = vmatprep.subr.mxu0 0.0
  %2213 = vmatpush1.msra.mxu0 0.0
  %2214 = vmatprep.subr.mxu0 0.0
  %2215 = vmatpush1.msra.mxu0 0.0
  %2216 = vmatprep.subr.mxu0 0.0
  %2217 = vmatpush1.msra.mxu0 0.0
  %2218 = vmatprep.subr.mxu0 0.0
  %2219 = vmatpush1.msra.mxu0 0.0
  %2220 = vmatprep.subr.mxu0 0.0
  %2221 = vmatpush1.msra.mxu0 0.0
  %2222 = vmatprep.subr.mxu0 0.0
  %2223 = vmatpush1.msra.mxu0 0.0
  %2224 = vmatprep.subr.mxu0 0.0
  %2225 = vmatpush1.msra.mxu0 0.0
  %2226 = vmatprep.subr.mxu0 0.0
  %2227 = vmatpush1.msra.mxu0 0.0
  %2228 = vmatprep.subr.mxu0 0.0
  %2229 = vmatpush1.msra.mxu0 0.0
  %2230 = vmatprep.subr.mxu0 0.0
  %2231 = vmatpush1.msra.mxu0 0.0
  %2232 = vmatprep.mubr.f32.mxu0 0.0
  %2233 = vmatmul.mubr.f32.gmra.mrb[0].mxu0 %v2166
  %v2234 = vpop.f32.mrb[0].mxu0
  %v2235 = vadd.f32 0.0, %v2234
  %v2236 = vpop.f32.mrb[0].mxu0
  %2237 = vdwg.mxu0
  %v2238 = vadd.f32 %v2165, %v2235
  %v2239 = vxor.u32 %v2238, 2147483648
  %v2240 = vmul.f32 %v2239, 1.442695
  %v2241 = vpow.pop %v2240
  %v2242 = vadd.f32 %v2241, 1.0
  %v2243 = vrcp.pop %v2242
  %v2244 = vmul.f32 1.0, %v2243
  %v2245 = vtanh.pop %v2238
  %v2246 = vmul.f32 %v2244, %v2149
  %2248 = vrot.lane.b32.xlu0 %v2245, 32
  %v2249 = vpop.permute.xlu0 %2248
  %v2251 = vmul.f32 %v2244, %v2249
  %2253 = vrot.lane.b32.xlu0 %v2251, 32
  %v2254 = vpop.permute.xlu0 %2253
  %v2256 = vadd.f32 %v2246, %v2254
  %v2257 = vtanh.pop %v2256
  %2259 = vrot.lane.b32.xlu0 %v2257, 32
  %v2260 = vpop.permute.xlu0 %2259
  %v2262 = vmul.f32 %v2244, %v2260
  %2264 = vrot.lane.b32.xlu0 %v2262, 64
  %v2265 = vpop.permute.xlu0 %2264
  %s2267 = scalar_lea.vmem %s5, 28
  %2268 = vst.msk [vmem:[%s2267] sm:$0x3] %vm768, %v2265
  %s2269 = scalar_lea.vmem %s5, 44
  %2270 = vst.msk [vmem:[%s2269] sm:$0x3] %vm771, %v2265
  %s2271 = scalar_lea.vmem [#allocation2], 30
  %v2272 = vld [vmem:[%s2271] sm:$0x3]
  %v2273 = vsel %vm665, %v2265, 0
  %2275 = vmatprep.subr.mxu0 0.0
  %2276 = vmatpush1.msra.mxu0 %v660
  %2277 = vmatprep.subr.mxu0 0.0
  %2278 = vmatpush1.msra.mxu0 %v661
  %2279 = vmatprep.subr.mxu0 0.0
  %2280 = vmatpush1.msra.mxu0 %v662
  %2281 = vmatprep.subr.mxu0 0.0
  %2282 = vmatpush1.msra.mxu0 %v663
  %2283 = vmatprep.subr.mxu0 0.0
  %2284 = vmatpush1.msra.mxu0 0.0
  %2285 = vmatprep.subr.mxu0 0.0
  %2286 = vmatpush1.msra.mxu0 0.0
  %2287 = vmatprep.subr.mxu0 0.0
  %2288 = vmatpush1.msra.mxu0 0.0
  %2289 = vmatprep.subr.mxu0 0.0
  %2290 = vmatpush1.msra.mxu0 0.0
  %2291 = vmatprep.subr.mxu0 0.0
  %2292 = vmatpush1.msra.mxu0 0.0
  %2293 = vmatprep.subr.mxu0 0.0
  %2294 = vmatpush1.msra.mxu0 0.0
  %2295 = vmatprep.subr.mxu0 0.0
  %2296 = vmatpush1.msra.mxu0 0.0
  %2297 = vmatprep.subr.mxu0 0.0
  %2298 = vmatpush1.msra.mxu0 0.0
  %2299 = vmatprep.subr.mxu0 0.0
  %2300 = vmatpush1.msra.mxu0 0.0
  %2301 = vmatprep.subr.mxu0 0.0
  %2302 = vmatpush1.msra.mxu0 0.0
  %2303 = vmatprep.subr.mxu0 0.0
  %2304 = vmatpush1.msra.mxu0 0.0
  %2305 = vmatprep.subr.mxu0 0.0
  %2306 = vmatpush1.msra.mxu0 0.0
  %2307 = vmatprep.subr.mxu0 0.0
  %2308 = vmatpush1.msra.mxu0 0.0
  %2309 = vmatprep.subr.mxu0 0.0
  %2310 = vmatpush1.msra.mxu0 0.0
  %2311 = vmatprep.subr.mxu0 0.0
  %2312 = vmatpush1.msra.mxu0 0.0
  %2313 = vmatprep.subr.mxu0 0.0
  %2314 = vmatpush1.msra.mxu0 0.0
  %2315 = vmatprep.subr.mxu0 0.0
  %2316 = vmatpush1.msra.mxu0 0.0
  %2317 = vmatprep.subr.mxu0 0.0
  %2318 = vmatpush1.msra.mxu0 0.0
  %2319 = vmatprep.subr.mxu0 0.0
  %2320 = vmatpush1.msra.mxu0 0.0
  %2321 = vmatprep.subr.mxu0 0.0
  %2322 = vmatpush1.msra.mxu0 0.0
  %2323 = vmatprep.subr.mxu0 0.0
  %2324 = vmatpush1.msra.mxu0 0.0
  %2325 = vmatprep.subr.mxu0 0.0
  %2326 = vmatpush1.msra.mxu0 0.0
  %2327 = vmatprep.subr.mxu0 0.0
  %2328 = vmatpush1.msra.mxu0 0.0
  %2329 = vmatprep.subr.mxu0 0.0
  %2330 = vmatpush1.msra.mxu0 0.0
  %2331 = vmatprep.subr.mxu0 0.0
  %2332 = vmatpush1.msra.mxu0 0.0
  %2333 = vmatprep.subr.mxu0 0.0
  %2334 = vmatpush1.msra.mxu0 0.0
  %2335 = vmatprep.subr.mxu0 0.0
  %2336 = vmatpush1.msra.mxu0 0.0
  %2337 = vmatprep.subr.mxu0 0.0
  %2338 = vmatpush1.msra.mxu0 0.0
  %2339 = vmatprep.mubr.f32.mxu0 0.0
  %2340 = vmatmul.mubr.f32.gmra.mrb[0].mxu0 %v2273
  %v2341 = vpop.f32.mrb[0].mxu0
  %v2342 = vadd.f32 0.0, %v2341
  %v2343 = vpop.f32.mrb[0].mxu0
  %2344 = vdwg.mxu0
  %v2345 = vadd.f32 %v2272, %v2342
  %v2346 = vxor.u32 %v2345, 2147483648
  %v2347 = vmul.f32 %v2346, 1.442695
  %v2348 = vpow.pop %v2347
  %v2349 = vadd.f32 %v2348, 1.0
  %v2350 = vrcp.pop %v2349
  %v2351 = vmul.f32 1.0, %v2350
  %v2352 = vtanh.pop %v2345
  %v2353 = vmul.f32 %v2351, %v2256
  %2355 = vrot.lane.b32.xlu0 %v2352, 32
  %v2356 = vpop.permute.xlu0 %2355
  %v2358 = vmul.f32 %v2351, %v2356
  %2360 = vrot.lane.b32.xlu0 %v2358, 32
  %v2361 = vpop.permute.xlu0 %2360
  %v2363 = vadd.f32 %v2353, %v2361
  %v2364 = vtanh.pop %v2363
  %2366 = vrot.lane.b32.xlu0 %v2364, 32
  %v2367 = vpop.permute.xlu0 %2366
  %v2369 = vmul.f32 %v2351, %v2367
  %2371 = vrot.lane.b32.xlu0 %v2369, 64
  %v2372 = vpop.permute.xlu0 %2371
  %s2374 = scalar_lea.vmem %s5, 30
  %2375 = vst.msk [vmem:[%s2374] sm:$0x3] %vm768, %v2372
  %s2376 = scalar_lea.vmem %s5, 42
  %2377 = vst.msk [vmem:[%s2376] sm:$0x3] %vm771, %v2372
  %s2378 = scalar_lea.vmem [#allocation2], 32
  %v2379 = vld [vmem:[%s2378] sm:$0x3]
  %v2380 = vsel %vm665, %v2372, 0
  %2382 = vmatprep.subr.mxu0 0.0
  %2383 = vmatpush1.msra.mxu0 %v660
  %2384 = vmatprep.subr.mxu0 0.0
  %2385 = vmatpush1.msra.mxu0 %v661
  %2386 = vmatprep.subr.mxu0 0.0
  %2387 = vmatpush1.msra.mxu0 %v662
  %2388 = vmatprep.subr.mxu0 0.0
  %2389 = vmatpush1.msra.mxu0 %v663
  %2390 = vmatprep.subr.mxu0 0.0
  %2391 = vmatpush1.msra.mxu0 0.0
  %2392 = vmatprep.subr.mxu0 0.0
  %2393 = vmatpush1.msra.mxu0 0.0
  %2394 = vmatprep.subr.mxu0 0.0
  %2395 = vmatpush1.msra.mxu0 0.0
  %2396 = vmatprep.subr.mxu0 0.0
  %2397 = vmatpush1.msra.mxu0 0.0
  %2398 = vmatprep.subr.mxu0 0.0
  %2399 = vmatpush1.msra.mxu0 0.0
  %2400 = vmatprep.subr.mxu0 0.0
  %2401 = vmatpush1.msra.mxu0 0.0
  %2402 = vmatprep.subr.mxu0 0.0
  %2403 = vmatpush1.msra.mxu0 0.0
  %2404 = vmatprep.subr.mxu0 0.0
  %2405 = vmatpush1.msra.mxu0 0.0
  %2406 = vmatprep.subr.mxu0 0.0
  %2407 = vmatpush1.msra.mxu0 0.0
  %2408 = vmatprep.subr.mxu0 0.0
  %2409 = vmatpush1.msra.mxu0 0.0
  %2410 = vmatprep.subr.mxu0 0.0
  %2411 = vmatpush1.msra.mxu0 0.0
  %2412 = vmatprep.subr.mxu0 0.0
  %2413 = vmatpush1.msra.mxu0 0.0
  %2414 = vmatprep.subr.mxu0 0.0
  %2415 = vmatpush1.msra.mxu0 0.0
  %2416 = vmatprep.subr.mxu0 0.0
  %2417 = vmatpush1.msra.mxu0 0.0
  %2418 = vmatprep.subr.mxu0 0.0
  %2419 = vmatpush1.msra.mxu0 0.0
  %2420 = vmatprep.subr.mxu0 0.0
  %2421 = vmatpush1.msra.mxu0 0.0
  %2422 = vmatprep.subr.mxu0 0.0
  %2423 = vmatpush1.msra.mxu0 0.0
  %2424 = vmatprep.subr.mxu0 0.0
  %2425 = vmatpush1.msra.mxu0 0.0
  %2426 = vmatprep.subr.mxu0 0.0
  %2427 = vmatpush1.msra.mxu0 0.0
  %2428 = vmatprep.subr.mxu0 0.0
  %2429 = vmatpush1.msra.mxu0 0.0
  %2430 = vmatprep.subr.mxu0 0.0
  %2431 = vmatpush1.msra.mxu0 0.0
  %2432 = vmatprep.subr.mxu0 0.0
  %2433 = vmatpush1.msra.mxu0 0.0
  %2434 = vmatprep.subr.mxu0 0.0
  %2435 = vmatpush1.msra.mxu0 0.0
  %2436 = vmatprep.subr.mxu0 0.0
  %2437 = vmatpush1.msra.mxu0 0.0
  %2438 = vmatprep.subr.mxu0 0.0
  %2439 = vmatpush1.msra.mxu0 0.0
  %2440 = vmatprep.subr.mxu0 0.0
  %2441 = vmatpush1.msra.mxu0 0.0
  %2442 = vmatprep.subr.mxu0 0.0
  %2443 = vmatpush1.msra.mxu0 0.0
  %2444 = vmatprep.subr.mxu0 0.0
  %2445 = vmatpush1.msra.mxu0 0.0
  %2446 = vmatprep.mubr.f32.mxu0 0.0
  %2447 = vmatmul.mubr.f32.gmra.mrb[0].mxu0 %v2380
  %v2448 = vpop.f32.mrb[0].mxu0
  %v2449 = vadd.f32 0.0, %v2448
  %v2450 = vpop.f32.mrb[0].mxu0
  %2451 = vdwg.mxu0
  %v2452 = vadd.f32 %v2379, %v2449
  %v2453 = vxor.u32 %v2452, 2147483648
  %v2454 = vmul.f32 %v2453, 1.442695
  %v2455 = vpow.pop %v2454
  %v2456 = vadd.f32 %v2455, 1.0
  %v2457 = vrcp.pop %v2456
  %v2458 = vmul.f32 1.0, %v2457
  %v2459 = vtanh.pop %v2452
  %v2460 = vmul.f32 %v2458, %v2363
  %2462 = vrot.lane.b32.xlu0 %v2459, 32
  %v2463 = vpop.permute.xlu0 %2462
  %v2465 = vmul.f32 %v2458, %v2463
  %2467 = vrot.lane.b32.xlu0 %v2465, 32
  %v2468 = vpop.permute.xlu0 %2467
  %v2470 = vadd.f32 %v2460, %v2468
  %v2471 = vtanh.pop %v2470
  %2473 = vrot.lane.b32.xlu0 %v2471, 32
  %v2474 = vpop.permute.xlu0 %2473
  %v2476 = vmul.f32 %v2458, %v2474
  %2478 = vrot.lane.b32.xlu0 %v2476, 64
  %v2479 = vpop.permute.xlu0 %2478
  %s2481 = scalar_lea.vmem %s5, 32
  %2482 = vst.msk [vmem:[%s2481] sm:$0x3] %vm768, %v2479
  %s2483 = scalar_lea.vmem %s5, 40
  %2484 = vst.msk [vmem:[%s2483] sm:$0x3] %vm771, %v2479
  %s2485 = scalar_lea.vmem [#allocation2], 34
  %v2486 = vld [vmem:[%s2485] sm:$0x3]
  %v2487 = vsel %vm665, %v2479, 0
  %2489 = vmatprep.subr.mxu0 0.0
  %2490 = vmatpush1.msra.mxu0 %v660
  %2491 = vmatprep.subr.mxu0 0.0
  %2492 = vmatpush1.msra.mxu0 %v661
  %2493 = vmatprep.subr.mxu0 0.0
  %2494 = vmatpush1.msra.mxu0 %v662
  %2495 = vmatprep.subr.mxu0 0.0
  %2496 = vmatpush1.msra.mxu0 %v663
  %2497 = vmatprep.subr.mxu0 0.0
  %2498 = vmatpush1.msra.mxu0 0.0
  %2499 = vmatprep.subr.mxu0 0.0
  %2500 = vmatpush1.msra.mxu0 0.0
  %2501 = vmatprep.subr.mxu0 0.0
  %2502 = vmatpush1.msra.mxu0 0.0
  %2503 = vmatprep.subr.mxu0 0.0
  %2504 = vmatpush1.msra.mxu0 0.0
  %2505 = vmatprep.subr.mxu0 0.0
  %2506 = vmatpush1.msra.mxu0 0.0
  %2507 = vmatprep.subr.mxu0 0.0
  %2508 = vmatpush1.msra.mxu0 0.0
  %2509 = vmatprep.subr.mxu0 0.0
  %2510 = vmatpush1.msra.mxu0 0.0
  %2511 = vmatprep.subr.mxu0 0.0
  %2512 = vmatpush1.msra.mxu0 0.0
  %2513 = vmatprep.subr.mxu0 0.0
  %2514 = vmatpush1.msra.mxu0 0.0
  %2515 = vmatprep.subr.mxu0 0.0
  %2516 = vmatpush1.msra.mxu0 0.0
  %2517 = vmatprep.subr.mxu0 0.0
  %2518 = vmatpush1.msra.mxu0 0.0
  %2519 = vmatprep.subr.mxu0 0.0
  %2520 = vmatpush1.msra.mxu0 0.0
  %2521 = vmatprep.subr.mxu0 0.0
  %2522 = vmatpush1.msra.mxu0 0.0
  %2523 = vmatprep.subr.mxu0 0.0
  %2524 = vmatpush1.msra.mxu0 0.0
  %2525 = vmatprep.subr.mxu0 0.0
  %2526 = vmatpush1.msra.mxu0 0.0
  %2527 = vmatprep.subr.mxu0 0.0
  %2528 = vmatpush1.msra.mxu0 0.0
  %2529 = vmatprep.subr.mxu0 0.0
  %2530 = vmatpush1.msra.mxu0 0.0
  %2531 = vmatprep.subr.mxu0 0.0
  %2532 = vmatpush1.msra.mxu0 0.0
  %2533 = vmatprep.subr.mxu0 0.0
  %2534 = vmatpush1.msra.mxu0 0.0
  %2535 = vmatprep.subr.mxu0 0.0
  %2536 = vmatpush1.msra.mxu0 0.0
  %2537 = vmatprep.subr.mxu0 0.0
  %2538 = vmatpush1.msra.mxu0 0.0
  %2539 = vmatprep.subr.mxu0 0.0
  %2540 = vmatpush1.msra.mxu0 0.0
  %2541 = vmatprep.subr.mxu0 0.0
  %2542 = vmatpush1.msra.mxu0 0.0
  %2543 = vmatprep.subr.mxu0 0.0
  %2544 = vmatpush1.msra.mxu0 0.0
  %2545 = vmatprep.subr.mxu0 0.0
  %2546 = vmatpush1.msra.mxu0 0.0
  %2547 = vmatprep.subr.mxu0 0.0
  %2548 = vmatpush1.msra.mxu0 0.0
  %2549 = vmatprep.subr.mxu0 0.0
  %2550 = vmatpush1.msra.mxu0 0.0
  %2551 = vmatprep.subr.mxu0 0.0
  %2552 = vmatpush1.msra.mxu0 0.0
  %2553 = vmatprep.mubr.f32.mxu0 0.0
  %2554 = vmatmul.mubr.f32.gmra.mrb[0].mxu0 %v2487
  %v2555 = vpop.f32.mrb[0].mxu0
  %v2556 = vadd.f32 0.0, %v2555
  %v2557 = vpop.f32.mrb[0].mxu0
  %2558 = vdwg.mxu0
  %v2559 = vadd.f32 %v2486, %v2556
  %v2560 = vxor.u32 %v2559, 2147483648
  %v2561 = vmul.f32 %v2560, 1.442695
  %v2562 = vpow.pop %v2561
  %v2563 = vadd.f32 %v2562, 1.0
  %v2564 = vrcp.pop %v2563
  %v2565 = vmul.f32 1.0, %v2564
  %v2566 = vtanh.pop %v2559
  %v2567 = vmul.f32 %v2565, %v2470
  %2569 = vrot.lane.b32.xlu0 %v2566, 32
  %v2570 = vpop.permute.xlu0 %2569
  %v2572 = vmul.f32 %v2565, %v2570
  %2574 = vrot.lane.b32.xlu0 %v2572, 32
  %v2575 = vpop.permute.xlu0 %2574
  %v2577 = vadd.f32 %v2567, %v2575
  %v2578 = vtanh.pop %v2577
  %2580 = vrot.lane.b32.xlu0 %v2578, 32
  %v2581 = vpop.permute.xlu0 %2580
  %v2583 = vmul.f32 %v2565, %v2581
  %2585 = vrot.lane.b32.xlu0 %v2583, 64
  %v2586 = vpop.permute.xlu0 %2585
  %s2588 = scalar_lea.vmem %s5, 34
  %2589 = vst.msk [vmem:[%s2588] sm:$0x3] %vm768, %v2586
  %s2590 = scalar_lea.vmem %s5, 38
  %2591 = vst.msk [vmem:[%s2590] sm:$0x3] %vm771, %v2586
  %s2592 = scalar_lea.vmem [#allocation2], 36
  %v2593 = vld [vmem:[%s2592] sm:$0x3]
  %v2594 = vsel %vm665, %v2586, 0
  %2596 = vmatprep.subr.mxu0 0.0
  %2597 = vmatpush1.msra.mxu0 %v660
  %2598 = vmatprep.subr.mxu0 0.0
  %2599 = vmatpush1.msra.mxu0 %v661
  %2600 = vmatprep.subr.mxu0 0.0
  %2601 = vmatpush1.msra.mxu0 %v662
  %2602 = vmatprep.subr.mxu0 0.0
  %2603 = vmatpush1.msra.mxu0 %v663
  %2604 = vmatprep.subr.mxu0 0.0
  %2605 = vmatpush1.msra.mxu0 0.0
  %2606 = vmatprep.subr.mxu0 0.0
  %2607 = vmatpush1.msra.mxu0 0.0
  %2608 = vmatprep.subr.mxu0 0.0
  %2609 = vmatpush1.msra.mxu0 0.0
  %2610 = vmatprep.subr.mxu0 0.0
  %2611 = vmatpush1.msra.mxu0 0.0
  %2612 = vmatprep.subr.mxu0 0.0
  %2613 = vmatpush1.msra.mxu0 0.0
  %2614 = vmatprep.subr.mxu0 0.0
  %2615 = vmatpush1.msra.mxu0 0.0
  %2616 = vmatprep.subr.mxu0 0.0
  %2617 = vmatpush1.msra.mxu0 0.0
  %2618 = vmatprep.subr.mxu0 0.0
  %2619 = vmatpush1.msra.mxu0 0.0
  %2620 = vmatprep.subr.mxu0 0.0
  %2621 = vmatpush1.msra.mxu0 0.0
  %2622 = vmatprep.subr.mxu0 0.0
  %2623 = vmatpush1.msra.mxu0 0.0
  %2624 = vmatprep.subr.mxu0 0.0
  %2625 = vmatpush1.msra.mxu0 0.0
  %2626 = vmatprep.subr.mxu0 0.0
  %2627 = vmatpush1.msra.mxu0 0.0
  %2628 = vmatprep.subr.mxu0 0.0
  %2629 = vmatpush1.msra.mxu0 0.0
  %2630 = vmatprep.subr.mxu0 0.0
  %2631 = vmatpush1.msra.mxu0 0.0
  %2632 = vmatprep.subr.mxu0 0.0
  %2633 = vmatpush1.msra.mxu0 0.0
  %2634 = vmatprep.subr.mxu0 0.0
  %2635 = vmatpush1.msra.mxu0 0.0
  %2636 = vmatprep.subr.mxu0 0.0
  %2637 = vmatpush1.msra.mxu0 0.0
  %2638 = vmatprep.subr.mxu0 0.0
  %2639 = vmatpush1.msra.mxu0 0.0
  %2640 = vmatprep.subr.mxu0 0.0
  %2641 = vmatpush1.msra.mxu0 0.0
  %2642 = vmatprep.subr.mxu0 0.0
  %2643 = vmatpush1.msra.mxu0 0.0
  %2644 = vmatprep.subr.mxu0 0.0
  %2645 = vmatpush1.msra.mxu0 0.0
  %2646 = vmatprep.subr.mxu0 0.0
  %2647 = vmatpush1.msra.mxu0 0.0
  %2648 = vmatprep.subr.mxu0 0.0
  %2649 = vmatpush1.msra.mxu0 0.0
  %2650 = vmatprep.subr.mxu0 0.0
  %2651 = vmatpush1.msra.mxu0 0.0
  %2652 = vmatprep.subr.mxu0 0.0
  %2653 = vmatpush1.msra.mxu0 0.0
  %2654 = vmatprep.subr.mxu0 0.0
  %2655 = vmatpush1.msra.mxu0 0.0
  %2656 = vmatprep.subr.mxu0 0.0
  %2657 = vmatpush1.msra.mxu0 0.0
  %2658 = vmatprep.subr.mxu0 0.0
  %2659 = vmatpush1.msra.mxu0 0.0
  %2660 = vmatprep.mubr.f32.mxu0 0.0
  %2661 = vmatmul.mubr.f32.gmra.mrb[0].mxu0 %v2594
  %v2662 = vpop.f32.mrb[0].mxu0
  %v2663 = vadd.f32 0.0, %v2662
  %v2664 = vpop.f32.mrb[0].mxu0
  %2665 = vdwg.mxu0
  %v2666 = vadd.f32 %v2593, %v2663
  %v2667 = vxor.u32 %v2666, 2147483648
  %v2668 = vmul.f32 %v2667, 1.442695
  %v2669 = vpow.pop %v2668
  %v2670 = vadd.f32 %v2669, 1.0
  %v2671 = vrcp.pop %v2670
  %v2672 = vmul.f32 1.0, %v2671
  %v2673 = vtanh.pop %v2666
  %v2674 = vmul.f32 %v2672, %v2577
  %2676 = vrot.lane.b32.xlu0 %v2673, 32
  %v2677 = vpop.permute.xlu0 %2676
  %v2679 = vmul.f32 %v2672, %v2677
  %2681 = vrot.lane.b32.xlu0 %v2679, 32
  %v2682 = vpop.permute.xlu0 %2681
  %v2684 = vadd.f32 %v2674, %v2682
  %v2685 = vtanh.pop %v2684
  %2687 = vrot.lane.b32.xlu0 %v2685, 32
  %v2688 = vpop.permute.xlu0 %2687
  %v2690 = vmul.f32 %v2672, %v2688
  %2692 = vrot.lane.b32.xlu0 %v2690, 64
  %v2693 = vpop.permute.xlu0 %2692
  %s2695 = scalar_lea.vmem %s5, 36
  %2696 = vst.msk [vmem:[%s2695] sm:$0x3] %vm768, %v2693
  %2697 = vst.msk [vmem:[%s2695] sm:$0x3] %vm771, %v2693
  %s2698 = scalar_lea.vmem [#allocation2], 38
  %v2699 = vld [vmem:[%s2698] sm:$0x3]
  %v2700 = vsel %vm665, %v2693, 0
  %2702 = vmatprep.subr.mxu0 0.0
  %2703 = vmatpush1.msra.mxu0 %v660
  %2704 = vmatprep.subr.mxu0 0.0
  %2705 = vmatpush1.msra.mxu0 %v661
  %2706 = vmatprep.subr.mxu0 0.0
  %2707 = vmatpush1.msra.mxu0 %v662
  %2708 = vmatprep.subr.mxu0 0.0
  %2709 = vmatpush1.msra.mxu0 %v663
  %2710 = vmatprep.subr.mxu0 0.0
  %2711 = vmatpush1.msra.mxu0 0.0
  %2712 = vmatprep.subr.mxu0 0.0
  %2713 = vmatpush1.msra.mxu0 0.0
  %2714 = vmatprep.subr.mxu0 0.0
  %2715 = vmatpush1.msra.mxu0 0.0
  %2716 = vmatprep.subr.mxu0 0.0
  %2717 = vmatpush1.msra.mxu0 0.0
  %2718 = vmatprep.subr.mxu0 0.0
  %2719 = vmatpush1.msra.mxu0 0.0
  %2720 = vmatprep.subr.mxu0 0.0
  %2721 = vmatpush1.msra.mxu0 0.0
  %2722 = vmatprep.subr.mxu0 0.0
  %2723 = vmatpush1.msra.mxu0 0.0
  %2724 = vmatprep.subr.mxu0 0.0
  %2725 = vmatpush1.msra.mxu0 0.0
  %2726 = vmatprep.subr.mxu0 0.0
  %2727 = vmatpush1.msra.mxu0 0.0
  %2728 = vmatprep.subr.mxu0 0.0
  %2729 = vmatpush1.msra.mxu0 0.0
  %2730 = vmatprep.subr.mxu0 0.0
  %2731 = vmatpush1.msra.mxu0 0.0
  %2732 = vmatprep.subr.mxu0 0.0
  %2733 = vmatpush1.msra.mxu0 0.0
  %2734 = vmatprep.subr.mxu0 0.0
  %2735 = vmatpush1.msra.mxu0 0.0
  %2736 = vmatprep.subr.mxu0 0.0
  %2737 = vmatpush1.msra.mxu0 0.0
  %2738 = vmatprep.subr.mxu0 0.0
  %2739 = vmatpush1.msra.mxu0 0.0
  %2740 = vmatprep.subr.mxu0 0.0
  %2741 = vmatpush1.msra.mxu0 0.0
  %2742 = vmatprep.subr.mxu0 0.0
  %2743 = vmatpush1.msra.mxu0 0.0
  %2744 = vmatprep.subr.mxu0 0.0
  %2745 = vmatpush1.msra.mxu0 0.0
  %2746 = vmatprep.subr.mxu0 0.0
  %2747 = vmatpush1.msra.mxu0 0.0
  %2748 = vmatprep.subr.mxu0 0.0
  %2749 = vmatpush1.msra.mxu0 0.0
  %2750 = vmatprep.subr.mxu0 0.0
  %2751 = vmatpush1.msra.mxu0 0.0
  %2752 = vmatprep.subr.mxu0 0.0
  %2753 = vmatpush1.msra.mxu0 0.0
  %2754 = vmatprep.subr.mxu0 0.0
  %2755 = vmatpush1.msra.mxu0 0.0
  %2756 = vmatprep.subr.mxu0 0.0
  %2757 = vmatpush1.msra.mxu0 0.0
  %2758 = vmatprep.subr.mxu0 0.0
  %2759 = vmatpush1.msra.mxu0 0.0
  %2760 = vmatprep.subr.mxu0 0.0
  %2761 = vmatpush1.msra.mxu0 0.0
  %2762 = vmatprep.subr.mxu0 0.0
  %2763 = vmatpush1.msra.mxu0 0.0
  %2764 = vmatprep.subr.mxu0 0.0
  %2765 = vmatpush1.msra.mxu0 0.0
  %2766 = vmatprep.mubr.f32.mxu0 0.0
  %2767 = vmatmul.mubr.f32.gmra.mrb[0].mxu0 %v2700
  %v2768 = vpop.f32.mrb[0].mxu0
  %v2769 = vadd.f32 0.0, %v2768
  %v2770 = vpop.f32.mrb[0].mxu0
  %2771 = vdwg.mxu0
  %v2772 = vadd.f32 %v2699, %v2769
  %v2773 = vxor.u32 %v2772, 2147483648
  %v2774 = vmul.f32 %v2773, 1.442695
  %v2775 = vpow.pop %v2774
  %v2776 = vadd.f32 %v2775, 1.0
  %v2777 = vrcp.pop %v2776
  %v2778 = vmul.f32 1.0, %v2777
  %v2779 = vtanh.pop %v2772
  %v2780 = vmul.f32 %v2778, %v2684
  %2782 = vrot.lane.b32.xlu0 %v2779, 32
  %v2783 = vpop.permute.xlu0 %2782
  %v2785 = vmul.f32 %v2778, %v2783
  %2787 = vrot.lane.b32.xlu0 %v2785, 32
  %v2788 = vpop.permute.xlu0 %2787
  %v2790 = vadd.f32 %v2780, %v2788
  %v2791 = vtanh.pop %v2790
  %2793 = vrot.lane.b32.xlu0 %v2791, 32
  %v2794 = vpop.permute.xlu0 %2793
  %v2796 = vmul.f32 %v2778, %v2794
  %2798 = vrot.lane.b32.xlu0 %v2796, 64
  %v2799 = vpop.permute.xlu0 %2798
  %2801 = vst.msk [vmem:[%s2590] sm:$0x3] %vm768, %v2799
  %2802 = vst.msk [vmem:[%s2588] sm:$0x3] %vm771, %v2799
  %s2803 = scalar_lea.vmem [#allocation2], 40
  %v2804 = vld [vmem:[%s2803] sm:$0x3]
  %v2805 = vsel %vm665, %v2799, 0
  %2807 = vmatprep.subr.mxu0 0.0
  %2808 = vmatpush1.msra.mxu0 %v660
  %2809 = vmatprep.subr.mxu0 0.0
  %2810 = vmatpush1.msra.mxu0 %v661
  %2811 = vmatprep.subr.mxu0 0.0
  %2812 = vmatpush1.msra.mxu0 %v662
  %2813 = vmatprep.subr.mxu0 0.0
  %2814 = vmatpush1.msra.mxu0 %v663
  %2815 = vmatprep.subr.mxu0 0.0
  %2816 = vmatpush1.msra.mxu0 0.0
  %2817 = vmatprep.subr.mxu0 0.0
  %2818 = vmatpush1.msra.mxu0 0.0
  %2819 = vmatprep.subr.mxu0 0.0
  %2820 = vmatpush1.msra.mxu0 0.0
  %2821 = vmatprep.subr.mxu0 0.0
  %2822 = vmatpush1.msra.mxu0 0.0
  %2823 = vmatprep.subr.mxu0 0.0
  %2824 = vmatpush1.msra.mxu0 0.0
  %2825 = vmatprep.subr.mxu0 0.0
  %2826 = vmatpush1.msra.mxu0 0.0
  %2827 = vmatprep.subr.mxu0 0.0
  %2828 = vmatpush1.msra.mxu0 0.0
  %2829 = vmatprep.subr.mxu0 0.0
  %2830 = vmatpush1.msra.mxu0 0.0
  %2831 = vmatprep.subr.mxu0 0.0
  %2832 = vmatpush1.msra.mxu0 0.0
  %2833 = vmatprep.subr.mxu0 0.0
  %2834 = vmatpush1.msra.mxu0 0.0
  %2835 = vmatprep.subr.mxu0 0.0
  %2836 = vmatpush1.msra.mxu0 0.0
  %2837 = vmatprep.subr.mxu0 0.0
  %2838 = vmatpush1.msra.mxu0 0.0
  %2839 = vmatprep.subr.mxu0 0.0
  %2840 = vmatpush1.msra.mxu0 0.0
  %2841 = vmatprep.subr.mxu0 0.0
  %2842 = vmatpush1.msra.mxu0 0.0
  %2843 = vmatprep.subr.mxu0 0.0
  %2844 = vmatpush1.msra.mxu0 0.0
  %2845 = vmatprep.subr.mxu0 0.0
  %2846 = vmatpush1.msra.mxu0 0.0
  %2847 = vmatprep.subr.mxu0 0.0
  %2848 = vmatpush1.msra.mxu0 0.0
  %2849 = vmatprep.subr.mxu0 0.0
  %2850 = vmatpush1.msra.mxu0 0.0
  %2851 = vmatprep.subr.mxu0 0.0
  %2852 = vmatpush1.msra.mxu0 0.0
  %2853 = vmatprep.subr.mxu0 0.0
  %2854 = vmatpush1.msra.mxu0 0.0
  %2855 = vmatprep.subr.mxu0 0.0
  %2856 = vmatpush1.msra.mxu0 0.0
  %2857 = vmatprep.subr.mxu0 0.0
  %2858 = vmatpush1.msra.mxu0 0.0
  %2859 = vmatprep.subr.mxu0 0.0
  %2860 = vmatpush1.msra.mxu0 0.0
  %2861 = vmatprep.subr.mxu0 0.0
  %2862 = vmatpush1.msra.mxu0 0.0
  %2863 = vmatprep.subr.mxu0 0.0
  %2864 = vmatpush1.msra.mxu0 0.0
  %2865 = vmatprep.subr.mxu0 0.0
  %2866 = vmatpush1.msra.mxu0 0.0
  %2867 = vmatprep.subr.mxu0 0.0
  %2868 = vmatpush1.msra.mxu0 0.0
  %2869 = vmatprep.subr.mxu0 0.0
  %2870 = vmatpush1.msra.mxu0 0.0
  %2871 = vmatprep.mubr.f32.mxu0 0.0
  %2872 = vmatmul.mubr.f32.gmra.mrb[0].mxu0 %v2805
  %v2873 = vpop.f32.mrb[0].mxu0
  %v2874 = vadd.f32 0.0, %v2873
  %v2875 = vpop.f32.mrb[0].mxu0
  %2876 = vdwg.mxu0
  %v2877 = vadd.f32 %v2804, %v2874
  %v2878 = vxor.u32 %v2877, 2147483648
  %v2879 = vmul.f32 %v2878, 1.442695
  %v2880 = vpow.pop %v2879
  %v2881 = vadd.f32 %v2880, 1.0
  %v2882 = vrcp.pop %v2881
  %v2883 = vmul.f32 1.0, %v2882
  %v2884 = vtanh.pop %v2877
  %v2885 = vmul.f32 %v2883, %v2790
  %2887 = vrot.lane.b32.xlu0 %v2884, 32
  %v2888 = vpop.permute.xlu0 %2887
  %v2890 = vmul.f32 %v2883, %v2888
  %2892 = vrot.lane.b32.xlu0 %v2890, 32
  %v2893 = vpop.permute.xlu0 %2892
  %v2895 = vadd.f32 %v2885, %v2893
  %v2896 = vtanh.pop %v2895
  %2898 = vrot.lane.b32.xlu0 %v2896, 32
  %v2899 = vpop.permute.xlu0 %2898
  %v2901 = vmul.f32 %v2883, %v2899
  %2903 = vrot.lane.b32.xlu0 %v2901, 64
  %v2904 = vpop.permute.xlu0 %2903
  %2906 = vst.msk [vmem:[%s2483] sm:$0x3] %vm768, %v2904
  %2907 = vst.msk [vmem:[%s2481] sm:$0x3] %vm771, %v2904
  %s2908 = scalar_lea.vmem [#allocation2], 42
  %v2909 = vld [vmem:[%s2908] sm:$0x3]
  %v2910 = vsel %vm665, %v2904, 0
  %2912 = vmatprep.subr.mxu0 0.0
  %2913 = vmatpush1.msra.mxu0 %v660
  %2914 = vmatprep.subr.mxu0 0.0
  %2915 = vmatpush1.msra.mxu0 %v661
  %2916 = vmatprep.subr.mxu0 0.0
  %2917 = vmatpush1.msra.mxu0 %v662
  %2918 = vmatprep.subr.mxu0 0.0
  %2919 = vmatpush1.msra.mxu0 %v663
  %2920 = vmatprep.subr.mxu0 0.0
  %2921 = vmatpush1.msra.mxu0 0.0
  %2922 = vmatprep.subr.mxu0 0.0
  %2923 = vmatpush1.msra.mxu0 0.0
  %2924 = vmatprep.subr.mxu0 0.0
  %2925 = vmatpush1.msra.mxu0 0.0
  %2926 = vmatprep.subr.mxu0 0.0
  %2927 = vmatpush1.msra.mxu0 0.0
  %2928 = vmatprep.subr.mxu0 0.0
  %2929 = vmatpush1.msra.mxu0 0.0
  %2930 = vmatprep.subr.mxu0 0.0
  %2931 = vmatpush1.msra.mxu0 0.0
  %2932 = vmatprep.subr.mxu0 0.0
  %2933 = vmatpush1.msra.mxu0 0.0
  %2934 = vmatprep.subr.mxu0 0.0
  %2935 = vmatpush1.msra.mxu0 0.0
  %2936 = vmatprep.subr.mxu0 0.0
  %2937 = vmatpush1.msra.mxu0 0.0
  %2938 = vmatprep.subr.mxu0 0.0
  %2939 = vmatpush1.msra.mxu0 0.0
  %2940 = vmatprep.subr.mxu0 0.0
  %2941 = vmatpush1.msra.mxu0 0.0
  %2942 = vmatprep.subr.mxu0 0.0
  %2943 = vmatpush1.msra.mxu0 0.0
  %2944 = vmatprep.subr.mxu0 0.0
  %2945 = vmatpush1.msra.mxu0 0.0
  %2946 = vmatprep.subr.mxu0 0.0
  %2947 = vmatpush1.msra.mxu0 0.0
  %2948 = vmatprep.subr.mxu0 0.0
  %2949 = vmatpush1.msra.mxu0 0.0
  %2950 = vmatprep.subr.mxu0 0.0
  %2951 = vmatpush1.msra.mxu0 0.0
  %2952 = vmatprep.subr.mxu0 0.0
  %2953 = vmatpush1.msra.mxu0 0.0
  %2954 = vmatprep.subr.mxu0 0.0
  %2955 = vmatpush1.msra.mxu0 0.0
  %2956 = vmatprep.subr.mxu0 0.0
  %2957 = vmatpush1.msra.mxu0 0.0
  %2958 = vmatprep.subr.mxu0 0.0
  %2959 = vmatpush1.msra.mxu0 0.0
  %2960 = vmatprep.subr.mxu0 0.0
  %2961 = vmatpush1.msra.mxu0 0.0
  %2962 = vmatprep.subr.mxu0 0.0
  %2963 = vmatpush1.msra.mxu0 0.0
  %2964 = vmatprep.subr.mxu0 0.0
  %2965 = vmatpush1.msra.mxu0 0.0
  %2966 = vmatprep.subr.mxu0 0.0
  %2967 = vmatpush1.msra.mxu0 0.0
  %2968 = vmatprep.subr.mxu0 0.0
  %2969 = vmatpush1.msra.mxu0 0.0
  %2970 = vmatprep.subr.mxu0 0.0
  %2971 = vmatpush1.msra.mxu0 0.0
  %2972 = vmatprep.subr.mxu0 0.0
  %2973 = vmatpush1.msra.mxu0 0.0
  %2974 = vmatprep.subr.mxu0 0.0
  %2975 = vmatpush1.msra.mxu0 0.0
  %2976 = vmatprep.mubr.f32.mxu0 0.0
  %2977 = vmatmul.mubr.f32.gmra.mrb[0].mxu0 %v2910
  %v2978 = vpop.f32.mrb[0].mxu0
  %v2979 = vadd.f32 0.0, %v2978
  %v2980 = vpop.f32.mrb[0].mxu0
  %2981 = vdwg.mxu0
  %v2982 = vadd.f32 %v2909, %v2979
  %v2983 = vxor.u32 %v2982, 2147483648
  %v2984 = vmul.f32 %v2983, 1.442695
  %v2985 = vpow.pop %v2984
  %v2986 = vadd.f32 %v2985, 1.0
  %v2987 = vrcp.pop %v2986
  %v2988 = vmul.f32 1.0, %v2987
  %v2989 = vtanh.pop %v2982
  %v2990 = vmul.f32 %v2988, %v2895
  %2992 = vrot.lane.b32.xlu0 %v2989, 32
  %v2993 = vpop.permute.xlu0 %2992
  %v2995 = vmul.f32 %v2988, %v2993
  %2997 = vrot.lane.b32.xlu0 %v2995, 32
  %v2998 = vpop.permute.xlu0 %2997
  %v3000 = vadd.f32 %v2990, %v2998
  %v3001 = vtanh.pop %v3000
  %3003 = vrot.lane.b32.xlu0 %v3001, 32
  %v3004 = vpop.permute.xlu0 %3003
  %v3006 = vmul.f32 %v2988, %v3004
  %3008 = vrot.lane.b32.xlu0 %v3006, 64
  %v3009 = vpop.permute.xlu0 %3008
  %3011 = vst.msk [vmem:[%s2376] sm:$0x3] %vm768, %v3009
  %3012 = vst.msk [vmem:[%s2374] sm:$0x3] %vm771, %v3009
  %s3013 = scalar_lea.vmem [#allocation2], 44
  %v3014 = vld [vmem:[%s3013] sm:$0x3]
  %v3015 = vsel %vm665, %v3009, 0
  %3017 = vmatprep.subr.mxu0 0.0
  %3018 = vmatpush1.msra.mxu0 %v660
  %3019 = vmatprep.subr.mxu0 0.0
  %3020 = vmatpush1.msra.mxu0 %v661
  %3021 = vmatprep.subr.mxu0 0.0
  %3022 = vmatpush1.msra.mxu0 %v662
  %3023 = vmatprep.subr.mxu0 0.0
  %3024 = vmatpush1.msra.mxu0 %v663
  %3025 = vmatprep.subr.mxu0 0.0
  %3026 = vmatpush1.msra.mxu0 0.0
  %3027 = vmatprep.subr.mxu0 0.0
  %3028 = vmatpush1.msra.mxu0 0.0
  %3029 = vmatprep.subr.mxu0 0.0
  %3030 = vmatpush1.msra.mxu0 0.0
  %3031 = vmatprep.subr.mxu0 0.0
  %3032 = vmatpush1.msra.mxu0 0.0
  %3033 = vmatprep.subr.mxu0 0.0
  %3034 = vmatpush1.msra.mxu0 0.0
  %3035 = vmatprep.subr.mxu0 0.0
  %3036 = vmatpush1.msra.mxu0 0.0
  %3037 = vmatprep.subr.mxu0 0.0
  %3038 = vmatpush1.msra.mxu0 0.0
  %3039 = vmatprep.subr.mxu0 0.0
  %3040 = vmatpush1.msra.mxu0 0.0
  %3041 = vmatprep.subr.mxu0 0.0
  %3042 = vmatpush1.msra.mxu0 0.0
  %3043 = vmatprep.subr.mxu0 0.0
  %3044 = vmatpush1.msra.mxu0 0.0
  %3045 = vmatprep.subr.mxu0 0.0
  %3046 = vmatpush1.msra.mxu0 0.0
  %3047 = vmatprep.subr.mxu0 0.0
  %3048 = vmatpush1.msra.mxu0 0.0
  %3049 = vmatprep.subr.mxu0 0.0
  %3050 = vmatpush1.msra.mxu0 0.0
  %3051 = vmatprep.subr.mxu0 0.0
  %3052 = vmatpush1.msra.mxu0 0.0
  %3053 = vmatprep.subr.mxu0 0.0
  %3054 = vmatpush1.msra.mxu0 0.0
  %3055 = vmatprep.subr.mxu0 0.0
  %3056 = vmatpush1.msra.mxu0 0.0
  %3057 = vmatprep.subr.mxu0 0.0
  %3058 = vmatpush1.msra.mxu0 0.0
  %3059 = vmatprep.subr.mxu0 0.0
  %3060 = vmatpush1.msra.mxu0 0.0
  %3061 = vmatprep.subr.mxu0 0.0
  %3062 = vmatpush1.msra.mxu0 0.0
  %3063 = vmatprep.subr.mxu0 0.0
  %3064 = vmatpush1.msra.mxu0 0.0
  %3065 = vmatprep.subr.mxu0 0.0
  %3066 = vmatpush1.msra.mxu0 0.0
  %3067 = vmatprep.subr.mxu0 0.0
  %3068 = vmatpush1.msra.mxu0 0.0
  %3069 = vmatprep.subr.mxu0 0.0
  %3070 = vmatpush1.msra.mxu0 0.0
  %3071 = vmatprep.subr.mxu0 0.0
  %3072 = vmatpush1.msra.mxu0 0.0
  %3073 = vmatprep.subr.mxu0 0.0
  %3074 = vmatpush1.msra.mxu0 0.0
  %3075 = vmatprep.subr.mxu0 0.0
  %3076 = vmatpush1.msra.mxu0 0.0
  %3077 = vmatprep.subr.mxu0 0.0
  %3078 = vmatpush1.msra.mxu0 0.0
  %3079 = vmatprep.subr.mxu0 0.0
  %3080 = vmatpush1.msra.mxu0 0.0
  %3081 = vmatprep.mubr.f32.mxu0 0.0
  %3082 = vmatmul.mubr.f32.gmra.mrb[0].mxu0 %v3015
  %v3083 = vpop.f32.mrb[0].mxu0
  %v3084 = vadd.f32 0.0, %v3083
  %v3085 = vpop.f32.mrb[0].mxu0
  %3086 = vdwg.mxu0
  %v3087 = vadd.f32 %v3014, %v3084
  %v3088 = vxor.u32 %v3087, 2147483648
  %v3089 = vmul.f32 %v3088, 1.442695
  %v3090 = vpow.pop %v3089
  %v3091 = vadd.f32 %v3090, 1.0
  %v3092 = vrcp.pop %v3091
  %v3093 = vmul.f32 1.0, %v3092
  %v3094 = vtanh.pop %v3087
  %v3095 = vmul.f32 %v3093, %v3000
  %3097 = vrot.lane.b32.xlu0 %v3094, 32
  %v3098 = vpop.permute.xlu0 %3097
  %v3100 = vmul.f32 %v3093, %v3098
  %3102 = vrot.lane.b32.xlu0 %v3100, 32
  %v3103 = vpop.permute.xlu0 %3102
  %v3105 = vadd.f32 %v3095, %v3103
  %v3106 = vtanh.pop %v3105
  %3108 = vrot.lane.b32.xlu0 %v3106, 32
  %v3109 = vpop.permute.xlu0 %3108
  %v3111 = vmul.f32 %v3093, %v3109
  %3113 = vrot.lane.b32.xlu0 %v3111, 64
  %v3114 = vpop.permute.xlu0 %3113
  %3116 = vst.msk [vmem:[%s2269] sm:$0x3] %vm768, %v3114
  %3117 = vst.msk [vmem:[%s2267] sm:$0x3] %vm771, %v3114
  %s3118 = scalar_lea.vmem [#allocation2], 46
  %v3119 = vld [vmem:[%s3118] sm:$0x3]
  %v3120 = vsel %vm665, %v3114, 0
  %3122 = vmatprep.subr.mxu0 0.0
  %3123 = vmatpush1.msra.mxu0 %v660
  %3124 = vmatprep.subr.mxu0 0.0
  %3125 = vmatpush1.msra.mxu0 %v661
  %3126 = vmatprep.subr.mxu0 0.0
  %3127 = vmatpush1.msra.mxu0 %v662
  %3128 = vmatprep.subr.mxu0 0.0
  %3129 = vmatpush1.msra.mxu0 %v663
  %3130 = vmatprep.subr.mxu0 0.0
  %3131 = vmatpush1.msra.mxu0 0.0
  %3132 = vmatprep.subr.mxu0 0.0
  %3133 = vmatpush1.msra.mxu0 0.0
  %3134 = vmatprep.subr.mxu0 0.0
  %3135 = vmatpush1.msra.mxu0 0.0
  %3136 = vmatprep.subr.mxu0 0.0
  %3137 = vmatpush1.msra.mxu0 0.0
  %3138 = vmatprep.subr.mxu0 0.0
  %3139 = vmatpush1.msra.mxu0 0.0
  %3140 = vmatprep.subr.mxu0 0.0
  %3141 = vmatpush1.msra.mxu0 0.0
  %3142 = vmatprep.subr.mxu0 0.0
  %3143 = vmatpush1.msra.mxu0 0.0
  %3144 = vmatprep.subr.mxu0 0.0
  %3145 = vmatpush1.msra.mxu0 0.0
  %3146 = vmatprep.subr.mxu0 0.0
  %3147 = vmatpush1.msra.mxu0 0.0
  %3148 = vmatprep.subr.mxu0 0.0
  %3149 = vmatpush1.msra.mxu0 0.0
  %3150 = vmatprep.subr.mxu0 0.0
  %3151 = vmatpush1.msra.mxu0 0.0
  %3152 = vmatprep.subr.mxu0 0.0
  %3153 = vmatpush1.msra.mxu0 0.0
  %3154 = vmatprep.subr.mxu0 0.0
  %3155 = vmatpush1.msra.mxu0 0.0
  %3156 = vmatprep.subr.mxu0 0.0
  %3157 = vmatpush1.msra.mxu0 0.0
  %3158 = vmatprep.subr.mxu0 0.0
  %3159 = vmatpush1.msra.mxu0 0.0
  %3160 = vmatprep.subr.mxu0 0.0
  %3161 = vmatpush1.msra.mxu0 0.0
  %3162 = vmatprep.subr.mxu0 0.0
  %3163 = vmatpush1.msra.mxu0 0.0
  %3164 = vmatprep.subr.mxu0 0.0
  %3165 = vmatpush1.msra.mxu0 0.0
  %3166 = vmatprep.subr.mxu0 0.0
  %3167 = vmatpush1.msra.mxu0 0.0
  %3168 = vmatprep.subr.mxu0 0.0
  %3169 = vmatpush1.msra.mxu0 0.0
  %3170 = vmatprep.subr.mxu0 0.0
  %3171 = vmatpush1.msra.mxu0 0.0
  %3172 = vmatprep.subr.mxu0 0.0
  %3173 = vmatpush1.msra.mxu0 0.0
  %3174 = vmatprep.subr.mxu0 0.0
  %3175 = vmatpush1.msra.mxu0 0.0
  %3176 = vmatprep.subr.mxu0 0.0
  %3177 = vmatpush1.msra.mxu0 0.0
  %3178 = vmatprep.subr.mxu0 0.0
  %3179 = vmatpush1.msra.mxu0 0.0
  %3180 = vmatprep.subr.mxu0 0.0
  %3181 = vmatpush1.msra.mxu0 0.0
  %3182 = vmatprep.subr.mxu0 0.0
  %3183 = vmatpush1.msra.mxu0 0.0
  %3184 = vmatprep.subr.mxu0 0.0
  %3185 = vmatpush1.msra.mxu0 0.0
  %3186 = vmatprep.mubr.f32.mxu0 0.0
  %3187 = vmatmul.mubr.f32.gmra.mrb[0].mxu0 %v3120
  %v3188 = vpop.f32.mrb[0].mxu0
  %v3189 = vadd.f32 0.0, %v3188
  %v3190 = vpop.f32.mrb[0].mxu0
  %3191 = vdwg.mxu0
  %v3192 = vadd.f32 %v3119, %v3189
  %v3193 = vxor.u32 %v3192, 2147483648
  %v3194 = vmul.f32 %v3193, 1.442695
  %v3195 = vpow.pop %v3194
  %v3196 = vadd.f32 %v3195, 1.0
  %v3197 = vrcp.pop %v3196
  %v3198 = vmul.f32 1.0, %v3197
  %v3199 = vtanh.pop %v3192
  %v3200 = vmul.f32 %v3198, %v3105
  %3202 = vrot.lane.b32.xlu0 %v3199, 32
  %v3203 = vpop.permute.xlu0 %3202
  %v3205 = vmul.f32 %v3198, %v3203
  %3207 = vrot.lane.b32.xlu0 %v3205, 32
  %v3208 = vpop.permute.xlu0 %3207
  %v3210 = vadd.f32 %v3200, %v3208
  %v3211 = vtanh.pop %v3210
  %3213 = vrot.lane.b32.xlu0 %v3211, 32
  %v3214 = vpop.permute.xlu0 %3213
  %v3216 = vmul.f32 %v3198, %v3214
  %3218 = vrot.lane.b32.xlu0 %v3216, 64
  %v3219 = vpop.permute.xlu0 %3218
  %3221 = vst.msk [vmem:[%s2162] sm:$0x3] %vm768, %v3219
  %3222 = vst.msk [vmem:[%s2160] sm:$0x3] %vm771, %v3219
  %s3223 = scalar_lea.vmem [#allocation2], 48
  %v3224 = vld [vmem:[%s3223] sm:$0x3]
  %v3225 = vsel %vm665, %v3219, 0
  %3227 = vmatprep.subr.mxu0 0.0
  %3228 = vmatpush1.msra.mxu0 %v660
  %3229 = vmatprep.subr.mxu0 0.0
  %3230 = vmatpush1.msra.mxu0 %v661
  %3231 = vmatprep.subr.mxu0 0.0
  %3232 = vmatpush1.msra.mxu0 %v662
  %3233 = vmatprep.subr.mxu0 0.0
  %3234 = vmatpush1.msra.mxu0 %v663
  %3235 = vmatprep.subr.mxu0 0.0
  %3236 = vmatpush1.msra.mxu0 0.0
  %3237 = vmatprep.subr.mxu0 0.0
  %3238 = vmatpush1.msra.mxu0 0.0
  %3239 = vmatprep.subr.mxu0 0.0
  %3240 = vmatpush1.msra.mxu0 0.0
  %3241 = vmatprep.subr.mxu0 0.0
  %3242 = vmatpush1.msra.mxu0 0.0
  %3243 = vmatprep.subr.mxu0 0.0
  %3244 = vmatpush1.msra.mxu0 0.0
  %3245 = vmatprep.subr.mxu0 0.0
  %3246 = vmatpush1.msra.mxu0 0.0
  %3247 = vmatprep.subr.mxu0 0.0
  %3248 = vmatpush1.msra.mxu0 0.0
  %3249 = vmatprep.subr.mxu0 0.0
  %3250 = vmatpush1.msra.mxu0 0.0
  %3251 = vmatprep.subr.mxu0 0.0
  %3252 = vmatpush1.msra.mxu0 0.0
  %3253 = vmatprep.subr.mxu0 0.0
  %3254 = vmatpush1.msra.mxu0 0.0
  %3255 = vmatprep.subr.mxu0 0.0
  %3256 = vmatpush1.msra.mxu0 0.0
  %3257 = vmatprep.subr.mxu0 0.0
  %3258 = vmatpush1.msra.mxu0 0.0
  %3259 = vmatprep.subr.mxu0 0.0
  %3260 = vmatpush1.msra.mxu0 0.0
  %3261 = vmatprep.subr.mxu0 0.0
  %3262 = vmatpush1.msra.mxu0 0.0
  %3263 = vmatprep.subr.mxu0 0.0
  %3264 = vmatpush1.msra.mxu0 0.0
  %3265 = vmatprep.subr.mxu0 0.0
  %3266 = vmatpush1.msra.mxu0 0.0
  %3267 = vmatprep.subr.mxu0 0.0
  %3268 = vmatpush1.msra.mxu0 0.0
  %3269 = vmatprep.subr.mxu0 0.0
  %3270 = vmatpush1.msra.mxu0 0.0
  %3271 = vmatprep.subr.mxu0 0.0
  %3272 = vmatpush1.msra.mxu0 0.0
  %3273 = vmatprep.subr.mxu0 0.0
  %3274 = vmatpush1.msra.mxu0 0.0
  %3275 = vmatprep.subr.mxu0 0.0
  %3276 = vmatpush1.msra.mxu0 0.0
  %3277 = vmatprep.subr.mxu0 0.0
  %3278 = vmatpush1.msra.mxu0 0.0
  %3279 = vmatprep.subr.mxu0 0.0
  %3280 = vmatpush1.msra.mxu0 0.0
  %3281 = vmatprep.subr.mxu0 0.0
  %3282 = vmatpush1.msra.mxu0 0.0
  %3283 = vmatprep.subr.mxu0 0.0
  %3284 = vmatpush1.msra.mxu0 0.0
  %3285 = vmatprep.subr.mxu0 0.0
  %3286 = vmatpush1.msra.mxu0 0.0
  %3287 = vmatprep.subr.mxu0 0.0
  %3288 = vmatpush1.msra.mxu0 0.0
  %3289 = vmatprep.subr.mxu0 0.0
  %3290 = vmatpush1.msra.mxu0 0.0
  %3291 = vmatprep.mubr.f32.mxu0 0.0
  %3292 = vmatmul.mubr.f32.gmra.mrb[0].mxu0 %v3225
  %v3293 = vpop.f32.mrb[0].mxu0
  %v3294 = vadd.f32 0.0, %v3293
  %v3295 = vpop.f32.mrb[0].mxu0
  %3296 = vdwg.mxu0
  %v3297 = vadd.f32 %v3224, %v3294
  %v3298 = vxor.u32 %v3297, 2147483648
  %v3299 = vmul.f32 %v3298, 1.442695
  %v3300 = vpow.pop %v3299
  %v3301 = vadd.f32 %v3300, 1.0
  %v3302 = vrcp.pop %v3301
  %v3303 = vmul.f32 1.0, %v3302
  %v3304 = vtanh.pop %v3297
  %v3305 = vmul.f32 %v3303, %v3210
  %3307 = vrot.lane.b32.xlu0 %v3304, 32
  %v3308 = vpop.permute.xlu0 %3307
  %v3310 = vmul.f32 %v3303, %v3308
  %3312 = vrot.lane.b32.xlu0 %v3310, 32
  %v3313 = vpop.permute.xlu0 %3312
  %v3315 = vadd.f32 %v3305, %v3313
  %v3316 = vtanh.pop %v3315
  %3318 = vrot.lane.b32.xlu0 %v3316, 32
  %v3319 = vpop.permute.xlu0 %3318
  %v3321 = vmul.f32 %v3303, %v3319
  %3323 = vrot.lane.b32.xlu0 %v3321, 64
  %v3324 = vpop.permute.xlu0 %3323
  %3326 = vst.msk [vmem:[%s2055] sm:$0x3] %vm768, %v3324
  %3327 = vst.msk [vmem:[%s2053] sm:$0x3] %vm771, %v3324
  %s3328 = scalar_lea.vmem [#allocation2], 50
  %v3329 = vld [vmem:[%s3328] sm:$0x3]
  %v3330 = vsel %vm665, %v3324, 0
  %3332 = vmatprep.subr.mxu0 0.0
  %3333 = vmatpush1.msra.mxu0 %v660
  %3334 = vmatprep.subr.mxu0 0.0
  %3335 = vmatpush1.msra.mxu0 %v661
  %3336 = vmatprep.subr.mxu0 0.0
  %3337 = vmatpush1.msra.mxu0 %v662
  %3338 = vmatprep.subr.mxu0 0.0
  %3339 = vmatpush1.msra.mxu0 %v663
  %3340 = vmatprep.subr.mxu0 0.0
  %3341 = vmatpush1.msra.mxu0 0.0
  %3342 = vmatprep.subr.mxu0 0.0
  %3343 = vmatpush1.msra.mxu0 0.0
  %3344 = vmatprep.subr.mxu0 0.0
  %3345 = vmatpush1.msra.mxu0 0.0
  %3346 = vmatprep.subr.mxu0 0.0
  %3347 = vmatpush1.msra.mxu0 0.0
  %3348 = vmatprep.subr.mxu0 0.0
  %3349 = vmatpush1.msra.mxu0 0.0
  %3350 = vmatprep.subr.mxu0 0.0
  %3351 = vmatpush1.msra.mxu0 0.0
  %3352 = vmatprep.subr.mxu0 0.0
  %3353 = vmatpush1.msra.mxu0 0.0
  %3354 = vmatprep.subr.mxu0 0.0
  %3355 = vmatpush1.msra.mxu0 0.0
  %3356 = vmatprep.subr.mxu0 0.0
  %3357 = vmatpush1.msra.mxu0 0.0
  %3358 = vmatprep.subr.mxu0 0.0
  %3359 = vmatpush1.msra.mxu0 0.0
  %3360 = vmatprep.subr.mxu0 0.0
  %3361 = vmatpush1.msra.mxu0 0.0
  %3362 = vmatprep.subr.mxu0 0.0
  %3363 = vmatpush1.msra.mxu0 0.0
  %3364 = vmatprep.subr.mxu0 0.0
  %3365 = vmatpush1.msra.mxu0 0.0
  %3366 = vmatprep.subr.mxu0 0.0
  %3367 = vmatpush1.msra.mxu0 0.0
  %3368 = vmatprep.subr.mxu0 0.0
  %3369 = vmatpush1.msra.mxu0 0.0
  %3370 = vmatprep.subr.mxu0 0.0
  %3371 = vmatpush1.msra.mxu0 0.0
  %3372 = vmatprep.subr.mxu0 0.0
  %3373 = vmatpush1.msra.mxu0 0.0
  %3374 = vmatprep.subr.mxu0 0.0
  %3375 = vmatpush1.msra.mxu0 0.0
  %3376 = vmatprep.subr.mxu0 0.0
  %3377 = vmatpush1.msra.mxu0 0.0
  %3378 = vmatprep.subr.mxu0 0.0
  %3379 = vmatpush1.msra.mxu0 0.0
  %3380 = vmatprep.subr.mxu0 0.0
  %3381 = vmatpush1.msra.mxu0 0.0
  %3382 = vmatprep.subr.mxu0 0.0
  %3383 = vmatpush1.msra.mxu0 0.0
  %3384 = vmatprep.subr.mxu0 0.0
  %3385 = vmatpush1.msra.mxu0 0.0
  %3386 = vmatprep.subr.mxu0 0.0
  %3387 = vmatpush1.msra.mxu0 0.0
  %3388 = vmatprep.subr.mxu0 0.0
  %3389 = vmatpush1.msra.mxu0 0.0
  %3390 = vmatprep.subr.mxu0 0.0
  %3391 = vmatpush1.msra.mxu0 0.0
  %3392 = vmatprep.subr.mxu0 0.0
  %3393 = vmatpush1.msra.mxu0 0.0
  %3394 = vmatprep.subr.mxu0 0.0
  %3395 = vmatpush1.msra.mxu0 0.0
  %3396 = vmatprep.mubr.f32.mxu0 0.0
  %3397 = vmatmul.mubr.f32.gmra.mrb[0].mxu0 %v3330
  %v3398 = vpop.f32.mrb[0].mxu0
  %v3399 = vadd.f32 0.0, %v3398
  %v3400 = vpop.f32.mrb[0].mxu0
  %3401 = vdwg.mxu0
  %v3402 = vadd.f32 %v3329, %v3399
  %v3403 = vxor.u32 %v3402, 2147483648
  %v3404 = vmul.f32 %v3403, 1.442695
  %v3405 = vpow.pop %v3404
  %v3406 = vadd.f32 %v3405, 1.0
  %v3407 = vrcp.pop %v3406
  %v3408 = vmul.f32 1.0, %v3407
  %v3409 = vtanh.pop %v3402
  %v3410 = vmul.f32 %v3408, %v3315
  %3412 = vrot.lane.b32.xlu0 %v3409, 32
  %v3413 = vpop.permute.xlu0 %3412
  %v3415 = vmul.f32 %v3408, %v3413
  %3417 = vrot.lane.b32.xlu0 %v3415, 32
  %v3418 = vpop.permute.xlu0 %3417
  %v3420 = vadd.f32 %v3410, %v3418
  %v3421 = vtanh.pop %v3420
  %3423 = vrot.lane.b32.xlu0 %v3421, 32
  %v3424 = vpop.permute.xlu0 %3423
  %v3426 = vmul.f32 %v3408, %v3424
  %3428 = vrot.lane.b32.xlu0 %v3426, 64
  %v3429 = vpop.permute.xlu0 %3428
  %3431 = vst.msk [vmem:[%s1948] sm:$0x3] %vm768, %v3429
  %3432 = vst.msk [vmem:[%s1946] sm:$0x3] %vm771, %v3429
  %s3433 = scalar_lea.vmem [#allocation2], 52
  %v3434 = vld [vmem:[%s3433] sm:$0x3]
  %v3435 = vsel %vm665, %v3429, 0
  %3437 = vmatprep.subr.mxu0 0.0
  %3438 = vmatpush1.msra.mxu0 %v660
  %3439 = vmatprep.subr.mxu0 0.0
  %3440 = vmatpush1.msra.mxu0 %v661
  %3441 = vmatprep.subr.mxu0 0.0
  %3442 = vmatpush1.msra.mxu0 %v662
  %3443 = vmatprep.subr.mxu0 0.0
  %3444 = vmatpush1.msra.mxu0 %v663
  %3445 = vmatprep.subr.mxu0 0.0
  %3446 = vmatpush1.msra.mxu0 0.0
  %3447 = vmatprep.subr.mxu0 0.0
  %3448 = vmatpush1.msra.mxu0 0.0
  %3449 = vmatprep.subr.mxu0 0.0
  %3450 = vmatpush1.msra.mxu0 0.0
  %3451 = vmatprep.subr.mxu0 0.0
  %3452 = vmatpush1.msra.mxu0 0.0
  %3453 = vmatprep.subr.mxu0 0.0
  %3454 = vmatpush1.msra.mxu0 0.0
  %3455 = vmatprep.subr.mxu0 0.0
  %3456 = vmatpush1.msra.mxu0 0.0
  %3457 = vmatprep.subr.mxu0 0.0
  %3458 = vmatpush1.msra.mxu0 0.0
  %3459 = vmatprep.subr.mxu0 0.0
  %3460 = vmatpush1.msra.mxu0 0.0
  %3461 = vmatprep.subr.mxu0 0.0
  %3462 = vmatpush1.msra.mxu0 0.0
  %3463 = vmatprep.subr.mxu0 0.0
  %3464 = vmatpush1.msra.mxu0 0.0
  %3465 = vmatprep.subr.mxu0 0.0
  %3466 = vmatpush1.msra.mxu0 0.0
  %3467 = vmatprep.subr.mxu0 0.0
  %3468 = vmatpush1.msra.mxu0 0.0
  %3469 = vmatprep.subr.mxu0 0.0
  %3470 = vmatpush1.msra.mxu0 0.0
  %3471 = vmatprep.subr.mxu0 0.0
  %3472 = vmatpush1.msra.mxu0 0.0
  %3473 = vmatprep.subr.mxu0 0.0
  %3474 = vmatpush1.msra.mxu0 0.0
  %3475 = vmatprep.subr.mxu0 0.0
  %3476 = vmatpush1.msra.mxu0 0.0
  %3477 = vmatprep.subr.mxu0 0.0
  %3478 = vmatpush1.msra.mxu0 0.0
  %3479 = vmatprep.subr.mxu0 0.0
  %3480 = vmatpush1.msra.mxu0 0.0
  %3481 = vmatprep.subr.mxu0 0.0
  %3482 = vmatpush1.msra.mxu0 0.0
  %3483 = vmatprep.subr.mxu0 0.0
  %3484 = vmatpush1.msra.mxu0 0.0
  %3485 = vmatprep.subr.mxu0 0.0
  %3486 = vmatpush1.msra.mxu0 0.0
  %3487 = vmatprep.subr.mxu0 0.0
  %3488 = vmatpush1.msra.mxu0 0.0
  %3489 = vmatprep.subr.mxu0 0.0
  %3490 = vmatpush1.msra.mxu0 0.0
  %3491 = vmatprep.subr.mxu0 0.0
  %3492 = vmatpush1.msra.mxu0 0.0
  %3493 = vmatprep.subr.mxu0 0.0
  %3494 = vmatpush1.msra.mxu0 0.0
  %3495 = vmatprep.subr.mxu0 0.0
  %3496 = vmatpush1.msra.mxu0 0.0
  %3497 = vmatprep.subr.mxu0 0.0
  %3498 = vmatpush1.msra.mxu0 0.0
  %3499 = vmatprep.subr.mxu0 0.0
  %3500 = vmatpush1.msra.mxu0 0.0
  %3501 = vmatprep.mubr.f32.mxu0 0.0
  %3502 = vmatmul.mubr.f32.gmra.mrb[0].mxu0 %v3435
  %v3503 = vpop.f32.mrb[0].mxu0
  %v3504 = vadd.f32 0.0, %v3503
  %v3505 = vpop.f32.mrb[0].mxu0
  %3506 = vdwg.mxu0
  %v3507 = vadd.f32 %v3434, %v3504
  %v3508 = vxor.u32 %v3507, 2147483648
  %v3509 = vmul.f32 %v3508, 1.442695
  %v3510 = vpow.pop %v3509
  %v3511 = vadd.f32 %v3510, 1.0
  %v3512 = vrcp.pop %v3511
  %v3513 = vmul.f32 1.0, %v3512
  %v3514 = vtanh.pop %v3507
  %v3515 = vmul.f32 %v3513, %v3420
  %3517 = vrot.lane.b32.xlu0 %v3514, 32
  %v3518 = vpop.permute.xlu0 %3517
  %v3520 = vmul.f32 %v3513, %v3518
  %3522 = vrot.lane.b32.xlu0 %v3520, 32
  %v3523 = vpop.permute.xlu0 %3522
  %v3525 = vadd.f32 %v3515, %v3523
  %v3526 = vtanh.pop %v3525
  %3528 = vrot.lane.b32.xlu0 %v3526, 32
  %v3529 = vpop.permute.xlu0 %3528
  %v3531 = vmul.f32 %v3513, %v3529
  %3533 = vrot.lane.b32.xlu0 %v3531, 64
  %v3534 = vpop.permute.xlu0 %3533
  %3536 = vst.msk [vmem:[%s1841] sm:$0x3] %vm768, %v3534
  %3537 = vst.msk [vmem:[%s1839] sm:$0x3] %vm771, %v3534
  %s3538 = scalar_lea.vmem [#allocation2], 54
  %v3539 = vld [vmem:[%s3538] sm:$0x3]
  %v3540 = vsel %vm665, %v3534, 0
  %3542 = vmatprep.subr.mxu0 0.0
  %3543 = vmatpush1.msra.mxu0 %v660
  %3544 = vmatprep.subr.mxu0 0.0
  %3545 = vmatpush1.msra.mxu0 %v661
  %3546 = vmatprep.subr.mxu0 0.0
  %3547 = vmatpush1.msra.mxu0 %v662
  %3548 = vmatprep.subr.mxu0 0.0
  %3549 = vmatpush1.msra.mxu0 %v663
  %3550 = vmatprep.subr.mxu0 0.0
  %3551 = vmatpush1.msra.mxu0 0.0
  %3552 = vmatprep.subr.mxu0 0.0
  %3553 = vmatpush1.msra.mxu0 0.0
  %3554 = vmatprep.subr.mxu0 0.0
  %3555 = vmatpush1.msra.mxu0 0.0
  %3556 = vmatprep.subr.mxu0 0.0
  %3557 = vmatpush1.msra.mxu0 0.0
  %3558 = vmatprep.subr.mxu0 0.0
  %3559 = vmatpush1.msra.mxu0 0.0
  %3560 = vmatprep.subr.mxu0 0.0
  %3561 = vmatpush1.msra.mxu0 0.0
  %3562 = vmatprep.subr.mxu0 0.0
  %3563 = vmatpush1.msra.mxu0 0.0
  %3564 = vmatprep.subr.mxu0 0.0
  %3565 = vmatpush1.msra.mxu0 0.0
  %3566 = vmatprep.subr.mxu0 0.0
  %3567 = vmatpush1.msra.mxu0 0.0
  %3568 = vmatprep.subr.mxu0 0.0
  %3569 = vmatpush1.msra.mxu0 0.0
  %3570 = vmatprep.subr.mxu0 0.0
  %3571 = vmatpush1.msra.mxu0 0.0
  %3572 = vmatprep.subr.mxu0 0.0
  %3573 = vmatpush1.msra.mxu0 0.0
  %3574 = vmatprep.subr.mxu0 0.0
  %3575 = vmatpush1.msra.mxu0 0.0
  %3576 = vmatprep.subr.mxu0 0.0
  %3577 = vmatpush1.msra.mxu0 0.0
  %3578 = vmatprep.subr.mxu0 0.0
  %3579 = vmatpush1.msra.mxu0 0.0
  %3580 = vmatprep.subr.mxu0 0.0
  %3581 = vmatpush1.msra.mxu0 0.0
  %3582 = vmatprep.subr.mxu0 0.0
  %3583 = vmatpush1.msra.mxu0 0.0
  %3584 = vmatprep.subr.mxu0 0.0
  %3585 = vmatpush1.msra.mxu0 0.0
  %3586 = vmatprep.subr.mxu0 0.0
  %3587 = vmatpush1.msra.mxu0 0.0
  %3588 = vmatprep.subr.mxu0 0.0
  %3589 = vmatpush1.msra.mxu0 0.0
  %3590 = vmatprep.subr.mxu0 0.0
  %3591 = vmatpush1.msra.mxu0 0.0
  %3592 = vmatprep.subr.mxu0 0.0
  %3593 = vmatpush1.msra.mxu0 0.0
  %3594 = vmatprep.subr.mxu0 0.0
  %3595 = vmatpush1.msra.mxu0 0.0
  %3596 = vmatprep.subr.mxu0 0.0
  %3597 = vmatpush1.msra.mxu0 0.0
  %3598 = vmatprep.subr.mxu0 0.0
  %3599 = vmatpush1.msra.mxu0 0.0
  %3600 = vmatprep.subr.mxu0 0.0
  %3601 = vmatpush1.msra.mxu0 0.0
  %3602 = vmatprep.subr.mxu0 0.0
  %3603 = vmatpush1.msra.mxu0 0.0
  %3604 = vmatprep.subr.mxu0 0.0
  %3605 = vmatpush1.msra.mxu0 0.0
  %3606 = vmatprep.mubr.f32.mxu0 0.0
  %3607 = vmatmul.mubr.f32.gmra.mrb[0].mxu0 %v3540
  %v3608 = vpop.f32.mrb[0].mxu0
  %v3609 = vadd.f32 0.0, %v3608
  %v3610 = vpop.f32.mrb[0].mxu0
  %3611 = vdwg.mxu0
  %v3612 = vadd.f32 %v3539, %v3609
  %v3613 = vxor.u32 %v3612, 2147483648
  %v3614 = vmul.f32 %v3613, 1.442695
  %v3615 = vpow.pop %v3614
  %v3616 = vadd.f32 %v3615, 1.0
  %v3617 = vrcp.pop %v3616
  %v3618 = vmul.f32 1.0, %v3617
  %v3619 = vtanh.pop %v3612
  %v3620 = vmul.f32 %v3618, %v3525
  %3622 = vrot.lane.b32.xlu0 %v3619, 32
  %v3623 = vpop.permute.xlu0 %3622
  %v3625 = vmul.f32 %v3618, %v3623
  %3627 = vrot.lane.b32.xlu0 %v3625, 32
  %v3628 = vpop.permute.xlu0 %3627
  %v3630 = vadd.f32 %v3620, %v3628
  %v3631 = vtanh.pop %v3630
  %3633 = vrot.lane.b32.xlu0 %v3631, 32
  %v3634 = vpop.permute.xlu0 %3633
  %v3636 = vmul.f32 %v3618, %v3634
  %3638 = vrot.lane.b32.xlu0 %v3636, 64
  %v3639 = vpop.permute.xlu0 %3638
  %3641 = vst.msk [vmem:[%s1734] sm:$0x3] %vm768, %v3639
  %3642 = vst.msk [vmem:[%s1732] sm:$0x3] %vm771, %v3639
  %s3643 = scalar_lea.vmem [#allocation2], 56
  %v3644 = vld [vmem:[%s3643] sm:$0x3]
  %v3645 = vsel %vm665, %v3639, 0
  %3647 = vmatprep.subr.mxu0 0.0
  %3648 = vmatpush1.msra.mxu0 %v660
  %3649 = vmatprep.subr.mxu0 0.0
  %3650 = vmatpush1.msra.mxu0 %v661
  %3651 = vmatprep.subr.mxu0 0.0
  %3652 = vmatpush1.msra.mxu0 %v662
  %3653 = vmatprep.subr.mxu0 0.0
  %3654 = vmatpush1.msra.mxu0 %v663
  %3655 = vmatprep.subr.mxu0 0.0
  %3656 = vmatpush1.msra.mxu0 0.0
  %3657 = vmatprep.subr.mxu0 0.0
  %3658 = vmatpush1.msra.mxu0 0.0
  %3659 = vmatprep.subr.mxu0 0.0
  %3660 = vmatpush1.msra.mxu0 0.0
  %3661 = vmatprep.subr.mxu0 0.0
  %3662 = vmatpush1.msra.mxu0 0.0
  %3663 = vmatprep.subr.mxu0 0.0
  %3664 = vmatpush1.msra.mxu0 0.0
  %3665 = vmatprep.subr.mxu0 0.0
  %3666 = vmatpush1.msra.mxu0 0.0
  %3667 = vmatprep.subr.mxu0 0.0
  %3668 = vmatpush1.msra.mxu0 0.0
  %3669 = vmatprep.subr.mxu0 0.0
  %3670 = vmatpush1.msra.mxu0 0.0
  %3671 = vmatprep.subr.mxu0 0.0
  %3672 = vmatpush1.msra.mxu0 0.0
  %3673 = vmatprep.subr.mxu0 0.0
  %3674 = vmatpush1.msra.mxu0 0.0
  %3675 = vmatprep.subr.mxu0 0.0
  %3676 = vmatpush1.msra.mxu0 0.0
  %3677 = vmatprep.subr.mxu0 0.0
  %3678 = vmatpush1.msra.mxu0 0.0
  %3679 = vmatprep.subr.mxu0 0.0
  %3680 = vmatpush1.msra.mxu0 0.0
  %3681 = vmatprep.subr.mxu0 0.0
  %3682 = vmatpush1.msra.mxu0 0.0
  %3683 = vmatprep.subr.mxu0 0.0
  %3684 = vmatpush1.msra.mxu0 0.0
  %3685 = vmatprep.subr.mxu0 0.0
  %3686 = vmatpush1.msra.mxu0 0.0
  %3687 = vmatprep.subr.mxu0 0.0
  %3688 = vmatpush1.msra.mxu0 0.0
  %3689 = vmatprep.subr.mxu0 0.0
  %3690 = vmatpush1.msra.mxu0 0.0
  %3691 = vmatprep.subr.mxu0 0.0
  %3692 = vmatpush1.msra.mxu0 0.0
  %3693 = vmatprep.subr.mxu0 0.0
  %3694 = vmatpush1.msra.mxu0 0.0
  %3695 = vmatprep.subr.mxu0 0.0
  %3696 = vmatpush1.msra.mxu0 0.0
  %3697 = vmatprep.subr.mxu0 0.0
  %3698 = vmatpush1.msra.mxu0 0.0
  %3699 = vmatprep.subr.mxu0 0.0
  %3700 = vmatpush1.msra.mxu0 0.0
  %3701 = vmatprep.subr.mxu0 0.0
  %3702 = vmatpush1.msra.mxu0 0.0
  %3703 = vmatprep.subr.mxu0 0.0
  %3704 = vmatpush1.msra.mxu0 0.0
  %3705 = vmatprep.subr.mxu0 0.0
  %3706 = vmatpush1.msra.mxu0 0.0
  %3707 = vmatprep.subr.mxu0 0.0
  %3708 = vmatpush1.msra.mxu0 0.0
  %3709 = vmatprep.subr.mxu0 0.0
  %3710 = vmatpush1.msra.mxu0 0.0
  %3711 = vmatprep.mubr.f32.mxu0 0.0
  %3712 = vmatmul.mubr.f32.gmra.mrb[0].mxu0 %v3645
  %v3713 = vpop.f32.mrb[0].mxu0
  %v3714 = vadd.f32 0.0, %v3713
  %v3715 = vpop.f32.mrb[0].mxu0
  %3716 = vdwg.mxu0
  %v3717 = vadd.f32 %v3644, %v3714
  %v3718 = vxor.u32 %v3717, 2147483648
  %v3719 = vmul.f32 %v3718, 1.442695
  %v3720 = vpow.pop %v3719
  %v3721 = vadd.f32 %v3720, 1.0
  %v3722 = vrcp.pop %v3721
  %v3723 = vmul.f32 1.0, %v3722
  %v3724 = vtanh.pop %v3717
  %v3725 = vmul.f32 %v3723, %v3630
  %3727 = vrot.lane.b32.xlu0 %v3724, 32
  %v3728 = vpop.permute.xlu0 %3727
  %v3730 = vmul.f32 %v3723, %v3728
  %3732 = vrot.lane.b32.xlu0 %v3730, 32
  %v3733 = vpop.permute.xlu0 %3732
  %v3735 = vadd.f32 %v3725, %v3733
  %v3736 = vtanh.pop %v3735
  %3738 = vrot.lane.b32.xlu0 %v3736, 32
  %v3739 = vpop.permute.xlu0 %3738
  %v3741 = vmul.f32 %v3723, %v3739
  %3743 = vrot.lane.b32.xlu0 %v3741, 64
  %v3744 = vpop.permute.xlu0 %3743
  %3746 = vst.msk [vmem:[%s1627] sm:$0x3] %vm768, %v3744
  %3747 = vst.msk [vmem:[%s1625] sm:$0x3] %vm771, %v3744
  %s3748 = scalar_lea.vmem [#allocation2], 58
  %v3749 = vld [vmem:[%s3748] sm:$0x3]
  %v3750 = vsel %vm665, %v3744, 0
  %3752 = vmatprep.subr.mxu0 0.0
  %3753 = vmatpush1.msra.mxu0 %v660
  %3754 = vmatprep.subr.mxu0 0.0
  %3755 = vmatpush1.msra.mxu0 %v661
  %3756 = vmatprep.subr.mxu0 0.0
  %3757 = vmatpush1.msra.mxu0 %v662
  %3758 = vmatprep.subr.mxu0 0.0
  %3759 = vmatpush1.msra.mxu0 %v663
  %3760 = vmatprep.subr.mxu0 0.0
  %3761 = vmatpush1.msra.mxu0 0.0
  %3762 = vmatprep.subr.mxu0 0.0
  %3763 = vmatpush1.msra.mxu0 0.0
  %3764 = vmatprep.subr.mxu0 0.0
  %3765 = vmatpush1.msra.mxu0 0.0
  %3766 = vmatprep.subr.mxu0 0.0
  %3767 = vmatpush1.msra.mxu0 0.0
  %3768 = vmatprep.subr.mxu0 0.0
  %3769 = vmatpush1.msra.mxu0 0.0
  %3770 = vmatprep.subr.mxu0 0.0
  %3771 = vmatpush1.msra.mxu0 0.0
  %3772 = vmatprep.subr.mxu0 0.0
  %3773 = vmatpush1.msra.mxu0 0.0
  %3774 = vmatprep.subr.mxu0 0.0
  %3775 = vmatpush1.msra.mxu0 0.0
  %3776 = vmatprep.subr.mxu0 0.0
  %3777 = vmatpush1.msra.mxu0 0.0
  %3778 = vmatprep.subr.mxu0 0.0
  %3779 = vmatpush1.msra.mxu0 0.0
  %3780 = vmatprep.subr.mxu0 0.0
  %3781 = vmatpush1.msra.mxu0 0.0
  %3782 = vmatprep.subr.mxu0 0.0
  %3783 = vmatpush1.msra.mxu0 0.0
  %3784 = vmatprep.subr.mxu0 0.0
  %3785 = vmatpush1.msra.mxu0 0.0
  %3786 = vmatprep.subr.mxu0 0.0
  %3787 = vmatpush1.msra.mxu0 0.0
  %3788 = vmatprep.subr.mxu0 0.0
  %3789 = vmatpush1.msra.mxu0 0.0
  %3790 = vmatprep.subr.mxu0 0.0
  %3791 = vmatpush1.msra.mxu0 0.0
  %3792 = vmatprep.subr.mxu0 0.0
  %3793 = vmatpush1.msra.mxu0 0.0
  %3794 = vmatprep.subr.mxu0 0.0
  %3795 = vmatpush1.msra.mxu0 0.0
  %3796 = vmatprep.subr.mxu0 0.0
  %3797 = vmatpush1.msra.mxu0 0.0
  %3798 = vmatprep.subr.mxu0 0.0
  %3799 = vmatpush1.msra.mxu0 0.0
  %3800 = vmatprep.subr.mxu0 0.0
  %3801 = vmatpush1.msra.mxu0 0.0
  %3802 = vmatprep.subr.mxu0 0.0
  %3803 = vmatpush1.msra.mxu0 0.0
  %3804 = vmatprep.subr.mxu0 0.0
  %3805 = vmatpush1.msra.mxu0 0.0
  %3806 = vmatprep.subr.mxu0 0.0
  %3807 = vmatpush1.msra.mxu0 0.0
  %3808 = vmatprep.subr.mxu0 0.0
  %3809 = vmatpush1.msra.mxu0 0.0
  %3810 = vmatprep.subr.mxu0 0.0
  %3811 = vmatpush1.msra.mxu0 0.0
  %3812 = vmatprep.subr.mxu0 0.0
  %3813 = vmatpush1.msra.mxu0 0.0
  %3814 = vmatprep.subr.mxu0 0.0
  %3815 = vmatpush1.msra.mxu0 0.0
  %3816 = vmatprep.mubr.f32.mxu0 0.0
  %3817 = vmatmul.mubr.f32.gmra.mrb[0].mxu0 %v3750
  %v3818 = vpop.f32.mrb[0].mxu0
  %v3819 = vadd.f32 0.0, %v3818
  %v3820 = vpop.f32.mrb[0].mxu0
  %3821 = vdwg.mxu0
  %v3822 = vadd.f32 %v3749, %v3819
  %v3823 = vxor.u32 %v3822, 2147483648
  %v3824 = vmul.f32 %v3823, 1.442695
  %v3825 = vpow.pop %v3824
  %v3826 = vadd.f32 %v3825, 1.0
  %v3827 = vrcp.pop %v3826
  %v3828 = vmul.f32 1.0, %v3827
  %v3829 = vtanh.pop %v3822
  %v3830 = vmul.f32 %v3828, %v3735
  %3832 = vrot.lane.b32.xlu0 %v3829, 32
  %v3833 = vpop.permute.xlu0 %3832
  %v3835 = vmul.f32 %v3828, %v3833
  %3837 = vrot.lane.b32.xlu0 %v3835, 32
  %v3838 = vpop.permute.xlu0 %3837
  %v3840 = vadd.f32 %v3830, %v3838
  %v3841 = vtanh.pop %v3840
  %3843 = vrot.lane.b32.xlu0 %v3841, 32
  %v3844 = vpop.permute.xlu0 %3843
  %v3846 = vmul.f32 %v3828, %v3844
  %3848 = vrot.lane.b32.xlu0 %v3846, 64
  %v3849 = vpop.permute.xlu0 %3848
  %3851 = vst.msk [vmem:[%s1520] sm:$0x3] %vm768, %v3849
  %3852 = vst.msk [vmem:[%s1518] sm:$0x3] %vm771, %v3849
  %s3853 = scalar_lea.vmem [#allocation2], 60
  %v3854 = vld [vmem:[%s3853] sm:$0x3]
  %v3855 = vsel %vm665, %v3849, 0
  %3857 = vmatprep.subr.mxu0 0.0
  %3858 = vmatpush1.msra.mxu0 %v660
  %3859 = vmatprep.subr.mxu0 0.0
  %3860 = vmatpush1.msra.mxu0 %v661
  %3861 = vmatprep.subr.mxu0 0.0
  %3862 = vmatpush1.msra.mxu0 %v662
  %3863 = vmatprep.subr.mxu0 0.0
  %3864 = vmatpush1.msra.mxu0 %v663
  %3865 = vmatprep.subr.mxu0 0.0
  %3866 = vmatpush1.msra.mxu0 0.0
  %3867 = vmatprep.subr.mxu0 0.0
  %3868 = vmatpush1.msra.mxu0 0.0
  %3869 = vmatprep.subr.mxu0 0.0
  %3870 = vmatpush1.msra.mxu0 0.0
  %3871 = vmatprep.subr.mxu0 0.0
  %3872 = vmatpush1.msra.mxu0 0.0
  %3873 = vmatprep.subr.mxu0 0.0
  %3874 = vmatpush1.msra.mxu0 0.0
  %3875 = vmatprep.subr.mxu0 0.0
  %3876 = vmatpush1.msra.mxu0 0.0
  %3877 = vmatprep.subr.mxu0 0.0
  %3878 = vmatpush1.msra.mxu0 0.0
  %3879 = vmatprep.subr.mxu0 0.0
  %3880 = vmatpush1.msra.mxu0 0.0
  %3881 = vmatprep.subr.mxu0 0.0
  %3882 = vmatpush1.msra.mxu0 0.0
  %3883 = vmatprep.subr.mxu0 0.0
  %3884 = vmatpush1.msra.mxu0 0.0
  %3885 = vmatprep.subr.mxu0 0.0
  %3886 = vmatpush1.msra.mxu0 0.0
  %3887 = vmatprep.subr.mxu0 0.0
  %3888 = vmatpush1.msra.mxu0 0.0
  %3889 = vmatprep.subr.mxu0 0.0
  %3890 = vmatpush1.msra.mxu0 0.0
  %3891 = vmatprep.subr.mxu0 0.0
  %3892 = vmatpush1.msra.mxu0 0.0
  %3893 = vmatprep.subr.mxu0 0.0
  %3894 = vmatpush1.msra.mxu0 0.0
  %3895 = vmatprep.subr.mxu0 0.0
  %3896 = vmatpush1.msra.mxu0 0.0
  %3897 = vmatprep.subr.mxu0 0.0
  %3898 = vmatpush1.msra.mxu0 0.0
  %3899 = vmatprep.subr.mxu0 0.0
  %3900 = vmatpush1.msra.mxu0 0.0
  %3901 = vmatprep.subr.mxu0 0.0
  %3902 = vmatpush1.msra.mxu0 0.0
  %3903 = vmatprep.subr.mxu0 0.0
  %3904 = vmatpush1.msra.mxu0 0.0
  %3905 = vmatprep.subr.mxu0 0.0
  %3906 = vmatpush1.msra.mxu0 0.0
  %3907 = vmatprep.subr.mxu0 0.0
  %3908 = vmatpush1.msra.mxu0 0.0
  %3909 = vmatprep.subr.mxu0 0.0
  %3910 = vmatpush1.msra.mxu0 0.0
  %3911 = vmatprep.subr.mxu0 0.0
  %3912 = vmatpush1.msra.mxu0 0.0
  %3913 = vmatprep.subr.mxu0 0.0
  %3914 = vmatpush1.msra.mxu0 0.0
  %3915 = vmatprep.subr.mxu0 0.0
  %3916 = vmatpush1.msra.mxu0 0.0
  %3917 = vmatprep.subr.mxu0 0.0
  %3918 = vmatpush1.msra.mxu0 0.0
  %3919 = vmatprep.subr.mxu0 0.0
  %3920 = vmatpush1.msra.mxu0 0.0
  %3921 = vmatprep.mubr.f32.mxu0 0.0
  %3922 = vmatmul.mubr.f32.gmra.mrb[0].mxu0 %v3855
  %v3923 = vpop.f32.mrb[0].mxu0
  %v3924 = vadd.f32 0.0, %v3923
  %v3925 = vpop.f32.mrb[0].mxu0
  %3926 = vdwg.mxu0
  %v3927 = vadd.f32 %v3854, %v3924
  %v3928 = vxor.u32 %v3927, 2147483648
  %v3929 = vmul.f32 %v3928, 1.442695
  %v3930 = vpow.pop %v3929
  %v3931 = vadd.f32 %v3930, 1.0
  %v3932 = vrcp.pop %v3931
  %v3933 = vmul.f32 1.0, %v3932
  %v3934 = vtanh.pop %v3927
  %v3935 = vmul.f32 %v3933, %v3840
  %3937 = vrot.lane.b32.xlu0 %v3934, 32
  %v3938 = vpop.permute.xlu0 %3937
  %v3940 = vmul.f32 %v3933, %v3938
  %3942 = vrot.lane.b32.xlu0 %v3940, 32
  %v3943 = vpop.permute.xlu0 %3942
  %v3945 = vadd.f32 %v3935, %v3943
  %v3946 = vtanh.pop %v3945
  %3948 = vrot.lane.b32.xlu0 %v3946, 32
  %v3949 = vpop.permute.xlu0 %3948
  %v3951 = vmul.f32 %v3933, %v3949
  %3953 = vrot.lane.b32.xlu0 %v3951, 64
  %v3954 = vpop.permute.xlu0 %3953
  %3956 = vst.msk [vmem:[%s1413] sm:$0x3] %vm768, %v3954
  %3957 = vst.msk [vmem:[%s1411] sm:$0x3] %vm771, %v3954
  %s3958 = scalar_lea.vmem [#allocation2], 62
  %v3959 = vld [vmem:[%s3958] sm:$0x3]
  %v3960 = vsel %vm665, %v3954, 0
  %3962 = vmatprep.subr.mxu0 0.0
  %3963 = vmatpush1.msra.mxu0 %v660
  %3964 = vmatprep.subr.mxu0 0.0
  %3965 = vmatpush1.msra.mxu0 %v661
  %3966 = vmatprep.subr.mxu0 0.0
  %3967 = vmatpush1.msra.mxu0 %v662
  %3968 = vmatprep.subr.mxu0 0.0
  %3969 = vmatpush1.msra.mxu0 %v663
  %3970 = vmatprep.subr.mxu0 0.0
  %3971 = vmatpush1.msra.mxu0 0.0
  %3972 = vmatprep.subr.mxu0 0.0
  %3973 = vmatpush1.msra.mxu0 0.0
  %3974 = vmatprep.subr.mxu0 0.0
  %3975 = vmatpush1.msra.mxu0 0.0
  %3976 = vmatprep.subr.mxu0 0.0
  %3977 = vmatpush1.msra.mxu0 0.0
  %3978 = vmatprep.subr.mxu0 0.0
  %3979 = vmatpush1.msra.mxu0 0.0
  %3980 = vmatprep.subr.mxu0 0.0
  %3981 = vmatpush1.msra.mxu0 0.0
  %3982 = vmatprep.subr.mxu0 0.0
  %3983 = vmatpush1.msra.mxu0 0.0
  %3984 = vmatprep.subr.mxu0 0.0
  %3985 = vmatpush1.msra.mxu0 0.0
  %3986 = vmatprep.subr.mxu0 0.0
  %3987 = vmatpush1.msra.mxu0 0.0
  %3988 = vmatprep.subr.mxu0 0.0
  %3989 = vmatpush1.msra.mxu0 0.0
  %3990 = vmatprep.subr.mxu0 0.0
  %3991 = vmatpush1.msra.mxu0 0.0
  %3992 = vmatprep.subr.mxu0 0.0
  %3993 = vmatpush1.msra.mxu0 0.0
  %3994 = vmatprep.subr.mxu0 0.0
  %3995 = vmatpush1.msra.mxu0 0.0
  %3996 = vmatprep.subr.mxu0 0.0
  %3997 = vmatpush1.msra.mxu0 0.0
  %3998 = vmatprep.subr.mxu0 0.0
  %3999 = vmatpush1.msra.mxu0 0.0
  %4000 = vmatprep.subr.mxu0 0.0
  %4001 = vmatpush1.msra.mxu0 0.0
  %4002 = vmatprep.subr.mxu0 0.0
  %4003 = vmatpush1.msra.mxu0 0.0
  %4004 = vmatprep.subr.mxu0 0.0
  %4005 = vmatpush1.msra.mxu0 0.0
  %4006 = vmatprep.subr.mxu0 0.0
  %4007 = vmatpush1.msra.mxu0 0.0
  %4008 = vmatprep.subr.mxu0 0.0
  %4009 = vmatpush1.msra.mxu0 0.0
  %4010 = vmatprep.subr.mxu0 0.0
  %4011 = vmatpush1.msra.mxu0 0.0
  %4012 = vmatprep.subr.mxu0 0.0
  %4013 = vmatpush1.msra.mxu0 0.0
  %4014 = vmatprep.subr.mxu0 0.0
  %4015 = vmatpush1.msra.mxu0 0.0
  %4016 = vmatprep.subr.mxu0 0.0
  %4017 = vmatpush1.msra.mxu0 0.0
  %4018 = vmatprep.subr.mxu0 0.0
  %4019 = vmatpush1.msra.mxu0 0.0
  %4020 = vmatprep.subr.mxu0 0.0
  %4021 = vmatpush1.msra.mxu0 0.0
  %4022 = vmatprep.subr.mxu0 0.0
  %4023 = vmatpush1.msra.mxu0 0.0
  %4024 = vmatprep.subr.mxu0 0.0
  %4025 = vmatpush1.msra.mxu0 0.0
  %4026 = vmatprep.mubr.f32.mxu0 0.0
  %4027 = vmatmul.mubr.f32.gmra.mrb[0].mxu0 %v3960
  %v4028 = vpop.f32.mrb[0].mxu0
  %v4029 = vadd.f32 0.0, %v4028
  %v4030 = vpop.f32.mrb[0].mxu0
  %4031 = vdwg.mxu0
  %v4032 = vadd.f32 %v3959, %v4029
  %v4033 = vxor.u32 %v4032, 2147483648
  %v4034 = vmul.f32 %v4033, 1.442695
  %v4035 = vpow.pop %v4034
  %v4036 = vadd.f32 %v4035, 1.0
  %v4037 = vrcp.pop %v4036
  %v4038 = vmul.f32 1.0, %v4037
  %v4039 = vtanh.pop %v4032
  %v4040 = vmul.f32 %v4038, %v3945
  %4042 = vrot.lane.b32.xlu0 %v4039, 32
  %v4043 = vpop.permute.xlu0 %4042
  %v4045 = vmul.f32 %v4038, %v4043
  %4047 = vrot.lane.b32.xlu0 %v4045, 32
  %v4048 = vpop.permute.xlu0 %4047
  %v4050 = vadd.f32 %v4040, %v4048
  %v4051 = vtanh.pop %v4050
  %4053 = vrot.lane.b32.xlu0 %v4051, 32
  %v4054 = vpop.permute.xlu0 %4053
  %v4056 = vmul.f32 %v4038, %v4054
  %4058 = vrot.lane.b32.xlu0 %v4056, 64
  %v4059 = vpop.permute.xlu0 %4058
  %4061 = vst.msk [vmem:[%s1306] sm:$0x3] %vm768, %v4059
  %4062 = vst.msk [vmem:[%s1304] sm:$0x3] %vm771, %v4059
  %s4063 = scalar_lea.vmem [#allocation2], 64
  %v4064 = vld [vmem:[%s4063] sm:$0x3]
  %v4065 = vsel %vm665, %v4059, 0
  %4067 = vmatprep.subr.mxu0 0.0
  %4068 = vmatpush1.msra.mxu0 %v660
  %4069 = vmatprep.subr.mxu0 0.0
  %4070 = vmatpush1.msra.mxu0 %v661
  %4071 = vmatprep.subr.mxu0 0.0
  %4072 = vmatpush1.msra.mxu0 %v662
  %4073 = vmatprep.subr.mxu0 0.0
  %4074 = vmatpush1.msra.mxu0 %v663
  %4075 = vmatprep.subr.mxu0 0.0
  %4076 = vmatpush1.msra.mxu0 0.0
  %4077 = vmatprep.subr.mxu0 0.0
  %4078 = vmatpush1.msra.mxu0 0.0
  %4079 = vmatprep.subr.mxu0 0.0
  %4080 = vmatpush1.msra.mxu0 0.0
  %4081 = vmatprep.subr.mxu0 0.0
  %4082 = vmatpush1.msra.mxu0 0.0
  %4083 = vmatprep.subr.mxu0 0.0
  %4084 = vmatpush1.msra.mxu0 0.0
  %4085 = vmatprep.subr.mxu0 0.0
  %4086 = vmatpush1.msra.mxu0 0.0
  %4087 = vmatprep.subr.mxu0 0.0
  %4088 = vmatpush1.msra.mxu0 0.0
  %4089 = vmatprep.subr.mxu0 0.0
  %4090 = vmatpush1.msra.mxu0 0.0
  %4091 = vmatprep.subr.mxu0 0.0
  %4092 = vmatpush1.msra.mxu0 0.0
  %4093 = vmatprep.subr.mxu0 0.0
  %4094 = vmatpush1.msra.mxu0 0.0
  %4095 = vmatprep.subr.mxu0 0.0
  %4096 = vmatpush1.msra.mxu0 0.0
  %4097 = vmatprep.subr.mxu0 0.0
  %4098 = vmatpush1.msra.mxu0 0.0
  %4099 = vmatprep.subr.mxu0 0.0
  %4100 = vmatpush1.msra.mxu0 0.0
  %4101 = vmatprep.subr.mxu0 0.0
  %4102 = vmatpush1.msra.mxu0 0.0
  %4103 = vmatprep.subr.mxu0 0.0
  %4104 = vmatpush1.msra.mxu0 0.0
  %4105 = vmatprep.subr.mxu0 0.0
  %4106 = vmatpush1.msra.mxu0 0.0
  %4107 = vmatprep.subr.mxu0 0.0
  %4108 = vmatpush1.msra.mxu0 0.0
  %4109 = vmatprep.subr.mxu0 0.0
  %4110 = vmatpush1.msra.mxu0 0.0
  %4111 = vmatprep.subr.mxu0 0.0
  %4112 = vmatpush1.msra.mxu0 0.0
  %4113 = vmatprep.subr.mxu0 0.0
  %4114 = vmatpush1.msra.mxu0 0.0
  %4115 = vmatprep.subr.mxu0 0.0
  %4116 = vmatpush1.msra.mxu0 0.0
  %4117 = vmatprep.subr.mxu0 0.0
  %4118 = vmatpush1.msra.mxu0 0.0
  %4119 = vmatprep.subr.mxu0 0.0
  %4120 = vmatpush1.msra.mxu0 0.0
  %4121 = vmatprep.subr.mxu0 0.0
  %4122 = vmatpush1.msra.mxu0 0.0
  %4123 = vmatprep.subr.mxu0 0.0
  %4124 = vmatpush1.msra.mxu0 0.0
  %4125 = vmatprep.subr.mxu0 0.0
  %4126 = vmatpush1.msra.mxu0 0.0
  %4127 = vmatprep.subr.mxu0 0.0
  %4128 = vmatpush1.msra.mxu0 0.0
  %4129 = vmatprep.subr.mxu0 0.0
  %4130 = vmatpush1.msra.mxu0 0.0
  %4131 = vmatprep.mubr.f32.mxu0 0.0
  %4132 = vmatmul.mubr.f32.gmra.mrb[0].mxu0 %v4065
  %v4133 = vpop.f32.mrb[0].mxu0
  %v4134 = vadd.f32 0.0, %v4133
  %v4135 = vpop.f32.mrb[0].mxu0
  %4136 = vdwg.mxu0
  %v4137 = vadd.f32 %v4064, %v4134
  %v4138 = vxor.u32 %v4137, 2147483648
  %v4139 = vmul.f32 %v4138, 1.442695
  %v4140 = vpow.pop %v4139
  %v4141 = vadd.f32 %v4140, 1.0
  %v4142 = vrcp.pop %v4141
  %v4143 = vmul.f32 1.0, %v4142
  %v4144 = vtanh.pop %v4137
  %v4145 = vmul.f32 %v4143, %v4050
  %4147 = vrot.lane.b32.xlu0 %v4144, 32
  %v4148 = vpop.permute.xlu0 %4147
  %v4150 = vmul.f32 %v4143, %v4148
  %4152 = vrot.lane.b32.xlu0 %v4150, 32
  %v4153 = vpop.permute.xlu0 %4152
  %v4155 = vadd.f32 %v4145, %v4153
  %v4156 = vtanh.pop %v4155
  %4158 = vrot.lane.b32.xlu0 %v4156, 32
  %v4159 = vpop.permute.xlu0 %4158
  %v4161 = vmul.f32 %v4143, %v4159
  %4163 = vrot.lane.b32.xlu0 %v4161, 64
  %v4164 = vpop.permute.xlu0 %4163
  %4166 = vst.msk [vmem:[%s1199] sm:$0x3] %vm768, %v4164
  %4167 = vst.msk [vmem:[%s1197] sm:$0x3] %vm771, %v4164
  %s4168 = scalar_lea.vmem [#allocation2], 66
  %v4169 = vld [vmem:[%s4168] sm:$0x3]
  %v4170 = vsel %vm665, %v4164, 0
  %4172 = vmatprep.subr.mxu0 0.0
  %4173 = vmatpush1.msra.mxu0 %v660
  %4174 = vmatprep.subr.mxu0 0.0
  %4175 = vmatpush1.msra.mxu0 %v661
  %4176 = vmatprep.subr.mxu0 0.0
  %4177 = vmatpush1.msra.mxu0 %v662
  %4178 = vmatprep.subr.mxu0 0.0
  %4179 = vmatpush1.msra.mxu0 %v663
  %4180 = vmatprep.subr.mxu0 0.0
  %4181 = vmatpush1.msra.mxu0 0.0
  %4182 = vmatprep.subr.mxu0 0.0
  %4183 = vmatpush1.msra.mxu0 0.0
  %4184 = vmatprep.subr.mxu0 0.0
  %4185 = vmatpush1.msra.mxu0 0.0
  %4186 = vmatprep.subr.mxu0 0.0
  %4187 = vmatpush1.msra.mxu0 0.0
  %4188 = vmatprep.subr.mxu0 0.0
  %4189 = vmatpush1.msra.mxu0 0.0
  %4190 = vmatprep.subr.mxu0 0.0
  %4191 = vmatpush1.msra.mxu0 0.0
  %4192 = vmatprep.subr.mxu0 0.0
  %4193 = vmatpush1.msra.mxu0 0.0
  %4194 = vmatprep.subr.mxu0 0.0
  %4195 = vmatpush1.msra.mxu0 0.0
  %4196 = vmatprep.subr.mxu0 0.0
  %4197 = vmatpush1.msra.mxu0 0.0
  %4198 = vmatprep.subr.mxu0 0.0
  %4199 = vmatpush1.msra.mxu0 0.0
  %4200 = vmatprep.subr.mxu0 0.0
  %4201 = vmatpush1.msra.mxu0 0.0
  %4202 = vmatprep.subr.mxu0 0.0
  %4203 = vmatpush1.msra.mxu0 0.0
  %4204 = vmatprep.subr.mxu0 0.0
  %4205 = vmatpush1.msra.mxu0 0.0
  %4206 = vmatprep.subr.mxu0 0.0
  %4207 = vmatpush1.msra.mxu0 0.0
  %4208 = vmatprep.subr.mxu0 0.0
  %4209 = vmatpush1.msra.mxu0 0.0
  %4210 = vmatprep.subr.mxu0 0.0
  %4211 = vmatpush1.msra.mxu0 0.0
  %4212 = vmatprep.subr.mxu0 0.0
  %4213 = vmatpush1.msra.mxu0 0.0
  %4214 = vmatprep.subr.mxu0 0.0
  %4215 = vmatpush1.msra.mxu0 0.0
  %4216 = vmatprep.subr.mxu0 0.0
  %4217 = vmatpush1.msra.mxu0 0.0
  %4218 = vmatprep.subr.mxu0 0.0
  %4219 = vmatpush1.msra.mxu0 0.0
  %4220 = vmatprep.subr.mxu0 0.0
  %4221 = vmatpush1.msra.mxu0 0.0
  %4222 = vmatprep.subr.mxu0 0.0
  %4223 = vmatpush1.msra.mxu0 0.0
  %4224 = vmatprep.subr.mxu0 0.0
  %4225 = vmatpush1.msra.mxu0 0.0
  %4226 = vmatprep.subr.mxu0 0.0
  %4227 = vmatpush1.msra.mxu0 0.0
  %4228 = vmatprep.subr.mxu0 0.0
  %4229 = vmatpush1.msra.mxu0 0.0
  %4230 = vmatprep.subr.mxu0 0.0
  %4231 = vmatpush1.msra.mxu0 0.0
  %4232 = vmatprep.subr.mxu0 0.0
  %4233 = vmatpush1.msra.mxu0 0.0
  %4234 = vmatprep.subr.mxu0 0.0
  %4235 = vmatpush1.msra.mxu0 0.0
  %4236 = vmatprep.mubr.f32.mxu0 0.0
  %4237 = vmatmul.mubr.f32.gmra.mrb[0].mxu0 %v4170
  %v4238 = vpop.f32.mrb[0].mxu0
  %v4239 = vadd.f32 0.0, %v4238
  %v4240 = vpop.f32.mrb[0].mxu0
  %4241 = vdwg.mxu0
  %v4242 = vadd.f32 %v4169, %v4239
  %v4243 = vxor.u32 %v4242, 2147483648
  %v4244 = vmul.f32 %v4243, 1.442695
  %v4245 = vpow.pop %v4244
  %v4246 = vadd.f32 %v4245, 1.0
  %v4247 = vrcp.pop %v4246
  %v4248 = vmul.f32 1.0, %v4247
  %v4249 = vtanh.pop %v4242
  %v4250 = vmul.f32 %v4248, %v4155
  %4252 = vrot.lane.b32.xlu0 %v4249, 32
  %v4253 = vpop.permute.xlu0 %4252
  %v4255 = vmul.f32 %v4248, %v4253
  %4257 = vrot.lane.b32.xlu0 %v4255, 32
  %v4258 = vpop.permute.xlu0 %4257
  %v4260 = vadd.f32 %v4250, %v4258
  %v4261 = vtanh.pop %v4260
  %4263 = vrot.lane.b32.xlu0 %v4261, 32
  %v4264 = vpop.permute.xlu0 %4263
  %v4266 = vmul.f32 %v4248, %v4264
  %4268 = vrot.lane.b32.xlu0 %v4266, 64
  %v4269 = vpop.permute.xlu0 %4268
  %4271 = vst.msk [vmem:[%s1092] sm:$0x3] %vm768, %v4269
  %4272 = vst.msk [vmem:[%s1090] sm:$0x3] %vm771, %v4269
  %s4273 = scalar_lea.vmem [#allocation2], 68
  %v4274 = vld [vmem:[%s4273] sm:$0x3]
  %v4275 = vsel %vm665, %v4269, 0
  %4277 = vmatprep.subr.mxu0 0.0
  %4278 = vmatpush1.msra.mxu0 %v660
  %4279 = vmatprep.subr.mxu0 0.0
  %4280 = vmatpush1.msra.mxu0 %v661
  %4281 = vmatprep.subr.mxu0 0.0
  %4282 = vmatpush1.msra.mxu0 %v662
  %4283 = vmatprep.subr.mxu0 0.0
  %4284 = vmatpush1.msra.mxu0 %v663
  %4285 = vmatprep.subr.mxu0 0.0
  %4286 = vmatpush1.msra.mxu0 0.0
  %4287 = vmatprep.subr.mxu0 0.0
  %4288 = vmatpush1.msra.mxu0 0.0
  %4289 = vmatprep.subr.mxu0 0.0
  %4290 = vmatpush1.msra.mxu0 0.0
  %4291 = vmatprep.subr.mxu0 0.0
  %4292 = vmatpush1.msra.mxu0 0.0
  %4293 = vmatprep.subr.mxu0 0.0
  %4294 = vmatpush1.msra.mxu0 0.0
  %4295 = vmatprep.subr.mxu0 0.0
  %4296 = vmatpush1.msra.mxu0 0.0
  %4297 = vmatprep.subr.mxu0 0.0
  %4298 = vmatpush1.msra.mxu0 0.0
  %4299 = vmatprep.subr.mxu0 0.0
  %4300 = vmatpush1.msra.mxu0 0.0
  %4301 = vmatprep.subr.mxu0 0.0
  %4302 = vmatpush1.msra.mxu0 0.0
  %4303 = vmatprep.subr.mxu0 0.0
  %4304 = vmatpush1.msra.mxu0 0.0
  %4305 = vmatprep.subr.mxu0 0.0
  %4306 = vmatpush1.msra.mxu0 0.0
  %4307 = vmatprep.subr.mxu0 0.0
  %4308 = vmatpush1.msra.mxu0 0.0
  %4309 = vmatprep.subr.mxu0 0.0
  %4310 = vmatpush1.msra.mxu0 0.0
  %4311 = vmatprep.subr.mxu0 0.0
  %4312 = vmatpush1.msra.mxu0 0.0
  %4313 = vmatprep.subr.mxu0 0.0
  %4314 = vmatpush1.msra.mxu0 0.0
  %4315 = vmatprep.subr.mxu0 0.0
  %4316 = vmatpush1.msra.mxu0 0.0
  %4317 = vmatprep.subr.mxu0 0.0
  %4318 = vmatpush1.msra.mxu0 0.0
  %4319 = vmatprep.subr.mxu0 0.0
  %4320 = vmatpush1.msra.mxu0 0.0
  %4321 = vmatprep.subr.mxu0 0.0
  %4322 = vmatpush1.msra.mxu0 0.0
  %4323 = vmatprep.subr.mxu0 0.0
  %4324 = vmatpush1.msra.mxu0 0.0
  %4325 = vmatprep.subr.mxu0 0.0
  %4326 = vmatpush1.msra.mxu0 0.0
  %4327 = vmatprep.subr.mxu0 0.0
  %4328 = vmatpush1.msra.mxu0 0.0
  %4329 = vmatprep.subr.mxu0 0.0
  %4330 = vmatpush1.msra.mxu0 0.0
  %4331 = vmatprep.subr.mxu0 0.0
  %4332 = vmatpush1.msra.mxu0 0.0
  %4333 = vmatprep.subr.mxu0 0.0
  %4334 = vmatpush1.msra.mxu0 0.0
  %4335 = vmatprep.subr.mxu0 0.0
  %4336 = vmatpush1.msra.mxu0 0.0
  %4337 = vmatprep.subr.mxu0 0.0
  %4338 = vmatpush1.msra.mxu0 0.0
  %4339 = vmatprep.subr.mxu0 0.0
  %4340 = vmatpush1.msra.mxu0 0.0
  %4341 = vmatprep.mubr.f32.mxu0 0.0
  %4342 = vmatmul.mubr.f32.gmra.mrb[0].mxu0 %v4275
  %v4343 = vpop.f32.mrb[0].mxu0
  %v4344 = vadd.f32 0.0, %v4343
  %v4345 = vpop.f32.mrb[0].mxu0
  %4346 = vdwg.mxu0
  %v4347 = vadd.f32 %v4274, %v4344
  %v4348 = vxor.u32 %v4347, 2147483648
  %v4349 = vmul.f32 %v4348, 1.442695
  %v4350 = vpow.pop %v4349
  %v4351 = vadd.f32 %v4350, 1.0
  %v4352 = vrcp.pop %v4351
  %v4353 = vmul.f32 1.0, %v4352
  %v4354 = vtanh.pop %v4347
  %v4355 = vmul.f32 %v4353, %v4260
  %4357 = vrot.lane.b32.xlu0 %v4354, 32
  %v4358 = vpop.permute.xlu0 %4357
  %v4360 = vmul.f32 %v4353, %v4358
  %4362 = vrot.lane.b32.xlu0 %v4360, 32
  %v4363 = vpop.permute.xlu0 %4362
  %v4365 = vadd.f32 %v4355, %v4363
  %v4366 = vtanh.pop %v4365
  %4368 = vrot.lane.b32.xlu0 %v4366, 32
  %v4369 = vpop.permute.xlu0 %4368
  %v4371 = vmul.f32 %v4353, %v4369
  %4373 = vrot.lane.b32.xlu0 %v4371, 64
  %v4374 = vpop.permute.xlu0 %4373
  %4376 = vst.msk [vmem:[%s985] sm:$0x3] %vm768, %v4374
  %4377 = vst.msk [vmem:[%s983] sm:$0x3] %vm771, %v4374
  %s4378 = scalar_lea.vmem [#allocation2], 70
  %v4379 = vld [vmem:[%s4378] sm:$0x3]
  %v4380 = vsel %vm665, %v4374, 0
  %4382 = vmatprep.subr.mxu0 0.0
  %4383 = vmatpush1.msra.mxu0 %v660
  %4384 = vmatprep.subr.mxu0 0.0
  %4385 = vmatpush1.msra.mxu0 %v661
  %4386 = vmatprep.subr.mxu0 0.0
  %4387 = vmatpush1.msra.mxu0 %v662
  %4388 = vmatprep.subr.mxu0 0.0
  %4389 = vmatpush1.msra.mxu0 %v663
  %4390 = vmatprep.subr.mxu0 0.0
  %4391 = vmatpush1.msra.mxu0 0.0
  %4392 = vmatprep.subr.mxu0 0.0
  %4393 = vmatpush1.msra.mxu0 0.0
  %4394 = vmatprep.subr.mxu0 0.0
  %4395 = vmatpush1.msra.mxu0 0.0
  %4396 = vmatprep.subr.mxu0 0.0
  %4397 = vmatpush1.msra.mxu0 0.0
  %4398 = vmatprep.subr.mxu0 0.0
  %4399 = vmatpush1.msra.mxu0 0.0
  %4400 = vmatprep.subr.mxu0 0.0
  %4401 = vmatpush1.msra.mxu0 0.0
  %4402 = vmatprep.subr.mxu0 0.0
  %4403 = vmatpush1.msra.mxu0 0.0
  %4404 = vmatprep.subr.mxu0 0.0
  %4405 = vmatpush1.msra.mxu0 0.0
  %4406 = vmatprep.subr.mxu0 0.0
  %4407 = vmatpush1.msra.mxu0 0.0
  %4408 = vmatprep.subr.mxu0 0.0
  %4409 = vmatpush1.msra.mxu0 0.0
  %4410 = vmatprep.subr.mxu0 0.0
  %4411 = vmatpush1.msra.mxu0 0.0
  %4412 = vmatprep.subr.mxu0 0.0
  %4413 = vmatpush1.msra.mxu0 0.0
  %4414 = vmatprep.subr.mxu0 0.0
  %4415 = vmatpush1.msra.mxu0 0.0
  %4416 = vmatprep.subr.mxu0 0.0
  %4417 = vmatpush1.msra.mxu0 0.0
  %4418 = vmatprep.subr.mxu0 0.0
  %4419 = vmatpush1.msra.mxu0 0.0
  %4420 = vmatprep.subr.mxu0 0.0
  %4421 = vmatpush1.msra.mxu0 0.0
  %4422 = vmatprep.subr.mxu0 0.0
  %4423 = vmatpush1.msra.mxu0 0.0
  %4424 = vmatprep.subr.mxu0 0.0
  %4425 = vmatpush1.msra.mxu0 0.0
  %4426 = vmatprep.subr.mxu0 0.0
  %4427 = vmatpush1.msra.mxu0 0.0
  %4428 = vmatprep.subr.mxu0 0.0
  %4429 = vmatpush1.msra.mxu0 0.0
  %4430 = vmatprep.subr.mxu0 0.0
  %4431 = vmatpush1.msra.mxu0 0.0
  %4432 = vmatprep.subr.mxu0 0.0
  %4433 = vmatpush1.msra.mxu0 0.0
  %4434 = vmatprep.subr.mxu0 0.0
  %4435 = vmatpush1.msra.mxu0 0.0
  %4436 = vmatprep.subr.mxu0 0.0
  %4437 = vmatpush1.msra.mxu0 0.0
  %4438 = vmatprep.subr.mxu0 0.0
  %4439 = vmatpush1.msra.mxu0 0.0
  %4440 = vmatprep.subr.mxu0 0.0
  %4441 = vmatpush1.msra.mxu0 0.0
  %4442 = vmatprep.subr.mxu0 0.0
  %4443 = vmatpush1.msra.mxu0 0.0
  %4444 = vmatprep.subr.mxu0 0.0
  %4445 = vmatpush1.msra.mxu0 0.0
  %4446 = vmatprep.mubr.f32.mxu0 0.0
  %4447 = vmatmul.mubr.f32.gmra.mrb[0].mxu0 %v4380
  %v4448 = vpop.f32.mrb[0].mxu0
  %v4449 = vadd.f32 0.0, %v4448
  %v4450 = vpop.f32.mrb[0].mxu0
  %4451 = vdwg.mxu0
  %v4452 = vadd.f32 %v4379, %v4449
  %v4453 = vxor.u32 %v4452, 2147483648
  %v4454 = vmul.f32 %v4453, 1.442695
  %v4455 = vpow.pop %v4454
  %v4456 = vadd.f32 %v4455, 1.0
  %v4457 = vrcp.pop %v4456
  %v4458 = vmul.f32 1.0, %v4457
  %v4459 = vtanh.pop %v4452
  %v4460 = vmul.f32 %v4458, %v4365
  %4462 = vrot.lane.b32.xlu0 %v4459, 32
  %v4463 = vpop.permute.xlu0 %4462
  %v4465 = vmul.f32 %v4458, %v4463
  %4467 = vrot.lane.b32.xlu0 %v4465, 32
  %v4468 = vpop.permute.xlu0 %4467
  %v4470 = vadd.f32 %v4460, %v4468
  %v4471 = vtanh.pop %v4470
  %4473 = vrot.lane.b32.xlu0 %v4471, 32
  %v4474 = vpop.permute.xlu0 %4473
  %v4476 = vmul.f32 %v4458, %v4474
  %4478 = vrot.lane.b32.xlu0 %v4476, 64
  %v4479 = vpop.permute.xlu0 %4478
  %4481 = vst.msk [vmem:[%s878] sm:$0x3] %vm768, %v4479
  %4482 = vst.msk [vmem:[%s876] sm:$0x3] %vm771, %v4479
  %s4483 = scalar_lea.vmem [#allocation2], 72
  %v4484 = vld [vmem:[%s4483] sm:$0x3]
  %v4485 = vsel %vm665, %v4479, 0
  %4487 = vmatprep.subr.mxu0 0.0
  %4488 = vmatpush1.msra.mxu0 %v660
  %4489 = vmatprep.subr.mxu0 0.0
  %4490 = vmatpush1.msra.mxu0 %v661
  %4491 = vmatprep.subr.mxu0 0.0
  %4492 = vmatpush1.msra.mxu0 %v662
  %4493 = vmatprep.subr.mxu0 0.0
  %4494 = vmatpush1.msra.mxu0 %v663
  %4495 = vmatprep.subr.mxu0 0.0
  %4496 = vmatpush1.msra.mxu0 0.0
  %4497 = vmatprep.subr.mxu0 0.0
  %4498 = vmatpush1.msra.mxu0 0.0
  %4499 = vmatprep.subr.mxu0 0.0
  %4500 = vmatpush1.msra.mxu0 0.0
  %4501 = vmatprep.subr.mxu0 0.0
  %4502 = vmatpush1.msra.mxu0 0.0
  %4503 = vmatprep.subr.mxu0 0.0
  %4504 = vmatpush1.msra.mxu0 0.0
  %4505 = vmatprep.subr.mxu0 0.0
  %4506 = vmatpush1.msra.mxu0 0.0
  %4507 = vmatprep.subr.mxu0 0.0
  %4508 = vmatpush1.msra.mxu0 0.0
  %4509 = vmatprep.subr.mxu0 0.0
  %4510 = vmatpush1.msra.mxu0 0.0
  %4511 = vmatprep.subr.mxu0 0.0
  %4512 = vmatpush1.msra.mxu0 0.0
  %4513 = vmatprep.subr.mxu0 0.0
  %4514 = vmatpush1.msra.mxu0 0.0
  %4515 = vmatprep.subr.mxu0 0.0
  %4516 = vmatpush1.msra.mxu0 0.0
  %4517 = vmatprep.subr.mxu0 0.0
  %4518 = vmatpush1.msra.mxu0 0.0
  %4519 = vmatprep.subr.mxu0 0.0
  %4520 = vmatpush1.msra.mxu0 0.0
  %4521 = vmatprep.subr.mxu0 0.0
  %4522 = vmatpush1.msra.mxu0 0.0
  %4523 = vmatprep.subr.mxu0 0.0
  %4524 = vmatpush1.msra.mxu0 0.0
  %4525 = vmatprep.subr.mxu0 0.0
  %4526 = vmatpush1.msra.mxu0 0.0
  %4527 = vmatprep.subr.mxu0 0.0
  %4528 = vmatpush1.msra.mxu0 0.0
  %4529 = vmatprep.subr.mxu0 0.0
  %4530 = vmatpush1.msra.mxu0 0.0
  %4531 = vmatprep.subr.mxu0 0.0
  %4532 = vmatpush1.msra.mxu0 0.0
  %4533 = vmatprep.subr.mxu0 0.0
  %4534 = vmatpush1.msra.mxu0 0.0
  %4535 = vmatprep.subr.mxu0 0.0
  %4536 = vmatpush1.msra.mxu0 0.0
  %4537 = vmatprep.subr.mxu0 0.0
  %4538 = vmatpush1.msra.mxu0 0.0
  %4539 = vmatprep.subr.mxu0 0.0
  %4540 = vmatpush1.msra.mxu0 0.0
  %4541 = vmatprep.subr.mxu0 0.0
  %4542 = vmatpush1.msra.mxu0 0.0
  %4543 = vmatprep.subr.mxu0 0.0
  %4544 = vmatpush1.msra.mxu0 0.0
  %4545 = vmatprep.subr.mxu0 0.0
  %4546 = vmatpush1.msra.mxu0 0.0
  %4547 = vmatprep.subr.mxu0 0.0
  %4548 = vmatpush1.msra.mxu0 0.0
  %4549 = vmatprep.subr.mxu0 0.0
  %4550 = vmatpush1.msra.mxu0 0.0
  %4551 = vmatprep.mubr.f32.mxu0 0.0
  %4552 = vmatmul.mubr.f32.gmra.mrb[0].mxu0 %v4485
  %v4553 = vpop.f32.mrb[0].mxu0
  %v4554 = vadd.f32 0.0, %v4553
  %v4555 = vpop.f32.mrb[0].mxu0
  %4556 = vdwg.mxu0
  %v4557 = vadd.f32 %v4484, %v4554
  %v4558 = vxor.u32 %v4557, 2147483648
  %v4559 = vmul.f32 %v4558, 1.442695
  %v4560 = vpow.pop %v4559
  %v4561 = vadd.f32 %v4560, 1.0
  %v4562 = vrcp.pop %v4561
  %v4563 = vmul.f32 1.0, %v4562
  %v4564 = vtanh.pop %v4557
  %v4565 = vmul.f32 %v4563, %v4470
  %4567 = vrot.lane.b32.xlu0 %v4564, 32
  %v4568 = vpop.permute.xlu0 %4567
  %v4570 = vmul.f32 %v4563, %v4568
  %4572 = vrot.lane.b32.xlu0 %v4570, 32
  %v4573 = vpop.permute.xlu0 %4572
  %v4575 = vadd.f32 %v4565, %v4573
  %v4576 = vtanh.pop %v4575
  %4578 = vrot.lane.b32.xlu0 %v4576, 32
  %v4579 = vpop.permute.xlu0 %4578
  %v4581 = vmul.f32 %v4563, %v4579
  %4583 = vrot.lane.b32.xlu0 %v4581, 64
  %v4584 = vpop.permute.xlu0 %4583
  %4586 = vst.msk [vmem:[%s770] sm:$0x3] %vm768, %v4584
  %4587 = vst.msk [vmem:[%s5] sm:$0x3] %vm771, %v4584
  %v4588 = vld [vmem:[%s5] sm:$0x3]
  %v4589 = vld [vmem:[%s5 + $0x2] sm:$0x3]
  %v4590 = vld [vmem:[%s5 + $0x4] sm:$0x3]
  %v4591 = vld [vmem:[%s5 + $0x6] sm:$0x3]
  %v4592 = vld [vmem:[%s5 + $0x8] sm:$0x3]
  %v4593 = vld [vmem:[%s5 + $0xa] sm:$0x3]
  %v4594 = vld [vmem:[%s5 + $0xc] sm:$0x3]
  %v4595 = vld [vmem:[%s5 + $0xe] sm:$0x3]
  %v4596 = vld [vmem:[%s5 + $0x10] sm:$0x3]
  %v4597 = vld [vmem:[%s5 + $0x12] sm:$0x3]
  %v4598 = vld [vmem:[%s5 + $0x14] sm:$0x3]
  %v4599 = vld [vmem:[%s5 + $0x16] sm:$0x3]
  %v4600 = vld [vmem:[%s5 + $0x18] sm:$0x3]
  %v4601 = vld [vmem:[%s5 + $0x1a] sm:$0x3]
  %v4602 = vld [vmem:[%s5 + $0x1c] sm:$0x3]
  %v4603 = vld [vmem:[%s5 + $0x1e] sm:$0x3]
  %v4604 = vld [vmem:[%s5 + $0x20] sm:$0x3]
  %v4605 = vld [vmem:[%s5 + $0x22] sm:$0x3]
  %v4606 = vld [vmem:[%s5 + $0x24] sm:$0x3]
  %v4607 = vld [vmem:[%s5 + $0x26] sm:$0x3]
  %v4608 = vld [vmem:[%s5 + $0x28] sm:$0x3]
  %v4609 = vld [vmem:[%s5 + $0x2a] sm:$0x3]
  %v4610 = vld [vmem:[%s5 + $0x2c] sm:$0x3]
  %v4611 = vld [vmem:[%s5 + $0x2e] sm:$0x3]
  %v4612 = vld [vmem:[%s5 + $0x30] sm:$0x3]
  %v4613 = vld [vmem:[%s5 + $0x32] sm:$0x3]
  %v4614 = vld [vmem:[%s5 + $0x34] sm:$0x3]
  %v4615 = vld [vmem:[%s5 + $0x36] sm:$0x3]
  %v4616 = vld [vmem:[%s5 + $0x38] sm:$0x3]
  %v4617 = vld [vmem:[%s5 + $0x3a] sm:$0x3]
  %v4618 = vld [vmem:[%s5 + $0x3c] sm:$0x3]
  %v4619 = vld [vmem:[%s5 + $0x3e] sm:$0x3]
  %v4620 = vld [vmem:[%s5 + $0x40] sm:$0x3]
  %v4621 = vld [vmem:[%s5 + $0x42] sm:$0x3]
  %v4622 = vld [vmem:[%s5 + $0x44] sm:$0x3]
  %v4623 = vld [vmem:[%s5 + $0x46] sm:$0x3]
  %v4624 = vld [vmem:[%s5 + $0x48] sm:$0x3]
  %v4625 = vld [vmem:[%s4] sm:$0x3]
  %v4626 = vld [vmem:[%s4 + $0x2] sm:$0x3]
  %v4627 = vld [vmem:[%s4 + $0x4] sm:$0x3]
  %v4628 = vld [vmem:[%s4 + $0x6] sm:$0x3]
  %v4629 = vld [vmem:[%s4 + $0x8] sm:$0x3]
  %v4630 = vld [vmem:[%s4 + $0xa] sm:$0x3]
  %v4631 = vld [vmem:[%s4 + $0xc] sm:$0x3]
  %v4632 = vld [vmem:[%s4 + $0xe] sm:$0x3]
  %v4633 = vld [vmem:[%s4 + $0x10] sm:$0x3]
  %v4634 = vld [vmem:[%s4 + $0x12] sm:$0x3]
  %v4635 = vld [vmem:[%s4 + $0x14] sm:$0x3]
  %v4636 = vld [vmem:[%s4 + $0x16] sm:$0x3]
  %v4637 = vld [vmem:[%s4 + $0x18] sm:$0x3]
  %v4638 = vld [vmem:[%s4 + $0x1a] sm:$0x3]
  %v4639 = vld [vmem:[%s4 + $0x1c] sm:$0x3]
  %v4640 = vld [vmem:[%s4 + $0x1e] sm:$0x3]
  %v4641 = vld [vmem:[%s4 + $0x20] sm:$0x3]
  %v4642 = vld [vmem:[%s4 + $0x22] sm:$0x3]
  %v4643 = vld [vmem:[%s4 + $0x24] sm:$0x3]
  %v4644 = vld [vmem:[%s4 + $0x26] sm:$0x3]
  %v4645 = vld [vmem:[%s4 + $0x28] sm:$0x3]
  %v4646 = vld [vmem:[%s4 + $0x2a] sm:$0x3]
  %v4647 = vld [vmem:[%s4 + $0x2c] sm:$0x3]
  %v4648 = vld [vmem:[%s4 + $0x2e] sm:$0x3]
  %v4649 = vld [vmem:[%s4 + $0x30] sm:$0x3]
  %v4650 = vld [vmem:[%s4 + $0x32] sm:$0x3]
  %v4651 = vld [vmem:[%s4 + $0x34] sm:$0x3]
  %v4652 = vld [vmem:[%s4 + $0x36] sm:$0x3]
  %v4653 = vld [vmem:[%s4 + $0x38] sm:$0x3]
  %v4654 = vld [vmem:[%s4 + $0x3a] sm:$0x3]
  %v4655 = vld [vmem:[%s4 + $0x3c] sm:$0x3]
  %v4656 = vld [vmem:[%s4 + $0x3e] sm:$0x3]
  %v4657 = vld [vmem:[%s4 + $0x40] sm:$0x3]
  %v4658 = vld [vmem:[%s4 + $0x42] sm:$0x3]
  %v4659 = vld [vmem:[%s4 + $0x44] sm:$0x3]
  %v4660 = vld [vmem:[%s4 + $0x46] sm:$0x3]
  %v4661 = vld [vmem:[%s4 + $0x48] sm:$0x3]
  %v4662 = vadd.f32 %v4588, %v4625
  %v4663 = vadd.f32 %v4589, %v4626
  %v4664 = vadd.f32 %v4590, %v4627
  %v4665 = vadd.f32 %v4591, %v4628
  %v4666 = vadd.f32 %v4592, %v4629
  %v4667 = vadd.f32 %v4593, %v4630
  %v4668 = vadd.f32 %v4594, %v4631
  %v4669 = vadd.f32 %v4595, %v4632
  %v4670 = vadd.f32 %v4596, %v4633
  %v4671 = vadd.f32 %v4597, %v4634
  %v4672 = vadd.f32 %v4598, %v4635
  %v4673 = vadd.f32 %v4599, %v4636
  %v4674 = vadd.f32 %v4600, %v4637
  %v4675 = vadd.f32 %v4601, %v4638
  %v4676 = vadd.f32 %v4602, %v4639
  %v4677 = vadd.f32 %v4603, %v4640
  %v4678 = vadd.f32 %v4604, %v4641
  %v4679 = vadd.f32 %v4605, %v4642
  %v4680 = vadd.f32 %v4606, %v4643
  %v4681 = vadd.f32 %v4607, %v4644
  %v4682 = vadd.f32 %v4608, %v4645
  %v4683 = vadd.f32 %v4609, %v4646
  %v4684 = vadd.f32 %v4610, %v4647
  %v4685 = vadd.f32 %v4611, %v4648
  %v4686 = vadd.f32 %v4612, %v4649
  %v4687 = vadd.f32 %v4613, %v4650
  %v4688 = vadd.f32 %v4614, %v4651
  %v4689 = vadd.f32 %v4615, %v4652
  %v4690 = vadd.f32 %v4616, %v4653
  %v4691 = vadd.f32 %v4617, %v4654
  %v4692 = vadd.f32 %v4618, %v4655
  %v4693 = vadd.f32 %v4619, %v4656
  %v4694 = vadd.f32 %v4620, %v4657
  %v4695 = vadd.f32 %v4621, %v4658
  %v4696 = vadd.f32 %v4622, %v4659
  %v4697 = vadd.f32 %v4623, %v4660
  %v4698 = vadd.f32 %v4624, %v4661
  %vm4699 = vcmask 254976
  %4700 = vst.msk [vmem:[%s5] sm:$0x3] %vm4699, %v4662
  %4701 = vst.msk [vmem:[%s5 + $0x2] sm:$0x3] %vm4699, %v4663
  %4702 = vst.msk [vmem:[%s5 + $0x4] sm:$0x3] %vm4699, %v4664
  %4703 = vst.msk [vmem:[%s5 + $0x6] sm:$0x3] %vm4699, %v4665
  %4704 = vst.msk [vmem:[%s5 + $0x8] sm:$0x3] %vm4699, %v4666
  %4705 = vst.msk [vmem:[%s5 + $0xa] sm:$0x3] %vm4699, %v4667
  %4706 = vst.msk [vmem:[%s5 + $0xc] sm:$0x3] %vm4699, %v4668
  %4707 = vst.msk [vmem:[%s5 + $0xe] sm:$0x3] %vm4699, %v4669
  %4708 = vst.msk [vmem:[%s5 + $0x10] sm:$0x3] %vm4699, %v4670
  %4709 = vst.msk [vmem:[%s5 + $0x12] sm:$0x3] %vm4699, %v4671
  %4710 = vst.msk [vmem:[%s5 + $0x14] sm:$0x3] %vm4699, %v4672
  %4711 = vst.msk [vmem:[%s5 + $0x16] sm:$0x3] %vm4699, %v4673
  %4712 = vst.msk [vmem:[%s5 + $0x18] sm:$0x3] %vm4699, %v4674
  %4713 = vst.msk [vmem:[%s5 + $0x1a] sm:$0x3] %vm4699, %v4675
  %4714 = vst.msk [vmem:[%s5 + $0x1c] sm:$0x3] %vm4699, %v4676
  %4715 = vst.msk [vmem:[%s5 + $0x1e] sm:$0x3] %vm4699, %v4677
  %4716 = vst.msk [vmem:[%s5 + $0x20] sm:$0x3] %vm4699, %v4678
  %4717 = vst.msk [vmem:[%s5 + $0x22] sm:$0x3] %vm4699, %v4679
  %4718 = vst.msk [vmem:[%s5 + $0x24] sm:$0x3] %vm4699, %v4680
  %4719 = vst.msk [vmem:[%s5 + $0x26] sm:$0x3] %vm4699, %v4681
  %4720 = vst.msk [vmem:[%s5 + $0x28] sm:$0x3] %vm4699, %v4682
  %4721 = vst.msk [vmem:[%s5 + $0x2a] sm:$0x3] %vm4699, %v4683
  %4722 = vst.msk [vmem:[%s5 + $0x2c] sm:$0x3] %vm4699, %v4684
  %4723 = vst.msk [vmem:[%s5 + $0x2e] sm:$0x3] %vm4699, %v4685
  %4724 = vst.msk [vmem:[%s5 + $0x30] sm:$0x3] %vm4699, %v4686
  %4725 = vst.msk [vmem:[%s5 + $0x32] sm:$0x3] %vm4699, %v4687
  %4726 = vst.msk [vmem:[%s5 + $0x34] sm:$0x3] %vm4699, %v4688
  %4727 = vst.msk [vmem:[%s5 + $0x36] sm:$0x3] %vm4699, %v4689
  %4728 = vst.msk [vmem:[%s5 + $0x38] sm:$0x3] %vm4699, %v4690
  %4729 = vst.msk [vmem:[%s5 + $0x3a] sm:$0x3] %vm4699, %v4691
  %4730 = vst.msk [vmem:[%s5 + $0x3c] sm:$0x3] %vm4699, %v4692
  %4731 = vst.msk [vmem:[%s5 + $0x3e] sm:$0x3] %vm4699, %v4693
  %4732 = vst.msk [vmem:[%s5 + $0x40] sm:$0x3] %vm4699, %v4694
  %4733 = vst.msk [vmem:[%s5 + $0x42] sm:$0x3] %vm4699, %v4695
  %4734 = vst.msk [vmem:[%s5 + $0x44] sm:$0x3] %vm4699, %v4696
  %4735 = vst.msk [vmem:[%s5 + $0x46] sm:$0x3] %vm4699, %v4697
  %4736 = vst.msk [vmem:[%s5 + $0x48] sm:$0x3] %vm4699, %v4698
  // Predicated region
  $region22: #{tpu_custom_call.1} parent=0 // pred_check
    _
  $region23: #{tpu_custom_call.1} parent=0 // pred_check_branch
    %4738 = sbr.rel (0) target = $region25
  $region24: #{tpu_custom_call.1} parent=0 // pred_region
    _
  $region25: #{tpu_custom_call.1} parent=0 // pred_fallthru
    _
  // Predicated region
  $region26: #{tpu_custom_call.1} parent=0 // pred_check
    _
  $region27: #{tpu_custom_call.1} parent=0 // pred_check_branch
    %4740 = sbr.rel (0) target = $region29
  $region28: #{tpu_custom_call.1} parent=0 // pred_region
    _
  $region29: #{tpu_custom_call.1} parent=0 // pred_fallthru
    _

</llo_original>
